<compile_context>
chip_gen: v6e
topology: v6e:2x2x1
jax: 0.10.0
libtpu: 0.0.40
codegen_flags: <defaults>
</compile_context>

<pallas_src>
import functools
import math

import jax
import jax.numpy as jnp
from jax.experimental import pallas as pl
from jax.experimental.pallas import tpu as pltpu

MXU_DTYPE = jnp.bfloat16   # MXU operand dtype; accumulation stays f32.


# ------------------------------ cost helper -------------------------------- #

def _cost(flops, operands, out_sds):
    nbytes = sum(int(a.size) * a.dtype.itemsize for a in operands)
    nbytes += math.prod(out_sds.shape) * out_sds.dtype.itemsize
    return pl.CostEstimate(flops=flops, transcendentals=0, bytes_accessed=nbytes)


# ----------------------------- Pallas kernels ------------------------------ #

def _conv_pool_corner_kernel(p_ref, w_ref, b_ref, o_ref, *, lane):
    """conv-GEMM + fused 2x2 maxpool + bias + ReLU, all batches in one GEMM.

    p_ref: (K, n_corners*lane)  im2col patches, pool-corner-major columns (bf16)
    w_ref: (Cout_pad, K)        GEMM-ready conv weight (bf16, zero row padding)
    b_ref: (Cout_pad, 1)        bias column (f32)
    o_ref: (Cout_pad, lane)     relu(max_corners(conv) + b), columns (b, y, x)
    """
    acc = jnp.dot(w_ref[...], p_ref[...], preferred_element_type=jnp.float32)
    n_corners = p_ref.shape[1] // lane
    m = acc[:, 0:lane]
    for c in range(1, n_corners):                 # static unroll (<=3 iters)
        # lane-aligned static slices -> cheap VPU max, no relayout
        m = jnp.maximum(m, acc[:, c * lane:(c + 1) * lane])
    # pool(relu(conv+b)) == relu(max_corners(conv) + b): per-channel bias,
    # monotone ReLU, so bias/ReLU are applied once, in f32.
    o_ref[...] = jnp.maximum(m + b_ref[...], 0.0).astype(o_ref.dtype)


def _conv_relu_kernel(p_ref, w_ref, b_ref, o_ref):
    """conv-GEMM + bias + ReLU, one matmul per batch element.

    p_ref: (B, K, L)   w_ref: (Cout, K)   b_ref: (Cout, 1)   o_ref: (B, Cout, L)
    Output rows are batch-major so the (C,H,W) flatten for fc1 is free.
    """
    for b in range(p_ref.shape[0]):               # static unroll, tiny B
        acc = jnp.dot(w_ref[...], p_ref[b], preferred_element_type=jnp.float32)
        o_ref[b] = jnp.maximum(acc + b_ref[...], 0.0).astype(o_ref.dtype)


def _fc_fused_kernel(x_ref, w1_ref, b1_ref, w2_ref, b2_ref, o_ref):
    """relu(x @ w1 + b1) @ w2 + b2, chunked over 128-wide fc1 output columns.

    Each grid step consumes one (3240,128) slab of w1 (BlockSpec pipelining
    overlaps that DMA with the previous step's matmul); the (B,512)
    intermediate never leaves registers/VMEM.
    """
    @pl.when(pl.program_id(0) == 0)
    def _():
        o_ref[...] = jnp.broadcast_to(b2_ref[...], o_ref.shape).astype(o_ref.dtype)

    h = jnp.dot(x_ref[...], w1_ref[...], preferred_element_type=jnp.float32)
    h = jnp.maximum(h + b1_ref[...], 0.0)                       # (B, 128) f32
    o_ref[...] += jnp.dot(h.astype(w2_ref.dtype), w2_ref[...],
                          preferred_element_type=jnp.float32)


# ------------------------ XLA-side patch construction ----------------------- #
# These run on tiny (<200 KB) arrays and fuse in XLA; they only use strided
# slices / stacks on leading axes (no lane-permuting 7-D transposes).
# TODO(synk): conv1 (Cin=1, K=9, stride 2) could skip im2col entirely with 9
# shifted VPU MACs inside the kernel; kept on the shared GEMM path for now.

def _conv1_pool_patches(x):
    """x: (B,1,96,96) f32 -> (9, 4*B*576) bf16 patches for conv1+pool."""
    B = x.shape[0]
    xp = jnp.pad(x[:, 0].astype(MXU_DTYPE), ((0, 0), (1, 1), (1, 1)))  # (B,98,98)
    corners = []
    for dh in (0, 1):
        for dw in (0, 1):
            taps = []
            for i in range(3):
                for j in range(3):
                    r0, c0 = 2 * dh + i, 2 * dw + j
                    # pooled output (Y,X) reads padded input (4Y+2dh+i, 4X+2dw+j)
                    taps.append(xp[:, r0:r0 + 93:4, c0:c0 + 93:4])     # (B,24,24)
            corners.append(jnp.stack(taps, axis=1))                     # (B,9,24,24)
    p = jnp.stack(corners, axis=1)                                       # (B,4,9,24,24)
    p = p.transpose(2, 1, 0, 3, 4).reshape(9, 4, B, 576)                 # (tap,corner,b,YX)
    return p.reshape(9, 4 * B * 576)


def _conv2_pool_patches(a1, B):
    """a1: (16, B*576) bf16 (cols = b,Y,X) -> (144, 4*B*128) patches (zero-padded 121->128)."""
    a1r = a1.reshape(16, B, 24, 24)                                      # free split
    corners = []
    for dh in (0, 1):
        for dw in (0, 1):
            taps = []
            for i in range(3):
                for j in range(3):
                    r0, c0 = dh + i, dw + j
                    taps.append(a1r[:, :, r0:r0 + 21:2, c0:c0 + 21:2])   # (16,B,11,11)
            corners.append(jnp.stack(taps, axis=1))                       # (16,9,B,11,11)
    p = jnp.stack(corners, axis=2)                                         # (16,9,4,B,11,11)
    p = p.reshape(16, 9, 4, B, 121)
    p = jnp.pad(p, ((0, 0), (0, 0), (0, 0), (0, 0), (0, 7)))               # 121 -> 128 lanes
    return p.reshape(16 * 9, 4 * B * 128)


def _conv3_patches(a2, B):
    """a2: (24, B*128) bf16 (cols = b, padded 11x11) -> (B, 216, 81) patches."""
    a2r = a2.reshape(24, B, 128)[:, :, :121].reshape(24, B, 11, 11)
    taps = []
    for i in range(3):
        for j in range(3):
            taps.append(a2r[:, :, i:i + 9, j:j + 9])                      # (24,B,9,9)
    p = jnp.stack(taps, axis=1)                                            # (24,9,B,9,9)
    p = p.reshape(24, 9, B, 81).reshape(216, B, 81)
    return p.transpose(1, 0, 2)                                            # (B,216,81)


# ------------------------------ stage wrappers ------------------------------ #

def _conv_pool_call(p, w, b, *, cout_pad, lane):
    flops = 2 * cout_pad * p.shape[0] * p.shape[1]
    out_sds = jax.ShapeDtypeStruct((cout_pad, lane), MXU_DTYPE)
    return pl.pallas_call(
        functools.partial(_conv_pool_corner_kernel, lane=lane),
        out_shape=out_sds,
        cost_estimate=_cost(flops, (p, w, b), out_sds),
    )(p, w, b)


def _conv_call(p, w, b, *, cout):
    Bn, K, L = p.shape
    flops = 2 * Bn * cout * K * L
    out_sds = jax.ShapeDtypeStruct((Bn, cout, L), MXU_DTYPE)
    return pl.pallas_call(
        _conv_relu_kernel,
        out_shape=out_sds,
        cost_estimate=_cost(flops, (p, w, b), out_sds),
    )(p, w, b)


def _fc_head(xf, w1p, b1p, w2p, b2p):
    """xf: (B, 3240) bf16 -> relu(xf @ w1p + b1p) @ w2p + b2p, one pipelined call."""
    B, K = xf.shape
    N1 = w1p.shape[1]            # 512 (padded from 500)
    N2 = w2p.shape[1]            # 4
    TN = 128
    flops = 2 * B * K * N1 + 2 * B * N1 * N2
    out_sds = jax.ShapeDtypeStruct((B, N2), jnp.float32)
    # TODO(synk): a cross-pallas_call DMA future (P10) started during conv1
    # would hide the fc1 weight fetch behind the conv stage entirely.
    return pl.pallas_call(
        _fc_fused_kernel,
        out_shape=out_sds,
        grid=(N1 // TN,),
        in_specs=[
            pl.BlockSpec((B, K), lambda j: (0, 0)),      # activations, DMA'd once
            pl.BlockSpec((K, TN), lambda j: (0, j)),     # fc1 weight slab (pipelined)
            pl.BlockSpec((1, TN), lambda j: (0, j)),     # fc1 bias slab
            pl.BlockSpec((TN, N2), lambda j: (j, 0)),    # fc2 weight slab
            pl.BlockSpec((1, N2), lambda j: (0, 0)),     # fc2 bias
        ],
        out_specs=pl.BlockSpec((B, N2), lambda j: (0, 0)),   # resident accumulator
        compiler_params=pltpu.CompilerParams(
            dimension_semantics=("arbitrary",)),
        cost_estimate=_cost(flops, (xf, w1p, b1p, w2p, b2p), out_sds),
    )(xf, w1p, b1p, w2p, b2p)


# ------------------------------- forward pass ------------------------------- #

def forward(params, x):
    B = x.shape[0]
    # conv1 (1->10, k3, s2, p1) + ReLU + 2x2 maxpool   (one fused GEMM kernel)
    p1 = _conv1_pool_patches(x)                               # (9, 4*B*576)
    a1 = _conv_pool_call(p1, params["w1"], params["b1"], cout_pad=16, lane=B * 576)
    # conv2 (10->20, k3) + ReLU + 2x2 maxpool          (one fused GEMM kernel)
    p2 = _conv2_pool_patches(a1, B)                           # (144, 4*B*128)
    a2 = _conv_pool_call(p2, params["w2"], params["b2"], cout_pad=24, lane=B * 128)
    # conv3 (20->40, k3) + ReLU                        (one GEMM kernel)
    p3 = _conv3_patches(a2, B)                                # (B, 216, 81)
    a3 = _conv_call(p3, params["w3"], params["b3"], cout=40)  # (B, 40, 81)
    # flatten in PyTorch (C,H,W) order: free metadata reshape, then fc1+ReLU+fc2
    xf = a3.reshape(B, 40 * 81)                               # (B, 3240) bf16
    return _fc_head(xf, params["wf1"], params["bf1"], params["wf2"], params["bf2"])


# ------------------------------ parameter init ------------------------------ #

def init_params(key):
    """Parameters in PyTorch layouts (same uniform fan-in init as nn.Conv2d/Linear)."""
    ks = jax.random.split(key, 10)

    def u(k, shape, fan_in):
        bound = 1.0 / jnp.sqrt(float(fan_in))
        return jax.random.uniform(k, shape, jnp.float32, -bound, bound)

    return {
        "w1": u(ks[0], (10, 1, 3, 3), 9),     "b1": u(ks[1], (10,), 9),
        "w2": u(ks[2], (20, 10, 3, 3), 90),   "b2": u(ks[3], (20,), 90),
        "w3": u(ks[4], (40, 20, 3, 3), 180),  "b3": u(ks[5], (40,), 180),
        "wf1": u(ks[6], (500, 3240), 3240),   "bf1": u(ks[7], (500,), 3240),
        "wf2": u(ks[8], (4, 500), 500),       "bf2": u(ks[9], (4,), 500),
    }


def pack_params(p):
    """One-time repack into padded, GEMM-ready layouts/dtypes (outside the hot path).

    Out-channels padded 10->16, 20->24 (zero rows); in-channel padding matched
    by zero weight columns; fc1 out-features padded 500->512 (zero cols/rows).
    """
    # conv1: (10,1,3,3) -> (16, 9)
    w1 = jnp.pad(p["w1"].reshape(10, 9), ((0, 6), (0, 0)))
    b1 = jnp.pad(p["b1"], (0, 6))
    # conv2: (20,10,3,3) -> in-channels 10->16 -> (24, 144)
    w2 = jnp.zeros((20, 16, 3, 3), jnp.float32).at[:, :10].set(p["w2"])
    w2 = jnp.pad(w2.reshape(20, 144), ((0, 4), (0, 0)))
    b2 = jnp.pad(p["b2"], (0, 4))
    # conv3: (40,20,3,3) -> in-channels 20->24 -> (40, 216)
    w3 = jnp.zeros((40, 24, 3, 3), jnp.float32).at[:, :20].set(p["w3"])
    w3 = w3.reshape(40, 216)
    b3 = p["b3"]
    # fc1: (500,3240) -> (3240,512);  fc2: (4,500) -> (512,4)
    wf1 = jnp.pad(p["wf1"].T, ((0, 0), (0, 12)))
    bf1 = jnp.pad(p["bf1"], (0, 12))
    wf2 = jnp.pad(p["wf2"].T, ((0, 12), (0, 0)))
    bf2 = p["bf2"]

    return {
        "w1": w1.astype(MXU_DTYPE), "b1": b1.reshape(-1, 1).astype(jnp.float32),
        "w2": w2.astype(MXU_DTYPE), "b2": b2.reshape(-1, 1).astype(jnp.float32),
        "w3": w3.astype(MXU_DTYPE), "b3": b3.reshape(-1, 1).astype(jnp.float32),
        "wf1": wf1.astype(MXU_DTYPE), "bf1": bf1.reshape(1, -1).astype(jnp.float32),
        "wf2": wf2.astype(MXU_DTYPE), "bf2": bf2.reshape(1, -1).astype(jnp.float32),
    }


if __name__ == "__main__":
    key = jax.random.PRNGKey(0)
    pkey, xkey = jax.random.split(key)
    params = pack_params(init_params(pkey))
    # NCHW input; 96x96 is the spatial size implied by fc1 in-features = 3240.
    x = jax.random.normal(xkey, (2, 1, 96, 96), jnp.float32)
    out = jax.block_until_ready(jax.jit(forward)(params, x))
    assert out.shape == (2, 4), out.shape
    assert out.dtype == jnp.float32
    print("KERNEL_OK")
</pallas_src>

<mosaic_0001>
module attributes {stable_mosaic.version = 11 : i64} {
  func.func @_conv_pool_corner_kernel(%arg0: memref<9x4608xbf16, #tpu.memory_space<vmem>>, %arg1: memref<16x9xbf16, #tpu.memory_space<vmem>>, %arg2: memref<16x1xf32, #tpu.memory_space<vmem>>, %arg3: memref<16x1152xbf16, #tpu.memory_space<vmem>>) attributes {dimension_semantics = [], scalar_prefetch = 0 : i64, scratch_operands = 0 : i64, tpu.core_type = #tpu.core_type<tc>} {
    %c0 = arith.constant 0 : index
    %c0_0 = arith.constant 0 : index
    %0 = vector.load %arg1[%c0, %c0_0] : memref<16x9xbf16, #tpu.memory_space<vmem>>, vector<16x9xbf16>
    %c0_1 = arith.constant 0 : index
    %c0_2 = arith.constant 0 : index
    %1 = vector.load %arg0[%c0_1, %c0_2] : memref<9x4608xbf16, #tpu.memory_space<vmem>>, vector<9x4608xbf16>
    %cst = arith.constant dense<0.000000e+00> : vector<16x4608xf32>
    %2 = tpu.matmul %0, %1, %cst {dimension_numbers = #tpu.dot_dimension_numbers<[1], [0], [0], [1], [0, 0, 1, 1], [], []>} : vector<16x9xbf16>, vector<9x4608xbf16>, vector<16x4608xf32> -> vector<16x4608xf32>
    %3 = vector.extract_strided_slice %2 {offsets = [0, 0], sizes = [16, 1152], strides = [1, 1]} : vector<16x4608xf32> to vector<16x1152xf32>
    %4 = vector.extract_strided_slice %2 {offsets = [0, 1152], sizes = [16, 1152], strides = [1, 1]} : vector<16x4608xf32> to vector<16x1152xf32>
    %5 = arith.maximumf %3, %4 : vector<16x1152xf32>
    %6 = vector.extract_strided_slice %2 {offsets = [0, 2304], sizes = [16, 1152], strides = [1, 1]} : vector<16x4608xf32> to vector<16x1152xf32>
    %7 = arith.maximumf %5, %6 : vector<16x1152xf32>
    %8 = vector.extract_strided_slice %2 {offsets = [0, 3456], sizes = [16, 1152], strides = [1, 1]} : vector<16x4608xf32> to vector<16x1152xf32>
    %9 = arith.maximumf %7, %8 : vector<16x1152xf32>
    %c0_3 = arith.constant 0 : index
    %c0_4 = arith.constant 0 : index
    %10 = vector.load %arg2[%c0_3, %c0_4] : memref<16x1xf32, #tpu.memory_space<vmem>>, vector<16x1xf32>
    %11 = vector.broadcast %10 : vector<16x1xf32> to vector<16x1152xf32>
    %12 = arith.addf %9, %11 : vector<16x1152xf32>
    %cst_5 = arith.constant 0.000000e+00 : f32
    %13 = vector.broadcast %cst_5 : f32 to vector<16x1152xf32>
    %14 = arith.maximumf %12, %13 : vector<16x1152xf32>
    %15 = arith.truncf %14 : vector<16x1152xf32> to vector<16x1152xbf16>
    %c0_6 = arith.constant 0 : index
    %c0_7 = arith.constant 0 : index
    %16 = vector.load %arg3[%c0_6, %c0_7] : memref<16x1152xbf16, #tpu.memory_space<vmem>>, vector<16x1152xbf16>
    tpu.vector_store %arg3[%c0_6, %c0_7], %15 {strides = array<i32>} : memref<16x1152xbf16, #tpu.memory_space<vmem>>, vector<16x1152xbf16>,
    return
  }
}

module attributes {stable_mosaic.version = 11 : i64} {
  func.func @_conv_pool_corner_kernel(%arg0: memref<144x1024xbf16, #tpu.memory_space<vmem>>, %arg1: memref<24x144xbf16, #tpu.memory_space<vmem>>, %arg2: memref<24x1xf32, #tpu.memory_space<vmem>>, %arg3: memref<24x256xbf16, #tpu.memory_space<vmem>>) attributes {dimension_semantics = [], scalar_prefetch = 0 : i64, scratch_operands = 0 : i64, tpu.core_type = #tpu.core_type<tc>} {
    %c0 = arith.constant 0 : index
    %c0_0 = arith.constant 0 : index
    %0 = vector.load %arg1[%c0, %c0_0] : memref<24x144xbf16, #tpu.memory_space<vmem>>, vector<24x144xbf16>
    %c0_1 = arith.constant 0 : index
    %c0_2 = arith.constant 0 : index
    %1 = vector.load %arg0[%c0_1, %c0_2] : memref<144x1024xbf16, #tpu.memory_space<vmem>>, vector<144x1024xbf16>
    %cst = arith.constant dense<0.000000e+00> : vector<24x1024xf32>
    %2 = tpu.matmul %0, %1, %cst {dimension_numbers = #tpu.dot_dimension_numbers<[1], [0], [0], [1], [0, 0, 1, 1], [], []>} : vector<24x144xbf16>, vector<144x1024xbf16>, vector<24x1024xf32> -> vector<24x1024xf32>
    %3 = vector.extract_strided_slice %2 {offsets = [0, 0], sizes = [24, 256], strides = [1, 1]} : vector<24x1024xf32> to vector<24x256xf32>
    %4 = vector.extract_strided_slice %2 {offsets = [0, 256], sizes = [24, 256], strides = [1, 1]} : vector<24x1024xf32> to vector<24x256xf32>
    %5 = arith.maximumf %3, %4 : vector<24x256xf32>
    %6 = vector.extract_strided_slice %2 {offsets = [0, 512], sizes = [24, 256], strides = [1, 1]} : vector<24x1024xf32> to vector<24x256xf32>
    %7 = arith.maximumf %5, %6 : vector<24x256xf32>
    %8 = vector.extract_strided_slice %2 {offsets = [0, 768], sizes = [24, 256], strides = [1, 1]} : vector<24x1024xf32> to vector<24x256xf32>
    %9 = arith.maximumf %7, %8 : vector<24x256xf32>
    %c0_3 = arith.constant 0 : index
    %c0_4 = arith.constant 0 : index
    %10 = vector.load %arg2[%c0_3, %c0_4] : memref<24x1xf32, #tpu.memory_space<vmem>>, vector<24x1xf32>
    %11 = vector.broadcast %10 : vector<24x1xf32> to vector<24x256xf32>
    %12 = arith.addf %9, %11 : vector<24x256xf32>
    %cst_5 = arith.constant 0.000000e+00 : f32
    %13 = vector.broadcast %cst_5 : f32 to vector<24x256xf32>
    %14 = arith.maximumf %12, %13 : vector<24x256xf32>
    %15 = arith.truncf %14 : vector<24x256xf32> to vector<24x256xbf16>
    %c0_6 = arith.constant 0 : index
    %c0_7 = arith.constant 0 : index
    %16 = vector.load %arg3[%c0_6, %c0_7] : memref<24x256xbf16, #tpu.memory_space<vmem>>, vector<24x256xbf16>
    tpu.vector_store %arg3[%c0_6, %c0_7], %15 {strides = array<i32>} : memref<24x256xbf16, #tpu.memory_space<vmem>>, vector<24x256xbf16>,
    return
  }
}

module attributes {stable_mosaic.version = 11 : i64} {
  func.func @_conv_relu_kernel(%arg0: memref<2x216x81xbf16, #tpu.memory_space<vmem>>, %arg1: memref<40x216xbf16, #tpu.memory_space<vmem>>, %arg2: memref<40x1xf32, #tpu.memory_space<vmem>>, %arg3: memref<2x40x81xbf16, #tpu.memory_space<vmem>>) attributes {dimension_semantics = [], scalar_prefetch = 0 : i64, scratch_operands = 0 : i64, tpu.core_type = #tpu.core_type<tc>} {
    %c0 = arith.constant 0 : index
    %c0_0 = arith.constant 0 : index
    %0 = vector.load %arg1[%c0, %c0_0] : memref<40x216xbf16, #tpu.memory_space<vmem>>, vector<40x216xbf16>
    %c0_1 = arith.constant 0 : index
    %c0_2 = arith.constant 0 : index
    %c0_3 = arith.constant 0 : index
    %1 = vector.load %arg0[%c0_1, %c0_2, %c0_3] : memref<2x216x81xbf16, #tpu.memory_space<vmem>>, vector<1x216x81xbf16>
    %2 = vector.shape_cast %1 : vector<1x216x81xbf16> to vector<216x81xbf16>
    %cst = arith.constant dense<0.000000e+00> : vector<40x81xf32>
    %3 = tpu.matmul %0, %2, %cst {dimension_numbers = #tpu.dot_dimension_numbers<[1], [0], [0], [1], [0, 0, 1, 1], [], []>} : vector<40x216xbf16>, vector<216x81xbf16>, vector<40x81xf32> -> vector<40x81xf32>
    %c0_4 = arith.constant 0 : index
    %c0_5 = arith.constant 0 : index
    %4 = vector.load %arg2[%c0_4, %c0_5] : memref<40x1xf32, #tpu.memory_space<vmem>>, vector<40x1xf32>
    %5 = vector.broadcast %4 : vector<40x1xf32> to vector<40x81xf32>
    %6 = arith.addf %3, %5 : vector<40x81xf32>
    %cst_6 = arith.constant 0.000000e+00 : f32
    %7 = vector.broadcast %cst_6 : f32 to vector<40x81xf32>
    %8 = arith.maximumf %6, %7 : vector<40x81xf32>
    %9 = arith.truncf %8 : vector<40x81xf32> to vector<40x81xbf16>
    %c0_7 = arith.constant 0 : index
    %c0_8 = arith.constant 0 : index
    %c0_9 = arith.constant 0 : index
    %10 = vector.load %arg3[%c0_7, %c0_8, %c0_9] : memref<2x40x81xbf16, #tpu.memory_space<vmem>>, vector<1x40x81xbf16>
    %11 = vector.shape_cast %10 : vector<1x40x81xbf16> to vector<40x81xbf16>
    %12 = vector.shape_cast %9 : vector<40x81xbf16> to vector<1x40x81xbf16>
    tpu.vector_store %arg3[%c0_7, %c0_8, %c0_9], %12 {strides = array<i32>} : memref<2x40x81xbf16, #tpu.memory_space<vmem>>, vector<1x40x81xbf16>,
    %c0_10 = arith.constant 0 : index
    %c0_11 = arith.constant 0 : index
    %13 = vector.load %arg1[%c0_10, %c0_11] : memref<40x216xbf16, #tpu.memory_space<vmem>>, vector<40x216xbf16>
    %c1 = arith.constant 1 : index
    %c0_12 = arith.constant 0 : index
    %c0_13 = arith.constant 0 : index
    %14 = vector.load %arg0[%c1, %c0_12, %c0_13] : memref<2x216x81xbf16, #tpu.memory_space<vmem>>, vector<1x216x81xbf16>
    %15 = vector.shape_cast %14 : vector<1x216x81xbf16> to vector<216x81xbf16>
    %cst_14 = arith.constant dense<0.000000e+00> : vector<40x81xf32>
    %16 = tpu.matmul %13, %15, %cst_14 {dimension_numbers = #tpu.dot_dimension_numbers<[1], [0], [0], [1], [0, 0, 1, 1], [], []>} : vector<40x216xbf16>, vector<216x81xbf16>, vector<40x81xf32> -> vector<40x81xf32>
    %c0_15 = arith.constant 0 : index
    %c0_16 = arith.constant 0 : index
    %17 = vector.load %arg2[%c0_15, %c0_16] : memref<40x1xf32, #tpu.memory_space<vmem>>, vector<40x1xf32>
    %18 = vector.broadcast %17 : vector<40x1xf32> to vector<40x81xf32>
    %19 = arith.addf %16, %18 : vector<40x81xf32>
    %cst_17 = arith.constant 0.000000e+00 : f32
    %20 = vector.broadcast %cst_17 : f32 to vector<40x81xf32>
    %21 = arith.maximumf %19, %20 : vector<40x81xf32>
    %22 = arith.truncf %21 : vector<40x81xf32> to vector<40x81xbf16>
    %c1_18 = arith.constant 1 : index
    %c0_19 = arith.constant 0 : index
    %c0_20 = arith.constant 0 : index
    %23 = vector.load %arg3[%c1_18, %c0_19, %c0_20] : memref<2x40x81xbf16, #tpu.memory_space<vmem>>, vector<1x40x81xbf16>
    %24 = vector.shape_cast %23 : vector<1x40x81xbf16> to vector<40x81xbf16>
    %25 = vector.shape_cast %22 : vector<40x81xbf16> to vector<1x40x81xbf16>
    tpu.vector_store %arg3[%c1_18, %c0_19, %c0_20], %25 {strides = array<i32>} : memref<2x40x81xbf16, #tpu.memory_space<vmem>>, vector<1x40x81xbf16>,
    return
  }
}

module attributes {stable_mosaic.version = 11 : i64} {
  func.func @_fc_fused_kernel(%arg0: i32, %arg1: memref<2x3240xbf16, #tpu.memory_space<vmem>>, %arg2: memref<3240x128xbf16, #tpu.memory_space<vmem>>, %arg3: memref<1x128xf32, #tpu.memory_space<vmem>>, %arg4: memref<128x4xbf16, #tpu.memory_space<vmem>>, %arg5: memref<1x4xf32, #tpu.memory_space<vmem>>, %arg6: memref<2x4xf32, #tpu.memory_space<vmem>>) attributes {dimension_semantics = [#tpu.dimension_semantics<arbitrary>], iteration_bounds = array<i64: 4>, scalar_prefetch = 0 : i64, scratch_operands = 0 : i64, tpu.core_type = #tpu.core_type<tc>, window_params = [{pipeline_mode = #tpu.pipeline_mode<synchronous>, transform_indices = @transform_0, window_bounds = array<i64: 2, 3240>}, {transform_indices = @transform_1, window_bounds = array<i64: 3240, 128>}, {transform_indices = @transform_2, window_bounds = array<i64: 1, 128>}, {transform_indices = @transform_3, window_bounds = array<i64: 128, 4>}, {pipeline_mode = #tpu.pipeline_mode<synchronous>, transform_indices = @transform_4, window_bounds = array<i64: 1, 4>}, {pipeline_mode = #tpu.pipeline_mode<synchronous>, transform_indices = @transform_5, window_bounds = array<i64: 2, 4>}]} {
    %c0_i32 = arith.constant 0 : i32
    %0 = arith.cmpi eq, %arg0, %c0_i32 : i32
    %1 = arith.extui %0 : i1 to i32
    %c0_i32_0 = arith.constant 0 : i32
    %2 = arith.cmpi ne, %1, %c0_i32_0 : i32
    scf.if %2 {
      %c0_14 = arith.constant 0 : index
      %c0_15 = arith.constant 0 : index
      %17 = vector.load %arg5[%c0_14, %c0_15] : memref<1x4xf32, #tpu.memory_space<vmem>>, vector<1x4xf32>
      %18 = vector.shape_cast %17 : vector<1x4xf32> to vector<1x4xf32>
      %19 = vector.broadcast %18 : vector<1x4xf32> to vector<2x4xf32>
      %c0_16 = arith.constant 0 : index
      %c0_17 = arith.constant 0 : index
      %20 = vector.load %arg6[%c0_16, %c0_17] : memref<2x4xf32, #tpu.memory_space<vmem>>, vector<2x4xf32>
      tpu.vector_store %arg6[%c0_16, %c0_17], %19 {strides = array<i32>} : memref<2x4xf32, #tpu.memory_space<vmem>>, vector<2x4xf32>,
    } else {
    }
    %c0 = arith.constant 0 : index
    %c0_1 = arith.constant 0 : index
    %3 = vector.load %arg1[%c0, %c0_1] : memref<2x3240xbf16, #tpu.memory_space<vmem>>, vector<2x3240xbf16>
    %c0_2 = arith.constant 0 : index
    %c0_3 = arith.constant 0 : index
    %4 = vector.load %arg2[%c0_2, %c0_3] : memref<3240x128xbf16, #tpu.memory_space<vmem>>, vector<3240x128xbf16>
    %cst = arith.constant dense<0.000000e+00> : vector<2x128xf32>
    %5 = tpu.matmul %3, %4, %cst {dimension_numbers = #tpu.dot_dimension_numbers<[1], [0], [0], [1], [0, 0, 1, 1], [], []>} : vector<2x3240xbf16>, vector<3240x128xbf16>, vector<2x128xf32> -> vector<2x128xf32>
    %c0_4 = arith.constant 0 : index
    %c0_5 = arith.constant 0 : index
    %6 = vector.load %arg3[%c0_4, %c0_5] : memref<1x128xf32, #tpu.memory_space<vmem>>, vector<1x128xf32>
    %7 = vector.broadcast %6 : vector<1x128xf32> to vector<2x128xf32>
    %8 = arith.addf %5, %7 : vector<2x128xf32>
    %cst_6 = arith.constant 0.000000e+00 : f32
    %9 = vector.broadcast %cst_6 : f32 to vector<2x128xf32>
    %10 = arith.maximumf %8, %9 : vector<2x128xf32>
    %c0_7 = arith.constant 0 : index
    %c0_8 = arith.constant 0 : index
    %11 = vector.load %arg6[%c0_7, %c0_8] : memref<2x4xf32, #tpu.memory_space<vmem>>, vector<2x4xf32>
    %12 = arith.truncf %10 : vector<2x128xf32> to vector<2x128xbf16>
    %c0_9 = arith.constant 0 : index
    %c0_10 = arith.constant 0 : index
    %13 = vector.load %arg4[%c0_9, %c0_10] : memref<128x4xbf16, #tpu.memory_space<vmem>>, vector<128x4xbf16>
    %cst_11 = arith.constant dense<0.000000e+00> : vector<2x4xf32>
    %14 = tpu.matmul %12, %13, %cst_11 {dimension_numbers = #tpu.dot_dimension_numbers<[1], [0], [0], [1], [0, 0, 1, 1], [], []>} : vector<2x128xbf16>, vector<128x4xbf16>, vector<2x4xf32> -> vector<2x4xf32>
    %15 = arith.addf %11, %14 : vector<2x4xf32>
    %c0_12 = arith.constant 0 : index
    %c0_13 = arith.constant 0 : index
    %16 = vector.load %arg6[%c0_12, %c0_13] : memref<2x4xf32, #tpu.memory_space<vmem>>, vector<2x4xf32>
    tpu.vector_store %arg6[%c0_12, %c0_13], %15 {strides = array<i32>} : memref<2x4xf32, #tpu.memory_space<vmem>>, vector<2x4xf32>,
    return
  }
  func.func @transform_0(%arg0: i32) -> (i32, i32) {
    %c0_i32 = arith.constant 0 : i32
    %c0_i32_0 = arith.constant 0 : i32
    %c0_i32_1 = arith.constant 0 : i32
    return %c0_i32, %c0_i32_0 : i32, i32
  }
  func.func @transform_1(%arg0: i32) -> (i32, i32) {
    %c0_i32 = arith.constant 0 : i32
    %c0_i32_0 = arith.constant 0 : i32
    return %c0_i32, %arg0 : i32, i32
  }
  func.func @transform_2(%arg0: i32) -> (i32, i32) {
    %c0_i32 = arith.constant 0 : i32
    %c0_i32_0 = arith.constant 0 : i32
    return %c0_i32, %arg0 : i32, i32
  }
  func.func @transform_3(%arg0: i32) -> (i32, i32) {
    %c0_i32 = arith.constant 0 : i32
    %c0_i32_0 = arith.constant 0 : i32
    return %arg0, %c0_i32 : i32, i32
  }
  func.func @transform_4(%arg0: i32) -> (i32, i32) {
    %c0_i32 = arith.constant 0 : i32
    %c0_i32_0 = arith.constant 0 : i32
    %c0_i32_1 = arith.constant 0 : i32
    return %c0_i32, %c0_i32_0 : i32, i32
  }
  func.func @transform_5(%arg0: i32) -> (i32, i32) {
    %c0_i32 = arith.constant 0 : i32
    %c0_i32_0 = arith.constant 0 : i32
    %c0_i32_1 = arith.constant 0 : i32
    return %c0_i32, %c0_i32_0 : i32, i32
  }
}

</mosaic_0001>

<llo_original>
// kernel: forward.4
$region0: #{forward.4}
  #allocation0 [shape = 'u32[]', space=smem, size = 0x4, offset = 0x4, fixed_abs, tag = 'smem constant byte address 0x4 - core index']
  #allocation1 [shape = 'u32[144,128]{1,0:T(1,128)}', space=vmem, size = 0x12000, scoped, tag = 'internal scratch']
  %s0 = inlined_call_operand.vmem [shape: bf16[9,4608], index: 0, kind: input, shape index: {}]
  %s1 = inlined_call_operand.vmem [shape: bf16[16,9], index: 1, kind: input, shape index: {}]
  %s2 = inlined_call_operand.vmem [shape: f32[16,1], index: 2, kind: input, shape index: {}]
  %s3 = inlined_call_operand.vmem [shape: bf16[16,1152], index: 3, kind: output, shape index: {}]
  %s4 = sld [smem:[#allocation0]]
  $region22: #{forward.4} parent=0
    _
  %s6 = ssub.s32 1, %s4
  %s7 = scalar_select 0, %s6, %s4
  // Predicated region
  $region2: #{forward.4} parent=0 // pred_check
    _
  $region3: #{forward.4} parent=0 // pred_check_branch
    %9 = sbr.rel (0) target = $region5
  $region4: #{forward.4} parent=0 // pred_region
    _
  $region5: #{forward.4} parent=0 // pred_fallthru
    _
  // Predicated region
  $region6: #{forward.4} parent=0 // pred_check
    _
  $region7: #{forward.4} parent=0 // pred_check_branch
    %11 = sbr.rel (0) target = $region9
  $region8: #{forward.4} parent=0 // pred_region
    _
  $region9: #{forward.4} parent=0 // pred_fallthru
    _
  // Predicated region
  $region10: #{forward.4} parent=0 // pred_check
    _
  $region11: #{forward.4} parent=0 // pred_check_branch
    %13 = sbr.rel (0) target = $region13
  $region12: #{forward.4} parent=0 // pred_region
    _
  $region13: #{forward.4} parent=0 // pred_fallthru
    _
  %v15 = vld [vmem:[%s1] sm:$0xf]
  %v16 = vld [vmem:[%s1 + $0x4] sm:$0xf]
  %v17 = vld [vmem:[%s0] sm:$0xff]
  %v18 = vld [vmem:[%s0 + $0x8] sm:$0xff]
  %v19 = vld [vmem:[%s0 + $0x10] sm:$0xff]
  %v20 = vld [vmem:[%s0 + $0x18] sm:$0xff]
  %v21 = vld [vmem:[%s0 + $0x20] sm:$0xff]
  %v22 = vld [vmem:[%s0 + $0x28] sm:$0xff]
  %v23 = vld [vmem:[%s0 + $0x30] sm:$0xff]
  %v24 = vld [vmem:[%s0 + $0x38] sm:$0xff]
  %v25 = vld [vmem:[%s0 + $0x40] sm:$0xff]
  %v26 = vld [vmem:[%s0 + $0x48] sm:$0xff]
  %v27 = vld [vmem:[%s0 + $0x50] sm:$0xff]
  %v28 = vld [vmem:[%s0 + $0x58] sm:$0xff]
  %v29 = vld [vmem:[%s0 + $0x60] sm:$0xff]
  %v30 = vld [vmem:[%s0 + $0x68] sm:$0xff]
  %v31 = vld [vmem:[%s0 + $0x70] sm:$0xff]
  %v32 = vld [vmem:[%s0 + $0x78] sm:$0xff]
  %v33 = vld [vmem:[%s0 + $0x80] sm:$0xff]
  %v34 = vld [vmem:[%s0 + $0x88] sm:$0xff]
  %v35 = vld [vmem:[%s0 + $0x90] sm:$0x11]
  %v36 = vld [vmem:[%s0 + $0x98] sm:$0x11]
  %v37 = vld [vmem:[%s0 + $0xa0] sm:$0x11]
  %v38 = vld [vmem:[%s0 + $0xa8] sm:$0x11]
  %v39 = vld [vmem:[%s0 + $0xb0] sm:$0x11]
  %v40 = vld [vmem:[%s0 + $0xb8] sm:$0x11]
  %v41 = vld [vmem:[%s0 + $0xc0] sm:$0x11]
  %v42 = vld [vmem:[%s0 + $0xc8] sm:$0x11]
  %v43 = vld [vmem:[%s0 + $0xd0] sm:$0x11]
  %v44 = vld [vmem:[%s0 + $0xd8] sm:$0x11]
  %v45 = vld [vmem:[%s0 + $0xe0] sm:$0x11]
  %v46 = vld [vmem:[%s0 + $0xe8] sm:$0x11]
  %v47 = vld [vmem:[%s0 + $0xf0] sm:$0x11]
  %v48 = vld [vmem:[%s0 + $0xf8] sm:$0x11]
  %v49 = vld [vmem:[%s0 + $0x100] sm:$0x11]
  %v50 = vld [vmem:[%s0 + $0x108] sm:$0x11]
  %v51 = vld [vmem:[%s0 + $0x110] sm:$0x11]
  %v52 = vld [vmem:[%s0 + $0x118] sm:$0x11]
  %v55 = vunpack.c.l.b16 %v15
  %v56 = vunpack.c.l.b16 %v16
  %v57 = vpack.c.b16 %v56, %v55
  %v94 = vunpack.c.l.b16 %v17
  %v95 = vunpack.c.h.b16 %v17
  %v96 = vunpack.c.l.b16 %v18
  %v97 = vunpack.c.h.b16 %v18
  %v98 = vunpack.c.l.b16 %v19
  %v99 = vunpack.c.h.b16 %v19
  %v100 = vunpack.c.l.b16 %v20
  %v101 = vunpack.c.h.b16 %v20
  %v102 = vunpack.c.l.b16 %v21
  %v103 = vunpack.c.h.b16 %v21
  %v104 = vunpack.c.l.b16 %v22
  %v105 = vunpack.c.h.b16 %v22
  %v106 = vunpack.c.l.b16 %v23
  %v107 = vunpack.c.h.b16 %v23
  %v108 = vunpack.c.l.b16 %v24
  %v109 = vunpack.c.h.b16 %v24
  %v110 = vunpack.c.l.b16 %v25
  %v111 = vunpack.c.h.b16 %v25
  %v112 = vunpack.c.l.b16 %v26
  %v113 = vunpack.c.h.b16 %v26
  %v114 = vunpack.c.l.b16 %v27
  %v115 = vunpack.c.h.b16 %v27
  %v116 = vunpack.c.l.b16 %v28
  %v117 = vunpack.c.h.b16 %v28
  %v118 = vunpack.c.l.b16 %v29
  %v119 = vunpack.c.h.b16 %v29
  %v120 = vunpack.c.l.b16 %v30
  %v121 = vunpack.c.h.b16 %v30
  %v122 = vunpack.c.l.b16 %v31
  %v123 = vunpack.c.h.b16 %v31
  %v124 = vunpack.c.l.b16 %v32
  %v125 = vunpack.c.h.b16 %v32
  %v126 = vunpack.c.l.b16 %v33
  %v127 = vunpack.c.h.b16 %v33
  %v128 = vunpack.c.l.b16 %v34
  %v129 = vunpack.c.h.b16 %v34
  %v130 = vunpack.c.l.b16 %v35
  %v131 = vunpack.c.h.b16 %v35
  %v132 = vunpack.c.l.b16 %v36
  %v133 = vunpack.c.h.b16 %v36
  %v134 = vunpack.c.l.b16 %v37
  %v135 = vunpack.c.h.b16 %v37
  %v136 = vunpack.c.l.b16 %v38
  %v137 = vunpack.c.h.b16 %v38
  %v138 = vunpack.c.l.b16 %v39
  %v139 = vunpack.c.h.b16 %v39
  %v140 = vunpack.c.l.b16 %v40
  %v141 = vunpack.c.h.b16 %v40
  %v142 = vunpack.c.l.b16 %v41
  %v143 = vunpack.c.h.b16 %v41
  %v144 = vunpack.c.l.b16 %v42
  %v145 = vunpack.c.h.b16 %v42
  %v146 = vunpack.c.l.b16 %v43
  %v147 = vunpack.c.h.b16 %v43
  %v148 = vunpack.c.l.b16 %v44
  %v149 = vunpack.c.h.b16 %v44
  %v150 = vunpack.c.l.b16 %v45
  %v151 = vunpack.c.h.b16 %v45
  %v152 = vunpack.c.l.b16 %v46
  %v153 = vunpack.c.h.b16 %v46
  %v154 = vunpack.c.l.b16 %v47
  %v155 = vunpack.c.h.b16 %v47
  %v156 = vunpack.c.l.b16 %v48
  %v157 = vunpack.c.h.b16 %v48
  %v158 = vunpack.c.l.b16 %v49
  %v159 = vunpack.c.h.b16 %v49
  %v160 = vunpack.c.l.b16 %v50
  %v161 = vunpack.c.h.b16 %v50
  %v162 = vunpack.c.l.b16 %v51
  %v163 = vunpack.c.h.b16 %v51
  %v164 = vunpack.c.l.b16 %v52
  %v165 = vunpack.c.h.b16 %v52
  %v166 = vpack.c.b16 %v130, %v94
  %v167 = vpack.c.b16 %v131, %v95
  %v168 = vpack.c.b16 %v132, %v96
  %v169 = vpack.c.b16 %v133, %v97
  %v170 = vpack.c.b16 %v134, %v98
  %v171 = vpack.c.b16 %v135, %v99
  %v172 = vpack.c.b16 %v136, %v100
  %v173 = vpack.c.b16 %v137, %v101
  %v174 = vpack.c.b16 %v138, %v102
  %v175 = vpack.c.b16 %v139, %v103
  %v176 = vpack.c.b16 %v140, %v104
  %v177 = vpack.c.b16 %v141, %v105
  %v178 = vpack.c.b16 %v142, %v106
  %v179 = vpack.c.b16 %v143, %v107
  %v180 = vpack.c.b16 %v144, %v108
  %v181 = vpack.c.b16 %v145, %v109
  %v182 = vpack.c.b16 %v146, %v110
  %v183 = vpack.c.b16 %v147, %v111
  %v184 = vpack.c.b16 %v148, %v112
  %v185 = vpack.c.b16 %v149, %v113
  %v186 = vpack.c.b16 %v150, %v114
  %v187 = vpack.c.b16 %v151, %v115
  %v188 = vpack.c.b16 %v152, %v116
  %v189 = vpack.c.b16 %v153, %v117
  %v190 = vpack.c.b16 %v154, %v118
  %v191 = vpack.c.b16 %v155, %v119
  %v192 = vpack.c.b16 %v156, %v120
  %v193 = vpack.c.b16 %v157, %v121
  %v194 = vpack.c.b16 %v158, %v122
  %v195 = vpack.c.b16 %v159, %v123
  %v196 = vpack.c.b16 %v160, %v124
  %v197 = vpack.c.b16 %v161, %v125
  %v198 = vpack.c.b16 %v162, %v126
  %v199 = vpack.c.b16 %v163, %v127
  %v200 = vpack.c.b16 %v164, %v128
  %v201 = vpack.c.b16 %v165, %v129
  %vm202 = vcmask 72704
  %v204 = vsel %vm202, %v57, 0
  %vm206 = vcmask 1043456
  %vm207 = vcmask 1044480
  %v208 = vsel %vm206, 4294967295, 65535
  %v209 = vsel %vm207, %v208, 0
  %v211 = vand.u32 %v166, %v209
  %v214 = vand.u32 %v167, %v209
  %v217 = vand.u32 %v168, %v209
  %v220 = vand.u32 %v169, %v209
  %v223 = vand.u32 %v170, %v209
  %v226 = vand.u32 %v171, %v209
  %v229 = vand.u32 %v172, %v209
  %v232 = vand.u32 %v173, %v209
  %v235 = vand.u32 %v174, %v209
  %v238 = vand.u32 %v175, %v209
  %v241 = vand.u32 %v176, %v209
  %v244 = vand.u32 %v177, %v209
  %v247 = vand.u32 %v178, %v209
  %v250 = vand.u32 %v179, %v209
  %v253 = vand.u32 %v180, %v209
  %v256 = vand.u32 %v181, %v209
  %v259 = vand.u32 %v182, %v209
  %v262 = vand.u32 %v183, %v209
  %v265 = vand.u32 %v184, %v209
  %v268 = vand.u32 %v185, %v209
  %v271 = vand.u32 %v186, %v209
  %v274 = vand.u32 %v187, %v209
  %v277 = vand.u32 %v188, %v209
  %v280 = vand.u32 %v189, %v209
  %v283 = vand.u32 %v190, %v209
  %v286 = vand.u32 %v191, %v209
  %v289 = vand.u32 %v192, %v209
  %v292 = vand.u32 %v193, %v209
  %v295 = vand.u32 %v194, %v209
  %v298 = vand.u32 %v195, %v209
  %v301 = vand.u32 %v196, %v209
  %v304 = vand.u32 %v197, %v209
  %v307 = vand.u32 %v198, %v209
  %v310 = vand.u32 %v199, %v209
  %v313 = vand.u32 %v200, %v209
  %v316 = vand.u32 %v201, %v209
  %318 = vmatprep.subr.bf16.mxu0 0
  %319 = vmatpush1.bf16.msra.mxu0 0
  %320 = vmatprep.subr.bf16.mxu0 0
  %321 = vmatpush1.bf16.msra.mxu0 0
  %322 = vmatprep.subr.bf16.mxu0 0
  %323 = vmatpush1.bf16.msra.mxu0 0
  %324 = vmatprep.subr.bf16.mxu0 0
  %325 = vmatpush1.bf16.msra.mxu0 0
  %326 = vmatprep.subr.bf16.mxu0 0
  %327 = vmatpush1.bf16.msra.mxu0 0
  %328 = vmatprep.subr.bf16.mxu0 0
  %329 = vmatpush1.bf16.msra.mxu0 0
  %330 = vmatprep.subr.bf16.mxu0 0
  %331 = vmatpush1.bf16.msra.mxu0 0
  %332 = vmatprep.subr.bf16.mxu0 %v214
  %333 = vmatpush1.bf16.msra.mxu0 %v211
  %334 = vmatprep.subr.bf16.mxu0 0
  %335 = vmatpush2.bf16.msra.mxu0 0
  %336 = vmatprep.subr.bf16.mxu0 0
  %337 = vmatpush2.bf16.msra.mxu0 0
  %338 = vmatprep.subr.bf16.mxu0 0
  %339 = vmatpush2.bf16.msra.mxu0 0
  %340 = vmatprep.subr.bf16.mxu0 0
  %341 = vmatpush2.bf16.msra.mxu0 0
  %342 = vmatprep.subr.bf16.mxu0 0
  %343 = vmatpush2.bf16.msra.mxu0 0
  %344 = vmatprep.subr.bf16.mxu0 0
  %345 = vmatpush2.bf16.msra.mxu0 0
  %346 = vmatprep.subr.bf16.mxu0 0
  %347 = vmatpush2.bf16.msra.mxu0 0
  %348 = vmatprep.subr.bf16.mxu0 0
  %349 = vmatpush2.bf16.msra.mxu0 0
  %350 = vmatprep.mubr.bf16.mxu0 0
  %351 = vmatmul.mubr.bf16.gmra.mxu0 %v204
  %v352 = vpop.f32.mrf.mxu0
  %v353 = vadd.f32 0.0, %v352
  %v354 = vpop.f32.mrf.mxu0
  %v355 = vadd.f32 0.0, %v354
  %v356 = vpop.f32.mrf.mxu0
  %v357 = vadd.f32 0.0, %v356
  %v358 = vpop.f32.mrf.mxu0
  %v359 = vadd.f32 0.0, %v358
  %360 = vdwg.mxu0
  %361 = vmatprep.subr.bf16.mxu0 0
  %362 = vmatpush1.bf16.msra.mxu0 0
  %363 = vmatprep.subr.bf16.mxu0 0
  %364 = vmatpush1.bf16.msra.mxu0 0
  %365 = vmatprep.subr.bf16.mxu0 0
  %366 = vmatpush1.bf16.msra.mxu0 0
  %367 = vmatprep.subr.bf16.mxu0 0
  %368 = vmatpush1.bf16.msra.mxu0 0
  %369 = vmatprep.subr.bf16.mxu0 0
  %370 = vmatpush1.bf16.msra.mxu0 0
  %371 = vmatprep.subr.bf16.mxu0 0
  %372 = vmatpush1.bf16.msra.mxu0 0
  %373 = vmatprep.subr.bf16.mxu0 0
  %374 = vmatpush1.bf16.msra.mxu0 0
  %375 = vmatprep.subr.bf16.mxu0 %v220
  %376 = vmatpush1.bf16.msra.mxu0 %v217
  %377 = vmatprep.subr.bf16.mxu0 0
  %378 = vmatpush2.bf16.msra.mxu0 0
  %379 = vmatprep.subr.bf16.mxu0 0
  %380 = vmatpush2.bf16.msra.mxu0 0
  %381 = vmatprep.subr.bf16.mxu0 0
  %382 = vmatpush2.bf16.msra.mxu0 0
  %383 = vmatprep.subr.bf16.mxu0 0
  %384 = vmatpush2.bf16.msra.mxu0 0
  %385 = vmatprep.subr.bf16.mxu0 0
  %386 = vmatpush2.bf16.msra.mxu0 0
  %387 = vmatprep.subr.bf16.mxu0 0
  %388 = vmatpush2.bf16.msra.mxu0 0
  %389 = vmatprep.subr.bf16.mxu0 0
  %390 = vmatpush2.bf16.msra.mxu0 0
  %391 = vmatprep.subr.bf16.mxu0 0
  %392 = vmatpush2.bf16.msra.mxu0 0
  %393 = vmatprep.mubr.bf16.mxu0 0
  %394 = vmatmul.mubr.bf16.gmra.mxu0 %v204
  %v395 = vpop.f32.mrf.mxu0
  %v396 = vadd.f32 0.0, %v395
  %v397 = vpop.f32.mrf.mxu0
  %v398 = vadd.f32 0.0, %v397
  %v399 = vpop.f32.mrf.mxu0
  %v400 = vadd.f32 0.0, %v399
  %v401 = vpop.f32.mrf.mxu0
  %v402 = vadd.f32 0.0, %v401
  %403 = vdwg.mxu0
  %404 = vmatprep.subr.bf16.mxu0 0
  %405 = vmatpush1.bf16.msra.mxu0 0
  %406 = vmatprep.subr.bf16.mxu0 0
  %407 = vmatpush1.bf16.msra.mxu0 0
  %408 = vmatprep.subr.bf16.mxu0 0
  %409 = vmatpush1.bf16.msra.mxu0 0
  %410 = vmatprep.subr.bf16.mxu0 0
  %411 = vmatpush1.bf16.msra.mxu0 0
  %412 = vmatprep.subr.bf16.mxu0 0
  %413 = vmatpush1.bf16.msra.mxu0 0
  %414 = vmatprep.subr.bf16.mxu0 0
  %415 = vmatpush1.bf16.msra.mxu0 0
  %416 = vmatprep.subr.bf16.mxu0 0
  %417 = vmatpush1.bf16.msra.mxu0 0
  %418 = vmatprep.subr.bf16.mxu0 %v226
  %419 = vmatpush1.bf16.msra.mxu0 %v223
  %420 = vmatprep.subr.bf16.mxu0 0
  %421 = vmatpush2.bf16.msra.mxu0 0
  %422 = vmatprep.subr.bf16.mxu0 0
  %423 = vmatpush2.bf16.msra.mxu0 0
  %424 = vmatprep.subr.bf16.mxu0 0
  %425 = vmatpush2.bf16.msra.mxu0 0
  %426 = vmatprep.subr.bf16.mxu0 0
  %427 = vmatpush2.bf16.msra.mxu0 0
  %428 = vmatprep.subr.bf16.mxu0 0
  %429 = vmatpush2.bf16.msra.mxu0 0
  %430 = vmatprep.subr.bf16.mxu0 0
  %431 = vmatpush2.bf16.msra.mxu0 0
  %432 = vmatprep.subr.bf16.mxu0 0
  %433 = vmatpush2.bf16.msra.mxu0 0
  %434 = vmatprep.subr.bf16.mxu0 0
  %435 = vmatpush2.bf16.msra.mxu0 0
  %436 = vmatprep.mubr.bf16.mxu0 0
  %437 = vmatmul.mubr.bf16.gmra.mxu0 %v204
  %v438 = vpop.f32.mrf.mxu0
  %v439 = vadd.f32 0.0, %v438
  %v440 = vpop.f32.mrf.mxu0
  %v441 = vadd.f32 0.0, %v440
  %v442 = vpop.f32.mrf.mxu0
  %v443 = vadd.f32 0.0, %v442
  %v444 = vpop.f32.mrf.mxu0
  %v445 = vadd.f32 0.0, %v444
  %446 = vdwg.mxu0
  %447 = vmatprep.subr.bf16.mxu0 0
  %448 = vmatpush1.bf16.msra.mxu0 0
  %449 = vmatprep.subr.bf16.mxu0 0
  %450 = vmatpush1.bf16.msra.mxu0 0
  %451 = vmatprep.subr.bf16.mxu0 0
  %452 = vmatpush1.bf16.msra.mxu0 0
  %453 = vmatprep.subr.bf16.mxu0 0
  %454 = vmatpush1.bf16.msra.mxu0 0
  %455 = vmatprep.subr.bf16.mxu0 0
  %456 = vmatpush1.bf16.msra.mxu0 0
  %457 = vmatprep.subr.bf16.mxu0 0
  %458 = vmatpush1.bf16.msra.mxu0 0
  %459 = vmatprep.subr.bf16.mxu0 0
  %460 = vmatpush1.bf16.msra.mxu0 0
  %461 = vmatprep.subr.bf16.mxu0 %v232
  %462 = vmatpush1.bf16.msra.mxu0 %v229
  %463 = vmatprep.subr.bf16.mxu0 0
  %464 = vmatpush2.bf16.msra.mxu0 0
  %465 = vmatprep.subr.bf16.mxu0 0
  %466 = vmatpush2.bf16.msra.mxu0 0
  %467 = vmatprep.subr.bf16.mxu0 0
  %468 = vmatpush2.bf16.msra.mxu0 0
  %469 = vmatprep.subr.bf16.mxu0 0
  %470 = vmatpush2.bf16.msra.mxu0 0
  %471 = vmatprep.subr.bf16.mxu0 0
  %472 = vmatpush2.bf16.msra.mxu0 0
  %473 = vmatprep.subr.bf16.mxu0 0
  %474 = vmatpush2.bf16.msra.mxu0 0
  %475 = vmatprep.subr.bf16.mxu0 0
  %476 = vmatpush2.bf16.msra.mxu0 0
  %477 = vmatprep.subr.bf16.mxu0 0
  %478 = vmatpush2.bf16.msra.mxu0 0
  %479 = vmatprep.mubr.bf16.mxu0 0
  %480 = vmatmul.mubr.bf16.gmra.mxu0 %v204
  %v481 = vpop.f32.mrf.mxu0
  %v482 = vadd.f32 0.0, %v481
  %v483 = vpop.f32.mrf.mxu0
  %v484 = vadd.f32 0.0, %v483
  %v485 = vpop.f32.mrf.mxu0
  %v486 = vadd.f32 0.0, %v485
  %v487 = vpop.f32.mrf.mxu0
  %v488 = vadd.f32 0.0, %v487
  %489 = vdwg.mxu0
  %490 = vmatprep.subr.bf16.mxu0 0
  %491 = vmatpush1.bf16.msra.mxu0 0
  %492 = vmatprep.subr.bf16.mxu0 0
  %493 = vmatpush1.bf16.msra.mxu0 0
  %494 = vmatprep.subr.bf16.mxu0 0
  %495 = vmatpush1.bf16.msra.mxu0 0
  %496 = vmatprep.subr.bf16.mxu0 0
  %497 = vmatpush1.bf16.msra.mxu0 0
  %498 = vmatprep.subr.bf16.mxu0 0
  %499 = vmatpush1.bf16.msra.mxu0 0
  %500 = vmatprep.subr.bf16.mxu0 0
  %501 = vmatpush1.bf16.msra.mxu0 0
  %502 = vmatprep.subr.bf16.mxu0 0
  %503 = vmatpush1.bf16.msra.mxu0 0
  %504 = vmatprep.subr.bf16.mxu0 %v238
  %505 = vmatpush1.bf16.msra.mxu0 %v235
  %506 = vmatprep.subr.bf16.mxu0 0
  %507 = vmatpush2.bf16.msra.mxu0 0
  %508 = vmatprep.subr.bf16.mxu0 0
  %509 = vmatpush2.bf16.msra.mxu0 0
  %510 = vmatprep.subr.bf16.mxu0 0
  %511 = vmatpush2.bf16.msra.mxu0 0
  %512 = vmatprep.subr.bf16.mxu0 0
  %513 = vmatpush2.bf16.msra.mxu0 0
  %514 = vmatprep.subr.bf16.mxu0 0
  %515 = vmatpush2.bf16.msra.mxu0 0
  %516 = vmatprep.subr.bf16.mxu0 0
  %517 = vmatpush2.bf16.msra.mxu0 0
  %518 = vmatprep.subr.bf16.mxu0 0
  %519 = vmatpush2.bf16.msra.mxu0 0
  %520 = vmatprep.subr.bf16.mxu0 0
  %521 = vmatpush2.bf16.msra.mxu0 0
  %522 = vmatprep.mubr.bf16.mxu0 0
  %523 = vmatmul.mubr.bf16.gmra.mxu0 %v204
  %v524 = vpop.f32.mrf.mxu0
  %v525 = vadd.f32 0.0, %v524
  %v526 = vpop.f32.mrf.mxu0
  %v527 = vadd.f32 0.0, %v526
  %v528 = vpop.f32.mrf.mxu0
  %v529 = vadd.f32 0.0, %v528
  %v530 = vpop.f32.mrf.mxu0
  %v531 = vadd.f32 0.0, %v530
  %532 = vdwg.mxu0
  %533 = vmatprep.subr.bf16.mxu0 0
  %534 = vmatpush1.bf16.msra.mxu0 0
  %535 = vmatprep.subr.bf16.mxu0 0
  %536 = vmatpush1.bf16.msra.mxu0 0
  %537 = vmatprep.subr.bf16.mxu0 0
  %538 = vmatpush1.bf16.msra.mxu0 0
  %539 = vmatprep.subr.bf16.mxu0 0
  %540 = vmatpush1.bf16.msra.mxu0 0
  %541 = vmatprep.subr.bf16.mxu0 0
  %542 = vmatpush1.bf16.msra.mxu0 0
  %543 = vmatprep.subr.bf16.mxu0 0
  %544 = vmatpush1.bf16.msra.mxu0 0
  %545 = vmatprep.subr.bf16.mxu0 0
  %546 = vmatpush1.bf16.msra.mxu0 0
  %547 = vmatprep.subr.bf16.mxu0 %v244
  %548 = vmatpush1.bf16.msra.mxu0 %v241
  %549 = vmatprep.subr.bf16.mxu0 0
  %550 = vmatpush2.bf16.msra.mxu0 0
  %551 = vmatprep.subr.bf16.mxu0 0
  %552 = vmatpush2.bf16.msra.mxu0 0
  %553 = vmatprep.subr.bf16.mxu0 0
  %554 = vmatpush2.bf16.msra.mxu0 0
  %555 = vmatprep.subr.bf16.mxu0 0
  %556 = vmatpush2.bf16.msra.mxu0 0
  %557 = vmatprep.subr.bf16.mxu0 0
  %558 = vmatpush2.bf16.msra.mxu0 0
  %559 = vmatprep.subr.bf16.mxu0 0
  %560 = vmatpush2.bf16.msra.mxu0 0
  %561 = vmatprep.subr.bf16.mxu0 0
  %562 = vmatpush2.bf16.msra.mxu0 0
  %563 = vmatprep.subr.bf16.mxu0 0
  %564 = vmatpush2.bf16.msra.mxu0 0
  %565 = vmatprep.mubr.bf16.mxu0 0
  %566 = vmatmul.mubr.bf16.gmra.mxu0 %v204
  %v567 = vpop.f32.mrf.mxu0
  %v568 = vadd.f32 0.0, %v567
  %v569 = vpop.f32.mrf.mxu0
  %v570 = vadd.f32 0.0, %v569
  %v571 = vpop.f32.mrf.mxu0
  %v572 = vadd.f32 0.0, %v571
  %v573 = vpop.f32.mrf.mxu0
  %v574 = vadd.f32 0.0, %v573
  %575 = vdwg.mxu0
  %576 = vmatprep.subr.bf16.mxu0 0
  %577 = vmatpush1.bf16.msra.mxu0 0
  %578 = vmatprep.subr.bf16.mxu0 0
  %579 = vmatpush1.bf16.msra.mxu0 0
  %580 = vmatprep.subr.bf16.mxu0 0
  %581 = vmatpush1.bf16.msra.mxu0 0
  %582 = vmatprep.subr.bf16.mxu0 0
  %583 = vmatpush1.bf16.msra.mxu0 0
  %584 = vmatprep.subr.bf16.mxu0 0
  %585 = vmatpush1.bf16.msra.mxu0 0
  %586 = vmatprep.subr.bf16.mxu0 0
  %587 = vmatpush1.bf16.msra.mxu0 0
  %588 = vmatprep.subr.bf16.mxu0 0
  %589 = vmatpush1.bf16.msra.mxu0 0
  %590 = vmatprep.subr.bf16.mxu0 %v250
  %591 = vmatpush1.bf16.msra.mxu0 %v247
  %592 = vmatprep.subr.bf16.mxu0 0
  %593 = vmatpush2.bf16.msra.mxu0 0
  %594 = vmatprep.subr.bf16.mxu0 0
  %595 = vmatpush2.bf16.msra.mxu0 0
  %596 = vmatprep.subr.bf16.mxu0 0
  %597 = vmatpush2.bf16.msra.mxu0 0
  %598 = vmatprep.subr.bf16.mxu0 0
  %599 = vmatpush2.bf16.msra.mxu0 0
  %600 = vmatprep.subr.bf16.mxu0 0
  %601 = vmatpush2.bf16.msra.mxu0 0
  %602 = vmatprep.subr.bf16.mxu0 0
  %603 = vmatpush2.bf16.msra.mxu0 0
  %604 = vmatprep.subr.bf16.mxu0 0
  %605 = vmatpush2.bf16.msra.mxu0 0
  %606 = vmatprep.subr.bf16.mxu0 0
  %607 = vmatpush2.bf16.msra.mxu0 0
  %608 = vmatprep.mubr.bf16.mxu0 0
  %609 = vmatmul.mubr.bf16.gmra.mxu0 %v204
  %v610 = vpop.f32.mrf.mxu0
  %v611 = vadd.f32 0.0, %v610
  %v612 = vpop.f32.mrf.mxu0
  %v613 = vadd.f32 0.0, %v612
  %v614 = vpop.f32.mrf.mxu0
  %v615 = vadd.f32 0.0, %v614
  %v616 = vpop.f32.mrf.mxu0
  %v617 = vadd.f32 0.0, %v616
  %618 = vdwg.mxu0
  %619 = vmatprep.subr.bf16.mxu0 0
  %620 = vmatpush1.bf16.msra.mxu0 0
  %621 = vmatprep.subr.bf16.mxu0 0
  %622 = vmatpush1.bf16.msra.mxu0 0
  %623 = vmatprep.subr.bf16.mxu0 0
  %624 = vmatpush1.bf16.msra.mxu0 0
  %625 = vmatprep.subr.bf16.mxu0 0
  %626 = vmatpush1.bf16.msra.mxu0 0
  %627 = vmatprep.subr.bf16.mxu0 0
  %628 = vmatpush1.bf16.msra.mxu0 0
  %629 = vmatprep.subr.bf16.mxu0 0
  %630 = vmatpush1.bf16.msra.mxu0 0
  %631 = vmatprep.subr.bf16.mxu0 0
  %632 = vmatpush1.bf16.msra.mxu0 0
  %633 = vmatprep.subr.bf16.mxu0 %v256
  %634 = vmatpush1.bf16.msra.mxu0 %v253
  %635 = vmatprep.subr.bf16.mxu0 0
  %636 = vmatpush2.bf16.msra.mxu0 0
  %637 = vmatprep.subr.bf16.mxu0 0
  %638 = vmatpush2.bf16.msra.mxu0 0
  %639 = vmatprep.subr.bf16.mxu0 0
  %640 = vmatpush2.bf16.msra.mxu0 0
  %641 = vmatprep.subr.bf16.mxu0 0
  %642 = vmatpush2.bf16.msra.mxu0 0
  %643 = vmatprep.subr.bf16.mxu0 0
  %644 = vmatpush2.bf16.msra.mxu0 0
  %645 = vmatprep.subr.bf16.mxu0 0
  %646 = vmatpush2.bf16.msra.mxu0 0
  %647 = vmatprep.subr.bf16.mxu0 0
  %648 = vmatpush2.bf16.msra.mxu0 0
  %649 = vmatprep.subr.bf16.mxu0 0
  %650 = vmatpush2.bf16.msra.mxu0 0
  %651 = vmatprep.mubr.bf16.mxu0 0
  %652 = vmatmul.mubr.bf16.gmra.mxu0 %v204
  %v653 = vpop.f32.mrf.mxu0
  %v654 = vadd.f32 0.0, %v653
  %v655 = vpop.f32.mrf.mxu0
  %v656 = vadd.f32 0.0, %v655
  %v657 = vpop.f32.mrf.mxu0
  %v658 = vadd.f32 0.0, %v657
  %v659 = vpop.f32.mrf.mxu0
  %v660 = vadd.f32 0.0, %v659
  %661 = vdwg.mxu0
  %662 = vmatprep.subr.bf16.mxu0 0
  %663 = vmatpush1.bf16.msra.mxu0 0
  %664 = vmatprep.subr.bf16.mxu0 0
  %665 = vmatpush1.bf16.msra.mxu0 0
  %666 = vmatprep.subr.bf16.mxu0 0
  %667 = vmatpush1.bf16.msra.mxu0 0
  %668 = vmatprep.subr.bf16.mxu0 0
  %669 = vmatpush1.bf16.msra.mxu0 0
  %670 = vmatprep.subr.bf16.mxu0 0
  %671 = vmatpush1.bf16.msra.mxu0 0
  %672 = vmatprep.subr.bf16.mxu0 0
  %673 = vmatpush1.bf16.msra.mxu0 0
  %674 = vmatprep.subr.bf16.mxu0 0
  %675 = vmatpush1.bf16.msra.mxu0 0
  %676 = vmatprep.subr.bf16.mxu0 %v262
  %677 = vmatpush1.bf16.msra.mxu0 %v259
  %678 = vmatprep.subr.bf16.mxu0 0
  %679 = vmatpush2.bf16.msra.mxu0 0
  %680 = vmatprep.subr.bf16.mxu0 0
  %681 = vmatpush2.bf16.msra.mxu0 0
  %682 = vmatprep.subr.bf16.mxu0 0
  %683 = vmatpush2.bf16.msra.mxu0 0
  %684 = vmatprep.subr.bf16.mxu0 0
  %685 = vmatpush2.bf16.msra.mxu0 0
  %686 = vmatprep.subr.bf16.mxu0 0
  %687 = vmatpush2.bf16.msra.mxu0 0
  %688 = vmatprep.subr.bf16.mxu0 0
  %689 = vmatpush2.bf16.msra.mxu0 0
  %690 = vmatprep.subr.bf16.mxu0 0
  %691 = vmatpush2.bf16.msra.mxu0 0
  %692 = vmatprep.subr.bf16.mxu0 0
  %693 = vmatpush2.bf16.msra.mxu0 0
  %694 = vmatprep.mubr.bf16.mxu0 0
  %695 = vmatmul.mubr.bf16.gmra.mxu0 %v204
  %v696 = vpop.f32.mrf.mxu0
  %v697 = vadd.f32 0.0, %v696
  %v698 = vpop.f32.mrf.mxu0
  %v699 = vadd.f32 0.0, %v698
  %v700 = vpop.f32.mrf.mxu0
  %v701 = vadd.f32 0.0, %v700
  %v702 = vpop.f32.mrf.mxu0
  %v703 = vadd.f32 0.0, %v702
  %704 = vdwg.mxu0
  %705 = vmatprep.subr.bf16.mxu0 0
  %706 = vmatpush1.bf16.msra.mxu0 0
  %707 = vmatprep.subr.bf16.mxu0 0
  %708 = vmatpush1.bf16.msra.mxu0 0
  %709 = vmatprep.subr.bf16.mxu0 0
  %710 = vmatpush1.bf16.msra.mxu0 0
  %711 = vmatprep.subr.bf16.mxu0 0
  %712 = vmatpush1.bf16.msra.mxu0 0
  %713 = vmatprep.subr.bf16.mxu0 0
  %714 = vmatpush1.bf16.msra.mxu0 0
  %715 = vmatprep.subr.bf16.mxu0 0
  %716 = vmatpush1.bf16.msra.mxu0 0
  %717 = vmatprep.subr.bf16.mxu0 0
  %718 = vmatpush1.bf16.msra.mxu0 0
  %719 = vmatprep.subr.bf16.mxu0 %v268
  %720 = vmatpush1.bf16.msra.mxu0 %v265
  %721 = vmatprep.subr.bf16.mxu0 0
  %722 = vmatpush2.bf16.msra.mxu0 0
  %723 = vmatprep.subr.bf16.mxu0 0
  %724 = vmatpush2.bf16.msra.mxu0 0
  %725 = vmatprep.subr.bf16.mxu0 0
  %726 = vmatpush2.bf16.msra.mxu0 0
  %727 = vmatprep.subr.bf16.mxu0 0
  %728 = vmatpush2.bf16.msra.mxu0 0
  %729 = vmatprep.subr.bf16.mxu0 0
  %730 = vmatpush2.bf16.msra.mxu0 0
  %731 = vmatprep.subr.bf16.mxu0 0
  %732 = vmatpush2.bf16.msra.mxu0 0
  %733 = vmatprep.subr.bf16.mxu0 0
  %734 = vmatpush2.bf16.msra.mxu0 0
  %735 = vmatprep.subr.bf16.mxu0 0
  %736 = vmatpush2.bf16.msra.mxu0 0
  %737 = vmatprep.mubr.bf16.mxu0 0
  %738 = vmatmul.mubr.bf16.gmra.mxu0 %v204
  %v739 = vpop.f32.mrf.mxu0
  %v740 = vadd.f32 0.0, %v739
  %v741 = vpop.f32.mrf.mxu0
  %v742 = vadd.f32 0.0, %v741
  %v743 = vpop.f32.mrf.mxu0
  %v744 = vadd.f32 0.0, %v743
  %v745 = vpop.f32.mrf.mxu0
  %v746 = vadd.f32 0.0, %v745
  %747 = vdwg.mxu0
  %748 = vmatprep.subr.bf16.mxu0 0
  %749 = vmatpush1.bf16.msra.mxu0 0
  %750 = vmatprep.subr.bf16.mxu0 0
  %751 = vmatpush1.bf16.msra.mxu0 0
  %752 = vmatprep.subr.bf16.mxu0 0
  %753 = vmatpush1.bf16.msra.mxu0 0
  %754 = vmatprep.subr.bf16.mxu0 0
  %755 = vmatpush1.bf16.msra.mxu0 0
  %756 = vmatprep.subr.bf16.mxu0 0
  %757 = vmatpush1.bf16.msra.mxu0 0
  %758 = vmatprep.subr.bf16.mxu0 0
  %759 = vmatpush1.bf16.msra.mxu0 0
  %760 = vmatprep.subr.bf16.mxu0 0
  %761 = vmatpush1.bf16.msra.mxu0 0
  %762 = vmatprep.subr.bf16.mxu0 %v274
  %763 = vmatpush1.bf16.msra.mxu0 %v271
  %764 = vmatprep.subr.bf16.mxu0 0
  %765 = vmatpush2.bf16.msra.mxu0 0
  %766 = vmatprep.subr.bf16.mxu0 0
  %767 = vmatpush2.bf16.msra.mxu0 0
  %768 = vmatprep.subr.bf16.mxu0 0
  %769 = vmatpush2.bf16.msra.mxu0 0
  %770 = vmatprep.subr.bf16.mxu0 0
  %771 = vmatpush2.bf16.msra.mxu0 0
  %772 = vmatprep.subr.bf16.mxu0 0
  %773 = vmatpush2.bf16.msra.mxu0 0
  %774 = vmatprep.subr.bf16.mxu0 0
  %775 = vmatpush2.bf16.msra.mxu0 0
  %776 = vmatprep.subr.bf16.mxu0 0
  %777 = vmatpush2.bf16.msra.mxu0 0
  %778 = vmatprep.subr.bf16.mxu0 0
  %779 = vmatpush2.bf16.msra.mxu0 0
  %780 = vmatprep.mubr.bf16.mxu0 0
  %781 = vmatmul.mubr.bf16.gmra.mxu0 %v204
  %v782 = vpop.f32.mrf.mxu0
  %v783 = vadd.f32 0.0, %v782
  %v784 = vpop.f32.mrf.mxu0
  %v785 = vadd.f32 0.0, %v784
  %v786 = vpop.f32.mrf.mxu0
  %v787 = vadd.f32 0.0, %v786
  %v788 = vpop.f32.mrf.mxu0
  %v789 = vadd.f32 0.0, %v788
  %790 = vdwg.mxu0
  %791 = vmatprep.subr.bf16.mxu0 0
  %792 = vmatpush1.bf16.msra.mxu0 0
  %793 = vmatprep.subr.bf16.mxu0 0
  %794 = vmatpush1.bf16.msra.mxu0 0
  %795 = vmatprep.subr.bf16.mxu0 0
  %796 = vmatpush1.bf16.msra.mxu0 0
  %797 = vmatprep.subr.bf16.mxu0 0
  %798 = vmatpush1.bf16.msra.mxu0 0
  %799 = vmatprep.subr.bf16.mxu0 0
  %800 = vmatpush1.bf16.msra.mxu0 0
  %801 = vmatprep.subr.bf16.mxu0 0
  %802 = vmatpush1.bf16.msra.mxu0 0
  %803 = vmatprep.subr.bf16.mxu0 0
  %804 = vmatpush1.bf16.msra.mxu0 0
  %805 = vmatprep.subr.bf16.mxu0 %v280
  %806 = vmatpush1.bf16.msra.mxu0 %v277
  %807 = vmatprep.subr.bf16.mxu0 0
  %808 = vmatpush2.bf16.msra.mxu0 0
  %809 = vmatprep.subr.bf16.mxu0 0
  %810 = vmatpush2.bf16.msra.mxu0 0
  %811 = vmatprep.subr.bf16.mxu0 0
  %812 = vmatpush2.bf16.msra.mxu0 0
  %813 = vmatprep.subr.bf16.mxu0 0
  %814 = vmatpush2.bf16.msra.mxu0 0
  %815 = vmatprep.subr.bf16.mxu0 0
  %816 = vmatpush2.bf16.msra.mxu0 0
  %817 = vmatprep.subr.bf16.mxu0 0
  %818 = vmatpush2.bf16.msra.mxu0 0
  %819 = vmatprep.subr.bf16.mxu0 0
  %820 = vmatpush2.bf16.msra.mxu0 0
  %821 = vmatprep.subr.bf16.mxu0 0
  %822 = vmatpush2.bf16.msra.mxu0 0
  %823 = vmatprep.mubr.bf16.mxu0 0
  %824 = vmatmul.mubr.bf16.gmra.mxu0 %v204
  %v825 = vpop.f32.mrf.mxu0
  %v826 = vadd.f32 0.0, %v825
  %v827 = vpop.f32.mrf.mxu0
  %v828 = vadd.f32 0.0, %v827
  %v829 = vpop.f32.mrf.mxu0
  %v830 = vadd.f32 0.0, %v829
  %v831 = vpop.f32.mrf.mxu0
  %v832 = vadd.f32 0.0, %v831
  %833 = vdwg.mxu0
  %834 = vmatprep.subr.bf16.mxu0 0
  %835 = vmatpush1.bf16.msra.mxu0 0
  %836 = vmatprep.subr.bf16.mxu0 0
  %837 = vmatpush1.bf16.msra.mxu0 0
  %838 = vmatprep.subr.bf16.mxu0 0
  %839 = vmatpush1.bf16.msra.mxu0 0
  %840 = vmatprep.subr.bf16.mxu0 0
  %841 = vmatpush1.bf16.msra.mxu0 0
  %842 = vmatprep.subr.bf16.mxu0 0
  %843 = vmatpush1.bf16.msra.mxu0 0
  %844 = vmatprep.subr.bf16.mxu0 0
  %845 = vmatpush1.bf16.msra.mxu0 0
  %846 = vmatprep.subr.bf16.mxu0 0
  %847 = vmatpush1.bf16.msra.mxu0 0
  %848 = vmatprep.subr.bf16.mxu0 %v286
  %849 = vmatpush1.bf16.msra.mxu0 %v283
  %850 = vmatprep.subr.bf16.mxu0 0
  %851 = vmatpush2.bf16.msra.mxu0 0
  %852 = vmatprep.subr.bf16.mxu0 0
  %853 = vmatpush2.bf16.msra.mxu0 0
  %854 = vmatprep.subr.bf16.mxu0 0
  %855 = vmatpush2.bf16.msra.mxu0 0
  %856 = vmatprep.subr.bf16.mxu0 0
  %857 = vmatpush2.bf16.msra.mxu0 0
  %858 = vmatprep.subr.bf16.mxu0 0
  %859 = vmatpush2.bf16.msra.mxu0 0
  %860 = vmatprep.subr.bf16.mxu0 0
  %861 = vmatpush2.bf16.msra.mxu0 0
  %862 = vmatprep.subr.bf16.mxu0 0
  %863 = vmatpush2.bf16.msra.mxu0 0
  %864 = vmatprep.subr.bf16.mxu0 0
  %865 = vmatpush2.bf16.msra.mxu0 0
  %866 = vmatprep.mubr.bf16.mxu0 0
  %867 = vmatmul.mubr.bf16.gmra.mxu0 %v204
  %v868 = vpop.f32.mrf.mxu0
  %v869 = vadd.f32 0.0, %v868
  %v870 = vpop.f32.mrf.mxu0
  %v871 = vadd.f32 0.0, %v870
  %v872 = vpop.f32.mrf.mxu0
  %v873 = vadd.f32 0.0, %v872
  %v874 = vpop.f32.mrf.mxu0
  %v875 = vadd.f32 0.0, %v874
  %876 = vdwg.mxu0
  %877 = vmatprep.subr.bf16.mxu0 0
  %878 = vmatpush1.bf16.msra.mxu0 0
  %879 = vmatprep.subr.bf16.mxu0 0
  %880 = vmatpush1.bf16.msra.mxu0 0
  %881 = vmatprep.subr.bf16.mxu0 0
  %882 = vmatpush1.bf16.msra.mxu0 0
  %883 = vmatprep.subr.bf16.mxu0 0
  %884 = vmatpush1.bf16.msra.mxu0 0
  %885 = vmatprep.subr.bf16.mxu0 0
  %886 = vmatpush1.bf16.msra.mxu0 0
  %887 = vmatprep.subr.bf16.mxu0 0
  %888 = vmatpush1.bf16.msra.mxu0 0
  %889 = vmatprep.subr.bf16.mxu0 0
  %890 = vmatpush1.bf16.msra.mxu0 0
  %891 = vmatprep.subr.bf16.mxu0 %v292
  %892 = vmatpush1.bf16.msra.mxu0 %v289
  %893 = vmatprep.subr.bf16.mxu0 0
  %894 = vmatpush2.bf16.msra.mxu0 0
  %895 = vmatprep.subr.bf16.mxu0 0
  %896 = vmatpush2.bf16.msra.mxu0 0
  %897 = vmatprep.subr.bf16.mxu0 0
  %898 = vmatpush2.bf16.msra.mxu0 0
  %899 = vmatprep.subr.bf16.mxu0 0
  %900 = vmatpush2.bf16.msra.mxu0 0
  %901 = vmatprep.subr.bf16.mxu0 0
  %902 = vmatpush2.bf16.msra.mxu0 0
  %903 = vmatprep.subr.bf16.mxu0 0
  %904 = vmatpush2.bf16.msra.mxu0 0
  %905 = vmatprep.subr.bf16.mxu0 0
  %906 = vmatpush2.bf16.msra.mxu0 0
  %907 = vmatprep.subr.bf16.mxu0 0
  %908 = vmatpush2.bf16.msra.mxu0 0
  %909 = vmatprep.mubr.bf16.mxu0 0
  %910 = vmatmul.mubr.bf16.gmra.mxu0 %v204
  %v911 = vpop.f32.mrf.mxu0
  %v912 = vadd.f32 0.0, %v911
  %v913 = vpop.f32.mrf.mxu0
  %v914 = vadd.f32 0.0, %v913
  %v915 = vpop.f32.mrf.mxu0
  %v916 = vadd.f32 0.0, %v915
  %v917 = vpop.f32.mrf.mxu0
  %v918 = vadd.f32 0.0, %v917
  %919 = vdwg.mxu0
  %920 = vmatprep.subr.bf16.mxu0 0
  %921 = vmatpush1.bf16.msra.mxu0 0
  %922 = vmatprep.subr.bf16.mxu0 0
  %923 = vmatpush1.bf16.msra.mxu0 0
  %924 = vmatprep.subr.bf16.mxu0 0
  %925 = vmatpush1.bf16.msra.mxu0 0
  %926 = vmatprep.subr.bf16.mxu0 0
  %927 = vmatpush1.bf16.msra.mxu0 0
  %928 = vmatprep.subr.bf16.mxu0 0
  %929 = vmatpush1.bf16.msra.mxu0 0
  %930 = vmatprep.subr.bf16.mxu0 0
  %931 = vmatpush1.bf16.msra.mxu0 0
  %932 = vmatprep.subr.bf16.mxu0 0
  %933 = vmatpush1.bf16.msra.mxu0 0
  %934 = vmatprep.subr.bf16.mxu0 %v298
  %935 = vmatpush1.bf16.msra.mxu0 %v295
  %936 = vmatprep.subr.bf16.mxu0 0
  %937 = vmatpush2.bf16.msra.mxu0 0
  %938 = vmatprep.subr.bf16.mxu0 0
  %939 = vmatpush2.bf16.msra.mxu0 0
  %940 = vmatprep.subr.bf16.mxu0 0
  %941 = vmatpush2.bf16.msra.mxu0 0
  %942 = vmatprep.subr.bf16.mxu0 0
  %943 = vmatpush2.bf16.msra.mxu0 0
  %944 = vmatprep.subr.bf16.mxu0 0
  %945 = vmatpush2.bf16.msra.mxu0 0
  %946 = vmatprep.subr.bf16.mxu0 0
  %947 = vmatpush2.bf16.msra.mxu0 0
  %948 = vmatprep.subr.bf16.mxu0 0
  %949 = vmatpush2.bf16.msra.mxu0 0
  %950 = vmatprep.subr.bf16.mxu0 0
  %951 = vmatpush2.bf16.msra.mxu0 0
  %952 = vmatprep.mubr.bf16.mxu0 0
  %953 = vmatmul.mubr.bf16.gmra.mxu0 %v204
  %v954 = vpop.f32.mrf.mxu0
  %v955 = vadd.f32 0.0, %v954
  %v956 = vpop.f32.mrf.mxu0
  %v957 = vadd.f32 0.0, %v956
  %v958 = vpop.f32.mrf.mxu0
  %v959 = vadd.f32 0.0, %v958
  %v960 = vpop.f32.mrf.mxu0
  %v961 = vadd.f32 0.0, %v960
  %962 = vdwg.mxu0
  %963 = vmatprep.subr.bf16.mxu0 0
  %964 = vmatpush1.bf16.msra.mxu0 0
  %965 = vmatprep.subr.bf16.mxu0 0
  %966 = vmatpush1.bf16.msra.mxu0 0
  %967 = vmatprep.subr.bf16.mxu0 0
  %968 = vmatpush1.bf16.msra.mxu0 0
  %969 = vmatprep.subr.bf16.mxu0 0
  %970 = vmatpush1.bf16.msra.mxu0 0
  %971 = vmatprep.subr.bf16.mxu0 0
  %972 = vmatpush1.bf16.msra.mxu0 0
  %973 = vmatprep.subr.bf16.mxu0 0
  %974 = vmatpush1.bf16.msra.mxu0 0
  %975 = vmatprep.subr.bf16.mxu0 0
  %976 = vmatpush1.bf16.msra.mxu0 0
  %977 = vmatprep.subr.bf16.mxu0 %v304
  %978 = vmatpush1.bf16.msra.mxu0 %v301
  %979 = vmatprep.subr.bf16.mxu0 0
  %980 = vmatpush2.bf16.msra.mxu0 0
  %981 = vmatprep.subr.bf16.mxu0 0
  %982 = vmatpush2.bf16.msra.mxu0 0
  %983 = vmatprep.subr.bf16.mxu0 0
  %984 = vmatpush2.bf16.msra.mxu0 0
  %985 = vmatprep.subr.bf16.mxu0 0
  %986 = vmatpush2.bf16.msra.mxu0 0
  %987 = vmatprep.subr.bf16.mxu0 0
  %988 = vmatpush2.bf16.msra.mxu0 0
  %989 = vmatprep.subr.bf16.mxu0 0
  %990 = vmatpush2.bf16.msra.mxu0 0
  %991 = vmatprep.subr.bf16.mxu0 0
  %992 = vmatpush2.bf16.msra.mxu0 0
  %993 = vmatprep.subr.bf16.mxu0 0
  %994 = vmatpush2.bf16.msra.mxu0 0
  %995 = vmatprep.mubr.bf16.mxu0 0
  %996 = vmatmul.mubr.bf16.gmra.mxu0 %v204
  %v997 = vpop.f32.mrf.mxu0
  %v998 = vadd.f32 0.0, %v997
  %v999 = vpop.f32.mrf.mxu0
  %v1000 = vadd.f32 0.0, %v999
  %v1001 = vpop.f32.mrf.mxu0
  %v1002 = vadd.f32 0.0, %v1001
  %v1003 = vpop.f32.mrf.mxu0
  %v1004 = vadd.f32 0.0, %v1003
  %1005 = vdwg.mxu0
  %1006 = vmatprep.subr.bf16.mxu0 0
  %1007 = vmatpush1.bf16.msra.mxu0 0
  %1008 = vmatprep.subr.bf16.mxu0 0
  %1009 = vmatpush1.bf16.msra.mxu0 0
  %1010 = vmatprep.subr.bf16.mxu0 0
  %1011 = vmatpush1.bf16.msra.mxu0 0
  %1012 = vmatprep.subr.bf16.mxu0 0
  %1013 = vmatpush1.bf16.msra.mxu0 0
  %1014 = vmatprep.subr.bf16.mxu0 0
  %1015 = vmatpush1.bf16.msra.mxu0 0
  %1016 = vmatprep.subr.bf16.mxu0 0
  %1017 = vmatpush1.bf16.msra.mxu0 0
  %1018 = vmatprep.subr.bf16.mxu0 0
  %1019 = vmatpush1.bf16.msra.mxu0 0
  %1020 = vmatprep.subr.bf16.mxu0 %v310
  %1021 = vmatpush1.bf16.msra.mxu0 %v307
  %1022 = vmatprep.subr.bf16.mxu0 0
  %1023 = vmatpush2.bf16.msra.mxu0 0
  %1024 = vmatprep.subr.bf16.mxu0 0
  %1025 = vmatpush2.bf16.msra.mxu0 0
  %1026 = vmatprep.subr.bf16.mxu0 0
  %1027 = vmatpush2.bf16.msra.mxu0 0
  %1028 = vmatprep.subr.bf16.mxu0 0
  %1029 = vmatpush2.bf16.msra.mxu0 0
  %1030 = vmatprep.subr.bf16.mxu0 0
  %1031 = vmatpush2.bf16.msra.mxu0 0
  %1032 = vmatprep.subr.bf16.mxu0 0
  %1033 = vmatpush2.bf16.msra.mxu0 0
  %1034 = vmatprep.subr.bf16.mxu0 0
  %1035 = vmatpush2.bf16.msra.mxu0 0
  %1036 = vmatprep.subr.bf16.mxu0 0
  %1037 = vmatpush2.bf16.msra.mxu0 0
  %1038 = vmatprep.mubr.bf16.mxu0 0
  %1039 = vmatmul.mubr.bf16.gmra.mxu0 %v204
  %v1040 = vpop.f32.mrf.mxu0
  %v1041 = vadd.f32 0.0, %v1040
  %v1042 = vpop.f32.mrf.mxu0
  %v1043 = vadd.f32 0.0, %v1042
  %v1044 = vpop.f32.mrf.mxu0
  %v1045 = vadd.f32 0.0, %v1044
  %v1046 = vpop.f32.mrf.mxu0
  %v1047 = vadd.f32 0.0, %v1046
  %1048 = vdwg.mxu0
  %1049 = vmatprep.subr.bf16.mxu0 0
  %1050 = vmatpush1.bf16.msra.mxu0 0
  %1051 = vmatprep.subr.bf16.mxu0 0
  %1052 = vmatpush1.bf16.msra.mxu0 0
  %1053 = vmatprep.subr.bf16.mxu0 0
  %1054 = vmatpush1.bf16.msra.mxu0 0
  %1055 = vmatprep.subr.bf16.mxu0 0
  %1056 = vmatpush1.bf16.msra.mxu0 0
  %1057 = vmatprep.subr.bf16.mxu0 0
  %1058 = vmatpush1.bf16.msra.mxu0 0
  %1059 = vmatprep.subr.bf16.mxu0 0
  %1060 = vmatpush1.bf16.msra.mxu0 0
  %1061 = vmatprep.subr.bf16.mxu0 0
  %1062 = vmatpush1.bf16.msra.mxu0 0
  %1063 = vmatprep.subr.bf16.mxu0 %v316
  %1064 = vmatpush1.bf16.msra.mxu0 %v313
  %1065 = vmatprep.subr.bf16.mxu0 0
  %1066 = vmatpush2.bf16.msra.mxu0 0
  %1067 = vmatprep.subr.bf16.mxu0 0
  %1068 = vmatpush2.bf16.msra.mxu0 0
  %1069 = vmatprep.subr.bf16.mxu0 0
  %1070 = vmatpush2.bf16.msra.mxu0 0
  %1071 = vmatprep.subr.bf16.mxu0 0
  %1072 = vmatpush2.bf16.msra.mxu0 0
  %1073 = vmatprep.subr.bf16.mxu0 0
  %1074 = vmatpush2.bf16.msra.mxu0 0
  %1075 = vmatprep.subr.bf16.mxu0 0
  %1076 = vmatpush2.bf16.msra.mxu0 0
  %1077 = vmatprep.subr.bf16.mxu0 0
  %1078 = vmatpush2.bf16.msra.mxu0 0
  %1079 = vmatprep.subr.bf16.mxu0 0
  %1080 = vmatpush2.bf16.msra.mxu0 0
  %1081 = vmatprep.mubr.bf16.mxu0 0
  %1082 = vmatmul.mubr.bf16.gmra.mxu0 %v204
  %v1083 = vpop.f32.mrf.mxu0
  %v1084 = vadd.f32 0.0, %v1083
  %v1085 = vpop.f32.mrf.mxu0
  %v1086 = vadd.f32 0.0, %v1085
  %v1087 = vpop.f32.mrf.mxu0
  %v1088 = vadd.f32 0.0, %v1087
  %v1089 = vpop.f32.mrf.mxu0
  %v1090 = vadd.f32 0.0, %v1089
  %1091 = vdwg.mxu0
  %v1092 = vmax.f32 %v353, %v527
  %v1093 = vmax.f32 %v355, %v568
  %v1094 = vmax.f32 %v396, %v570
  %v1095 = vmax.f32 %v398, %v611
  %v1096 = vmax.f32 %v439, %v613
  %v1097 = vmax.f32 %v441, %v654
  %v1098 = vmax.f32 %v482, %v656
  %v1099 = vmax.f32 %v484, %v697
  %v1100 = vmax.f32 %v525, %v699
  %v1101 = vmax.f32 %v357, %v531
  %v1102 = vmax.f32 %v359, %v572
  %v1103 = vmax.f32 %v400, %v574
  %v1104 = vmax.f32 %v402, %v615
  %v1105 = vmax.f32 %v443, %v617
  %v1106 = vmax.f32 %v445, %v658
  %v1107 = vmax.f32 %v486, %v660
  %v1108 = vmax.f32 %v488, %v701
  %v1109 = vmax.f32 %v529, %v703
  %v1110 = vmax.f32 %v1092, %v740
  %v1111 = vmax.f32 %v1093, %v742
  %v1112 = vmax.f32 %v1094, %v783
  %v1113 = vmax.f32 %v1095, %v785
  %v1114 = vmax.f32 %v1096, %v826
  %v1115 = vmax.f32 %v1097, %v828
  %v1116 = vmax.f32 %v1098, %v869
  %v1117 = vmax.f32 %v1099, %v871
  %v1118 = vmax.f32 %v1100, %v912
  %v1119 = vmax.f32 %v1101, %v744
  %v1120 = vmax.f32 %v1102, %v746
  %v1121 = vmax.f32 %v1103, %v787
  %v1122 = vmax.f32 %v1104, %v789
  %v1123 = vmax.f32 %v1105, %v830
  %v1124 = vmax.f32 %v1106, %v832
  %v1125 = vmax.f32 %v1107, %v873
  %v1126 = vmax.f32 %v1108, %v875
  %v1127 = vmax.f32 %v1109, %v916
  %v1128 = vmax.f32 %v1110, %v914
  %v1129 = vmax.f32 %v1111, %v955
  %v1130 = vmax.f32 %v1112, %v957
  %v1131 = vmax.f32 %v1113, %v998
  %v1132 = vmax.f32 %v1114, %v1000
  %v1133 = vmax.f32 %v1115, %v1041
  %v1134 = vmax.f32 %v1116, %v1043
  %v1135 = vmax.f32 %v1117, %v1084
  %v1136 = vmax.f32 %v1118, %v1086
  %v1137 = vmax.f32 %v1119, %v918
  %v1138 = vmax.f32 %v1120, %v959
  %v1139 = vmax.f32 %v1121, %v961
  %v1140 = vmax.f32 %v1122, %v1002
  %v1141 = vmax.f32 %v1123, %v1004
  %v1142 = vmax.f32 %v1124, %v1045
  %v1143 = vmax.f32 %v1125, %v1047
  %v1144 = vmax.f32 %v1126, %v1088
  %v1145 = vmax.f32 %v1127, %v1090
  %v1146 = vld [vmem:[%s2] sm:$0xff]
  %v1147 = vld [vmem:[%s2 + $0x8] sm:$0xff]
  %1149 = vset.pattern.permute.xlu0 0
  %1150 = vperm.xlu0 %1149, %v1146
  %v1151 = vpop.permute.xlu0 %1150
  %1154 = vset.pattern.permute.xlu0 0
  %1155 = vperm.xlu0 %1154, %v1147
  %v1156 = vpop.permute.xlu0 %1155
  %v1158 = vadd.f32 %v1128, %v1151
  %v1159 = vadd.f32 %v1129, %v1151
  %v1160 = vadd.f32 %v1130, %v1151
  %v1161 = vadd.f32 %v1131, %v1151
  %v1162 = vadd.f32 %v1132, %v1151
  %v1163 = vadd.f32 %v1133, %v1151
  %v1164 = vadd.f32 %v1134, %v1151
  %v1165 = vadd.f32 %v1135, %v1151
  %v1166 = vadd.f32 %v1136, %v1151
  %v1167 = vadd.f32 %v1137, %v1156
  %v1168 = vadd.f32 %v1138, %v1156
  %v1169 = vadd.f32 %v1139, %v1156
  %v1170 = vadd.f32 %v1140, %v1156
  %v1171 = vadd.f32 %v1141, %v1156
  %v1172 = vadd.f32 %v1142, %v1156
  %v1173 = vadd.f32 %v1143, %v1156
  %v1174 = vadd.f32 %v1144, %v1156
  %v1175 = vadd.f32 %v1145, %v1156
  %v1176 = vmax.f32 %v1158, 0.0
  %v1177 = vmax.f32 %v1159, 0.0
  %v1178 = vmax.f32 %v1160, 0.0
  %v1179 = vmax.f32 %v1161, 0.0
  %v1180 = vmax.f32 %v1162, 0.0
  %v1181 = vmax.f32 %v1163, 0.0
  %v1182 = vmax.f32 %v1164, 0.0
  %v1183 = vmax.f32 %v1165, 0.0
  %v1184 = vmax.f32 %v1166, 0.0
  %v1185 = vmax.f32 %v1167, 0.0
  %v1186 = vmax.f32 %v1168, 0.0
  %v1187 = vmax.f32 %v1169, 0.0
  %v1188 = vmax.f32 %v1170, 0.0
  %v1189 = vmax.f32 %v1171, 0.0
  %v1190 = vmax.f32 %v1172, 0.0
  %v1191 = vmax.f32 %v1173, 0.0
  %v1192 = vmax.f32 %v1174, 0.0
  %v1193 = vmax.f32 %v1175, 0.0
  %v1194 = vpack.c.bf16 %v1185, %v1176
  %v1195 = vpack.c.bf16 %v1186, %v1177
  %v1196 = vpack.c.bf16 %v1187, %v1178
  %v1197 = vpack.c.bf16 %v1188, %v1179
  %v1198 = vpack.c.bf16 %v1189, %v1180
  %v1199 = vpack.c.bf16 %v1190, %v1181
  %v1200 = vpack.c.bf16 %v1191, %v1182
  %v1201 = vpack.c.bf16 %v1192, %v1183
  %v1202 = vpack.c.bf16 %v1193, %v1184
  %v1212 = vunpack.c.l.b16 %v1194
  %v1213 = vunpack.c.l.b16 %v1195
  %v1214 = vunpack.c.l.b16 %v1196
  %v1215 = vunpack.c.l.b16 %v1197
  %v1216 = vunpack.c.l.b16 %v1198
  %v1217 = vunpack.c.l.b16 %v1199
  %v1218 = vunpack.c.l.b16 %v1200
  %v1219 = vunpack.c.l.b16 %v1201
  %v1220 = vunpack.c.l.b16 %v1202
  %v1221 = vunpack.c.h.b16 %v1194
  %v1222 = vunpack.c.h.b16 %v1195
  %v1223 = vunpack.c.h.b16 %v1196
  %v1224 = vunpack.c.h.b16 %v1197
  %v1225 = vunpack.c.h.b16 %v1198
  %v1226 = vunpack.c.h.b16 %v1199
  %v1227 = vunpack.c.h.b16 %v1200
  %v1228 = vunpack.c.h.b16 %v1201
  %v1229 = vunpack.c.h.b16 %v1202
  %v1230 = vpack.c.b16 %v1213, %v1212
  %v1231 = vpack.c.b16 %v1215, %v1214
  %v1232 = vpack.c.b16 %v1217, %v1216
  %v1233 = vpack.c.b16 %v1219, %v1218
  %v1234 = vpack.c.b16 %v1220, %v1220
  %v1235 = vpack.c.b16 %v1222, %v1221
  %v1236 = vpack.c.b16 %v1224, %v1223
  %v1237 = vpack.c.b16 %v1226, %v1225
  %v1238 = vpack.c.b16 %v1228, %v1227
  %v1239 = vpack.c.b16 %v1229, %v1229
  %1250 = vst [vmem:[%s3] sm:$0xff] %v1230
  %1251 = vst [vmem:[%s3 + $0x8] sm:$0xff] %v1231
  %1252 = vst [vmem:[%s3 + $0x10] sm:$0xff] %v1232
  %1253 = vst [vmem:[%s3 + $0x18] sm:$0xff] %v1233
  %1254 = vst [vmem:[%s3 + $0x20] sm:$0xf] %v1234
  %1255 = vst [vmem:[%s3 + $0x24] sm:$0xff] %v1235
  %1256 = vst [vmem:[%s3 + $0x2c] sm:$0xff] %v1236
  %1257 = vst [vmem:[%s3 + $0x34] sm:$0xff] %v1237
  %1258 = vst [vmem:[%s3 + $0x3c] sm:$0xff] %v1238
  %1259 = vst [vmem:[%s3 + $0x44] sm:$0xf] %v1239
  // Predicated region
  $region14: #{forward.4} parent=0 // pred_check
    _
  $region15: #{forward.4} parent=0 // pred_check_branch
    %1261 = sbr.rel (0) target = $region17
  $region16: #{forward.4} parent=0 // pred_region
    _
  $region17: #{forward.4} parent=0 // pred_fallthru
    _
  // Predicated region
  $region18: #{forward.4} parent=0 // pred_check
    _
  $region19: #{forward.4} parent=0 // pred_check_branch
    %1263 = sbr.rel (0) target = $region21
  $region20: #{forward.4} parent=0 // pred_region
    _
  $region21: #{forward.4} parent=0 // pred_fallthru
    _

// kernel: forward.5
$region0: #{forward.5}
  #allocation0 [shape = 'u32[]', space=smem, size = 0x4, offset = 0x4, fixed_abs, tag = 'smem constant byte address 0x4 - core index']
  #allocation1 [shape = 'u32[144,128]{1,0:T(1,128)}', space=vmem, size = 0x12000, scoped, tag = 'internal scratch']
  %s0 = inlined_call_operand.vmem [shape: bf16[144,1024], index: 0, kind: input, shape index: {}]
  %s1 = inlined_call_operand.vmem [shape: bf16[24,144], index: 1, kind: input, shape index: {}]
  %s2 = inlined_call_operand.vmem [shape: f32[24,1], index: 2, kind: input, shape index: {}]
  %s3 = inlined_call_operand.vmem [shape: bf16[24,256], index: 3, kind: output, shape index: {}]
  %s4 = sld [smem:[#allocation0]]
  $region22: #{forward.5} parent=0
    _
  %s6 = ssub.s32 1, %s4
  %s7 = scalar_select 0, %s6, %s4
  // Predicated region
  $region2: #{forward.5} parent=0 // pred_check
    _
  $region3: #{forward.5} parent=0 // pred_check_branch
    %9 = sbr.rel (0) target = $region5
  $region4: #{forward.5} parent=0 // pred_region
    _
  $region5: #{forward.5} parent=0 // pred_fallthru
    _
  // Predicated region
  $region6: #{forward.5} parent=0 // pred_check
    _
  $region7: #{forward.5} parent=0 // pred_check_branch
    %11 = sbr.rel (0) target = $region9
  $region8: #{forward.5} parent=0 // pred_region
    _
  $region9: #{forward.5} parent=0 // pred_fallthru
    _
  // Predicated region
  $region10: #{forward.5} parent=0 // pred_check
    _
  $region11: #{forward.5} parent=0 // pred_check_branch
    %13 = sbr.rel (0) target = $region13
  $region12: #{forward.5} parent=0 // pred_region
    _
  $region13: #{forward.5} parent=0 // pred_fallthru
    _
  %v15 = vld [vmem:[%s1] sm:$0xff]
  %v16 = vld [vmem:[%s1 + $0x8] sm:$0xff]
  %v17 = vld [vmem:[%s1 + $0x10] sm:$0xff]
  %v18 = vld [vmem:[%s0] sm:$0xff]
  %v19 = vld [vmem:[%s0 + $0x8] sm:$0xff]
  %v20 = vld [vmem:[%s0 + $0x10] sm:$0xff]
  %v21 = vld [vmem:[%s0 + $0x18] sm:$0xff]
  %v22 = vld [vmem:[%s0 + $0x20] sm:$0xff]
  %v23 = vld [vmem:[%s0 + $0x28] sm:$0xff]
  %v24 = vld [vmem:[%s0 + $0x30] sm:$0xff]
  %v25 = vld [vmem:[%s0 + $0x38] sm:$0xff]
  %v26 = vld [vmem:[%s0 + $0x40] sm:$0xff]
  %v27 = vld [vmem:[%s0 + $0x48] sm:$0xff]
  %v28 = vld [vmem:[%s0 + $0x50] sm:$0xff]
  %v29 = vld [vmem:[%s0 + $0x58] sm:$0xff]
  %v30 = vld [vmem:[%s0 + $0x60] sm:$0xff]
  %v31 = vld [vmem:[%s0 + $0x68] sm:$0xff]
  %v32 = vld [vmem:[%s0 + $0x70] sm:$0xff]
  %v33 = vld [vmem:[%s0 + $0x78] sm:$0xff]
  %v34 = vld [vmem:[%s0 + $0x80] sm:$0xff]
  %v35 = vld [vmem:[%s0 + $0x88] sm:$0xff]
  %v36 = vld [vmem:[%s0 + $0x90] sm:$0xff]
  %v37 = vld [vmem:[%s0 + $0x98] sm:$0xff]
  %v38 = vld [vmem:[%s0 + $0xa0] sm:$0xff]
  %v39 = vld [vmem:[%s0 + $0xa8] sm:$0xff]
  %v40 = vld [vmem:[%s0 + $0xb0] sm:$0xff]
  %v41 = vld [vmem:[%s0 + $0xb8] sm:$0xff]
  %v42 = vld [vmem:[%s0 + $0xc0] sm:$0xff]
  %v43 = vld [vmem:[%s0 + $0xc8] sm:$0xff]
  %v44 = vld [vmem:[%s0 + $0xd0] sm:$0xff]
  %v45 = vld [vmem:[%s0 + $0xd8] sm:$0xff]
  %v46 = vld [vmem:[%s0 + $0xe0] sm:$0xff]
  %v47 = vld [vmem:[%s0 + $0xe8] sm:$0xff]
  %v48 = vld [vmem:[%s0 + $0xf0] sm:$0xff]
  %v49 = vld [vmem:[%s0 + $0xf8] sm:$0xff]
  %v50 = vld [vmem:[%s0 + $0x100] sm:$0xff]
  %v51 = vld [vmem:[%s0 + $0x108] sm:$0xff]
  %v52 = vld [vmem:[%s0 + $0x110] sm:$0xff]
  %v53 = vld [vmem:[%s0 + $0x118] sm:$0xff]
  %v54 = vld [vmem:[%s0 + $0x120] sm:$0xff]
  %v55 = vld [vmem:[%s0 + $0x128] sm:$0xff]
  %v56 = vld [vmem:[%s0 + $0x130] sm:$0xff]
  %v57 = vld [vmem:[%s0 + $0x138] sm:$0xff]
  %v58 = vld [vmem:[%s0 + $0x140] sm:$0xff]
  %v59 = vld [vmem:[%s0 + $0x148] sm:$0xff]
  %v60 = vld [vmem:[%s0 + $0x150] sm:$0xff]
  %v61 = vld [vmem:[%s0 + $0x158] sm:$0xff]
  %v62 = vld [vmem:[%s0 + $0x160] sm:$0xff]
  %v63 = vld [vmem:[%s0 + $0x168] sm:$0xff]
  %v64 = vld [vmem:[%s0 + $0x170] sm:$0xff]
  %v65 = vld [vmem:[%s0 + $0x178] sm:$0xff]
  %v66 = vld [vmem:[%s0 + $0x180] sm:$0xff]
  %v67 = vld [vmem:[%s0 + $0x188] sm:$0xff]
  %v68 = vld [vmem:[%s0 + $0x190] sm:$0xff]
  %v69 = vld [vmem:[%s0 + $0x198] sm:$0xff]
  %v70 = vld [vmem:[%s0 + $0x1a0] sm:$0xff]
  %v71 = vld [vmem:[%s0 + $0x1a8] sm:$0xff]
  %v72 = vld [vmem:[%s0 + $0x1b0] sm:$0xff]
  %v73 = vld [vmem:[%s0 + $0x1b8] sm:$0xff]
  %v74 = vld [vmem:[%s0 + $0x1c0] sm:$0xff]
  %v75 = vld [vmem:[%s0 + $0x1c8] sm:$0xff]
  %v76 = vld [vmem:[%s0 + $0x1d0] sm:$0xff]
  %v77 = vld [vmem:[%s0 + $0x1d8] sm:$0xff]
  %v78 = vld [vmem:[%s0 + $0x1e0] sm:$0xff]
  %v79 = vld [vmem:[%s0 + $0x1e8] sm:$0xff]
  %v80 = vld [vmem:[%s0 + $0x1f0] sm:$0xff]
  %v81 = vld [vmem:[%s0 + $0x1f8] sm:$0xff]
  %v82 = vld [vmem:[%s0 + $0x200] sm:$0xff]
  %v83 = vld [vmem:[%s0 + $0x208] sm:$0xff]
  %v84 = vld [vmem:[%s0 + $0x210] sm:$0xff]
  %v85 = vld [vmem:[%s0 + $0x218] sm:$0xff]
  %v86 = vld [vmem:[%s0 + $0x220] sm:$0xff]
  %v87 = vld [vmem:[%s0 + $0x228] sm:$0xff]
  %v88 = vld [vmem:[%s0 + $0x230] sm:$0xff]
  %v89 = vld [vmem:[%s0 + $0x238] sm:$0xff]
  %v93 = vunpack.c.l.b16 %v15
  %v94 = vunpack.c.h.b16 %v15
  %v95 = vunpack.c.l.b16 %v16
  %v96 = vunpack.c.h.b16 %v16
  %v97 = vunpack.c.l.b16 %v17
  %v98 = vunpack.c.h.b16 %v17
  %v99 = vpack.c.b16 %v95, %v93
  %v100 = vpack.c.b16 %v96, %v94
  %v101 = vpack.c.b16 %v97, %v97
  %v102 = vpack.c.b16 %v98, %v98
  %v177 = vunpack.c.l.b16 %v18
  %v178 = vunpack.c.h.b16 %v18
  %v179 = vunpack.c.l.b16 %v19
  %v180 = vunpack.c.h.b16 %v19
  %v181 = vunpack.c.l.b16 %v20
  %v182 = vunpack.c.h.b16 %v20
  %v183 = vunpack.c.l.b16 %v21
  %v184 = vunpack.c.h.b16 %v21
  %v185 = vunpack.c.l.b16 %v22
  %v186 = vunpack.c.h.b16 %v22
  %v187 = vunpack.c.l.b16 %v23
  %v188 = vunpack.c.h.b16 %v23
  %v189 = vunpack.c.l.b16 %v24
  %v190 = vunpack.c.h.b16 %v24
  %v191 = vunpack.c.l.b16 %v25
  %v192 = vunpack.c.h.b16 %v25
  %v193 = vunpack.c.l.b16 %v26
  %v194 = vunpack.c.h.b16 %v26
  %v195 = vunpack.c.l.b16 %v27
  %v196 = vunpack.c.h.b16 %v27
  %v197 = vunpack.c.l.b16 %v28
  %v198 = vunpack.c.h.b16 %v28
  %v199 = vunpack.c.l.b16 %v29
  %v200 = vunpack.c.h.b16 %v29
  %v201 = vunpack.c.l.b16 %v30
  %v202 = vunpack.c.h.b16 %v30
  %v203 = vunpack.c.l.b16 %v31
  %v204 = vunpack.c.h.b16 %v31
  %v205 = vunpack.c.l.b16 %v32
  %v206 = vunpack.c.h.b16 %v32
  %v207 = vunpack.c.l.b16 %v33
  %v208 = vunpack.c.h.b16 %v33
  %v209 = vunpack.c.l.b16 %v34
  %v210 = vunpack.c.h.b16 %v34
  %v211 = vunpack.c.l.b16 %v35
  %v212 = vunpack.c.h.b16 %v35
  %v213 = vunpack.c.l.b16 %v36
  %v214 = vunpack.c.h.b16 %v36
  %v215 = vunpack.c.l.b16 %v37
  %v216 = vunpack.c.h.b16 %v37
  %v217 = vunpack.c.l.b16 %v38
  %v218 = vunpack.c.h.b16 %v38
  %v219 = vunpack.c.l.b16 %v39
  %v220 = vunpack.c.h.b16 %v39
  %v221 = vunpack.c.l.b16 %v40
  %v222 = vunpack.c.h.b16 %v40
  %v223 = vunpack.c.l.b16 %v41
  %v224 = vunpack.c.h.b16 %v41
  %v225 = vunpack.c.l.b16 %v42
  %v226 = vunpack.c.h.b16 %v42
  %v227 = vunpack.c.l.b16 %v43
  %v228 = vunpack.c.h.b16 %v43
  %v229 = vunpack.c.l.b16 %v44
  %v230 = vunpack.c.h.b16 %v44
  %v231 = vunpack.c.l.b16 %v45
  %v232 = vunpack.c.h.b16 %v45
  %v233 = vunpack.c.l.b16 %v46
  %v234 = vunpack.c.h.b16 %v46
  %v235 = vunpack.c.l.b16 %v47
  %v236 = vunpack.c.h.b16 %v47
  %v237 = vunpack.c.l.b16 %v48
  %v238 = vunpack.c.h.b16 %v48
  %v239 = vunpack.c.l.b16 %v49
  %v240 = vunpack.c.h.b16 %v49
  %v241 = vunpack.c.l.b16 %v50
  %v242 = vunpack.c.h.b16 %v50
  %v243 = vunpack.c.l.b16 %v51
  %v244 = vunpack.c.h.b16 %v51
  %v245 = vunpack.c.l.b16 %v52
  %v246 = vunpack.c.h.b16 %v52
  %v247 = vunpack.c.l.b16 %v53
  %v248 = vunpack.c.h.b16 %v53
  %v249 = vunpack.c.l.b16 %v54
  %v250 = vunpack.c.h.b16 %v54
  %v251 = vunpack.c.l.b16 %v55
  %v252 = vunpack.c.h.b16 %v55
  %v253 = vunpack.c.l.b16 %v56
  %v254 = vunpack.c.h.b16 %v56
  %v255 = vunpack.c.l.b16 %v57
  %v256 = vunpack.c.h.b16 %v57
  %v257 = vunpack.c.l.b16 %v58
  %v258 = vunpack.c.h.b16 %v58
  %v259 = vunpack.c.l.b16 %v59
  %v260 = vunpack.c.h.b16 %v59
  %v261 = vunpack.c.l.b16 %v60
  %v262 = vunpack.c.h.b16 %v60
  %v263 = vunpack.c.l.b16 %v61
  %v264 = vunpack.c.h.b16 %v61
  %v265 = vunpack.c.l.b16 %v62
  %v266 = vunpack.c.h.b16 %v62
  %v267 = vunpack.c.l.b16 %v63
  %v268 = vunpack.c.h.b16 %v63
  %v269 = vunpack.c.l.b16 %v64
  %v270 = vunpack.c.h.b16 %v64
  %v271 = vunpack.c.l.b16 %v65
  %v272 = vunpack.c.h.b16 %v65
  %v273 = vunpack.c.l.b16 %v66
  %v274 = vunpack.c.h.b16 %v66
  %v275 = vunpack.c.l.b16 %v67
  %v276 = vunpack.c.h.b16 %v67
  %v277 = vunpack.c.l.b16 %v68
  %v278 = vunpack.c.h.b16 %v68
  %v279 = vunpack.c.l.b16 %v69
  %v280 = vunpack.c.h.b16 %v69
  %v281 = vunpack.c.l.b16 %v70
  %v282 = vunpack.c.h.b16 %v70
  %v283 = vunpack.c.l.b16 %v71
  %v284 = vunpack.c.h.b16 %v71
  %v285 = vunpack.c.l.b16 %v72
  %v286 = vunpack.c.h.b16 %v72
  %v287 = vunpack.c.l.b16 %v73
  %v288 = vunpack.c.h.b16 %v73
  %v289 = vunpack.c.l.b16 %v74
  %v290 = vunpack.c.h.b16 %v74
  %v291 = vunpack.c.l.b16 %v75
  %v292 = vunpack.c.h.b16 %v75
  %v293 = vunpack.c.l.b16 %v76
  %v294 = vunpack.c.h.b16 %v76
  %v295 = vunpack.c.l.b16 %v77
  %v296 = vunpack.c.h.b16 %v77
  %v297 = vunpack.c.l.b16 %v78
  %v298 = vunpack.c.h.b16 %v78
  %v299 = vunpack.c.l.b16 %v79
  %v300 = vunpack.c.h.b16 %v79
  %v301 = vunpack.c.l.b16 %v80
  %v302 = vunpack.c.h.b16 %v80
  %v303 = vunpack.c.l.b16 %v81
  %v304 = vunpack.c.h.b16 %v81
  %v305 = vunpack.c.l.b16 %v82
  %v306 = vunpack.c.h.b16 %v82
  %v307 = vunpack.c.l.b16 %v83
  %v308 = vunpack.c.h.b16 %v83
  %v309 = vunpack.c.l.b16 %v84
  %v310 = vunpack.c.h.b16 %v84
  %v311 = vunpack.c.l.b16 %v85
  %v312 = vunpack.c.h.b16 %v85
  %v313 = vunpack.c.l.b16 %v86
  %v314 = vunpack.c.h.b16 %v86
  %v315 = vunpack.c.l.b16 %v87
  %v316 = vunpack.c.h.b16 %v87
  %v317 = vunpack.c.l.b16 %v88
  %v318 = vunpack.c.h.b16 %v88
  %v319 = vunpack.c.l.b16 %v89
  %v320 = vunpack.c.h.b16 %v89
  %v321 = vpack.c.b16 %v185, %v177
  %v322 = vpack.c.b16 %v186, %v178
  %v323 = vpack.c.b16 %v187, %v179
  %v324 = vpack.c.b16 %v188, %v180
  %v325 = vpack.c.b16 %v189, %v181
  %v326 = vpack.c.b16 %v190, %v182
  %v327 = vpack.c.b16 %v191, %v183
  %v328 = vpack.c.b16 %v192, %v184
  %v329 = vpack.c.b16 %v201, %v193
  %v330 = vpack.c.b16 %v202, %v194
  %v331 = vpack.c.b16 %v203, %v195
  %v332 = vpack.c.b16 %v204, %v196
  %v333 = vpack.c.b16 %v205, %v197
  %v334 = vpack.c.b16 %v206, %v198
  %v335 = vpack.c.b16 %v207, %v199
  %v336 = vpack.c.b16 %v208, %v200
  %v337 = vpack.c.b16 %v217, %v209
  %v338 = vpack.c.b16 %v218, %v210
  %v339 = vpack.c.b16 %v219, %v211
  %v340 = vpack.c.b16 %v220, %v212
  %v341 = vpack.c.b16 %v221, %v213
  %v342 = vpack.c.b16 %v222, %v214
  %v343 = vpack.c.b16 %v223, %v215
  %v344 = vpack.c.b16 %v224, %v216
  %v345 = vpack.c.b16 %v233, %v225
  %v346 = vpack.c.b16 %v234, %v226
  %v347 = vpack.c.b16 %v235, %v227
  %v348 = vpack.c.b16 %v236, %v228
  %v349 = vpack.c.b16 %v237, %v229
  %v350 = vpack.c.b16 %v238, %v230
  %v351 = vpack.c.b16 %v239, %v231
  %v352 = vpack.c.b16 %v240, %v232
  %v353 = vpack.c.b16 %v249, %v241
  %v354 = vpack.c.b16 %v250, %v242
  %v355 = vpack.c.b16 %v251, %v243
  %v356 = vpack.c.b16 %v252, %v244
  %v357 = vpack.c.b16 %v253, %v245
  %v358 = vpack.c.b16 %v254, %v246
  %v359 = vpack.c.b16 %v255, %v247
  %v360 = vpack.c.b16 %v256, %v248
  %v361 = vpack.c.b16 %v265, %v257
  %v362 = vpack.c.b16 %v266, %v258
  %v363 = vpack.c.b16 %v267, %v259
  %v364 = vpack.c.b16 %v268, %v260
  %v365 = vpack.c.b16 %v269, %v261
  %v366 = vpack.c.b16 %v270, %v262
  %v367 = vpack.c.b16 %v271, %v263
  %v368 = vpack.c.b16 %v272, %v264
  %v369 = vpack.c.b16 %v281, %v273
  %v370 = vpack.c.b16 %v282, %v274
  %v371 = vpack.c.b16 %v283, %v275
  %v372 = vpack.c.b16 %v284, %v276
  %v373 = vpack.c.b16 %v285, %v277
  %v374 = vpack.c.b16 %v286, %v278
  %v375 = vpack.c.b16 %v287, %v279
  %v376 = vpack.c.b16 %v288, %v280
  %v377 = vpack.c.b16 %v297, %v289
  %v378 = vpack.c.b16 %v298, %v290
  %v379 = vpack.c.b16 %v299, %v291
  %v380 = vpack.c.b16 %v300, %v292
  %v381 = vpack.c.b16 %v301, %v293
  %v382 = vpack.c.b16 %v302, %v294
  %v383 = vpack.c.b16 %v303, %v295
  %v384 = vpack.c.b16 %v304, %v296
  %v385 = vpack.c.b16 %v313, %v305
  %v386 = vpack.c.b16 %v314, %v306
  %v387 = vpack.c.b16 %v315, %v307
  %v388 = vpack.c.b16 %v316, %v308
  %v389 = vpack.c.b16 %v317, %v309
  %v390 = vpack.c.b16 %v318, %v310
  %v391 = vpack.c.b16 %v319, %v311
  %v392 = vpack.c.b16 %v320, %v312
  %vm465 = vcmask 130048
  %v467 = vsel %vm465, %v100, 0
  %v470 = vsel %vm465, %v102, 0
  %472 = vmatprep.subr.bf16.mxu0 %v378
  %473 = vmatpush1.bf16.msra.mxu0 %v377
  %474 = vmatprep.subr.bf16.mxu0 %v370
  %475 = vmatpush1.bf16.msra.mxu0 %v369
  %476 = vmatprep.subr.bf16.mxu0 %v362
  %477 = vmatpush1.bf16.msra.mxu0 %v361
  %478 = vmatprep.subr.bf16.mxu0 %v354
  %479 = vmatpush1.bf16.msra.mxu0 %v353
  %480 = vmatprep.subr.bf16.mxu0 %v346
  %481 = vmatpush1.bf16.msra.mxu0 %v345
  %482 = vmatprep.subr.bf16.mxu0 %v338
  %483 = vmatpush1.bf16.msra.mxu0 %v337
  %484 = vmatprep.subr.bf16.mxu0 %v330
  %485 = vmatpush1.bf16.msra.mxu0 %v329
  %486 = vmatprep.subr.bf16.mxu0 %v322
  %487 = vmatpush1.bf16.msra.mxu0 %v321
  %488 = vmatprep.subr.bf16.mxu0 0
  %489 = vmatpush2.bf16.msra.mxu0 0
  %490 = vmatprep.subr.bf16.mxu0 0
  %491 = vmatpush2.bf16.msra.mxu0 0
  %492 = vmatprep.subr.bf16.mxu0 0
  %493 = vmatpush2.bf16.msra.mxu0 0
  %494 = vmatprep.subr.bf16.mxu0 0
  %495 = vmatpush2.bf16.msra.mxu0 0
  %496 = vmatprep.subr.bf16.mxu0 0
  %497 = vmatpush2.bf16.msra.mxu0 0
  %498 = vmatprep.subr.bf16.mxu0 0
  %499 = vmatpush2.bf16.msra.mxu0 0
  %500 = vmatprep.subr.bf16.mxu0 0
  %501 = vmatpush2.bf16.msra.mxu0 0
  %502 = vmatprep.subr.bf16.mxu0 %v386
  %503 = vmatpush2.bf16.msra.mxu0 %v385
  %504 = vmatprep.mubr.bf16.mxu0 %v467
  %505 = vmatmul.mubr.bf16.gmra.mxu0 %v99
  %v506 = vpop.f32.mrf.mxu0
  %v507 = vadd.f32 0.0, %v506
  %v508 = vpop.f32.mrf.mxu0
  %v509 = vadd.f32 0.0, %v508
  %v510 = vpop.f32.mrf.mxu0
  %v511 = vadd.f32 0.0, %v510
  %v512 = vpop.f32.mrf.mxu0
  %v513 = vadd.f32 0.0, %v512
  %514 = vmatprep.mubr.bf16.mxu0 %v470
  %515 = vmatmul.mubr.bf16.gmra.mxu0 %v101
  %v516 = vpop.f32.mrf.mxu0
  %v517 = vadd.f32 0.0, %v516
  %v518 = vpop.f32.mrf.mxu0
  %v519 = vadd.f32 0.0, %v518
  %v520 = vpop.f32.mrf.mxu0
  %v521 = vpop.f32.mrf.mxu0
  %522 = vdwg.mxu0
  %523 = vmatprep.subr.bf16.mxu0 %v380
  %524 = vmatpush1.bf16.msra.mxu0 %v379
  %525 = vmatprep.subr.bf16.mxu0 %v372
  %526 = vmatpush1.bf16.msra.mxu0 %v371
  %527 = vmatprep.subr.bf16.mxu0 %v364
  %528 = vmatpush1.bf16.msra.mxu0 %v363
  %529 = vmatprep.subr.bf16.mxu0 %v356
  %530 = vmatpush1.bf16.msra.mxu0 %v355
  %531 = vmatprep.subr.bf16.mxu0 %v348
  %532 = vmatpush1.bf16.msra.mxu0 %v347
  %533 = vmatprep.subr.bf16.mxu0 %v340
  %534 = vmatpush1.bf16.msra.mxu0 %v339
  %535 = vmatprep.subr.bf16.mxu0 %v332
  %536 = vmatpush1.bf16.msra.mxu0 %v331
  %537 = vmatprep.subr.bf16.mxu0 %v324
  %538 = vmatpush1.bf16.msra.mxu0 %v323
  %539 = vmatprep.subr.bf16.mxu0 0
  %540 = vmatpush2.bf16.msra.mxu0 0
  %541 = vmatprep.subr.bf16.mxu0 0
  %542 = vmatpush2.bf16.msra.mxu0 0
  %543 = vmatprep.subr.bf16.mxu0 0
  %544 = vmatpush2.bf16.msra.mxu0 0
  %545 = vmatprep.subr.bf16.mxu0 0
  %546 = vmatpush2.bf16.msra.mxu0 0
  %547 = vmatprep.subr.bf16.mxu0 0
  %548 = vmatpush2.bf16.msra.mxu0 0
  %549 = vmatprep.subr.bf16.mxu0 0
  %550 = vmatpush2.bf16.msra.mxu0 0
  %551 = vmatprep.subr.bf16.mxu0 0
  %552 = vmatpush2.bf16.msra.mxu0 0
  %553 = vmatprep.subr.bf16.mxu0 %v388
  %554 = vmatpush2.bf16.msra.mxu0 %v387
  %555 = vmatprep.mubr.bf16.mxu0 %v467
  %556 = vmatmul.mubr.bf16.gmra.mxu0 %v99
  %v557 = vpop.f32.mrf.mxu0
  %v558 = vadd.f32 0.0, %v557
  %v559 = vpop.f32.mrf.mxu0
  %v560 = vadd.f32 0.0, %v559
  %v561 = vpop.f32.mrf.mxu0
  %v562 = vadd.f32 0.0, %v561
  %v563 = vpop.f32.mrf.mxu0
  %v564 = vadd.f32 0.0, %v563
  %565 = vmatprep.mubr.bf16.mxu0 %v470
  %566 = vmatmul.mubr.bf16.gmra.mxu0 %v101
  %v567 = vpop.f32.mrf.mxu0
  %v568 = vadd.f32 0.0, %v567
  %v569 = vpop.f32.mrf.mxu0
  %v570 = vadd.f32 0.0, %v569
  %v571 = vpop.f32.mrf.mxu0
  %v572 = vpop.f32.mrf.mxu0
  %573 = vdwg.mxu0
  %574 = vmatprep.subr.bf16.mxu0 %v382
  %575 = vmatpush1.bf16.msra.mxu0 %v381
  %576 = vmatprep.subr.bf16.mxu0 %v374
  %577 = vmatpush1.bf16.msra.mxu0 %v373
  %578 = vmatprep.subr.bf16.mxu0 %v366
  %579 = vmatpush1.bf16.msra.mxu0 %v365
  %580 = vmatprep.subr.bf16.mxu0 %v358
  %581 = vmatpush1.bf16.msra.mxu0 %v357
  %582 = vmatprep.subr.bf16.mxu0 %v350
  %583 = vmatpush1.bf16.msra.mxu0 %v349
  %584 = vmatprep.subr.bf16.mxu0 %v342
  %585 = vmatpush1.bf16.msra.mxu0 %v341
  %586 = vmatprep.subr.bf16.mxu0 %v334
  %587 = vmatpush1.bf16.msra.mxu0 %v333
  %588 = vmatprep.subr.bf16.mxu0 %v326
  %589 = vmatpush1.bf16.msra.mxu0 %v325
  %590 = vmatprep.subr.bf16.mxu0 0
  %591 = vmatpush2.bf16.msra.mxu0 0
  %592 = vmatprep.subr.bf16.mxu0 0
  %593 = vmatpush2.bf16.msra.mxu0 0
  %594 = vmatprep.subr.bf16.mxu0 0
  %595 = vmatpush2.bf16.msra.mxu0 0
  %596 = vmatprep.subr.bf16.mxu0 0
  %597 = vmatpush2.bf16.msra.mxu0 0
  %598 = vmatprep.subr.bf16.mxu0 0
  %599 = vmatpush2.bf16.msra.mxu0 0
  %600 = vmatprep.subr.bf16.mxu0 0
  %601 = vmatpush2.bf16.msra.mxu0 0
  %602 = vmatprep.subr.bf16.mxu0 0
  %603 = vmatpush2.bf16.msra.mxu0 0
  %604 = vmatprep.subr.bf16.mxu0 %v390
  %605 = vmatpush2.bf16.msra.mxu0 %v389
  %606 = vmatprep.mubr.bf16.mxu0 %v467
  %607 = vmatmul.mubr.bf16.gmra.mxu0 %v99
  %v608 = vpop.f32.mrf.mxu0
  %v609 = vadd.f32 0.0, %v608
  %v610 = vpop.f32.mrf.mxu0
  %v611 = vadd.f32 0.0, %v610
  %v612 = vpop.f32.mrf.mxu0
  %v613 = vadd.f32 0.0, %v612
  %v614 = vpop.f32.mrf.mxu0
  %v615 = vadd.f32 0.0, %v614
  %616 = vmatprep.mubr.bf16.mxu0 %v470
  %617 = vmatmul.mubr.bf16.gmra.mxu0 %v101
  %v618 = vpop.f32.mrf.mxu0
  %v619 = vadd.f32 0.0, %v618
  %v620 = vpop.f32.mrf.mxu0
  %v621 = vadd.f32 0.0, %v620
  %v622 = vpop.f32.mrf.mxu0
  %v623 = vpop.f32.mrf.mxu0
  %624 = vdwg.mxu0
  %625 = vmatprep.subr.bf16.mxu0 %v384
  %626 = vmatpush1.bf16.msra.mxu0 %v383
  %627 = vmatprep.subr.bf16.mxu0 %v376
  %628 = vmatpush1.bf16.msra.mxu0 %v375
  %629 = vmatprep.subr.bf16.mxu0 %v368
  %630 = vmatpush1.bf16.msra.mxu0 %v367
  %631 = vmatprep.subr.bf16.mxu0 %v360
  %632 = vmatpush1.bf16.msra.mxu0 %v359
  %633 = vmatprep.subr.bf16.mxu0 %v352
  %634 = vmatpush1.bf16.msra.mxu0 %v351
  %635 = vmatprep.subr.bf16.mxu0 %v344
  %636 = vmatpush1.bf16.msra.mxu0 %v343
  %637 = vmatprep.subr.bf16.mxu0 %v336
  %638 = vmatpush1.bf16.msra.mxu0 %v335
  %639 = vmatprep.subr.bf16.mxu0 %v328
  %640 = vmatpush1.bf16.msra.mxu0 %v327
  %641 = vmatprep.subr.bf16.mxu0 0
  %642 = vmatpush2.bf16.msra.mxu0 0
  %643 = vmatprep.subr.bf16.mxu0 0
  %644 = vmatpush2.bf16.msra.mxu0 0
  %645 = vmatprep.subr.bf16.mxu0 0
  %646 = vmatpush2.bf16.msra.mxu0 0
  %647 = vmatprep.subr.bf16.mxu0 0
  %648 = vmatpush2.bf16.msra.mxu0 0
  %649 = vmatprep.subr.bf16.mxu0 0
  %650 = vmatpush2.bf16.msra.mxu0 0
  %651 = vmatprep.subr.bf16.mxu0 0
  %652 = vmatpush2.bf16.msra.mxu0 0
  %653 = vmatprep.subr.bf16.mxu0 0
  %654 = vmatpush2.bf16.msra.mxu0 0
  %655 = vmatprep.subr.bf16.mxu0 %v392
  %656 = vmatpush2.bf16.msra.mxu0 %v391
  %657 = vmatprep.mubr.bf16.mxu0 %v467
  %658 = vmatmul.mubr.bf16.gmra.mxu0 %v99
  %v659 = vpop.f32.mrf.mxu0
  %v660 = vadd.f32 0.0, %v659
  %v661 = vpop.f32.mrf.mxu0
  %v662 = vadd.f32 0.0, %v661
  %v663 = vpop.f32.mrf.mxu0
  %v664 = vadd.f32 0.0, %v663
  %v665 = vpop.f32.mrf.mxu0
  %v666 = vadd.f32 0.0, %v665
  %667 = vmatprep.mubr.bf16.mxu0 %v470
  %668 = vmatmul.mubr.bf16.gmra.mxu0 %v101
  %v669 = vpop.f32.mrf.mxu0
  %v670 = vadd.f32 0.0, %v669
  %v671 = vpop.f32.mrf.mxu0
  %v672 = vadd.f32 0.0, %v671
  %v673 = vpop.f32.mrf.mxu0
  %v674 = vpop.f32.mrf.mxu0
  %675 = vdwg.mxu0
  %v676 = vmax.f32 %v507, %v558
  %v677 = vmax.f32 %v509, %v560
  %v678 = vmax.f32 %v511, %v562
  %v679 = vmax.f32 %v513, %v564
  %v680 = vmax.f32 %v517, %v568
  %v681 = vmax.f32 %v519, %v570
  %v682 = vmax.f32 %v676, %v609
  %v683 = vmax.f32 %v677, %v611
  %v684 = vmax.f32 %v678, %v613
  %v685 = vmax.f32 %v679, %v615
  %v686 = vmax.f32 %v680, %v619
  %v687 = vmax.f32 %v681, %v621
  %v688 = vmax.f32 %v682, %v660
  %v689 = vmax.f32 %v683, %v662
  %v690 = vmax.f32 %v684, %v664
  %v691 = vmax.f32 %v685, %v666
  %v692 = vmax.f32 %v686, %v670
  %v693 = vmax.f32 %v687, %v672
  %v694 = vld [vmem:[%s2] sm:$0xff]
  %v695 = vld [vmem:[%s2 + $0x8] sm:$0xff]
  %v696 = vld [vmem:[%s2 + $0x10] sm:$0xff]
  %698 = vset.pattern.permute.xlu0 0
  %699 = vperm.xlu0 %698, %v694
  %v700 = vpop.permute.xlu0 %699
  %703 = vset.pattern.permute.xlu0 0
  %704 = vperm.xlu0 %703, %v695
  %v705 = vpop.permute.xlu0 %704
  %708 = vset.pattern.permute.xlu0 0
  %709 = vperm.xlu0 %708, %v696
  %v710 = vpop.permute.xlu0 %709
  %v712 = vadd.f32 %v688, %v700
  %v713 = vadd.f32 %v689, %v700
  %v714 = vadd.f32 %v690, %v705
  %v715 = vadd.f32 %v691, %v705
  %v716 = vadd.f32 %v692, %v710
  %v717 = vadd.f32 %v693, %v710
  %v718 = vmax.f32 %v712, 0.0
  %v719 = vmax.f32 %v713, 0.0
  %v720 = vmax.f32 %v714, 0.0
  %v721 = vmax.f32 %v715, 0.0
  %v722 = vmax.f32 %v716, 0.0
  %v723 = vmax.f32 %v717, 0.0
  %v724 = vpack.c.bf16 %v720, %v718
  %v725 = vpack.c.bf16 %v721, %v719
  %v726 = vpack.c.bf16 %v722, %v722
  %v727 = vpack.c.bf16 %v723, %v723
  %v732 = vunpack.c.l.b16 %v724
  %v733 = vunpack.c.l.b16 %v725
  %v734 = vunpack.c.h.b16 %v724
  %v735 = vunpack.c.h.b16 %v725
  %v736 = vunpack.c.l.b16 %v726
  %v737 = vunpack.c.l.b16 %v727
  %v738 = vpack.c.b16 %v733, %v732
  %v739 = vpack.c.b16 %v735, %v734
  %v740 = vpack.c.b16 %v737, %v736
  %744 = vst [vmem:[%s3] sm:$0xff] %v738
  %745 = vst [vmem:[%s3 + $0x8] sm:$0xff] %v739
  %746 = vst [vmem:[%s3 + $0x10] sm:$0xff] %v740
  // Predicated region
  $region14: #{forward.5} parent=0 // pred_check
    _
  $region15: #{forward.5} parent=0 // pred_check_branch
    %748 = sbr.rel (0) target = $region17
  $region16: #{forward.5} parent=0 // pred_region
    _
  $region17: #{forward.5} parent=0 // pred_fallthru
    _
  // Predicated region
  $region18: #{forward.5} parent=0 // pred_check
    _
  $region19: #{forward.5} parent=0 // pred_check_branch
    %750 = sbr.rel (0) target = $region21
  $region20: #{forward.5} parent=0 // pred_region
    _
  $region21: #{forward.5} parent=0 // pred_fallthru
    _

// kernel: forward.6
$region0: #{forward.6}
  #allocation0 [shape = 'u32[]', space=smem, size = 0x4, offset = 0x4, fixed_abs, tag = 'smem constant byte address 0x4 - core index']
  #allocation1 [shape = 'u32[144,128]{1,0:T(1,128)}', space=vmem, size = 0x12000, scoped, tag = 'internal scratch']
  %s0 = inlined_call_operand.vmem [shape: bf16[2,216,81], index: 0, kind: input, shape index: {}]
  %s1 = inlined_call_operand.vmem [shape: bf16[40,216], index: 1, kind: input, shape index: {}]
  %s2 = inlined_call_operand.vmem [shape: f32[40,1], index: 2, kind: input, shape index: {}]
  %s3 = inlined_call_operand.vmem [shape: bf16[2,40,81], index: 3, kind: output, shape index: {}]
  %s4 = sld [smem:[#allocation0]]
  $region22: #{forward.6} parent=0
    _
  %s6 = ssub.s32 1, %s4
  %s7 = scalar_select 0, %s6, %s4
  // Predicated region
  $region2: #{forward.6} parent=0 // pred_check
    _
  $region3: #{forward.6} parent=0 // pred_check_branch
    %9 = sbr.rel (0) target = $region5
  $region4: #{forward.6} parent=0 // pred_region
    _
  $region5: #{forward.6} parent=0 // pred_fallthru
    _
  // Predicated region
  $region6: #{forward.6} parent=0 // pred_check
    _
  $region7: #{forward.6} parent=0 // pred_check_branch
    %11 = sbr.rel (0) target = $region9
  $region8: #{forward.6} parent=0 // pred_region
    _
  $region9: #{forward.6} parent=0 // pred_fallthru
    _
  // Predicated region
  $region10: #{forward.6} parent=0 // pred_check
    _
  $region11: #{forward.6} parent=0 // pred_check_branch
    %13 = sbr.rel (0) target = $region13
  $region12: #{forward.6} parent=0 // pred_region
    _
  $region13: #{forward.6} parent=0 // pred_fallthru
    _
  %v15 = vld [vmem:[%s1] sm:$0xff]
  %v16 = vld [vmem:[%s1 + $0x8] sm:$0xff]
  %v17 = vld [vmem:[%s1 + $0x10] sm:$0xff]
  %v18 = vld [vmem:[%s1 + $0x18] sm:$0xff]
  %v19 = vld [vmem:[%s1 + $0x20] sm:$0xff]
  %v20 = vld [vmem:[%s0] sm:$0xf]
  %v21 = vld [vmem:[%s0 + $0x4] sm:$0xf]
  %v22 = vld [vmem:[%s0 + $0x8] sm:$0xf]
  %v23 = vld [vmem:[%s0 + $0xc] sm:$0xf]
  %v24 = vld [vmem:[%s0 + $0x10] sm:$0xf]
  %v25 = vld [vmem:[%s0 + $0x14] sm:$0xf]
  %v26 = vld [vmem:[%s0 + $0x18] sm:$0xf]
  %v27 = vld [vmem:[%s0 + $0x1c] sm:$0xf]
  %v28 = vld [vmem:[%s0 + $0x20] sm:$0xf]
  %v29 = vld [vmem:[%s0 + $0x24] sm:$0xf]
  %v30 = vld [vmem:[%s0 + $0x28] sm:$0xf]
  %v31 = vld [vmem:[%s0 + $0x2c] sm:$0xf]
  %v32 = vld [vmem:[%s0 + $0x30] sm:$0xf]
  %v33 = vld [vmem:[%s0 + $0x34] sm:$0xf]
  %v34 = vld [vmem:[%s0 + $0x38] sm:$0xf]
  %v35 = vld [vmem:[%s0 + $0x3c] sm:$0xf]
  %v36 = vld [vmem:[%s0 + $0x40] sm:$0xf]
  %v37 = vld [vmem:[%s0 + $0x44] sm:$0xf]
  %v38 = vld [vmem:[%s0 + $0x48] sm:$0xf]
  %v39 = vld [vmem:[%s0 + $0x4c] sm:$0xf]
  %v40 = vld [vmem:[%s0 + $0x50] sm:$0xf]
  %v41 = vld [vmem:[%s0 + $0x54] sm:$0xf]
  %v42 = vld [vmem:[%s0 + $0x58] sm:$0xf]
  %v43 = vld [vmem:[%s0 + $0x5c] sm:$0xf]
  %v44 = vld [vmem:[%s0 + $0x60] sm:$0xf]
  %v45 = vld [vmem:[%s0 + $0x64] sm:$0xf]
  %v46 = vld [vmem:[%s0 + $0x68] sm:$0xf]
  %v47 = vld [vmem:[%s2] sm:$0xff]
  %v48 = vld [vmem:[%s2 + $0x8] sm:$0xff]
  %v49 = vld [vmem:[%s2 + $0x10] sm:$0xff]
  %v50 = vld [vmem:[%s2 + $0x18] sm:$0xff]
  %v51 = vld [vmem:[%s2 + $0x20] sm:$0xff]
  %53 = vset.pattern.permute.xlu0 0
  %54 = vperm.xlu0 %53, %v47
  %v55 = vpop.permute.xlu0 %54
  %58 = vset.pattern.permute.xlu0 0
  %59 = vperm.xlu0 %58, %v48
  %v60 = vpop.permute.xlu0 %59
  %63 = vset.pattern.permute.xlu0 0
  %64 = vperm.xlu0 %63, %v49
  %v65 = vpop.permute.xlu0 %64
  %68 = vset.pattern.permute.xlu0 0
  %69 = vperm.xlu0 %68, %v50
  %v70 = vpop.permute.xlu0 %69
  %73 = vset.pattern.permute.xlu0 0
  %74 = vperm.xlu0 %73, %v51
  %v75 = vpop.permute.xlu0 %74
  %v82 = vunpack.c.l.b16 %v15
  %v83 = vunpack.c.h.b16 %v15
  %v84 = vunpack.c.l.b16 %v16
  %v85 = vunpack.c.h.b16 %v16
  %v86 = vunpack.c.l.b16 %v17
  %v87 = vunpack.c.h.b16 %v17
  %v88 = vunpack.c.l.b16 %v18
  %v89 = vunpack.c.h.b16 %v18
  %v90 = vunpack.c.l.b16 %v19
  %v91 = vunpack.c.h.b16 %v19
  %v92 = vpack.c.b16 %v84, %v82
  %v93 = vpack.c.b16 %v85, %v83
  %v94 = vpack.c.b16 %v88, %v86
  %v95 = vpack.c.b16 %v89, %v87
  %v96 = vpack.c.b16 %v90, %v90
  %v97 = vpack.c.b16 %v91, %v91
  %v128 = vunpack.c.l.b16 %v20
  %v129 = vunpack.c.l.b16 %v21
  %v130 = vunpack.c.l.b16 %v22
  %v131 = vunpack.c.l.b16 %v23
  %v132 = vunpack.c.l.b16 %v24
  %v133 = vunpack.c.l.b16 %v25
  %v134 = vunpack.c.l.b16 %v26
  %v135 = vunpack.c.l.b16 %v27
  %v136 = vunpack.c.l.b16 %v28
  %v137 = vunpack.c.l.b16 %v29
  %v138 = vunpack.c.l.b16 %v30
  %v139 = vunpack.c.l.b16 %v31
  %v140 = vunpack.c.l.b16 %v32
  %v141 = vunpack.c.l.b16 %v33
  %v142 = vunpack.c.l.b16 %v34
  %v143 = vunpack.c.l.b16 %v35
  %v144 = vunpack.c.l.b16 %v36
  %v145 = vunpack.c.l.b16 %v37
  %v146 = vunpack.c.l.b16 %v38
  %v147 = vunpack.c.l.b16 %v39
  %v148 = vunpack.c.l.b16 %v40
  %v149 = vunpack.c.l.b16 %v41
  %v150 = vunpack.c.l.b16 %v42
  %v151 = vunpack.c.l.b16 %v43
  %v152 = vunpack.c.l.b16 %v44
  %v153 = vunpack.c.l.b16 %v45
  %v154 = vunpack.c.l.b16 %v46
  %v155 = vpack.c.b16 %v129, %v128
  %v156 = vpack.c.b16 %v131, %v130
  %v157 = vpack.c.b16 %v133, %v132
  %v158 = vpack.c.b16 %v135, %v134
  %v159 = vpack.c.b16 %v137, %v136
  %v160 = vpack.c.b16 %v139, %v138
  %v161 = vpack.c.b16 %v141, %v140
  %v162 = vpack.c.b16 %v143, %v142
  %v163 = vpack.c.b16 %v145, %v144
  %v164 = vpack.c.b16 %v147, %v146
  %v165 = vpack.c.b16 %v149, %v148
  %v166 = vpack.c.b16 %v151, %v150
  %v167 = vpack.c.b16 %v153, %v152
  %v168 = vpack.c.b16 %v154, %v154
  %vm182 = vcmask 719872
  %v184 = vsel %vm182, %v93, 0
  %v187 = vsel %vm182, %v95, 0
  %v190 = vsel %vm182, %v97, 0
  %vm192 = vcmask 1043456
  %v194 = vsel %vm192, %v168, 0
  %196 = vmatprep.subr.bf16.mxu0 0
  %197 = vmatpush1.bf16.msra.mxu0 %v162
  %198 = vmatprep.subr.bf16.mxu0 0
  %199 = vmatpush1.bf16.msra.mxu0 %v161
  %200 = vmatprep.subr.bf16.mxu0 0
  %201 = vmatpush1.bf16.msra.mxu0 %v160
  %202 = vmatprep.subr.bf16.mxu0 0
  %203 = vmatpush1.bf16.msra.mxu0 %v159
  %204 = vmatprep.subr.bf16.mxu0 0
  %205 = vmatpush1.bf16.msra.mxu0 %v158
  %206 = vmatprep.subr.bf16.mxu0 0
  %207 = vmatpush1.bf16.msra.mxu0 %v157
  %208 = vmatprep.subr.bf16.mxu0 0
  %209 = vmatpush1.bf16.msra.mxu0 %v156
  %210 = vmatprep.subr.bf16.mxu0 0
  %211 = vmatpush1.bf16.msra.mxu0 %v155
  %212 = vmatprep.subr.bf16.mxu0 0
  %213 = vmatpush2.bf16.msra.mxu0 0
  %214 = vmatprep.subr.bf16.mxu0 0
  %215 = vmatpush2.bf16.msra.mxu0 0
  %216 = vmatprep.subr.bf16.mxu0 0
  %217 = vmatpush2.bf16.msra.mxu0 %v194
  %218 = vmatprep.subr.bf16.mxu0 0
  %219 = vmatpush2.bf16.msra.mxu0 %v167
  %220 = vmatprep.subr.bf16.mxu0 0
  %221 = vmatpush2.bf16.msra.mxu0 %v166
  %222 = vmatprep.subr.bf16.mxu0 0
  %223 = vmatpush2.bf16.msra.mxu0 %v165
  %224 = vmatprep.subr.bf16.mxu0 0
  %225 = vmatpush2.bf16.msra.mxu0 %v164
  %226 = vmatprep.subr.bf16.mxu0 0
  %227 = vmatpush2.bf16.msra.mxu0 %v163
  %228 = vmatprep.mubr.bf16.mxu0 %v184
  %229 = vmatmul.mubr.bf16.gmra.mxu0 %v92
  %v230 = vpop.f32.mrf.mxu0
  %v231 = vadd.f32 %v55, %v230
  %v232 = vpop.f32.mrf.mxu0
  %v233 = vpop.f32.mrf.mxu0
  %v234 = vadd.f32 %v60, %v233
  %v235 = vpop.f32.mrf.mxu0
  %236 = vmatprep.mubr.bf16.mxu0 %v187
  %237 = vmatmul.mubr.bf16.gmra.mxu0 %v94
  %v238 = vpop.f32.mrf.mxu0
  %v239 = vadd.f32 %v65, %v238
  %v240 = vpop.f32.mrf.mxu0
  %v241 = vpop.f32.mrf.mxu0
  %v242 = vadd.f32 %v70, %v241
  %v243 = vpop.f32.mrf.mxu0
  %244 = vmatprep.mubr.bf16.mxu0 %v190
  %245 = vmatmul.mubr.bf16.gmra.mxu0 %v96
  %v246 = vpop.f32.mrf.mxu0
  %v247 = vadd.f32 %v75, %v246
  %v248 = vpop.f32.mrf.mxu0
  %v249 = vpop.f32.mrf.mxu0
  %v250 = vpop.f32.mrf.mxu0
  %251 = vdwg.mxu0
  %v252 = vmax.f32 %v231, 0.0
  %v253 = vmax.f32 %v234, 0.0
  %v254 = vmax.f32 %v239, 0.0
  %v255 = vmax.f32 %v242, 0.0
  %v256 = vmax.f32 %v247, 0.0
  %v257 = vpack.c.bf16 %v253, %v252
  %v258 = vpack.c.bf16 %v255, %v254
  %v259 = vpack.c.bf16 %v256, %v256
  %v263 = vunpack.c.l.b16 %v257
  %v264 = vunpack.c.h.b16 %v257
  %v265 = vunpack.c.l.b16 %v258
  %v266 = vunpack.c.h.b16 %v258
  %v267 = vunpack.c.l.b16 %v259
  %v268 = vpack.c.b16 %v263, %v263
  %v269 = vpack.c.b16 %v264, %v264
  %v270 = vpack.c.b16 %v265, %v265
  %v271 = vpack.c.b16 %v266, %v266
  %v272 = vpack.c.b16 %v267, %v267
  %vm278 = vcmask 658432
  %279 = vst.msk [vmem:[%s3] sm:$0xf] %vm278, %v268
  %280 = vst.msk [vmem:[%s3 + $0x4] sm:$0xf] %vm278, %v269
  %281 = vst.msk [vmem:[%s3 + $0x8] sm:$0xf] %vm278, %v270
  %282 = vst.msk [vmem:[%s3 + $0xc] sm:$0xf] %vm278, %v271
  %283 = vst.msk [vmem:[%s3 + $0x10] sm:$0xf] %vm278, %v272
  %v284 = vld [vmem:[%s1] sm:$0xff]
  %v285 = vld [vmem:[%s1 + $0x8] sm:$0xff]
  %v286 = vld [vmem:[%s1 + $0x10] sm:$0xff]
  %v287 = vld [vmem:[%s1 + $0x18] sm:$0xff]
  %v288 = vld [vmem:[%s1 + $0x20] sm:$0xff]
  %s289 = scalar_lea.vmem %s0, 108
  %v290 = vld [vmem:[%s289] sm:$0xf]
  %v291 = vld [vmem:[%s289 + $0x4] sm:$0xf]
  %v292 = vld [vmem:[%s289 + $0x8] sm:$0xf]
  %v293 = vld [vmem:[%s289 + $0xc] sm:$0xf]
  %v294 = vld [vmem:[%s289 + $0x10] sm:$0xf]
  %v295 = vld [vmem:[%s289 + $0x14] sm:$0xf]
  %v296 = vld [vmem:[%s289 + $0x18] sm:$0xf]
  %v297 = vld [vmem:[%s289 + $0x1c] sm:$0xf]
  %v298 = vld [vmem:[%s289 + $0x20] sm:$0xf]
  %v299 = vld [vmem:[%s289 + $0x24] sm:$0xf]
  %v300 = vld [vmem:[%s289 + $0x28] sm:$0xf]
  %v301 = vld [vmem:[%s289 + $0x2c] sm:$0xf]
  %v302 = vld [vmem:[%s289 + $0x30] sm:$0xf]
  %v303 = vld [vmem:[%s289 + $0x34] sm:$0xf]
  %v304 = vld [vmem:[%s289 + $0x38] sm:$0xf]
  %v305 = vld [vmem:[%s289 + $0x3c] sm:$0xf]
  %v306 = vld [vmem:[%s289 + $0x40] sm:$0xf]
  %v307 = vld [vmem:[%s289 + $0x44] sm:$0xf]
  %v308 = vld [vmem:[%s289 + $0x48] sm:$0xf]
  %v309 = vld [vmem:[%s289 + $0x4c] sm:$0xf]
  %v310 = vld [vmem:[%s289 + $0x50] sm:$0xf]
  %v311 = vld [vmem:[%s289 + $0x54] sm:$0xf]
  %v312 = vld [vmem:[%s289 + $0x58] sm:$0xf]
  %v313 = vld [vmem:[%s289 + $0x5c] sm:$0xf]
  %v314 = vld [vmem:[%s289 + $0x60] sm:$0xf]
  %v315 = vld [vmem:[%s289 + $0x64] sm:$0xf]
  %v316 = vld [vmem:[%s289 + $0x68] sm:$0xf]
  %v317 = vld [vmem:[%s2] sm:$0xff]
  %v318 = vld [vmem:[%s2 + $0x8] sm:$0xff]
  %v319 = vld [vmem:[%s2 + $0x10] sm:$0xff]
  %v320 = vld [vmem:[%s2 + $0x18] sm:$0xff]
  %v321 = vld [vmem:[%s2 + $0x20] sm:$0xff]
  %323 = vset.pattern.permute.xlu0 0
  %324 = vperm.xlu0 %323, %v317
  %v325 = vpop.permute.xlu0 %324
  %328 = vset.pattern.permute.xlu0 0
  %329 = vperm.xlu0 %328, %v318
  %v330 = vpop.permute.xlu0 %329
  %333 = vset.pattern.permute.xlu0 0
  %334 = vperm.xlu0 %333, %v319
  %v335 = vpop.permute.xlu0 %334
  %338 = vset.pattern.permute.xlu0 0
  %339 = vperm.xlu0 %338, %v320
  %v340 = vpop.permute.xlu0 %339
  %343 = vset.pattern.permute.xlu0 0
  %344 = vperm.xlu0 %343, %v321
  %v345 = vpop.permute.xlu0 %344
  %v352 = vunpack.c.l.b16 %v284
  %v353 = vunpack.c.h.b16 %v284
  %v354 = vunpack.c.l.b16 %v285
  %v355 = vunpack.c.h.b16 %v285
  %v356 = vunpack.c.l.b16 %v286
  %v357 = vunpack.c.h.b16 %v286
  %v358 = vunpack.c.l.b16 %v287
  %v359 = vunpack.c.h.b16 %v287
  %v360 = vunpack.c.l.b16 %v288
  %v361 = vunpack.c.h.b16 %v288
  %v362 = vpack.c.b16 %v354, %v352
  %v363 = vpack.c.b16 %v355, %v353
  %v364 = vpack.c.b16 %v358, %v356
  %v365 = vpack.c.b16 %v359, %v357
  %v366 = vpack.c.b16 %v360, %v360
  %v367 = vpack.c.b16 %v361, %v361
  %v398 = vunpack.c.l.b16 %v290
  %v399 = vunpack.c.l.b16 %v291
  %v400 = vunpack.c.l.b16 %v292
  %v401 = vunpack.c.l.b16 %v293
  %v402 = vunpack.c.l.b16 %v294
  %v403 = vunpack.c.l.b16 %v295
  %v404 = vunpack.c.l.b16 %v296
  %v405 = vunpack.c.l.b16 %v297
  %v406 = vunpack.c.l.b16 %v298
  %v407 = vunpack.c.l.b16 %v299
  %v408 = vunpack.c.l.b16 %v300
  %v409 = vunpack.c.l.b16 %v301
  %v410 = vunpack.c.l.b16 %v302
  %v411 = vunpack.c.l.b16 %v303
  %v412 = vunpack.c.l.b16 %v304
  %v413 = vunpack.c.l.b16 %v305
  %v414 = vunpack.c.l.b16 %v306
  %v415 = vunpack.c.l.b16 %v307
  %v416 = vunpack.c.l.b16 %v308
  %v417 = vunpack.c.l.b16 %v309
  %v418 = vunpack.c.l.b16 %v310
  %v419 = vunpack.c.l.b16 %v311
  %v420 = vunpack.c.l.b16 %v312
  %v421 = vunpack.c.l.b16 %v313
  %v422 = vunpack.c.l.b16 %v314
  %v423 = vunpack.c.l.b16 %v315
  %v424 = vunpack.c.l.b16 %v316
  %v425 = vpack.c.b16 %v399, %v398
  %v426 = vpack.c.b16 %v401, %v400
  %v427 = vpack.c.b16 %v403, %v402
  %v428 = vpack.c.b16 %v405, %v404
  %v429 = vpack.c.b16 %v407, %v406
  %v430 = vpack.c.b16 %v409, %v408
  %v431 = vpack.c.b16 %v411, %v410
  %v432 = vpack.c.b16 %v413, %v412
  %v433 = vpack.c.b16 %v415, %v414
  %v434 = vpack.c.b16 %v417, %v416
  %v435 = vpack.c.b16 %v419, %v418
  %v436 = vpack.c.b16 %v421, %v420
  %v437 = vpack.c.b16 %v423, %v422
  %v438 = vpack.c.b16 %v424, %v424
  %v453 = vsel %vm182, %v363, 0
  %v456 = vsel %vm182, %v365, 0
  %v459 = vsel %vm182, %v367, 0
  %v462 = vsel %vm192, %v438, 0
  %464 = vmatprep.subr.bf16.mxu0 0
  %465 = vmatpush1.bf16.msra.mxu0 %v432
  %466 = vmatprep.subr.bf16.mxu0 0
  %467 = vmatpush1.bf16.msra.mxu0 %v431
  %468 = vmatprep.subr.bf16.mxu0 0
  %469 = vmatpush1.bf16.msra.mxu0 %v430
  %470 = vmatprep.subr.bf16.mxu0 0
  %471 = vmatpush1.bf16.msra.mxu0 %v429
  %472 = vmatprep.subr.bf16.mxu0 0
  %473 = vmatpush1.bf16.msra.mxu0 %v428
  %474 = vmatprep.subr.bf16.mxu0 0
  %475 = vmatpush1.bf16.msra.mxu0 %v427
  %476 = vmatprep.subr.bf16.mxu0 0
  %477 = vmatpush1.bf16.msra.mxu0 %v426
  %478 = vmatprep.subr.bf16.mxu0 0
  %479 = vmatpush1.bf16.msra.mxu0 %v425
  %480 = vmatprep.subr.bf16.mxu0 0
  %481 = vmatpush2.bf16.msra.mxu0 0
  %482 = vmatprep.subr.bf16.mxu0 0
  %483 = vmatpush2.bf16.msra.mxu0 0
  %484 = vmatprep.subr.bf16.mxu0 0
  %485 = vmatpush2.bf16.msra.mxu0 %v462
  %486 = vmatprep.subr.bf16.mxu0 0
  %487 = vmatpush2.bf16.msra.mxu0 %v437
  %488 = vmatprep.subr.bf16.mxu0 0
  %489 = vmatpush2.bf16.msra.mxu0 %v436
  %490 = vmatprep.subr.bf16.mxu0 0
  %491 = vmatpush2.bf16.msra.mxu0 %v435
  %492 = vmatprep.subr.bf16.mxu0 0
  %493 = vmatpush2.bf16.msra.mxu0 %v434
  %494 = vmatprep.subr.bf16.mxu0 0
  %495 = vmatpush2.bf16.msra.mxu0 %v433
  %496 = vmatprep.mubr.bf16.mxu0 %v453
  %497 = vmatmul.mubr.bf16.gmra.mxu0 %v362
  %v498 = vpop.f32.mrf.mxu0
  %v499 = vadd.f32 %v325, %v498
  %v500 = vpop.f32.mrf.mxu0
  %v501 = vpop.f32.mrf.mxu0
  %v502 = vadd.f32 %v330, %v501
  %v503 = vpop.f32.mrf.mxu0
  %504 = vmatprep.mubr.bf16.mxu0 %v456
  %505 = vmatmul.mubr.bf16.gmra.mxu0 %v364
  %v506 = vpop.f32.mrf.mxu0
  %v507 = vadd.f32 %v335, %v506
  %v508 = vpop.f32.mrf.mxu0
  %v509 = vpop.f32.mrf.mxu0
  %v510 = vadd.f32 %v340, %v509
  %v511 = vpop.f32.mrf.mxu0
  %512 = vmatprep.mubr.bf16.mxu0 %v459
  %513 = vmatmul.mubr.bf16.gmra.mxu0 %v366
  %v514 = vpop.f32.mrf.mxu0
  %v515 = vadd.f32 %v345, %v514
  %v516 = vpop.f32.mrf.mxu0
  %v517 = vpop.f32.mrf.mxu0
  %v518 = vpop.f32.mrf.mxu0
  %519 = vdwg.mxu0
  %v520 = vmax.f32 %v499, 0.0
  %v521 = vmax.f32 %v502, 0.0
  %v522 = vmax.f32 %v507, 0.0
  %v523 = vmax.f32 %v510, 0.0
  %v524 = vmax.f32 %v515, 0.0
  %v525 = vpack.c.bf16 %v521, %v520
  %v526 = vpack.c.bf16 %v523, %v522
  %v527 = vpack.c.bf16 %v524, %v524
  %v531 = vunpack.c.l.b16 %v525
  %v532 = vunpack.c.h.b16 %v525
  %v533 = vunpack.c.l.b16 %v526
  %v534 = vunpack.c.h.b16 %v526
  %v535 = vunpack.c.l.b16 %v527
  %v536 = vpack.c.b16 %v531, %v531
  %v537 = vpack.c.b16 %v532, %v532
  %v538 = vpack.c.b16 %v533, %v533
  %v539 = vpack.c.b16 %v534, %v534
  %v540 = vpack.c.b16 %v535, %v535
  %s546 = scalar_lea.vmem %s3, 20
  %547 = vst.msk [vmem:[%s546] sm:$0xf] %vm278, %v536
  %548 = vst.msk [vmem:[%s546 + $0x4] sm:$0xf] %vm278, %v537
  %549 = vst.msk [vmem:[%s546 + $0x8] sm:$0xf] %vm278, %v538
  %550 = vst.msk [vmem:[%s546 + $0xc] sm:$0xf] %vm278, %v539
  %551 = vst.msk [vmem:[%s546 + $0x10] sm:$0xf] %vm278, %v540
  // Predicated region
  $region14: #{forward.6} parent=0 // pred_check
    _
  $region15: #{forward.6} parent=0 // pred_check_branch
    %553 = sbr.rel (0) target = $region17
  $region16: #{forward.6} parent=0 // pred_region
    _
  $region17: #{forward.6} parent=0 // pred_fallthru
    _
  // Predicated region
  $region18: #{forward.6} parent=0 // pred_check
    _
  $region19: #{forward.6} parent=0 // pred_check_branch
    %555 = sbr.rel (0) target = $region21
  $region20: #{forward.6} parent=0 // pred_region
    _
  $region21: #{forward.6} parent=0 // pred_fallthru
    _

// kernel: forward.7
$region0: #{forward.7}
  #allocation0 [shape = 'u32[]', space=smem, size = 0x4, offset = 0x4, fixed_abs, tag = 'smem constant byte address 0x4 - core index']
  #allocation1 [shape = 'u32[144,128]{1,0:T(1,128)}', space=vmem, size = 0x12000, scoped, tag = 'internal scratch']
  %s0 = inlined_call_operand.vmem [shape: bf16[2,3240], index: 0, kind: input, shape index: {}]
  %s1 = inlined_call_operand.vmem [shape: bf16[3240,512], index: 1, kind: input, shape index: {}]
  %s2 = inlined_call_operand.vmem [shape: f32[1,512], index: 2, kind: input, shape index: {}]
  %s3 = inlined_call_operand.vmem [shape: bf16[512,4], index: 3, kind: input, shape index: {}]
  %s4 = inlined_call_operand.vmem [shape: f32[1,4], index: 4, kind: input, shape index: {}]
  %s5 = inlined_call_operand.hbm [shape: f32[2,4], index: 5, kind: output, shape index: {}]
  %s6 = sld [smem:[#allocation0]]
  $region98: #{forward.7} parent=0
    _
  %s8 = ssub.s32 1, %s6
  %s9 = scalar_select 0, %s8, %s6
  $region1: #{forward.7} parent=0
    #allocation2 [shape = 'u8[1658880]{0}', space=vmem, size = 0x195000, scoped, tag = 'input window, operand 1']
    #allocation3 [shape = 'u8[1024]{0}', space=vmem, size = 0x400, scoped, tag = 'output window, operand 0, single buffered']
    #allocation4 [shape = 's32[2]{0}', space=sflag, size = 0x8, scoped, tag = 'scoped memory for forward.7']
    %10 = vsyncpa [#allocation4], 0
    loop: start=0, step=1, limit=6
    $region2: #{forward.7} parent=1 // loop_pre_header
      _
    $region3: #{forward.7} parent=1 // loop_header
      %s12 = sphi 0, %s16
      %p13 = scmp.ge.s32.totalorder %s12, 6
      %s20 = sphi 0, %s20
      %s22 = sphi 0, %s20
      %s23 = sphi 0, %s22
      %s37 = sphi 0, %s23
      %s43 = sphi 0, %s45
      %s46 = sphi 0, %s43
      %s47 = sphi 0, %s46
      %s63 = sphi 0, %s47
      %s69 = sphi 0, %s71
      %s72 = sphi 0, %s69
      %s73 = sphi 0, %s72
      %s89 = sphi 0, %s73
      %s95 = sphi 0, %s97
      %s98 = sphi 0, %s95
      %s99 = sphi 0, %s98
      %s115 = sphi 0, %s99
      %s119 = sphi 0, %s119
      %s121 = sphi 0, %s119
      %s122 = sphi 0, %s121
      %s136 = sphi 0, %s122
      %s140 = sphi 0, %s140
      %s142 = sphi 0, %s140
      %s143 = sphi 0, %s142
      %s157 = sphi 0, %s143
    $region4: #{forward.7} parent=1 // loop_header_branch
      %15 = sbr.rel (%p13) target = $region8
    $region5: #{forward.7} parent=1 // loop_body
      %s17 = ssub.s32 %s12, 1
      %s18 = ssub.s32 %s12, 2
      %s19 = sadd.s32 %s12, 1
      %s21 = sadd.s32 %s20, 1
      %p24 = scmp.eq.s32.totalorder %s12, 3
      %p25 = scmp.ne.s32.totalorder %s20, %s22
      %p26 = scmp.eq.s32.totalorder %s12, 0
      %p27 = por %p25, %p26
      %p28 = scmp.ne.s32.totalorder %s20, %s22
      %p29 = scmp.eq.s32.totalorder %s17, 3
      %p30 = por %p28, %p29
      %p31 = scmp.ne.s32.totalorder %s22, %s23
      %p32 = scmp.eq.s32.totalorder %s17, 0
      %p33 = por %p31, %p32
      %p34 = scmp.ne.s32.totalorder %s22, %s23
      %p35 = scmp.eq.s32.totalorder %s18, 3
      %p36 = por %p34, %p35
      %p38 = scmp.ne.s32.totalorder %s23, %s37
      %p39 = scmp.eq.s32.totalorder %s18, 0
      %p40 = por %p38, %p39
      %s41 = ssub.s32 %s12, %s19
      %p42 = scmp.eq.s32.totalorder %s41, 0
      %s44 = sadd.s32 %s43, 1
      %s45 = scalar_select %p42, %s43, %s44
      %p48 = pneg %p42
      %p49 = scmp.eq.s32.totalorder %s12, 3
      %p50 = por %p48, %p49
      %p51 = scmp.ne.s32.totalorder %s43, %s46
      %p52 = scmp.eq.s32.totalorder %s12, 0
      %p53 = por %p51, %p52
      %p54 = scmp.ne.s32.totalorder %s43, %s46
      %p55 = scmp.eq.s32.totalorder %s17, 3
      %p56 = por %p54, %p55
      %p57 = scmp.ne.s32.totalorder %s46, %s47
      %p58 = scmp.eq.s32.totalorder %s17, 0
      %p59 = por %p57, %p58
      %p60 = scmp.ne.s32.totalorder %s46, %s47
      %p61 = scmp.eq.s32.totalorder %s18, 3
      %p62 = por %p60, %p61
      %p64 = scmp.ne.s32.totalorder %s47, %s63
      %p65 = scmp.eq.s32.totalorder %s18, 0
      %p66 = por %p64, %p65
      %s67 = ssub.s32 %s12, %s19
      %p68 = scmp.eq.s32.totalorder %s67, 0
      %s70 = sadd.s32 %s69, 1
      %s71 = scalar_select %p68, %s69, %s70
      %p74 = pneg %p68
      %p75 = scmp.eq.s32.totalorder %s12, 3
      %p76 = por %p74, %p75
      %p77 = scmp.ne.s32.totalorder %s69, %s72
      %p78 = scmp.eq.s32.totalorder %s12, 0
      %p79 = por %p77, %p78
      %p80 = scmp.ne.s32.totalorder %s69, %s72
      %p81 = scmp.eq.s32.totalorder %s17, 3
      %p82 = por %p80, %p81
      %p83 = scmp.ne.s32.totalorder %s72, %s73
      %p84 = scmp.eq.s32.totalorder %s17, 0
      %p85 = por %p83, %p84
      %p86 = scmp.ne.s32.totalorder %s72, %s73
      %p87 = scmp.eq.s32.totalorder %s18, 3
      %p88 = por %p86, %p87
      %p90 = scmp.ne.s32.totalorder %s73, %s89
      %p91 = scmp.eq.s32.totalorder %s18, 0
      %p92 = por %p90, %p91
      %s93 = ssub.s32 %s12, %s19
      %p94 = scmp.eq.s32.totalorder %s93, 0
      %s96 = sadd.s32 %s95, 1
      %s97 = scalar_select %p94, %s95, %s96
      %p100 = pneg %p94
      %p101 = scmp.eq.s32.totalorder %s12, 3
      %p102 = por %p100, %p101
      %p103 = scmp.ne.s32.totalorder %s95, %s98
      %p104 = scmp.eq.s32.totalorder %s12, 0
      %p105 = por %p103, %p104
      %p106 = scmp.ne.s32.totalorder %s95, %s98
      %p107 = scmp.eq.s32.totalorder %s17, 3
      %p108 = por %p106, %p107
      %p109 = scmp.ne.s32.totalorder %s98, %s99
      %p110 = scmp.eq.s32.totalorder %s17, 0
      %p111 = por %p109, %p110
      %p112 = scmp.ne.s32.totalorder %s98, %s99
      %p113 = scmp.eq.s32.totalorder %s18, 3
      %p114 = por %p112, %p113
      %p116 = scmp.ne.s32.totalorder %s99, %s115
      %p117 = scmp.eq.s32.totalorder %s18, 0
      %p118 = por %p116, %p117
      %s120 = sadd.s32 %s119, 1
      %p123 = scmp.eq.s32.totalorder %s12, 3
      %p124 = scmp.ne.s32.totalorder %s119, %s121
      %p125 = scmp.eq.s32.totalorder %s12, 0
      %p126 = por %p124, %p125
      %p127 = scmp.ne.s32.totalorder %s119, %s121
      %p128 = scmp.eq.s32.totalorder %s17, 3
      %p129 = por %p127, %p128
      %p130 = scmp.ne.s32.totalorder %s121, %s122
      %p131 = scmp.eq.s32.totalorder %s17, 0
      %p132 = por %p130, %p131
      %p133 = scmp.ne.s32.totalorder %s121, %s122
      %p134 = scmp.eq.s32.totalorder %s18, 3
      %p135 = por %p133, %p134
      %p137 = scmp.ne.s32.totalorder %s122, %s136
      %p138 = scmp.eq.s32.totalorder %s18, 0
      %p139 = por %p137, %p138
      %s141 = sadd.s32 %s140, 1
      %p144 = scmp.eq.s32.totalorder %s12, 3
      %p145 = scmp.ne.s32.totalorder %s140, %s142
      %p146 = scmp.eq.s32.totalorder %s12, 0
      %p147 = por %p145, %p146
      %p148 = scmp.ne.s32.totalorder %s140, %s142
      %p149 = scmp.eq.s32.totalorder %s17, 3
      %p150 = por %p148, %p149
      %p151 = scmp.ne.s32.totalorder %s142, %s143
      %p152 = scmp.eq.s32.totalorder %s17, 0
      %p153 = por %p151, %p152
      %p154 = scmp.ne.s32.totalorder %s142, %s143
      %p155 = scmp.eq.s32.totalorder %s18, 3
      %p156 = por %p154, %p155
      %p158 = scmp.ne.s32.totalorder %s143, %s157
      %p159 = scmp.eq.s32.totalorder %s18, 0
      %p160 = por %p158, %p159
      %p161 = scmp.le.s32.totalorder 1, %s12
      %p162 = scmp.lt.s32.totalorder %s12, 5
      %p163 = pnand %p161, %p162
      %p164 = pneg %p163
      // Predicated region
      $region9: #{forward.7} parent=5 // pred_check
        _
      $region10: #{forward.7} parent=5 // pred_check_branch
        %166 = sbr.rel (%p163) target = $region12
      $region11: #{forward.7} parent=5 // pred_region
        %s167 = ssub.s32 %s12, 1
        // Predicated region
        $region13: #{forward.7} parent=11 // pred_check
          %p168 = pneg %p33
        $region14: #{forward.7} parent=11 // pred_check_branch
          %170 = sbr.rel (%p168) target = $region16
        $region15: #{forward.7} parent=11 // pred_region
          _
        $region16: #{forward.7} parent=11 // pred_fallthru
          _
        // Predicated region
        $region17: #{forward.7} parent=11 // pred_check
          %p171 = pneg %p132
        $region18: #{forward.7} parent=11 // pred_check_branch
          %173 = sbr.rel (%p171) target = $region20
        $region19: #{forward.7} parent=11 // pred_region
          _
        $region20: #{forward.7} parent=11 // pred_fallthru
          _
      $region12: #{forward.7} parent=5 // pred_fallthru
        _
      %p174 = scmp.lt.s32.totalorder %s12, 4
      // Predicated region
      $region21: #{forward.7} parent=5 // pred_check
        %p175 = pneg %p174
      $region22: #{forward.7} parent=5 // pred_check_branch
        %177 = sbr.rel (%p175) target = $region24
      $region23: #{forward.7} parent=5 // pred_region
        // Predicated region
        $region25: #{forward.7} parent=23 // pred_check
          %p178 = pneg %p53
        $region26: #{forward.7} parent=23 // pred_check_branch
          %180 = sbr.rel (%p178) target = $region28
        $region27: #{forward.7} parent=23 // pred_region
          %s181 = sand.u32 %s43, 1
          %s182 = sand.u32 %s43, 1
          %s183 = smul.addr %s182, 1620
          %s184 = scalar_lea.vmem [#allocation2], %s183
          %s185 = smul.addr %s12, 4
          %s186 = scalar_lea.vmem %s1, %s185
          // Predicated region
          $region29: #{forward.7} parent=27 // pred_check
            _
          $region30: #{forward.7} parent=27 // pred_check_branch
            %188 = sbr.rel (0) target = $region32
          $region31: #{forward.7} parent=27 // pred_region
            // Predicated region
            $region33: #{forward.7} parent=31 // pred_check
              _
            $region34: #{forward.7} parent=31 // pred_check_branch
              %190 = sbr.rel target = $region36
            $region35: #{forward.7} parent=31 // pred_region
              // Predicated region
              $region48: #{forward.7} parent=35 // pred_check
                _
              $region49: #{forward.7} parent=35 // pred_check_branch
                %1014 = sbr.rel (0) target = $region51
              $region50: #{forward.7} parent=35 // pred_region
                loop: start=0, step=1, limit=1
                $region52: #{forward.7} parent=50 // loop_pre_header
                  _
                $region53: #{forward.7} parent=50 // loop_header
                  %s1016 = sphi 0, %s1020
                  %p1017 = scmp.ge.s32.totalorder %s1016, 1
                  %s1021 = sphi %s186, %s186
                  %s1022 = sphi %s184, %s184
                $region54: #{forward.7} parent=50 // loop_header_branch
                  %1019 = sbr.rel (%p1017) target = $region58
                $region55: #{forward.7} parent=50 // loop_body
                  _
                $region56: #{forward.7} parent=50 // loop_footer
                  %s1020 = sadd.s32 1, %s1016
                $region57: #{forward.7} parent=50 // loop_footer_branch
                  %1015 = sbr.rel target = $region53
                $region58: #{forward.7} parent=50 // loop_exit
                  _
                %s1024 = ssub.s32 16, 1
                loop: start=0, step=1, limit=1
                $region59: #{forward.7} parent=50 // loop_pre_header
                  _
                $region60: #{forward.7} parent=50 // loop_header
                  %s1026 = sphi 0, %s1030
                  %p1027 = scmp.ge.s32.totalorder %s1026, 1
                  %s1031 = sphi %s186, %s186
                  %s1032 = sphi %s184, %s184
                $region61: #{forward.7} parent=50 // loop_header_branch
                  %1029 = sbr.rel (%p1027) target = $region65
                $region62: #{forward.7} parent=50 // loop_body
                  %v1033 = vld [vmem:[%s1031] sm:%s1024]
                  %1034 = vst [vmem:[%s1032] sm:%s1024] %v1033
                  %v1035 = vld [vmem:[%s1031 + $0x10] sm:%s1024]
                  %1036 = vst [vmem:[%s1032 + $0x4] sm:%s1024] %v1035
                  %v1037 = vld [vmem:[%s1031 + $0x20] sm:%s1024]
                  %1038 = vst [vmem:[%s1032 + $0x8] sm:%s1024] %v1037
                  %v1039 = vld [vmem:[%s1031 + $0x30] sm:%s1024]
                  %1040 = vst [vmem:[%s1032 + $0xc] sm:%s1024] %v1039
                  %v1041 = vld [vmem:[%s1031 + $0x40] sm:%s1024]
                  %1042 = vst [vmem:[%s1032 + $0x10] sm:%s1024] %v1041
                  %v1043 = vld [vmem:[%s1031 + $0x50] sm:%s1024]
                  %1044 = vst [vmem:[%s1032 + $0x14] sm:%s1024] %v1043
                  %v1045 = vld [vmem:[%s1031 + $0x60] sm:%s1024]
                  %1046 = vst [vmem:[%s1032 + $0x18] sm:%s1024] %v1045
                  %v1047 = vld [vmem:[%s1031 + $0x70] sm:%s1024]
                  %1048 = vst [vmem:[%s1032 + $0x1c] sm:%s1024] %v1047
                  %v1049 = vld [vmem:[%s1031 + $0x80] sm:%s1024]
                  %1050 = vst [vmem:[%s1032 + $0x20] sm:%s1024] %v1049
                  %v1051 = vld [vmem:[%s1031 + $0x90] sm:%s1024]
                  %1052 = vst [vmem:[%s1032 + $0x24] sm:%s1024] %v1051
                  %v1053 = vld [vmem:[%s1031 + $0xa0] sm:%s1024]
                  %1054 = vst [vmem:[%s1032 + $0x28] sm:%s1024] %v1053
                  %v1055 = vld [vmem:[%s1031 + $0xb0] sm:%s1024]
                  %1056 = vst [vmem:[%s1032 + $0x2c] sm:%s1024] %v1055
                  %v1057 = vld [vmem:[%s1031 + $0xc0] sm:%s1024]
                  %1058 = vst [vmem:[%s1032 + $0x30] sm:%s1024] %v1057
                  %v1059 = vld [vmem:[%s1031 + $0xd0] sm:%s1024]
                  %1060 = vst [vmem:[%s1032 + $0x34] sm:%s1024] %v1059
                  %v1061 = vld [vmem:[%s1031 + $0xe0] sm:%s1024]
                  %1062 = vst [vmem:[%s1032 + $0x38] sm:%s1024] %v1061
                  %v1063 = vld [vmem:[%s1031 + $0xf0] sm:%s1024]
                  %1064 = vst [vmem:[%s1032 + $0x3c] sm:%s1024] %v1063
                  %v1065 = vld [vmem:[%s1031 + $0x100] sm:%s1024]
                  %1066 = vst [vmem:[%s1032 + $0x40] sm:%s1024] %v1065
                  %v1067 = vld [vmem:[%s1031 + $0x110] sm:%s1024]
                  %1068 = vst [vmem:[%s1032 + $0x44] sm:%s1024] %v1067
                  %v1069 = vld [vmem:[%s1031 + $0x120] sm:%s1024]
                  %1070 = vst [vmem:[%s1032 + $0x48] sm:%s1024] %v1069
                  %v1071 = vld [vmem:[%s1031 + $0x130] sm:%s1024]
                  %1072 = vst [vmem:[%s1032 + $0x4c] sm:%s1024] %v1071
                  %v1073 = vld [vmem:[%s1031 + $0x140] sm:%s1024]
                  %1074 = vst [vmem:[%s1032 + $0x50] sm:%s1024] %v1073
                  %v1075 = vld [vmem:[%s1031 + $0x150] sm:%s1024]
                  %1076 = vst [vmem:[%s1032 + $0x54] sm:%s1024] %v1075
                  %v1077 = vld [vmem:[%s1031 + $0x160] sm:%s1024]
                  %1078 = vst [vmem:[%s1032 + $0x58] sm:%s1024] %v1077
                  %v1079 = vld [vmem:[%s1031 + $0x170] sm:%s1024]
                  %1080 = vst [vmem:[%s1032 + $0x5c] sm:%s1024] %v1079
                  %v1081 = vld [vmem:[%s1031 + $0x180] sm:%s1024]
                  %1082 = vst [vmem:[%s1032 + $0x60] sm:%s1024] %v1081
                  %v1083 = vld [vmem:[%s1031 + $0x190] sm:%s1024]
                  %1084 = vst [vmem:[%s1032 + $0x64] sm:%s1024] %v1083
                  %v1085 = vld [vmem:[%s1031 + $0x1a0] sm:%s1024]
                  %1086 = vst [vmem:[%s1032 + $0x68] sm:%s1024] %v1085
                  %v1087 = vld [vmem:[%s1031 + $0x1b0] sm:%s1024]
                  %1088 = vst [vmem:[%s1032 + $0x6c] sm:%s1024] %v1087
                  %v1089 = vld [vmem:[%s1031 + $0x1c0] sm:%s1024]
                  %1090 = vst [vmem:[%s1032 + $0x70] sm:%s1024] %v1089
                  %v1091 = vld [vmem:[%s1031 + $0x1d0] sm:%s1024]
                  %1092 = vst [vmem:[%s1032 + $0x74] sm:%s1024] %v1091
                  %v1093 = vld [vmem:[%s1031 + $0x1e0] sm:%s1024]
                  %1094 = vst [vmem:[%s1032 + $0x78] sm:%s1024] %v1093
                  %v1095 = vld [vmem:[%s1031 + $0x1f0] sm:%s1024]
                  %1096 = vst [vmem:[%s1032 + $0x7c] sm:%s1024] %v1095
                  %v1097 = vld [vmem:[%s1031 + $0x200] sm:%s1024]
                  %1098 = vst [vmem:[%s1032 + $0x80] sm:%s1024] %v1097
                  %v1099 = vld [vmem:[%s1031 + $0x210] sm:%s1024]
                  %1100 = vst [vmem:[%s1032 + $0x84] sm:%s1024] %v1099
                  %v1101 = vld [vmem:[%s1031 + $0x220] sm:%s1024]
                  %1102 = vst [vmem:[%s1032 + $0x88] sm:%s1024] %v1101
                  %v1103 = vld [vmem:[%s1031 + $0x230] sm:%s1024]
                  %1104 = vst [vmem:[%s1032 + $0x8c] sm:%s1024] %v1103
                  %v1105 = vld [vmem:[%s1031 + $0x240] sm:%s1024]
                  %1106 = vst [vmem:[%s1032 + $0x90] sm:%s1024] %v1105
                  %v1107 = vld [vmem:[%s1031 + $0x250] sm:%s1024]
                  %1108 = vst [vmem:[%s1032 + $0x94] sm:%s1024] %v1107
                  %v1109 = vld [vmem:[%s1031 + $0x260] sm:%s1024]
                  %1110 = vst [vmem:[%s1032 + $0x98] sm:%s1024] %v1109
                  %v1111 = vld [vmem:[%s1031 + $0x270] sm:%s1024]
                  %1112 = vst [vmem:[%s1032 + $0x9c] sm:%s1024] %v1111
                  %v1113 = vld [vmem:[%s1031 + $0x280] sm:%s1024]
                  %1114 = vst [vmem:[%s1032 + $0xa0] sm:%s1024] %v1113
                  %v1115 = vld [vmem:[%s1031 + $0x290] sm:%s1024]
                  %1116 = vst [vmem:[%s1032 + $0xa4] sm:%s1024] %v1115
                  %v1117 = vld [vmem:[%s1031 + $0x2a0] sm:%s1024]
                  %1118 = vst [vmem:[%s1032 + $0xa8] sm:%s1024] %v1117
                  %v1119 = vld [vmem:[%s1031 + $0x2b0] sm:%s1024]
                  %1120 = vst [vmem:[%s1032 + $0xac] sm:%s1024] %v1119
                  %v1121 = vld [vmem:[%s1031 + $0x2c0] sm:%s1024]
                  %1122 = vst [vmem:[%s1032 + $0xb0] sm:%s1024] %v1121
                  %v1123 = vld [vmem:[%s1031 + $0x2d0] sm:%s1024]
                  %1124 = vst [vmem:[%s1032 + $0xb4] sm:%s1024] %v1123
                  %v1125 = vld [vmem:[%s1031 + $0x2e0] sm:%s1024]
                  %1126 = vst [vmem:[%s1032 + $0xb8] sm:%s1024] %v1125
                  %v1127 = vld [vmem:[%s1031 + $0x2f0] sm:%s1024]
                  %1128 = vst [vmem:[%s1032 + $0xbc] sm:%s1024] %v1127
                  %v1129 = vld [vmem:[%s1031 + $0x300] sm:%s1024]
                  %1130 = vst [vmem:[%s1032 + $0xc0] sm:%s1024] %v1129
                  %v1131 = vld [vmem:[%s1031 + $0x310] sm:%s1024]
                  %1132 = vst [vmem:[%s1032 + $0xc4] sm:%s1024] %v1131
                  %v1133 = vld [vmem:[%s1031 + $0x320] sm:%s1024]
                  %1134 = vst [vmem:[%s1032 + $0xc8] sm:%s1024] %v1133
                  %v1135 = vld [vmem:[%s1031 + $0x330] sm:%s1024]
                  %1136 = vst [vmem:[%s1032 + $0xcc] sm:%s1024] %v1135
                  %v1137 = vld [vmem:[%s1031 + $0x340] sm:%s1024]
                  %1138 = vst [vmem:[%s1032 + $0xd0] sm:%s1024] %v1137
                  %v1139 = vld [vmem:[%s1031 + $0x350] sm:%s1024]
                  %1140 = vst [vmem:[%s1032 + $0xd4] sm:%s1024] %v1139
                  %v1141 = vld [vmem:[%s1031 + $0x360] sm:%s1024]
                  %1142 = vst [vmem:[%s1032 + $0xd8] sm:%s1024] %v1141
                  %v1143 = vld [vmem:[%s1031 + $0x370] sm:%s1024]
                  %1144 = vst [vmem:[%s1032 + $0xdc] sm:%s1024] %v1143
                  %v1145 = vld [vmem:[%s1031 + $0x380] sm:%s1024]
                  %1146 = vst [vmem:[%s1032 + $0xe0] sm:%s1024] %v1145
                  %v1147 = vld [vmem:[%s1031 + $0x390] sm:%s1024]
                  %1148 = vst [vmem:[%s1032 + $0xe4] sm:%s1024] %v1147
                  %v1149 = vld [vmem:[%s1031 + $0x3a0] sm:%s1024]
                  %1150 = vst [vmem:[%s1032 + $0xe8] sm:%s1024] %v1149
                  %v1151 = vld [vmem:[%s1031 + $0x3b0] sm:%s1024]
                  %1152 = vst [vmem:[%s1032 + $0xec] sm:%s1024] %v1151
                  %v1153 = vld [vmem:[%s1031 + $0x3c0] sm:%s1024]
                  %1154 = vst [vmem:[%s1032 + $0xf0] sm:%s1024] %v1153
                  %v1155 = vld [vmem:[%s1031 + $0x3d0] sm:%s1024]
                  %1156 = vst [vmem:[%s1032 + $0xf4] sm:%s1024] %v1155
                  %v1157 = vld [vmem:[%s1031 + $0x3e0] sm:%s1024]
                  %1158 = vst [vmem:[%s1032 + $0xf8] sm:%s1024] %v1157
                  %v1159 = vld [vmem:[%s1031 + $0x3f0] sm:%s1024]
                  %1160 = vst [vmem:[%s1032 + $0xfc] sm:%s1024] %v1159
                  %v1161 = vld [vmem:[%s1031 + $0x400] sm:%s1024]
                  %1162 = vst [vmem:[%s1032 + $0x100] sm:%s1024] %v1161
                  %v1163 = vld [vmem:[%s1031 + $0x410] sm:%s1024]
                  %1164 = vst [vmem:[%s1032 + $0x104] sm:%s1024] %v1163
                  %v1165 = vld [vmem:[%s1031 + $0x420] sm:%s1024]
                  %1166 = vst [vmem:[%s1032 + $0x108] sm:%s1024] %v1165
                  %v1167 = vld [vmem:[%s1031 + $0x430] sm:%s1024]
                  %1168 = vst [vmem:[%s1032 + $0x10c] sm:%s1024] %v1167
                  %v1169 = vld [vmem:[%s1031 + $0x440] sm:%s1024]
                  %1170 = vst [vmem:[%s1032 + $0x110] sm:%s1024] %v1169
                  %v1171 = vld [vmem:[%s1031 + $0x450] sm:%s1024]
                  %1172 = vst [vmem:[%s1032 + $0x114] sm:%s1024] %v1171
                  %v1173 = vld [vmem:[%s1031 + $0x460] sm:%s1024]
                  %1174 = vst [vmem:[%s1032 + $0x118] sm:%s1024] %v1173
                  %v1175 = vld [vmem:[%s1031 + $0x470] sm:%s1024]
                  %1176 = vst [vmem:[%s1032 + $0x11c] sm:%s1024] %v1175
                  %v1177 = vld [vmem:[%s1031 + $0x480] sm:%s1024]
                  %1178 = vst [vmem:[%s1032 + $0x120] sm:%s1024] %v1177
                  %v1179 = vld [vmem:[%s1031 + $0x490] sm:%s1024]
                  %1180 = vst [vmem:[%s1032 + $0x124] sm:%s1024] %v1179
                  %v1181 = vld [vmem:[%s1031 + $0x4a0] sm:%s1024]
                  %1182 = vst [vmem:[%s1032 + $0x128] sm:%s1024] %v1181
                  %v1183 = vld [vmem:[%s1031 + $0x4b0] sm:%s1024]
                  %1184 = vst [vmem:[%s1032 + $0x12c] sm:%s1024] %v1183
                  %v1185 = vld [vmem:[%s1031 + $0x4c0] sm:%s1024]
                  %1186 = vst [vmem:[%s1032 + $0x130] sm:%s1024] %v1185
                  %v1187 = vld [vmem:[%s1031 + $0x4d0] sm:%s1024]
                  %1188 = vst [vmem:[%s1032 + $0x134] sm:%s1024] %v1187
                  %v1189 = vld [vmem:[%s1031 + $0x4e0] sm:%s1024]
                  %1190 = vst [vmem:[%s1032 + $0x138] sm:%s1024] %v1189
                  %v1191 = vld [vmem:[%s1031 + $0x4f0] sm:%s1024]
                  %1192 = vst [vmem:[%s1032 + $0x13c] sm:%s1024] %v1191
                  %v1193 = vld [vmem:[%s1031 + $0x500] sm:%s1024]
                  %1194 = vst [vmem:[%s1032 + $0x140] sm:%s1024] %v1193
                  %v1195 = vld [vmem:[%s1031 + $0x510] sm:%s1024]
                  %1196 = vst [vmem:[%s1032 + $0x144] sm:%s1024] %v1195
                  %v1197 = vld [vmem:[%s1031 + $0x520] sm:%s1024]
                  %1198 = vst [vmem:[%s1032 + $0x148] sm:%s1024] %v1197
                  %v1199 = vld [vmem:[%s1031 + $0x530] sm:%s1024]
                  %1200 = vst [vmem:[%s1032 + $0x14c] sm:%s1024] %v1199
                  %v1201 = vld [vmem:[%s1031 + $0x540] sm:%s1024]
                  %1202 = vst [vmem:[%s1032 + $0x150] sm:%s1024] %v1201
                  %v1203 = vld [vmem:[%s1031 + $0x550] sm:%s1024]
                  %1204 = vst [vmem:[%s1032 + $0x154] sm:%s1024] %v1203
                  %v1205 = vld [vmem:[%s1031 + $0x560] sm:%s1024]
                  %1206 = vst [vmem:[%s1032 + $0x158] sm:%s1024] %v1205
                  %v1207 = vld [vmem:[%s1031 + $0x570] sm:%s1024]
                  %1208 = vst [vmem:[%s1032 + $0x15c] sm:%s1024] %v1207
                  %v1209 = vld [vmem:[%s1031 + $0x580] sm:%s1024]
                  %1210 = vst [vmem:[%s1032 + $0x160] sm:%s1024] %v1209
                  %v1211 = vld [vmem:[%s1031 + $0x590] sm:%s1024]
                  %1212 = vst [vmem:[%s1032 + $0x164] sm:%s1024] %v1211
                  %v1213 = vld [vmem:[%s1031 + $0x5a0] sm:%s1024]
                  %1214 = vst [vmem:[%s1032 + $0x168] sm:%s1024] %v1213
                  %v1215 = vld [vmem:[%s1031 + $0x5b0] sm:%s1024]
                  %1216 = vst [vmem:[%s1032 + $0x16c] sm:%s1024] %v1215
                  %v1217 = vld [vmem:[%s1031 + $0x5c0] sm:%s1024]
                  %1218 = vst [vmem:[%s1032 + $0x170] sm:%s1024] %v1217
                  %v1219 = vld [vmem:[%s1031 + $0x5d0] sm:%s1024]
                  %1220 = vst [vmem:[%s1032 + $0x174] sm:%s1024] %v1219
                  %v1221 = vld [vmem:[%s1031 + $0x5e0] sm:%s1024]
                  %1222 = vst [vmem:[%s1032 + $0x178] sm:%s1024] %v1221
                  %v1223 = vld [vmem:[%s1031 + $0x5f0] sm:%s1024]
                  %1224 = vst [vmem:[%s1032 + $0x17c] sm:%s1024] %v1223
                  %v1225 = vld [vmem:[%s1031 + $0x600] sm:%s1024]
                  %1226 = vst [vmem:[%s1032 + $0x180] sm:%s1024] %v1225
                  %v1227 = vld [vmem:[%s1031 + $0x610] sm:%s1024]
                  %1228 = vst [vmem:[%s1032 + $0x184] sm:%s1024] %v1227
                  %v1229 = vld [vmem:[%s1031 + $0x620] sm:%s1024]
                  %1230 = vst [vmem:[%s1032 + $0x188] sm:%s1024] %v1229
                  %v1231 = vld [vmem:[%s1031 + $0x630] sm:%s1024]
                  %1232 = vst [vmem:[%s1032 + $0x18c] sm:%s1024] %v1231
                  %v1233 = vld [vmem:[%s1031 + $0x640] sm:%s1024]
                  %1234 = vst [vmem:[%s1032 + $0x190] sm:%s1024] %v1233
                  %v1235 = vld [vmem:[%s1031 + $0x650] sm:%s1024]
                  %1236 = vst [vmem:[%s1032 + $0x194] sm:%s1024] %v1235
                  %v1237 = vld [vmem:[%s1031 + $0x660] sm:%s1024]
                  %1238 = vst [vmem:[%s1032 + $0x198] sm:%s1024] %v1237
                  %v1239 = vld [vmem:[%s1031 + $0x670] sm:%s1024]
                  %1240 = vst [vmem:[%s1032 + $0x19c] sm:%s1024] %v1239
                  %v1241 = vld [vmem:[%s1031 + $0x680] sm:%s1024]
                  %1242 = vst [vmem:[%s1032 + $0x1a0] sm:%s1024] %v1241
                  %v1243 = vld [vmem:[%s1031 + $0x690] sm:%s1024]
                  %1244 = vst [vmem:[%s1032 + $0x1a4] sm:%s1024] %v1243
                  %v1245 = vld [vmem:[%s1031 + $0x6a0] sm:%s1024]
                  %1246 = vst [vmem:[%s1032 + $0x1a8] sm:%s1024] %v1245
                  %v1247 = vld [vmem:[%s1031 + $0x6b0] sm:%s1024]
                  %1248 = vst [vmem:[%s1032 + $0x1ac] sm:%s1024] %v1247
                  %v1249 = vld [vmem:[%s1031 + $0x6c0] sm:%s1024]
                  %1250 = vst [vmem:[%s1032 + $0x1b0] sm:%s1024] %v1249
                  %v1251 = vld [vmem:[%s1031 + $0x6d0] sm:%s1024]
                  %1252 = vst [vmem:[%s1032 + $0x1b4] sm:%s1024] %v1251
                  %v1253 = vld [vmem:[%s1031 + $0x6e0] sm:%s1024]
                  %1254 = vst [vmem:[%s1032 + $0x1b8] sm:%s1024] %v1253
                  %v1255 = vld [vmem:[%s1031 + $0x6f0] sm:%s1024]
                  %1256 = vst [vmem:[%s1032 + $0x1bc] sm:%s1024] %v1255
                  %v1257 = vld [vmem:[%s1031 + $0x700] sm:%s1024]
                  %1258 = vst [vmem:[%s1032 + $0x1c0] sm:%s1024] %v1257
                  %v1259 = vld [vmem:[%s1031 + $0x710] sm:%s1024]
                  %1260 = vst [vmem:[%s1032 + $0x1c4] sm:%s1024] %v1259
                  %v1261 = vld [vmem:[%s1031 + $0x720] sm:%s1024]
                  %1262 = vst [vmem:[%s1032 + $0x1c8] sm:%s1024] %v1261
                  %v1263 = vld [vmem:[%s1031 + $0x730] sm:%s1024]
                  %1264 = vst [vmem:[%s1032 + $0x1cc] sm:%s1024] %v1263
                  %v1265 = vld [vmem:[%s1031 + $0x740] sm:%s1024]
                  %1266 = vst [vmem:[%s1032 + $0x1d0] sm:%s1024] %v1265
                  %v1267 = vld [vmem:[%s1031 + $0x750] sm:%s1024]
                  %1268 = vst [vmem:[%s1032 + $0x1d4] sm:%s1024] %v1267
                  %v1269 = vld [vmem:[%s1031 + $0x760] sm:%s1024]
                  %1270 = vst [vmem:[%s1032 + $0x1d8] sm:%s1024] %v1269
                  %v1271 = vld [vmem:[%s1031 + $0x770] sm:%s1024]
                  %1272 = vst [vmem:[%s1032 + $0x1dc] sm:%s1024] %v1271
                  %v1273 = vld [vmem:[%s1031 + $0x780] sm:%s1024]
                  %1274 = vst [vmem:[%s1032 + $0x1e0] sm:%s1024] %v1273
                  %v1275 = vld [vmem:[%s1031 + $0x790] sm:%s1024]
                  %1276 = vst [vmem:[%s1032 + $0x1e4] sm:%s1024] %v1275
                  %v1277 = vld [vmem:[%s1031 + $0x7a0] sm:%s1024]
                  %1278 = vst [vmem:[%s1032 + $0x1e8] sm:%s1024] %v1277
                  %v1279 = vld [vmem:[%s1031 + $0x7b0] sm:%s1024]
                  %1280 = vst [vmem:[%s1032 + $0x1ec] sm:%s1024] %v1279
                  %v1281 = vld [vmem:[%s1031 + $0x7c0] sm:%s1024]
                  %1282 = vst [vmem:[%s1032 + $0x1f0] sm:%s1024] %v1281
                  %v1283 = vld [vmem:[%s1031 + $0x7d0] sm:%s1024]
                  %1284 = vst [vmem:[%s1032 + $0x1f4] sm:%s1024] %v1283
                  %v1285 = vld [vmem:[%s1031 + $0x7e0] sm:%s1024]
                  %1286 = vst [vmem:[%s1032 + $0x1f8] sm:%s1024] %v1285
                  %v1287 = vld [vmem:[%s1031 + $0x7f0] sm:%s1024]
                  %1288 = vst [vmem:[%s1032 + $0x1fc] sm:%s1024] %v1287
                  %v1289 = vld [vmem:[%s1031 + $0x800] sm:%s1024]
                  %1290 = vst [vmem:[%s1032 + $0x200] sm:%s1024] %v1289
                  %v1291 = vld [vmem:[%s1031 + $0x810] sm:%s1024]
                  %1292 = vst [vmem:[%s1032 + $0x204] sm:%s1024] %v1291
                  %v1293 = vld [vmem:[%s1031 + $0x820] sm:%s1024]
                  %1294 = vst [vmem:[%s1032 + $0x208] sm:%s1024] %v1293
                  %v1295 = vld [vmem:[%s1031 + $0x830] sm:%s1024]
                  %1296 = vst [vmem:[%s1032 + $0x20c] sm:%s1024] %v1295
                  %v1297 = vld [vmem:[%s1031 + $0x840] sm:%s1024]
                  %1298 = vst [vmem:[%s1032 + $0x210] sm:%s1024] %v1297
                  %v1299 = vld [vmem:[%s1031 + $0x850] sm:%s1024]
                  %1300 = vst [vmem:[%s1032 + $0x214] sm:%s1024] %v1299
                  %v1301 = vld [vmem:[%s1031 + $0x860] sm:%s1024]
                  %1302 = vst [vmem:[%s1032 + $0x218] sm:%s1024] %v1301
                  %v1303 = vld [vmem:[%s1031 + $0x870] sm:%s1024]
                  %1304 = vst [vmem:[%s1032 + $0x21c] sm:%s1024] %v1303
                  %v1305 = vld [vmem:[%s1031 + $0x880] sm:%s1024]
                  %1306 = vst [vmem:[%s1032 + $0x220] sm:%s1024] %v1305
                  %v1307 = vld [vmem:[%s1031 + $0x890] sm:%s1024]
                  %1308 = vst [vmem:[%s1032 + $0x224] sm:%s1024] %v1307
                  %v1309 = vld [vmem:[%s1031 + $0x8a0] sm:%s1024]
                  %1310 = vst [vmem:[%s1032 + $0x228] sm:%s1024] %v1309
                  %v1311 = vld [vmem:[%s1031 + $0x8b0] sm:%s1024]
                  %1312 = vst [vmem:[%s1032 + $0x22c] sm:%s1024] %v1311
                  %v1313 = vld [vmem:[%s1031 + $0x8c0] sm:%s1024]
                  %1314 = vst [vmem:[%s1032 + $0x230] sm:%s1024] %v1313
                  %v1315 = vld [vmem:[%s1031 + $0x8d0] sm:%s1024]
                  %1316 = vst [vmem:[%s1032 + $0x234] sm:%s1024] %v1315
                  %v1317 = vld [vmem:[%s1031 + $0x8e0] sm:%s1024]
                  %1318 = vst [vmem:[%s1032 + $0x238] sm:%s1024] %v1317
                  %v1319 = vld [vmem:[%s1031 + $0x8f0] sm:%s1024]
                  %1320 = vst [vmem:[%s1032 + $0x23c] sm:%s1024] %v1319
                  %v1321 = vld [vmem:[%s1031 + $0x900] sm:%s1024]
                  %1322 = vst [vmem:[%s1032 + $0x240] sm:%s1024] %v1321
                  %v1323 = vld [vmem:[%s1031 + $0x910] sm:%s1024]
                  %1324 = vst [vmem:[%s1032 + $0x244] sm:%s1024] %v1323
                  %v1325 = vld [vmem:[%s1031 + $0x920] sm:%s1024]
                  %1326 = vst [vmem:[%s1032 + $0x248] sm:%s1024] %v1325
                  %v1327 = vld [vmem:[%s1031 + $0x930] sm:%s1024]
                  %1328 = vst [vmem:[%s1032 + $0x24c] sm:%s1024] %v1327
                  %v1329 = vld [vmem:[%s1031 + $0x940] sm:%s1024]
                  %1330 = vst [vmem:[%s1032 + $0x250] sm:%s1024] %v1329
                  %v1331 = vld [vmem:[%s1031 + $0x950] sm:%s1024]
                  %1332 = vst [vmem:[%s1032 + $0x254] sm:%s1024] %v1331
                  %v1333 = vld [vmem:[%s1031 + $0x960] sm:%s1024]
                  %1334 = vst [vmem:[%s1032 + $0x258] sm:%s1024] %v1333
                  %v1335 = vld [vmem:[%s1031 + $0x970] sm:%s1024]
                  %1336 = vst [vmem:[%s1032 + $0x25c] sm:%s1024] %v1335
                  %v1337 = vld [vmem:[%s1031 + $0x980] sm:%s1024]
                  %1338 = vst [vmem:[%s1032 + $0x260] sm:%s1024] %v1337
                  %v1339 = vld [vmem:[%s1031 + $0x990] sm:%s1024]
                  %1340 = vst [vmem:[%s1032 + $0x264] sm:%s1024] %v1339
                  %v1341 = vld [vmem:[%s1031 + $0x9a0] sm:%s1024]
                  %1342 = vst [vmem:[%s1032 + $0x268] sm:%s1024] %v1341
                  %v1343 = vld [vmem:[%s1031 + $0x9b0] sm:%s1024]
                  %1344 = vst [vmem:[%s1032 + $0x26c] sm:%s1024] %v1343
                  %v1345 = vld [vmem:[%s1031 + $0x9c0] sm:%s1024]
                  %1346 = vst [vmem:[%s1032 + $0x270] sm:%s1024] %v1345
                  %v1347 = vld [vmem:[%s1031 + $0x9d0] sm:%s1024]
                  %1348 = vst [vmem:[%s1032 + $0x274] sm:%s1024] %v1347
                  %v1349 = vld [vmem:[%s1031 + $0x9e0] sm:%s1024]
                  %1350 = vst [vmem:[%s1032 + $0x278] sm:%s1024] %v1349
                  %v1351 = vld [vmem:[%s1031 + $0x9f0] sm:%s1024]
                  %1352 = vst [vmem:[%s1032 + $0x27c] sm:%s1024] %v1351
                  %v1353 = vld [vmem:[%s1031 + $0xa00] sm:%s1024]
                  %1354 = vst [vmem:[%s1032 + $0x280] sm:%s1024] %v1353
                  %v1355 = vld [vmem:[%s1031 + $0xa10] sm:%s1024]
                  %1356 = vst [vmem:[%s1032 + $0x284] sm:%s1024] %v1355
                  %v1357 = vld [vmem:[%s1031 + $0xa20] sm:%s1024]
                  %1358 = vst [vmem:[%s1032 + $0x288] sm:%s1024] %v1357
                  %v1359 = vld [vmem:[%s1031 + $0xa30] sm:%s1024]
                  %1360 = vst [vmem:[%s1032 + $0x28c] sm:%s1024] %v1359
                  %v1361 = vld [vmem:[%s1031 + $0xa40] sm:%s1024]
                  %1362 = vst [vmem:[%s1032 + $0x290] sm:%s1024] %v1361
                  %v1363 = vld [vmem:[%s1031 + $0xa50] sm:%s1024]
                  %1364 = vst [vmem:[%s1032 + $0x294] sm:%s1024] %v1363
                  %v1365 = vld [vmem:[%s1031 + $0xa60] sm:%s1024]
                  %1366 = vst [vmem:[%s1032 + $0x298] sm:%s1024] %v1365
                  %v1367 = vld [vmem:[%s1031 + $0xa70] sm:%s1024]
                  %1368 = vst [vmem:[%s1032 + $0x29c] sm:%s1024] %v1367
                  %v1369 = vld [vmem:[%s1031 + $0xa80] sm:%s1024]
                  %1370 = vst [vmem:[%s1032 + $0x2a0] sm:%s1024] %v1369
                  %v1371 = vld [vmem:[%s1031 + $0xa90] sm:%s1024]
                  %1372 = vst [vmem:[%s1032 + $0x2a4] sm:%s1024] %v1371
                  %v1373 = vld [vmem:[%s1031 + $0xaa0] sm:%s1024]
                  %1374 = vst [vmem:[%s1032 + $0x2a8] sm:%s1024] %v1373
                  %v1375 = vld [vmem:[%s1031 + $0xab0] sm:%s1024]
                  %1376 = vst [vmem:[%s1032 + $0x2ac] sm:%s1024] %v1375
                  %v1377 = vld [vmem:[%s1031 + $0xac0] sm:%s1024]
                  %1378 = vst [vmem:[%s1032 + $0x2b0] sm:%s1024] %v1377
                  %v1379 = vld [vmem:[%s1031 + $0xad0] sm:%s1024]
                  %1380 = vst [vmem:[%s1032 + $0x2b4] sm:%s1024] %v1379
                  %v1381 = vld [vmem:[%s1031 + $0xae0] sm:%s1024]
                  %1382 = vst [vmem:[%s1032 + $0x2b8] sm:%s1024] %v1381
                  %v1383 = vld [vmem:[%s1031 + $0xaf0] sm:%s1024]
                  %1384 = vst [vmem:[%s1032 + $0x2bc] sm:%s1024] %v1383
                  %v1385 = vld [vmem:[%s1031 + $0xb00] sm:%s1024]
                  %1386 = vst [vmem:[%s1032 + $0x2c0] sm:%s1024] %v1385
                  %v1387 = vld [vmem:[%s1031 + $0xb10] sm:%s1024]
                  %1388 = vst [vmem:[%s1032 + $0x2c4] sm:%s1024] %v1387
                  %v1389 = vld [vmem:[%s1031 + $0xb20] sm:%s1024]
                  %1390 = vst [vmem:[%s1032 + $0x2c8] sm:%s1024] %v1389
                  %v1391 = vld [vmem:[%s1031 + $0xb30] sm:%s1024]
                  %1392 = vst [vmem:[%s1032 + $0x2cc] sm:%s1024] %v1391
                  %v1393 = vld [vmem:[%s1031 + $0xb40] sm:%s1024]
                  %1394 = vst [vmem:[%s1032 + $0x2d0] sm:%s1024] %v1393
                  %v1395 = vld [vmem:[%s1031 + $0xb50] sm:%s1024]
                  %1396 = vst [vmem:[%s1032 + $0x2d4] sm:%s1024] %v1395
                  %v1397 = vld [vmem:[%s1031 + $0xb60] sm:%s1024]
                  %1398 = vst [vmem:[%s1032 + $0x2d8] sm:%s1024] %v1397
                  %v1399 = vld [vmem:[%s1031 + $0xb70] sm:%s1024]
                  %1400 = vst [vmem:[%s1032 + $0x2dc] sm:%s1024] %v1399
                  %v1401 = vld [vmem:[%s1031 + $0xb80] sm:%s1024]
                  %1402 = vst [vmem:[%s1032 + $0x2e0] sm:%s1024] %v1401
                  %v1403 = vld [vmem:[%s1031 + $0xb90] sm:%s1024]
                  %1404 = vst [vmem:[%s1032 + $0x2e4] sm:%s1024] %v1403
                  %v1405 = vld [vmem:[%s1031 + $0xba0] sm:%s1024]
                  %1406 = vst [vmem:[%s1032 + $0x2e8] sm:%s1024] %v1405
                  %v1407 = vld [vmem:[%s1031 + $0xbb0] sm:%s1024]
                  %1408 = vst [vmem:[%s1032 + $0x2ec] sm:%s1024] %v1407
                  %v1409 = vld [vmem:[%s1031 + $0xbc0] sm:%s1024]
                  %1410 = vst [vmem:[%s1032 + $0x2f0] sm:%s1024] %v1409
                  %v1411 = vld [vmem:[%s1031 + $0xbd0] sm:%s1024]
                  %1412 = vst [vmem:[%s1032 + $0x2f4] sm:%s1024] %v1411
                  %v1413 = vld [vmem:[%s1031 + $0xbe0] sm:%s1024]
                  %1414 = vst [vmem:[%s1032 + $0x2f8] sm:%s1024] %v1413
                  %v1415 = vld [vmem:[%s1031 + $0xbf0] sm:%s1024]
                  %1416 = vst [vmem:[%s1032 + $0x2fc] sm:%s1024] %v1415
                  %v1417 = vld [vmem:[%s1031 + $0xc00] sm:%s1024]
                  %1418 = vst [vmem:[%s1032 + $0x300] sm:%s1024] %v1417
                  %v1419 = vld [vmem:[%s1031 + $0xc10] sm:%s1024]
                  %1420 = vst [vmem:[%s1032 + $0x304] sm:%s1024] %v1419
                  %v1421 = vld [vmem:[%s1031 + $0xc20] sm:%s1024]
                  %1422 = vst [vmem:[%s1032 + $0x308] sm:%s1024] %v1421
                  %v1423 = vld [vmem:[%s1031 + $0xc30] sm:%s1024]
                  %1424 = vst [vmem:[%s1032 + $0x30c] sm:%s1024] %v1423
                  %v1425 = vld [vmem:[%s1031 + $0xc40] sm:%s1024]
                  %1426 = vst [vmem:[%s1032 + $0x310] sm:%s1024] %v1425
                  %v1427 = vld [vmem:[%s1031 + $0xc50] sm:%s1024]
                  %1428 = vst [vmem:[%s1032 + $0x314] sm:%s1024] %v1427
                  %v1429 = vld [vmem:[%s1031 + $0xc60] sm:%s1024]
                  %1430 = vst [vmem:[%s1032 + $0x318] sm:%s1024] %v1429
                  %v1431 = vld [vmem:[%s1031 + $0xc70] sm:%s1024]
                  %1432 = vst [vmem:[%s1032 + $0x31c] sm:%s1024] %v1431
                  %v1433 = vld [vmem:[%s1031 + $0xc80] sm:%s1024]
                  %1434 = vst [vmem:[%s1032 + $0x320] sm:%s1024] %v1433
                  %v1435 = vld [vmem:[%s1031 + $0xc90] sm:%s1024]
                  %1436 = vst [vmem:[%s1032 + $0x324] sm:%s1024] %v1435
                  %v1437 = vld [vmem:[%s1031 + $0xca0] sm:%s1024]
                  %1438 = vst [vmem:[%s1032 + $0x328] sm:%s1024] %v1437
                  %v1439 = vld [vmem:[%s1031 + $0xcb0] sm:%s1024]
                  %1440 = vst [vmem:[%s1032 + $0x32c] sm:%s1024] %v1439
                  %v1441 = vld [vmem:[%s1031 + $0xcc0] sm:%s1024]
                  %1442 = vst [vmem:[%s1032 + $0x330] sm:%s1024] %v1441
                  %v1443 = vld [vmem:[%s1031 + $0xcd0] sm:%s1024]
                  %1444 = vst [vmem:[%s1032 + $0x334] sm:%s1024] %v1443
                  %v1445 = vld [vmem:[%s1031 + $0xce0] sm:%s1024]
                  %1446 = vst [vmem:[%s1032 + $0x338] sm:%s1024] %v1445
                  %v1447 = vld [vmem:[%s1031 + $0xcf0] sm:%s1024]
                  %1448 = vst [vmem:[%s1032 + $0x33c] sm:%s1024] %v1447
                  %v1449 = vld [vmem:[%s1031 + $0xd00] sm:%s1024]
                  %1450 = vst [vmem:[%s1032 + $0x340] sm:%s1024] %v1449
                  %v1451 = vld [vmem:[%s1031 + $0xd10] sm:%s1024]
                  %1452 = vst [vmem:[%s1032 + $0x344] sm:%s1024] %v1451
                  %v1453 = vld [vmem:[%s1031 + $0xd20] sm:%s1024]
                  %1454 = vst [vmem:[%s1032 + $0x348] sm:%s1024] %v1453
                  %v1455 = vld [vmem:[%s1031 + $0xd30] sm:%s1024]
                  %1456 = vst [vmem:[%s1032 + $0x34c] sm:%s1024] %v1455
                  %v1457 = vld [vmem:[%s1031 + $0xd40] sm:%s1024]
                  %1458 = vst [vmem:[%s1032 + $0x350] sm:%s1024] %v1457
                  %v1459 = vld [vmem:[%s1031 + $0xd50] sm:%s1024]
                  %1460 = vst [vmem:[%s1032 + $0x354] sm:%s1024] %v1459
                  %v1461 = vld [vmem:[%s1031 + $0xd60] sm:%s1024]
                  %1462 = vst [vmem:[%s1032 + $0x358] sm:%s1024] %v1461
                  %v1463 = vld [vmem:[%s1031 + $0xd70] sm:%s1024]
                  %1464 = vst [vmem:[%s1032 + $0x35c] sm:%s1024] %v1463
                  %v1465 = vld [vmem:[%s1031 + $0xd80] sm:%s1024]
                  %1466 = vst [vmem:[%s1032 + $0x360] sm:%s1024] %v1465
                  %v1467 = vld [vmem:[%s1031 + $0xd90] sm:%s1024]
                  %1468 = vst [vmem:[%s1032 + $0x364] sm:%s1024] %v1467
                  %v1469 = vld [vmem:[%s1031 + $0xda0] sm:%s1024]
                  %1470 = vst [vmem:[%s1032 + $0x368] sm:%s1024] %v1469
                  %v1471 = vld [vmem:[%s1031 + $0xdb0] sm:%s1024]
                  %1472 = vst [vmem:[%s1032 + $0x36c] sm:%s1024] %v1471
                  %v1473 = vld [vmem:[%s1031 + $0xdc0] sm:%s1024]
                  %1474 = vst [vmem:[%s1032 + $0x370] sm:%s1024] %v1473
                  %v1475 = vld [vmem:[%s1031 + $0xdd0] sm:%s1024]
                  %1476 = vst [vmem:[%s1032 + $0x374] sm:%s1024] %v1475
                  %v1477 = vld [vmem:[%s1031 + $0xde0] sm:%s1024]
                  %1478 = vst [vmem:[%s1032 + $0x378] sm:%s1024] %v1477
                  %v1479 = vld [vmem:[%s1031 + $0xdf0] sm:%s1024]
                  %1480 = vst [vmem:[%s1032 + $0x37c] sm:%s1024] %v1479
                  %v1481 = vld [vmem:[%s1031 + $0xe00] sm:%s1024]
                  %1482 = vst [vmem:[%s1032 + $0x380] sm:%s1024] %v1481
                  %v1483 = vld [vmem:[%s1031 + $0xe10] sm:%s1024]
                  %1484 = vst [vmem:[%s1032 + $0x384] sm:%s1024] %v1483
                  %v1485 = vld [vmem:[%s1031 + $0xe20] sm:%s1024]
                  %1486 = vst [vmem:[%s1032 + $0x388] sm:%s1024] %v1485
                  %v1487 = vld [vmem:[%s1031 + $0xe30] sm:%s1024]
                  %1488 = vst [vmem:[%s1032 + $0x38c] sm:%s1024] %v1487
                  %v1489 = vld [vmem:[%s1031 + $0xe40] sm:%s1024]
                  %1490 = vst [vmem:[%s1032 + $0x390] sm:%s1024] %v1489
                  %v1491 = vld [vmem:[%s1031 + $0xe50] sm:%s1024]
                  %1492 = vst [vmem:[%s1032 + $0x394] sm:%s1024] %v1491
                  %v1493 = vld [vmem:[%s1031 + $0xe60] sm:%s1024]
                  %1494 = vst [vmem:[%s1032 + $0x398] sm:%s1024] %v1493
                  %v1495 = vld [vmem:[%s1031 + $0xe70] sm:%s1024]
                  %1496 = vst [vmem:[%s1032 + $0x39c] sm:%s1024] %v1495
                  %v1497 = vld [vmem:[%s1031 + $0xe80] sm:%s1024]
                  %1498 = vst [vmem:[%s1032 + $0x3a0] sm:%s1024] %v1497
                  %v1499 = vld [vmem:[%s1031 + $0xe90] sm:%s1024]
                  %1500 = vst [vmem:[%s1032 + $0x3a4] sm:%s1024] %v1499
                  %v1501 = vld [vmem:[%s1031 + $0xea0] sm:%s1024]
                  %1502 = vst [vmem:[%s1032 + $0x3a8] sm:%s1024] %v1501
                  %v1503 = vld [vmem:[%s1031 + $0xeb0] sm:%s1024]
                  %1504 = vst [vmem:[%s1032 + $0x3ac] sm:%s1024] %v1503
                  %v1505 = vld [vmem:[%s1031 + $0xec0] sm:%s1024]
                  %1506 = vst [vmem:[%s1032 + $0x3b0] sm:%s1024] %v1505
                  %v1507 = vld [vmem:[%s1031 + $0xed0] sm:%s1024]
                  %1508 = vst [vmem:[%s1032 + $0x3b4] sm:%s1024] %v1507
                  %v1509 = vld [vmem:[%s1031 + $0xee0] sm:%s1024]
                  %1510 = vst [vmem:[%s1032 + $0x3b8] sm:%s1024] %v1509
                  %v1511 = vld [vmem:[%s1031 + $0xef0] sm:%s1024]
                  %1512 = vst [vmem:[%s1032 + $0x3bc] sm:%s1024] %v1511
                  %v1513 = vld [vmem:[%s1031 + $0xf00] sm:%s1024]
                  %1514 = vst [vmem:[%s1032 + $0x3c0] sm:%s1024] %v1513
                  %v1515 = vld [vmem:[%s1031 + $0xf10] sm:%s1024]
                  %1516 = vst [vmem:[%s1032 + $0x3c4] sm:%s1024] %v1515
                  %v1517 = vld [vmem:[%s1031 + $0xf20] sm:%s1024]
                  %1518 = vst [vmem:[%s1032 + $0x3c8] sm:%s1024] %v1517
                  %v1519 = vld [vmem:[%s1031 + $0xf30] sm:%s1024]
                  %1520 = vst [vmem:[%s1032 + $0x3cc] sm:%s1024] %v1519
                  %v1521 = vld [vmem:[%s1031 + $0xf40] sm:%s1024]
                  %1522 = vst [vmem:[%s1032 + $0x3d0] sm:%s1024] %v1521
                  %v1523 = vld [vmem:[%s1031 + $0xf50] sm:%s1024]
                  %1524 = vst [vmem:[%s1032 + $0x3d4] sm:%s1024] %v1523
                  %v1525 = vld [vmem:[%s1031 + $0xf60] sm:%s1024]
                  %1526 = vst [vmem:[%s1032 + $0x3d8] sm:%s1024] %v1525
                  %v1527 = vld [vmem:[%s1031 + $0xf70] sm:%s1024]
                  %1528 = vst [vmem:[%s1032 + $0x3dc] sm:%s1024] %v1527
                  %v1529 = vld [vmem:[%s1031 + $0xf80] sm:%s1024]
                  %1530 = vst [vmem:[%s1032 + $0x3e0] sm:%s1024] %v1529
                  %v1531 = vld [vmem:[%s1031 + $0xf90] sm:%s1024]
                  %1532 = vst [vmem:[%s1032 + $0x3e4] sm:%s1024] %v1531
                  %v1533 = vld [vmem:[%s1031 + $0xfa0] sm:%s1024]
                  %1534 = vst [vmem:[%s1032 + $0x3e8] sm:%s1024] %v1533
                  %v1535 = vld [vmem:[%s1031 + $0xfb0] sm:%s1024]
                  %1536 = vst [vmem:[%s1032 + $0x3ec] sm:%s1024] %v1535
                  %v1537 = vld [vmem:[%s1031 + $0xfc0] sm:%s1024]
                  %1538 = vst [vmem:[%s1032 + $0x3f0] sm:%s1024] %v1537
                  %v1539 = vld [vmem:[%s1031 + $0xfd0] sm:%s1024]
                  %1540 = vst [vmem:[%s1032 + $0x3f4] sm:%s1024] %v1539
                  %v1541 = vld [vmem:[%s1031 + $0xfe0] sm:%s1024]
                  %1542 = vst [vmem:[%s1032 + $0x3f8] sm:%s1024] %v1541
                  %v1543 = vld [vmem:[%s1031 + $0xff0] sm:%s1024]
                  %1544 = vst [vmem:[%s1032 + $0x3fc] sm:%s1024] %v1543
                  %v1545 = vld [vmem:[%s1031 + $0x1000] sm:%s1024]
                  %1546 = vst [vmem:[%s1032 + $0x400] sm:%s1024] %v1545
                  %v1547 = vld [vmem:[%s1031 + $0x1010] sm:%s1024]
                  %1548 = vst [vmem:[%s1032 + $0x404] sm:%s1024] %v1547
                  %v1549 = vld [vmem:[%s1031 + $0x1020] sm:%s1024]
                  %1550 = vst [vmem:[%s1032 + $0x408] sm:%s1024] %v1549
                  %v1551 = vld [vmem:[%s1031 + $0x1030] sm:%s1024]
                  %1552 = vst [vmem:[%s1032 + $0x40c] sm:%s1024] %v1551
                  %v1553 = vld [vmem:[%s1031 + $0x1040] sm:%s1024]
                  %1554 = vst [vmem:[%s1032 + $0x410] sm:%s1024] %v1553
                  %v1555 = vld [vmem:[%s1031 + $0x1050] sm:%s1024]
                  %1556 = vst [vmem:[%s1032 + $0x414] sm:%s1024] %v1555
                  %v1557 = vld [vmem:[%s1031 + $0x1060] sm:%s1024]
                  %1558 = vst [vmem:[%s1032 + $0x418] sm:%s1024] %v1557
                  %v1559 = vld [vmem:[%s1031 + $0x1070] sm:%s1024]
                  %1560 = vst [vmem:[%s1032 + $0x41c] sm:%s1024] %v1559
                  %v1561 = vld [vmem:[%s1031 + $0x1080] sm:%s1024]
                  %1562 = vst [vmem:[%s1032 + $0x420] sm:%s1024] %v1561
                  %v1563 = vld [vmem:[%s1031 + $0x1090] sm:%s1024]
                  %1564 = vst [vmem:[%s1032 + $0x424] sm:%s1024] %v1563
                  %v1565 = vld [vmem:[%s1031 + $0x10a0] sm:%s1024]
                  %1566 = vst [vmem:[%s1032 + $0x428] sm:%s1024] %v1565
                  %v1567 = vld [vmem:[%s1031 + $0x10b0] sm:%s1024]
                  %1568 = vst [vmem:[%s1032 + $0x42c] sm:%s1024] %v1567
                  %v1569 = vld [vmem:[%s1031 + $0x10c0] sm:%s1024]
                  %1570 = vst [vmem:[%s1032 + $0x430] sm:%s1024] %v1569
                  %v1571 = vld [vmem:[%s1031 + $0x10d0] sm:%s1024]
                  %1572 = vst [vmem:[%s1032 + $0x434] sm:%s1024] %v1571
                  %v1573 = vld [vmem:[%s1031 + $0x10e0] sm:%s1024]
                  %1574 = vst [vmem:[%s1032 + $0x438] sm:%s1024] %v1573
                  %v1575 = vld [vmem:[%s1031 + $0x10f0] sm:%s1024]
                  %1576 = vst [vmem:[%s1032 + $0x43c] sm:%s1024] %v1575
                  %v1577 = vld [vmem:[%s1031 + $0x1100] sm:%s1024]
                  %1578 = vst [vmem:[%s1032 + $0x440] sm:%s1024] %v1577
                  %v1579 = vld [vmem:[%s1031 + $0x1110] sm:%s1024]
                  %1580 = vst [vmem:[%s1032 + $0x444] sm:%s1024] %v1579
                  %v1581 = vld [vmem:[%s1031 + $0x1120] sm:%s1024]
                  %1582 = vst [vmem:[%s1032 + $0x448] sm:%s1024] %v1581
                  %v1583 = vld [vmem:[%s1031 + $0x1130] sm:%s1024]
                  %1584 = vst [vmem:[%s1032 + $0x44c] sm:%s1024] %v1583
                  %v1585 = vld [vmem:[%s1031 + $0x1140] sm:%s1024]
                  %1586 = vst [vmem:[%s1032 + $0x450] sm:%s1024] %v1585
                  %v1587 = vld [vmem:[%s1031 + $0x1150] sm:%s1024]
                  %1588 = vst [vmem:[%s1032 + $0x454] sm:%s1024] %v1587
                  %v1589 = vld [vmem:[%s1031 + $0x1160] sm:%s1024]
                  %1590 = vst [vmem:[%s1032 + $0x458] sm:%s1024] %v1589
                  %v1591 = vld [vmem:[%s1031 + $0x1170] sm:%s1024]
                  %1592 = vst [vmem:[%s1032 + $0x45c] sm:%s1024] %v1591
                  %v1593 = vld [vmem:[%s1031 + $0x1180] sm:%s1024]
                  %1594 = vst [vmem:[%s1032 + $0x460] sm:%s1024] %v1593
                  %v1595 = vld [vmem:[%s1031 + $0x1190] sm:%s1024]
                  %1596 = vst [vmem:[%s1032 + $0x464] sm:%s1024] %v1595
                  %v1597 = vld [vmem:[%s1031 + $0x11a0] sm:%s1024]
                  %1598 = vst [vmem:[%s1032 + $0x468] sm:%s1024] %v1597
                  %v1599 = vld [vmem:[%s1031 + $0x11b0] sm:%s1024]
                  %1600 = vst [vmem:[%s1032 + $0x46c] sm:%s1024] %v1599
                  %v1601 = vld [vmem:[%s1031 + $0x11c0] sm:%s1024]
                  %1602 = vst [vmem:[%s1032 + $0x470] sm:%s1024] %v1601
                  %v1603 = vld [vmem:[%s1031 + $0x11d0] sm:%s1024]
                  %1604 = vst [vmem:[%s1032 + $0x474] sm:%s1024] %v1603
                  %v1605 = vld [vmem:[%s1031 + $0x11e0] sm:%s1024]
                  %1606 = vst [vmem:[%s1032 + $0x478] sm:%s1024] %v1605
                  %v1607 = vld [vmem:[%s1031 + $0x11f0] sm:%s1024]
                  %1608 = vst [vmem:[%s1032 + $0x47c] sm:%s1024] %v1607
                  %v1609 = vld [vmem:[%s1031 + $0x1200] sm:%s1024]
                  %1610 = vst [vmem:[%s1032 + $0x480] sm:%s1024] %v1609
                  %v1611 = vld [vmem:[%s1031 + $0x1210] sm:%s1024]
                  %1612 = vst [vmem:[%s1032 + $0x484] sm:%s1024] %v1611
                  %v1613 = vld [vmem:[%s1031 + $0x1220] sm:%s1024]
                  %1614 = vst [vmem:[%s1032 + $0x488] sm:%s1024] %v1613
                  %v1615 = vld [vmem:[%s1031 + $0x1230] sm:%s1024]
                  %1616 = vst [vmem:[%s1032 + $0x48c] sm:%s1024] %v1615
                  %v1617 = vld [vmem:[%s1031 + $0x1240] sm:%s1024]
                  %1618 = vst [vmem:[%s1032 + $0x490] sm:%s1024] %v1617
                  %v1619 = vld [vmem:[%s1031 + $0x1250] sm:%s1024]
                  %1620 = vst [vmem:[%s1032 + $0x494] sm:%s1024] %v1619
                  %v1621 = vld [vmem:[%s1031 + $0x1260] sm:%s1024]
                  %1622 = vst [vmem:[%s1032 + $0x498] sm:%s1024] %v1621
                  %v1623 = vld [vmem:[%s1031 + $0x1270] sm:%s1024]
                  %1624 = vst [vmem:[%s1032 + $0x49c] sm:%s1024] %v1623
                  %v1625 = vld [vmem:[%s1031 + $0x1280] sm:%s1024]
                  %1626 = vst [vmem:[%s1032 + $0x4a0] sm:%s1024] %v1625
                  %v1627 = vld [vmem:[%s1031 + $0x1290] sm:%s1024]
                  %1628 = vst [vmem:[%s1032 + $0x4a4] sm:%s1024] %v1627
                  %v1629 = vld [vmem:[%s1031 + $0x12a0] sm:%s1024]
                  %1630 = vst [vmem:[%s1032 + $0x4a8] sm:%s1024] %v1629
                  %v1631 = vld [vmem:[%s1031 + $0x12b0] sm:%s1024]
                  %1632 = vst [vmem:[%s1032 + $0x4ac] sm:%s1024] %v1631
                  %v1633 = vld [vmem:[%s1031 + $0x12c0] sm:%s1024]
                  %1634 = vst [vmem:[%s1032 + $0x4b0] sm:%s1024] %v1633
                  %v1635 = vld [vmem:[%s1031 + $0x12d0] sm:%s1024]
                  %1636 = vst [vmem:[%s1032 + $0x4b4] sm:%s1024] %v1635
                  %v1637 = vld [vmem:[%s1031 + $0x12e0] sm:%s1024]
                  %1638 = vst [vmem:[%s1032 + $0x4b8] sm:%s1024] %v1637
                  %v1639 = vld [vmem:[%s1031 + $0x12f0] sm:%s1024]
                  %1640 = vst [vmem:[%s1032 + $0x4bc] sm:%s1024] %v1639
                  %v1641 = vld [vmem:[%s1031 + $0x1300] sm:%s1024]
                  %1642 = vst [vmem:[%s1032 + $0x4c0] sm:%s1024] %v1641
                  %v1643 = vld [vmem:[%s1031 + $0x1310] sm:%s1024]
                  %1644 = vst [vmem:[%s1032 + $0x4c4] sm:%s1024] %v1643
                  %v1645 = vld [vmem:[%s1031 + $0x1320] sm:%s1024]
                  %1646 = vst [vmem:[%s1032 + $0x4c8] sm:%s1024] %v1645
                  %v1647 = vld [vmem:[%s1031 + $0x1330] sm:%s1024]
                  %1648 = vst [vmem:[%s1032 + $0x4cc] sm:%s1024] %v1647
                  %v1649 = vld [vmem:[%s1031 + $0x1340] sm:%s1024]
                  %1650 = vst [vmem:[%s1032 + $0x4d0] sm:%s1024] %v1649
                  %v1651 = vld [vmem:[%s1031 + $0x1350] sm:%s1024]
                  %1652 = vst [vmem:[%s1032 + $0x4d4] sm:%s1024] %v1651
                  %v1653 = vld [vmem:[%s1031 + $0x1360] sm:%s1024]
                  %1654 = vst [vmem:[%s1032 + $0x4d8] sm:%s1024] %v1653
                  %v1655 = vld [vmem:[%s1031 + $0x1370] sm:%s1024]
                  %1656 = vst [vmem:[%s1032 + $0x4dc] sm:%s1024] %v1655
                  %v1657 = vld [vmem:[%s1031 + $0x1380] sm:%s1024]
                  %1658 = vst [vmem:[%s1032 + $0x4e0] sm:%s1024] %v1657
                  %v1659 = vld [vmem:[%s1031 + $0x1390] sm:%s1024]
                  %1660 = vst [vmem:[%s1032 + $0x4e4] sm:%s1024] %v1659
                  %v1661 = vld [vmem:[%s1031 + $0x13a0] sm:%s1024]
                  %1662 = vst [vmem:[%s1032 + $0x4e8] sm:%s1024] %v1661
                  %v1663 = vld [vmem:[%s1031 + $0x13b0] sm:%s1024]
                  %1664 = vst [vmem:[%s1032 + $0x4ec] sm:%s1024] %v1663
                  %v1665 = vld [vmem:[%s1031 + $0x13c0] sm:%s1024]
                  %1666 = vst [vmem:[%s1032 + $0x4f0] sm:%s1024] %v1665
                  %v1667 = vld [vmem:[%s1031 + $0x13d0] sm:%s1024]
                  %1668 = vst [vmem:[%s1032 + $0x4f4] sm:%s1024] %v1667
                  %v1669 = vld [vmem:[%s1031 + $0x13e0] sm:%s1024]
                  %1670 = vst [vmem:[%s1032 + $0x4f8] sm:%s1024] %v1669
                  %v1671 = vld [vmem:[%s1031 + $0x13f0] sm:%s1024]
                  %1672 = vst [vmem:[%s1032 + $0x4fc] sm:%s1024] %v1671
                  %v1673 = vld [vmem:[%s1031 + $0x1400] sm:%s1024]
                  %1674 = vst [vmem:[%s1032 + $0x500] sm:%s1024] %v1673
                  %v1675 = vld [vmem:[%s1031 + $0x1410] sm:%s1024]
                  %1676 = vst [vmem:[%s1032 + $0x504] sm:%s1024] %v1675
                  %v1677 = vld [vmem:[%s1031 + $0x1420] sm:%s1024]
                  %1678 = vst [vmem:[%s1032 + $0x508] sm:%s1024] %v1677
                  %v1679 = vld [vmem:[%s1031 + $0x1430] sm:%s1024]
                  %1680 = vst [vmem:[%s1032 + $0x50c] sm:%s1024] %v1679
                  %v1681 = vld [vmem:[%s1031 + $0x1440] sm:%s1024]
                  %1682 = vst [vmem:[%s1032 + $0x510] sm:%s1024] %v1681
                  %v1683 = vld [vmem:[%s1031 + $0x1450] sm:%s1024]
                  %1684 = vst [vmem:[%s1032 + $0x514] sm:%s1024] %v1683
                  %v1685 = vld [vmem:[%s1031 + $0x1460] sm:%s1024]
                  %1686 = vst [vmem:[%s1032 + $0x518] sm:%s1024] %v1685
                  %v1687 = vld [vmem:[%s1031 + $0x1470] sm:%s1024]
                  %1688 = vst [vmem:[%s1032 + $0x51c] sm:%s1024] %v1687
                  %v1689 = vld [vmem:[%s1031 + $0x1480] sm:%s1024]
                  %1690 = vst [vmem:[%s1032 + $0x520] sm:%s1024] %v1689
                  %v1691 = vld [vmem:[%s1031 + $0x1490] sm:%s1024]
                  %1692 = vst [vmem:[%s1032 + $0x524] sm:%s1024] %v1691
                  %v1693 = vld [vmem:[%s1031 + $0x14a0] sm:%s1024]
                  %1694 = vst [vmem:[%s1032 + $0x528] sm:%s1024] %v1693
                  %v1695 = vld [vmem:[%s1031 + $0x14b0] sm:%s1024]
                  %1696 = vst [vmem:[%s1032 + $0x52c] sm:%s1024] %v1695
                  %v1697 = vld [vmem:[%s1031 + $0x14c0] sm:%s1024]
                  %1698 = vst [vmem:[%s1032 + $0x530] sm:%s1024] %v1697
                  %v1699 = vld [vmem:[%s1031 + $0x14d0] sm:%s1024]
                  %1700 = vst [vmem:[%s1032 + $0x534] sm:%s1024] %v1699
                  %v1701 = vld [vmem:[%s1031 + $0x14e0] sm:%s1024]
                  %1702 = vst [vmem:[%s1032 + $0x538] sm:%s1024] %v1701
                  %v1703 = vld [vmem:[%s1031 + $0x14f0] sm:%s1024]
                  %1704 = vst [vmem:[%s1032 + $0x53c] sm:%s1024] %v1703
                  %v1705 = vld [vmem:[%s1031 + $0x1500] sm:%s1024]
                  %1706 = vst [vmem:[%s1032 + $0x540] sm:%s1024] %v1705
                  %v1707 = vld [vmem:[%s1031 + $0x1510] sm:%s1024]
                  %1708 = vst [vmem:[%s1032 + $0x544] sm:%s1024] %v1707
                  %v1709 = vld [vmem:[%s1031 + $0x1520] sm:%s1024]
                  %1710 = vst [vmem:[%s1032 + $0x548] sm:%s1024] %v1709
                  %v1711 = vld [vmem:[%s1031 + $0x1530] sm:%s1024]
                  %1712 = vst [vmem:[%s1032 + $0x54c] sm:%s1024] %v1711
                  %v1713 = vld [vmem:[%s1031 + $0x1540] sm:%s1024]
                  %1714 = vst [vmem:[%s1032 + $0x550] sm:%s1024] %v1713
                  %v1715 = vld [vmem:[%s1031 + $0x1550] sm:%s1024]
                  %1716 = vst [vmem:[%s1032 + $0x554] sm:%s1024] %v1715
                  %v1717 = vld [vmem:[%s1031 + $0x1560] sm:%s1024]
                  %1718 = vst [vmem:[%s1032 + $0x558] sm:%s1024] %v1717
                  %v1719 = vld [vmem:[%s1031 + $0x1570] sm:%s1024]
                  %1720 = vst [vmem:[%s1032 + $0x55c] sm:%s1024] %v1719
                  %v1721 = vld [vmem:[%s1031 + $0x1580] sm:%s1024]
                  %1722 = vst [vmem:[%s1032 + $0x560] sm:%s1024] %v1721
                  %v1723 = vld [vmem:[%s1031 + $0x1590] sm:%s1024]
                  %1724 = vst [vmem:[%s1032 + $0x564] sm:%s1024] %v1723
                  %v1725 = vld [vmem:[%s1031 + $0x15a0] sm:%s1024]
                  %1726 = vst [vmem:[%s1032 + $0x568] sm:%s1024] %v1725
                  %v1727 = vld [vmem:[%s1031 + $0x15b0] sm:%s1024]
                  %1728 = vst [vmem:[%s1032 + $0x56c] sm:%s1024] %v1727
                  %v1729 = vld [vmem:[%s1031 + $0x15c0] sm:%s1024]
                  %1730 = vst [vmem:[%s1032 + $0x570] sm:%s1024] %v1729
                  %v1731 = vld [vmem:[%s1031 + $0x15d0] sm:%s1024]
                  %1732 = vst [vmem:[%s1032 + $0x574] sm:%s1024] %v1731
                  %v1733 = vld [vmem:[%s1031 + $0x15e0] sm:%s1024]
                  %1734 = vst [vmem:[%s1032 + $0x578] sm:%s1024] %v1733
                  %v1735 = vld [vmem:[%s1031 + $0x15f0] sm:%s1024]
                  %1736 = vst [vmem:[%s1032 + $0x57c] sm:%s1024] %v1735
                  %v1737 = vld [vmem:[%s1031 + $0x1600] sm:%s1024]
                  %1738 = vst [vmem:[%s1032 + $0x580] sm:%s1024] %v1737
                  %v1739 = vld [vmem:[%s1031 + $0x1610] sm:%s1024]
                  %1740 = vst [vmem:[%s1032 + $0x584] sm:%s1024] %v1739
                  %v1741 = vld [vmem:[%s1031 + $0x1620] sm:%s1024]
                  %1742 = vst [vmem:[%s1032 + $0x588] sm:%s1024] %v1741
                  %v1743 = vld [vmem:[%s1031 + $0x1630] sm:%s1024]
                  %1744 = vst [vmem:[%s1032 + $0x58c] sm:%s1024] %v1743
                  %v1745 = vld [vmem:[%s1031 + $0x1640] sm:%s1024]
                  %1746 = vst [vmem:[%s1032 + $0x590] sm:%s1024] %v1745
                  %v1747 = vld [vmem:[%s1031 + $0x1650] sm:%s1024]
                  %1748 = vst [vmem:[%s1032 + $0x594] sm:%s1024] %v1747
                  %v1749 = vld [vmem:[%s1031 + $0x1660] sm:%s1024]
                  %1750 = vst [vmem:[%s1032 + $0x598] sm:%s1024] %v1749
                  %v1751 = vld [vmem:[%s1031 + $0x1670] sm:%s1024]
                  %1752 = vst [vmem:[%s1032 + $0x59c] sm:%s1024] %v1751
                  %v1753 = vld [vmem:[%s1031 + $0x1680] sm:%s1024]
                  %1754 = vst [vmem:[%s1032 + $0x5a0] sm:%s1024] %v1753
                  %v1755 = vld [vmem:[%s1031 + $0x1690] sm:%s1024]
                  %1756 = vst [vmem:[%s1032 + $0x5a4] sm:%s1024] %v1755
                  %v1757 = vld [vmem:[%s1031 + $0x16a0] sm:%s1024]
                  %1758 = vst [vmem:[%s1032 + $0x5a8] sm:%s1024] %v1757
                  %v1759 = vld [vmem:[%s1031 + $0x16b0] sm:%s1024]
                  %1760 = vst [vmem:[%s1032 + $0x5ac] sm:%s1024] %v1759
                  %v1761 = vld [vmem:[%s1031 + $0x16c0] sm:%s1024]
                  %1762 = vst [vmem:[%s1032 + $0x5b0] sm:%s1024] %v1761
                  %v1763 = vld [vmem:[%s1031 + $0x16d0] sm:%s1024]
                  %1764 = vst [vmem:[%s1032 + $0x5b4] sm:%s1024] %v1763
                  %v1765 = vld [vmem:[%s1031 + $0x16e0] sm:%s1024]
                  %1766 = vst [vmem:[%s1032 + $0x5b8] sm:%s1024] %v1765
                  %v1767 = vld [vmem:[%s1031 + $0x16f0] sm:%s1024]
                  %1768 = vst [vmem:[%s1032 + $0x5bc] sm:%s1024] %v1767
                  %v1769 = vld [vmem:[%s1031 + $0x1700] sm:%s1024]
                  %1770 = vst [vmem:[%s1032 + $0x5c0] sm:%s1024] %v1769
                  %v1771 = vld [vmem:[%s1031 + $0x1710] sm:%s1024]
                  %1772 = vst [vmem:[%s1032 + $0x5c4] sm:%s1024] %v1771
                  %v1773 = vld [vmem:[%s1031 + $0x1720] sm:%s1024]
                  %1774 = vst [vmem:[%s1032 + $0x5c8] sm:%s1024] %v1773
                  %v1775 = vld [vmem:[%s1031 + $0x1730] sm:%s1024]
                  %1776 = vst [vmem:[%s1032 + $0x5cc] sm:%s1024] %v1775
                  %v1777 = vld [vmem:[%s1031 + $0x1740] sm:%s1024]
                  %1778 = vst [vmem:[%s1032 + $0x5d0] sm:%s1024] %v1777
                  %v1779 = vld [vmem:[%s1031 + $0x1750] sm:%s1024]
                  %1780 = vst [vmem:[%s1032 + $0x5d4] sm:%s1024] %v1779
                  %v1781 = vld [vmem:[%s1031 + $0x1760] sm:%s1024]
                  %1782 = vst [vmem:[%s1032 + $0x5d8] sm:%s1024] %v1781
                  %v1783 = vld [vmem:[%s1031 + $0x1770] sm:%s1024]
                  %1784 = vst [vmem:[%s1032 + $0x5dc] sm:%s1024] %v1783
                  %v1785 = vld [vmem:[%s1031 + $0x1780] sm:%s1024]
                  %1786 = vst [vmem:[%s1032 + $0x5e0] sm:%s1024] %v1785
                  %v1787 = vld [vmem:[%s1031 + $0x1790] sm:%s1024]
                  %1788 = vst [vmem:[%s1032 + $0x5e4] sm:%s1024] %v1787
                  %v1789 = vld [vmem:[%s1031 + $0x17a0] sm:%s1024]
                  %1790 = vst [vmem:[%s1032 + $0x5e8] sm:%s1024] %v1789
                  %v1791 = vld [vmem:[%s1031 + $0x17b0] sm:%s1024]
                  %1792 = vst [vmem:[%s1032 + $0x5ec] sm:%s1024] %v1791
                  %v1793 = vld [vmem:[%s1031 + $0x17c0] sm:%s1024]
                  %1794 = vst [vmem:[%s1032 + $0x5f0] sm:%s1024] %v1793
                  %v1795 = vld [vmem:[%s1031 + $0x17d0] sm:%s1024]
                  %1796 = vst [vmem:[%s1032 + $0x5f4] sm:%s1024] %v1795
                  %v1797 = vld [vmem:[%s1031 + $0x17e0] sm:%s1024]
                  %1798 = vst [vmem:[%s1032 + $0x5f8] sm:%s1024] %v1797
                  %v1799 = vld [vmem:[%s1031 + $0x17f0] sm:%s1024]
                  %1800 = vst [vmem:[%s1032 + $0x5fc] sm:%s1024] %v1799
                  %v1801 = vld [vmem:[%s1031 + $0x1800] sm:%s1024]
                  %1802 = vst [vmem:[%s1032 + $0x600] sm:%s1024] %v1801
                  %v1803 = vld [vmem:[%s1031 + $0x1810] sm:%s1024]
                  %1804 = vst [vmem:[%s1032 + $0x604] sm:%s1024] %v1803
                  %v1805 = vld [vmem:[%s1031 + $0x1820] sm:%s1024]
                  %1806 = vst [vmem:[%s1032 + $0x608] sm:%s1024] %v1805
                  %v1807 = vld [vmem:[%s1031 + $0x1830] sm:%s1024]
                  %1808 = vst [vmem:[%s1032 + $0x60c] sm:%s1024] %v1807
                  %v1809 = vld [vmem:[%s1031 + $0x1840] sm:%s1024]
                  %1810 = vst [vmem:[%s1032 + $0x610] sm:%s1024] %v1809
                  %v1811 = vld [vmem:[%s1031 + $0x1850] sm:%s1024]
                  %1812 = vst [vmem:[%s1032 + $0x614] sm:%s1024] %v1811
                  %v1813 = vld [vmem:[%s1031 + $0x1860] sm:%s1024]
                  %1814 = vst [vmem:[%s1032 + $0x618] sm:%s1024] %v1813
                  %v1815 = vld [vmem:[%s1031 + $0x1870] sm:%s1024]
                  %1816 = vst [vmem:[%s1032 + $0x61c] sm:%s1024] %v1815
                  %v1817 = vld [vmem:[%s1031 + $0x1880] sm:%s1024]
                  %1818 = vst [vmem:[%s1032 + $0x620] sm:%s1024] %v1817
                  %v1819 = vld [vmem:[%s1031 + $0x1890] sm:%s1024]
                  %1820 = vst [vmem:[%s1032 + $0x624] sm:%s1024] %v1819
                  %v1821 = vld [vmem:[%s1031 + $0x18a0] sm:%s1024]
                  %1822 = vst [vmem:[%s1032 + $0x628] sm:%s1024] %v1821
                  %v1823 = vld [vmem:[%s1031 + $0x18b0] sm:%s1024]
                  %1824 = vst [vmem:[%s1032 + $0x62c] sm:%s1024] %v1823
                  %v1825 = vld [vmem:[%s1031 + $0x18c0] sm:%s1024]
                  %1826 = vst [vmem:[%s1032 + $0x630] sm:%s1024] %v1825
                  %v1827 = vld [vmem:[%s1031 + $0x18d0] sm:%s1024]
                  %1828 = vst [vmem:[%s1032 + $0x634] sm:%s1024] %v1827
                  %v1829 = vld [vmem:[%s1031 + $0x18e0] sm:%s1024]
                  %1830 = vst [vmem:[%s1032 + $0x638] sm:%s1024] %v1829
                  %v1831 = vld [vmem:[%s1031 + $0x18f0] sm:%s1024]
                  %1832 = vst [vmem:[%s1032 + $0x63c] sm:%s1024] %v1831
                  %v1833 = vld [vmem:[%s1031 + $0x1900] sm:%s1024]
                  %1834 = vst [vmem:[%s1032 + $0x640] sm:%s1024] %v1833
                  %v1835 = vld [vmem:[%s1031 + $0x1910] sm:%s1024]
                  %1836 = vst [vmem:[%s1032 + $0x644] sm:%s1024] %v1835
                  %v1837 = vld [vmem:[%s1031 + $0x1920] sm:%s1024]
                  %1838 = vst [vmem:[%s1032 + $0x648] sm:%s1024] %v1837
                  %v1839 = vld [vmem:[%s1031 + $0x1930] sm:%s1024]
                  %1840 = vst [vmem:[%s1032 + $0x64c] sm:%s1024] %v1839
                  %v1841 = vld [vmem:[%s1031 + $0x1940] sm:%s1024]
                  %1842 = vst [vmem:[%s1032 + $0x650] sm:%s1024] %v1841
                $region63: #{forward.7} parent=50 // loop_footer
                  %s1030 = sadd.s32 1, %s1026
                $region64: #{forward.7} parent=50 // loop_footer_branch
                  %1025 = sbr.rel target = $region60
                $region65: #{forward.7} parent=50 // loop_exit
                  _
              $region51: #{forward.7} parent=35 // pred_fallthru
                _
            $region36: #{forward.7} parent=31 // pred_fallthru
              _
            // Predicated region
            $region37: #{forward.7} parent=31 // pred_check
              _
            $region38: #{forward.7} parent=31 // pred_check_branch
              %192 = sbr.rel (0) target = $region40
            $region39: #{forward.7} parent=31 // pred_region
              %s194 = ssub.s32 16, 1
              loop: start=0, step=1, limit=1
              $region41: #{forward.7} parent=39 // loop_pre_header
                _
              $region42: #{forward.7} parent=39 // loop_header
                %s196 = sphi 0, %s200
                %p197 = scmp.ge.s32.totalorder %s196, 1
                %s201 = sphi %s186, %s186
                %s202 = sphi %s184, %s184
              $region43: #{forward.7} parent=39 // loop_header_branch
                %199 = sbr.rel (%p197) target = $region47
              $region44: #{forward.7} parent=39 // loop_body
                %v203 = vld [vmem:[%s201] sm:%s194]
                %204 = vst [vmem:[%s202] sm:%s194] %v203
                %v205 = vld [vmem:[%s201 + $0x10] sm:%s194]
                %206 = vst [vmem:[%s202 + $0x4] sm:%s194] %v205
                %v207 = vld [vmem:[%s201 + $0x20] sm:%s194]
                %208 = vst [vmem:[%s202 + $0x8] sm:%s194] %v207
                %v209 = vld [vmem:[%s201 + $0x30] sm:%s194]
                %210 = vst [vmem:[%s202 + $0xc] sm:%s194] %v209
                %v211 = vld [vmem:[%s201 + $0x40] sm:%s194]
                %212 = vst [vmem:[%s202 + $0x10] sm:%s194] %v211
                %v213 = vld [vmem:[%s201 + $0x50] sm:%s194]
                %214 = vst [vmem:[%s202 + $0x14] sm:%s194] %v213
                %v215 = vld [vmem:[%s201 + $0x60] sm:%s194]
                %216 = vst [vmem:[%s202 + $0x18] sm:%s194] %v215
                %v217 = vld [vmem:[%s201 + $0x70] sm:%s194]
                %218 = vst [vmem:[%s202 + $0x1c] sm:%s194] %v217
                %v219 = vld [vmem:[%s201 + $0x80] sm:%s194]
                %220 = vst [vmem:[%s202 + $0x20] sm:%s194] %v219
                %v221 = vld [vmem:[%s201 + $0x90] sm:%s194]
                %222 = vst [vmem:[%s202 + $0x24] sm:%s194] %v221
                %v223 = vld [vmem:[%s201 + $0xa0] sm:%s194]
                %224 = vst [vmem:[%s202 + $0x28] sm:%s194] %v223
                %v225 = vld [vmem:[%s201 + $0xb0] sm:%s194]
                %226 = vst [vmem:[%s202 + $0x2c] sm:%s194] %v225
                %v227 = vld [vmem:[%s201 + $0xc0] sm:%s194]
                %228 = vst [vmem:[%s202 + $0x30] sm:%s194] %v227
                %v229 = vld [vmem:[%s201 + $0xd0] sm:%s194]
                %230 = vst [vmem:[%s202 + $0x34] sm:%s194] %v229
                %v231 = vld [vmem:[%s201 + $0xe0] sm:%s194]
                %232 = vst [vmem:[%s202 + $0x38] sm:%s194] %v231
                %v233 = vld [vmem:[%s201 + $0xf0] sm:%s194]
                %234 = vst [vmem:[%s202 + $0x3c] sm:%s194] %v233
                %v235 = vld [vmem:[%s201 + $0x100] sm:%s194]
                %236 = vst [vmem:[%s202 + $0x40] sm:%s194] %v235
                %v237 = vld [vmem:[%s201 + $0x110] sm:%s194]
                %238 = vst [vmem:[%s202 + $0x44] sm:%s194] %v237
                %v239 = vld [vmem:[%s201 + $0x120] sm:%s194]
                %240 = vst [vmem:[%s202 + $0x48] sm:%s194] %v239
                %v241 = vld [vmem:[%s201 + $0x130] sm:%s194]
                %242 = vst [vmem:[%s202 + $0x4c] sm:%s194] %v241
                %v243 = vld [vmem:[%s201 + $0x140] sm:%s194]
                %244 = vst [vmem:[%s202 + $0x50] sm:%s194] %v243
                %v245 = vld [vmem:[%s201 + $0x150] sm:%s194]
                %246 = vst [vmem:[%s202 + $0x54] sm:%s194] %v245
                %v247 = vld [vmem:[%s201 + $0x160] sm:%s194]
                %248 = vst [vmem:[%s202 + $0x58] sm:%s194] %v247
                %v249 = vld [vmem:[%s201 + $0x170] sm:%s194]
                %250 = vst [vmem:[%s202 + $0x5c] sm:%s194] %v249
                %v251 = vld [vmem:[%s201 + $0x180] sm:%s194]
                %252 = vst [vmem:[%s202 + $0x60] sm:%s194] %v251
                %v253 = vld [vmem:[%s201 + $0x190] sm:%s194]
                %254 = vst [vmem:[%s202 + $0x64] sm:%s194] %v253
                %v255 = vld [vmem:[%s201 + $0x1a0] sm:%s194]
                %256 = vst [vmem:[%s202 + $0x68] sm:%s194] %v255
                %v257 = vld [vmem:[%s201 + $0x1b0] sm:%s194]
                %258 = vst [vmem:[%s202 + $0x6c] sm:%s194] %v257
                %v259 = vld [vmem:[%s201 + $0x1c0] sm:%s194]
                %260 = vst [vmem:[%s202 + $0x70] sm:%s194] %v259
                %v261 = vld [vmem:[%s201 + $0x1d0] sm:%s194]
                %262 = vst [vmem:[%s202 + $0x74] sm:%s194] %v261
                %v263 = vld [vmem:[%s201 + $0x1e0] sm:%s194]
                %264 = vst [vmem:[%s202 + $0x78] sm:%s194] %v263
                %v265 = vld [vmem:[%s201 + $0x1f0] sm:%s194]
                %266 = vst [vmem:[%s202 + $0x7c] sm:%s194] %v265
                %v267 = vld [vmem:[%s201 + $0x200] sm:%s194]
                %268 = vst [vmem:[%s202 + $0x80] sm:%s194] %v267
                %v269 = vld [vmem:[%s201 + $0x210] sm:%s194]
                %270 = vst [vmem:[%s202 + $0x84] sm:%s194] %v269
                %v271 = vld [vmem:[%s201 + $0x220] sm:%s194]
                %272 = vst [vmem:[%s202 + $0x88] sm:%s194] %v271
                %v273 = vld [vmem:[%s201 + $0x230] sm:%s194]
                %274 = vst [vmem:[%s202 + $0x8c] sm:%s194] %v273
                %v275 = vld [vmem:[%s201 + $0x240] sm:%s194]
                %276 = vst [vmem:[%s202 + $0x90] sm:%s194] %v275
                %v277 = vld [vmem:[%s201 + $0x250] sm:%s194]
                %278 = vst [vmem:[%s202 + $0x94] sm:%s194] %v277
                %v279 = vld [vmem:[%s201 + $0x260] sm:%s194]
                %280 = vst [vmem:[%s202 + $0x98] sm:%s194] %v279
                %v281 = vld [vmem:[%s201 + $0x270] sm:%s194]
                %282 = vst [vmem:[%s202 + $0x9c] sm:%s194] %v281
                %v283 = vld [vmem:[%s201 + $0x280] sm:%s194]
                %284 = vst [vmem:[%s202 + $0xa0] sm:%s194] %v283
                %v285 = vld [vmem:[%s201 + $0x290] sm:%s194]
                %286 = vst [vmem:[%s202 + $0xa4] sm:%s194] %v285
                %v287 = vld [vmem:[%s201 + $0x2a0] sm:%s194]
                %288 = vst [vmem:[%s202 + $0xa8] sm:%s194] %v287
                %v289 = vld [vmem:[%s201 + $0x2b0] sm:%s194]
                %290 = vst [vmem:[%s202 + $0xac] sm:%s194] %v289
                %v291 = vld [vmem:[%s201 + $0x2c0] sm:%s194]
                %292 = vst [vmem:[%s202 + $0xb0] sm:%s194] %v291
                %v293 = vld [vmem:[%s201 + $0x2d0] sm:%s194]
                %294 = vst [vmem:[%s202 + $0xb4] sm:%s194] %v293
                %v295 = vld [vmem:[%s201 + $0x2e0] sm:%s194]
                %296 = vst [vmem:[%s202 + $0xb8] sm:%s194] %v295
                %v297 = vld [vmem:[%s201 + $0x2f0] sm:%s194]
                %298 = vst [vmem:[%s202 + $0xbc] sm:%s194] %v297
                %v299 = vld [vmem:[%s201 + $0x300] sm:%s194]
                %300 = vst [vmem:[%s202 + $0xc0] sm:%s194] %v299
                %v301 = vld [vmem:[%s201 + $0x310] sm:%s194]
                %302 = vst [vmem:[%s202 + $0xc4] sm:%s194] %v301
                %v303 = vld [vmem:[%s201 + $0x320] sm:%s194]
                %304 = vst [vmem:[%s202 + $0xc8] sm:%s194] %v303
                %v305 = vld [vmem:[%s201 + $0x330] sm:%s194]
                %306 = vst [vmem:[%s202 + $0xcc] sm:%s194] %v305
                %v307 = vld [vmem:[%s201 + $0x340] sm:%s194]
                %308 = vst [vmem:[%s202 + $0xd0] sm:%s194] %v307
                %v309 = vld [vmem:[%s201 + $0x350] sm:%s194]
                %310 = vst [vmem:[%s202 + $0xd4] sm:%s194] %v309
                %v311 = vld [vmem:[%s201 + $0x360] sm:%s194]
                %312 = vst [vmem:[%s202 + $0xd8] sm:%s194] %v311
                %v313 = vld [vmem:[%s201 + $0x370] sm:%s194]
                %314 = vst [vmem:[%s202 + $0xdc] sm:%s194] %v313
                %v315 = vld [vmem:[%s201 + $0x380] sm:%s194]
                %316 = vst [vmem:[%s202 + $0xe0] sm:%s194] %v315
                %v317 = vld [vmem:[%s201 + $0x390] sm:%s194]
                %318 = vst [vmem:[%s202 + $0xe4] sm:%s194] %v317
                %v319 = vld [vmem:[%s201 + $0x3a0] sm:%s194]
                %320 = vst [vmem:[%s202 + $0xe8] sm:%s194] %v319
                %v321 = vld [vmem:[%s201 + $0x3b0] sm:%s194]
                %322 = vst [vmem:[%s202 + $0xec] sm:%s194] %v321
                %v323 = vld [vmem:[%s201 + $0x3c0] sm:%s194]
                %324 = vst [vmem:[%s202 + $0xf0] sm:%s194] %v323
                %v325 = vld [vmem:[%s201 + $0x3d0] sm:%s194]
                %326 = vst [vmem:[%s202 + $0xf4] sm:%s194] %v325
                %v327 = vld [vmem:[%s201 + $0x3e0] sm:%s194]
                %328 = vst [vmem:[%s202 + $0xf8] sm:%s194] %v327
                %v329 = vld [vmem:[%s201 + $0x3f0] sm:%s194]
                %330 = vst [vmem:[%s202 + $0xfc] sm:%s194] %v329
                %v331 = vld [vmem:[%s201 + $0x400] sm:%s194]
                %332 = vst [vmem:[%s202 + $0x100] sm:%s194] %v331
                %v333 = vld [vmem:[%s201 + $0x410] sm:%s194]
                %334 = vst [vmem:[%s202 + $0x104] sm:%s194] %v333
                %v335 = vld [vmem:[%s201 + $0x420] sm:%s194]
                %336 = vst [vmem:[%s202 + $0x108] sm:%s194] %v335
                %v337 = vld [vmem:[%s201 + $0x430] sm:%s194]
                %338 = vst [vmem:[%s202 + $0x10c] sm:%s194] %v337
                %v339 = vld [vmem:[%s201 + $0x440] sm:%s194]
                %340 = vst [vmem:[%s202 + $0x110] sm:%s194] %v339
                %v341 = vld [vmem:[%s201 + $0x450] sm:%s194]
                %342 = vst [vmem:[%s202 + $0x114] sm:%s194] %v341
                %v343 = vld [vmem:[%s201 + $0x460] sm:%s194]
                %344 = vst [vmem:[%s202 + $0x118] sm:%s194] %v343
                %v345 = vld [vmem:[%s201 + $0x470] sm:%s194]
                %346 = vst [vmem:[%s202 + $0x11c] sm:%s194] %v345
                %v347 = vld [vmem:[%s201 + $0x480] sm:%s194]
                %348 = vst [vmem:[%s202 + $0x120] sm:%s194] %v347
                %v349 = vld [vmem:[%s201 + $0x490] sm:%s194]
                %350 = vst [vmem:[%s202 + $0x124] sm:%s194] %v349
                %v351 = vld [vmem:[%s201 + $0x4a0] sm:%s194]
                %352 = vst [vmem:[%s202 + $0x128] sm:%s194] %v351
                %v353 = vld [vmem:[%s201 + $0x4b0] sm:%s194]
                %354 = vst [vmem:[%s202 + $0x12c] sm:%s194] %v353
                %v355 = vld [vmem:[%s201 + $0x4c0] sm:%s194]
                %356 = vst [vmem:[%s202 + $0x130] sm:%s194] %v355
                %v357 = vld [vmem:[%s201 + $0x4d0] sm:%s194]
                %358 = vst [vmem:[%s202 + $0x134] sm:%s194] %v357
                %v359 = vld [vmem:[%s201 + $0x4e0] sm:%s194]
                %360 = vst [vmem:[%s202 + $0x138] sm:%s194] %v359
                %v361 = vld [vmem:[%s201 + $0x4f0] sm:%s194]
                %362 = vst [vmem:[%s202 + $0x13c] sm:%s194] %v361
                %v363 = vld [vmem:[%s201 + $0x500] sm:%s194]
                %364 = vst [vmem:[%s202 + $0x140] sm:%s194] %v363
                %v365 = vld [vmem:[%s201 + $0x510] sm:%s194]
                %366 = vst [vmem:[%s202 + $0x144] sm:%s194] %v365
                %v367 = vld [vmem:[%s201 + $0x520] sm:%s194]
                %368 = vst [vmem:[%s202 + $0x148] sm:%s194] %v367
                %v369 = vld [vmem:[%s201 + $0x530] sm:%s194]
                %370 = vst [vmem:[%s202 + $0x14c] sm:%s194] %v369
                %v371 = vld [vmem:[%s201 + $0x540] sm:%s194]
                %372 = vst [vmem:[%s202 + $0x150] sm:%s194] %v371
                %v373 = vld [vmem:[%s201 + $0x550] sm:%s194]
                %374 = vst [vmem:[%s202 + $0x154] sm:%s194] %v373
                %v375 = vld [vmem:[%s201 + $0x560] sm:%s194]
                %376 = vst [vmem:[%s202 + $0x158] sm:%s194] %v375
                %v377 = vld [vmem:[%s201 + $0x570] sm:%s194]
                %378 = vst [vmem:[%s202 + $0x15c] sm:%s194] %v377
                %v379 = vld [vmem:[%s201 + $0x580] sm:%s194]
                %380 = vst [vmem:[%s202 + $0x160] sm:%s194] %v379
                %v381 = vld [vmem:[%s201 + $0x590] sm:%s194]
                %382 = vst [vmem:[%s202 + $0x164] sm:%s194] %v381
                %v383 = vld [vmem:[%s201 + $0x5a0] sm:%s194]
                %384 = vst [vmem:[%s202 + $0x168] sm:%s194] %v383
                %v385 = vld [vmem:[%s201 + $0x5b0] sm:%s194]
                %386 = vst [vmem:[%s202 + $0x16c] sm:%s194] %v385
                %v387 = vld [vmem:[%s201 + $0x5c0] sm:%s194]
                %388 = vst [vmem:[%s202 + $0x170] sm:%s194] %v387
                %v389 = vld [vmem:[%s201 + $0x5d0] sm:%s194]
                %390 = vst [vmem:[%s202 + $0x174] sm:%s194] %v389
                %v391 = vld [vmem:[%s201 + $0x5e0] sm:%s194]
                %392 = vst [vmem:[%s202 + $0x178] sm:%s194] %v391
                %v393 = vld [vmem:[%s201 + $0x5f0] sm:%s194]
                %394 = vst [vmem:[%s202 + $0x17c] sm:%s194] %v393
                %v395 = vld [vmem:[%s201 + $0x600] sm:%s194]
                %396 = vst [vmem:[%s202 + $0x180] sm:%s194] %v395
                %v397 = vld [vmem:[%s201 + $0x610] sm:%s194]
                %398 = vst [vmem:[%s202 + $0x184] sm:%s194] %v397
                %v399 = vld [vmem:[%s201 + $0x620] sm:%s194]
                %400 = vst [vmem:[%s202 + $0x188] sm:%s194] %v399
                %v401 = vld [vmem:[%s201 + $0x630] sm:%s194]
                %402 = vst [vmem:[%s202 + $0x18c] sm:%s194] %v401
                %v403 = vld [vmem:[%s201 + $0x640] sm:%s194]
                %404 = vst [vmem:[%s202 + $0x190] sm:%s194] %v403
                %v405 = vld [vmem:[%s201 + $0x650] sm:%s194]
                %406 = vst [vmem:[%s202 + $0x194] sm:%s194] %v405
                %v407 = vld [vmem:[%s201 + $0x660] sm:%s194]
                %408 = vst [vmem:[%s202 + $0x198] sm:%s194] %v407
                %v409 = vld [vmem:[%s201 + $0x670] sm:%s194]
                %410 = vst [vmem:[%s202 + $0x19c] sm:%s194] %v409
                %v411 = vld [vmem:[%s201 + $0x680] sm:%s194]
                %412 = vst [vmem:[%s202 + $0x1a0] sm:%s194] %v411
                %v413 = vld [vmem:[%s201 + $0x690] sm:%s194]
                %414 = vst [vmem:[%s202 + $0x1a4] sm:%s194] %v413
                %v415 = vld [vmem:[%s201 + $0x6a0] sm:%s194]
                %416 = vst [vmem:[%s202 + $0x1a8] sm:%s194] %v415
                %v417 = vld [vmem:[%s201 + $0x6b0] sm:%s194]
                %418 = vst [vmem:[%s202 + $0x1ac] sm:%s194] %v417
                %v419 = vld [vmem:[%s201 + $0x6c0] sm:%s194]
                %420 = vst [vmem:[%s202 + $0x1b0] sm:%s194] %v419
                %v421 = vld [vmem:[%s201 + $0x6d0] sm:%s194]
                %422 = vst [vmem:[%s202 + $0x1b4] sm:%s194] %v421
                %v423 = vld [vmem:[%s201 + $0x6e0] sm:%s194]
                %424 = vst [vmem:[%s202 + $0x1b8] sm:%s194] %v423
                %v425 = vld [vmem:[%s201 + $0x6f0] sm:%s194]
                %426 = vst [vmem:[%s202 + $0x1bc] sm:%s194] %v425
                %v427 = vld [vmem:[%s201 + $0x700] sm:%s194]
                %428 = vst [vmem:[%s202 + $0x1c0] sm:%s194] %v427
                %v429 = vld [vmem:[%s201 + $0x710] sm:%s194]
                %430 = vst [vmem:[%s202 + $0x1c4] sm:%s194] %v429
                %v431 = vld [vmem:[%s201 + $0x720] sm:%s194]
                %432 = vst [vmem:[%s202 + $0x1c8] sm:%s194] %v431
                %v433 = vld [vmem:[%s201 + $0x730] sm:%s194]
                %434 = vst [vmem:[%s202 + $0x1cc] sm:%s194] %v433
                %v435 = vld [vmem:[%s201 + $0x740] sm:%s194]
                %436 = vst [vmem:[%s202 + $0x1d0] sm:%s194] %v435
                %v437 = vld [vmem:[%s201 + $0x750] sm:%s194]
                %438 = vst [vmem:[%s202 + $0x1d4] sm:%s194] %v437
                %v439 = vld [vmem:[%s201 + $0x760] sm:%s194]
                %440 = vst [vmem:[%s202 + $0x1d8] sm:%s194] %v439
                %v441 = vld [vmem:[%s201 + $0x770] sm:%s194]
                %442 = vst [vmem:[%s202 + $0x1dc] sm:%s194] %v441
                %v443 = vld [vmem:[%s201 + $0x780] sm:%s194]
                %444 = vst [vmem:[%s202 + $0x1e0] sm:%s194] %v443
                %v445 = vld [vmem:[%s201 + $0x790] sm:%s194]
                %446 = vst [vmem:[%s202 + $0x1e4] sm:%s194] %v445
                %v447 = vld [vmem:[%s201 + $0x7a0] sm:%s194]
                %448 = vst [vmem:[%s202 + $0x1e8] sm:%s194] %v447
                %v449 = vld [vmem:[%s201 + $0x7b0] sm:%s194]
                %450 = vst [vmem:[%s202 + $0x1ec] sm:%s194] %v449
                %v451 = vld [vmem:[%s201 + $0x7c0] sm:%s194]
                %452 = vst [vmem:[%s202 + $0x1f0] sm:%s194] %v451
                %v453 = vld [vmem:[%s201 + $0x7d0] sm:%s194]
                %454 = vst [vmem:[%s202 + $0x1f4] sm:%s194] %v453
                %v455 = vld [vmem:[%s201 + $0x7e0] sm:%s194]
                %456 = vst [vmem:[%s202 + $0x1f8] sm:%s194] %v455
                %v457 = vld [vmem:[%s201 + $0x7f0] sm:%s194]
                %458 = vst [vmem:[%s202 + $0x1fc] sm:%s194] %v457
                %v459 = vld [vmem:[%s201 + $0x800] sm:%s194]
                %460 = vst [vmem:[%s202 + $0x200] sm:%s194] %v459
                %v461 = vld [vmem:[%s201 + $0x810] sm:%s194]
                %462 = vst [vmem:[%s202 + $0x204] sm:%s194] %v461
                %v463 = vld [vmem:[%s201 + $0x820] sm:%s194]
                %464 = vst [vmem:[%s202 + $0x208] sm:%s194] %v463
                %v465 = vld [vmem:[%s201 + $0x830] sm:%s194]
                %466 = vst [vmem:[%s202 + $0x20c] sm:%s194] %v465
                %v467 = vld [vmem:[%s201 + $0x840] sm:%s194]
                %468 = vst [vmem:[%s202 + $0x210] sm:%s194] %v467
                %v469 = vld [vmem:[%s201 + $0x850] sm:%s194]
                %470 = vst [vmem:[%s202 + $0x214] sm:%s194] %v469
                %v471 = vld [vmem:[%s201 + $0x860] sm:%s194]
                %472 = vst [vmem:[%s202 + $0x218] sm:%s194] %v471
                %v473 = vld [vmem:[%s201 + $0x870] sm:%s194]
                %474 = vst [vmem:[%s202 + $0x21c] sm:%s194] %v473
                %v475 = vld [vmem:[%s201 + $0x880] sm:%s194]
                %476 = vst [vmem:[%s202 + $0x220] sm:%s194] %v475
                %v477 = vld [vmem:[%s201 + $0x890] sm:%s194]
                %478 = vst [vmem:[%s202 + $0x224] sm:%s194] %v477
                %v479 = vld [vmem:[%s201 + $0x8a0] sm:%s194]
                %480 = vst [vmem:[%s202 + $0x228] sm:%s194] %v479
                %v481 = vld [vmem:[%s201 + $0x8b0] sm:%s194]
                %482 = vst [vmem:[%s202 + $0x22c] sm:%s194] %v481
                %v483 = vld [vmem:[%s201 + $0x8c0] sm:%s194]
                %484 = vst [vmem:[%s202 + $0x230] sm:%s194] %v483
                %v485 = vld [vmem:[%s201 + $0x8d0] sm:%s194]
                %486 = vst [vmem:[%s202 + $0x234] sm:%s194] %v485
                %v487 = vld [vmem:[%s201 + $0x8e0] sm:%s194]
                %488 = vst [vmem:[%s202 + $0x238] sm:%s194] %v487
                %v489 = vld [vmem:[%s201 + $0x8f0] sm:%s194]
                %490 = vst [vmem:[%s202 + $0x23c] sm:%s194] %v489
                %v491 = vld [vmem:[%s201 + $0x900] sm:%s194]
                %492 = vst [vmem:[%s202 + $0x240] sm:%s194] %v491
                %v493 = vld [vmem:[%s201 + $0x910] sm:%s194]
                %494 = vst [vmem:[%s202 + $0x244] sm:%s194] %v493
                %v495 = vld [vmem:[%s201 + $0x920] sm:%s194]
                %496 = vst [vmem:[%s202 + $0x248] sm:%s194] %v495
                %v497 = vld [vmem:[%s201 + $0x930] sm:%s194]
                %498 = vst [vmem:[%s202 + $0x24c] sm:%s194] %v497
                %v499 = vld [vmem:[%s201 + $0x940] sm:%s194]
                %500 = vst [vmem:[%s202 + $0x250] sm:%s194] %v499
                %v501 = vld [vmem:[%s201 + $0x950] sm:%s194]
                %502 = vst [vmem:[%s202 + $0x254] sm:%s194] %v501
                %v503 = vld [vmem:[%s201 + $0x960] sm:%s194]
                %504 = vst [vmem:[%s202 + $0x258] sm:%s194] %v503
                %v505 = vld [vmem:[%s201 + $0x970] sm:%s194]
                %506 = vst [vmem:[%s202 + $0x25c] sm:%s194] %v505
                %v507 = vld [vmem:[%s201 + $0x980] sm:%s194]
                %508 = vst [vmem:[%s202 + $0x260] sm:%s194] %v507
                %v509 = vld [vmem:[%s201 + $0x990] sm:%s194]
                %510 = vst [vmem:[%s202 + $0x264] sm:%s194] %v509
                %v511 = vld [vmem:[%s201 + $0x9a0] sm:%s194]
                %512 = vst [vmem:[%s202 + $0x268] sm:%s194] %v511
                %v513 = vld [vmem:[%s201 + $0x9b0] sm:%s194]
                %514 = vst [vmem:[%s202 + $0x26c] sm:%s194] %v513
                %v515 = vld [vmem:[%s201 + $0x9c0] sm:%s194]
                %516 = vst [vmem:[%s202 + $0x270] sm:%s194] %v515
                %v517 = vld [vmem:[%s201 + $0x9d0] sm:%s194]
                %518 = vst [vmem:[%s202 + $0x274] sm:%s194] %v517
                %v519 = vld [vmem:[%s201 + $0x9e0] sm:%s194]
                %520 = vst [vmem:[%s202 + $0x278] sm:%s194] %v519
                %v521 = vld [vmem:[%s201 + $0x9f0] sm:%s194]
                %522 = vst [vmem:[%s202 + $0x27c] sm:%s194] %v521
                %v523 = vld [vmem:[%s201 + $0xa00] sm:%s194]
                %524 = vst [vmem:[%s202 + $0x280] sm:%s194] %v523
                %v525 = vld [vmem:[%s201 + $0xa10] sm:%s194]
                %526 = vst [vmem:[%s202 + $0x284] sm:%s194] %v525
                %v527 = vld [vmem:[%s201 + $0xa20] sm:%s194]
                %528 = vst [vmem:[%s202 + $0x288] sm:%s194] %v527
                %v529 = vld [vmem:[%s201 + $0xa30] sm:%s194]
                %530 = vst [vmem:[%s202 + $0x28c] sm:%s194] %v529
                %v531 = vld [vmem:[%s201 + $0xa40] sm:%s194]
                %532 = vst [vmem:[%s202 + $0x290] sm:%s194] %v531
                %v533 = vld [vmem:[%s201 + $0xa50] sm:%s194]
                %534 = vst [vmem:[%s202 + $0x294] sm:%s194] %v533
                %v535 = vld [vmem:[%s201 + $0xa60] sm:%s194]
                %536 = vst [vmem:[%s202 + $0x298] sm:%s194] %v535
                %v537 = vld [vmem:[%s201 + $0xa70] sm:%s194]
                %538 = vst [vmem:[%s202 + $0x29c] sm:%s194] %v537
                %v539 = vld [vmem:[%s201 + $0xa80] sm:%s194]
                %540 = vst [vmem:[%s202 + $0x2a0] sm:%s194] %v539
                %v541 = vld [vmem:[%s201 + $0xa90] sm:%s194]
                %542 = vst [vmem:[%s202 + $0x2a4] sm:%s194] %v541
                %v543 = vld [vmem:[%s201 + $0xaa0] sm:%s194]
                %544 = vst [vmem:[%s202 + $0x2a8] sm:%s194] %v543
                %v545 = vld [vmem:[%s201 + $0xab0] sm:%s194]
                %546 = vst [vmem:[%s202 + $0x2ac] sm:%s194] %v545
                %v547 = vld [vmem:[%s201 + $0xac0] sm:%s194]
                %548 = vst [vmem:[%s202 + $0x2b0] sm:%s194] %v547
                %v549 = vld [vmem:[%s201 + $0xad0] sm:%s194]
                %550 = vst [vmem:[%s202 + $0x2b4] sm:%s194] %v549
                %v551 = vld [vmem:[%s201 + $0xae0] sm:%s194]
                %552 = vst [vmem:[%s202 + $0x2b8] sm:%s194] %v551
                %v553 = vld [vmem:[%s201 + $0xaf0] sm:%s194]
                %554 = vst [vmem:[%s202 + $0x2bc] sm:%s194] %v553
                %v555 = vld [vmem:[%s201 + $0xb00] sm:%s194]
                %556 = vst [vmem:[%s202 + $0x2c0] sm:%s194] %v555
                %v557 = vld [vmem:[%s201 + $0xb10] sm:%s194]
                %558 = vst [vmem:[%s202 + $0x2c4] sm:%s194] %v557
                %v559 = vld [vmem:[%s201 + $0xb20] sm:%s194]
                %560 = vst [vmem:[%s202 + $0x2c8] sm:%s194] %v559
                %v561 = vld [vmem:[%s201 + $0xb30] sm:%s194]
                %562 = vst [vmem:[%s202 + $0x2cc] sm:%s194] %v561
                %v563 = vld [vmem:[%s201 + $0xb40] sm:%s194]
                %564 = vst [vmem:[%s202 + $0x2d0] sm:%s194] %v563
                %v565 = vld [vmem:[%s201 + $0xb50] sm:%s194]
                %566 = vst [vmem:[%s202 + $0x2d4] sm:%s194] %v565
                %v567 = vld [vmem:[%s201 + $0xb60] sm:%s194]
                %568 = vst [vmem:[%s202 + $0x2d8] sm:%s194] %v567
                %v569 = vld [vmem:[%s201 + $0xb70] sm:%s194]
                %570 = vst [vmem:[%s202 + $0x2dc] sm:%s194] %v569
                %v571 = vld [vmem:[%s201 + $0xb80] sm:%s194]
                %572 = vst [vmem:[%s202 + $0x2e0] sm:%s194] %v571
                %v573 = vld [vmem:[%s201 + $0xb90] sm:%s194]
                %574 = vst [vmem:[%s202 + $0x2e4] sm:%s194] %v573
                %v575 = vld [vmem:[%s201 + $0xba0] sm:%s194]
                %576 = vst [vmem:[%s202 + $0x2e8] sm:%s194] %v575
                %v577 = vld [vmem:[%s201 + $0xbb0] sm:%s194]
                %578 = vst [vmem:[%s202 + $0x2ec] sm:%s194] %v577
                %v579 = vld [vmem:[%s201 + $0xbc0] sm:%s194]
                %580 = vst [vmem:[%s202 + $0x2f0] sm:%s194] %v579
                %v581 = vld [vmem:[%s201 + $0xbd0] sm:%s194]
                %582 = vst [vmem:[%s202 + $0x2f4] sm:%s194] %v581
                %v583 = vld [vmem:[%s201 + $0xbe0] sm:%s194]
                %584 = vst [vmem:[%s202 + $0x2f8] sm:%s194] %v583
                %v585 = vld [vmem:[%s201 + $0xbf0] sm:%s194]
                %586 = vst [vmem:[%s202 + $0x2fc] sm:%s194] %v585
                %v587 = vld [vmem:[%s201 + $0xc00] sm:%s194]
                %588 = vst [vmem:[%s202 + $0x300] sm:%s194] %v587
                %v589 = vld [vmem:[%s201 + $0xc10] sm:%s194]
                %590 = vst [vmem:[%s202 + $0x304] sm:%s194] %v589
                %v591 = vld [vmem:[%s201 + $0xc20] sm:%s194]
                %592 = vst [vmem:[%s202 + $0x308] sm:%s194] %v591
                %v593 = vld [vmem:[%s201 + $0xc30] sm:%s194]
                %594 = vst [vmem:[%s202 + $0x30c] sm:%s194] %v593
                %v595 = vld [vmem:[%s201 + $0xc40] sm:%s194]
                %596 = vst [vmem:[%s202 + $0x310] sm:%s194] %v595
                %v597 = vld [vmem:[%s201 + $0xc50] sm:%s194]
                %598 = vst [vmem:[%s202 + $0x314] sm:%s194] %v597
                %v599 = vld [vmem:[%s201 + $0xc60] sm:%s194]
                %600 = vst [vmem:[%s202 + $0x318] sm:%s194] %v599
                %v601 = vld [vmem:[%s201 + $0xc70] sm:%s194]
                %602 = vst [vmem:[%s202 + $0x31c] sm:%s194] %v601
                %v603 = vld [vmem:[%s201 + $0xc80] sm:%s194]
                %604 = vst [vmem:[%s202 + $0x320] sm:%s194] %v603
                %v605 = vld [vmem:[%s201 + $0xc90] sm:%s194]
                %606 = vst [vmem:[%s202 + $0x324] sm:%s194] %v605
                %v607 = vld [vmem:[%s201 + $0xca0] sm:%s194]
                %608 = vst [vmem:[%s202 + $0x328] sm:%s194] %v607
                %v609 = vld [vmem:[%s201 + $0xcb0] sm:%s194]
                %610 = vst [vmem:[%s202 + $0x32c] sm:%s194] %v609
                %v611 = vld [vmem:[%s201 + $0xcc0] sm:%s194]
                %612 = vst [vmem:[%s202 + $0x330] sm:%s194] %v611
                %v613 = vld [vmem:[%s201 + $0xcd0] sm:%s194]
                %614 = vst [vmem:[%s202 + $0x334] sm:%s194] %v613
                %v615 = vld [vmem:[%s201 + $0xce0] sm:%s194]
                %616 = vst [vmem:[%s202 + $0x338] sm:%s194] %v615
                %v617 = vld [vmem:[%s201 + $0xcf0] sm:%s194]
                %618 = vst [vmem:[%s202 + $0x33c] sm:%s194] %v617
                %v619 = vld [vmem:[%s201 + $0xd00] sm:%s194]
                %620 = vst [vmem:[%s202 + $0x340] sm:%s194] %v619
                %v621 = vld [vmem:[%s201 + $0xd10] sm:%s194]
                %622 = vst [vmem:[%s202 + $0x344] sm:%s194] %v621
                %v623 = vld [vmem:[%s201 + $0xd20] sm:%s194]
                %624 = vst [vmem:[%s202 + $0x348] sm:%s194] %v623
                %v625 = vld [vmem:[%s201 + $0xd30] sm:%s194]
                %626 = vst [vmem:[%s202 + $0x34c] sm:%s194] %v625
                %v627 = vld [vmem:[%s201 + $0xd40] sm:%s194]
                %628 = vst [vmem:[%s202 + $0x350] sm:%s194] %v627
                %v629 = vld [vmem:[%s201 + $0xd50] sm:%s194]
                %630 = vst [vmem:[%s202 + $0x354] sm:%s194] %v629
                %v631 = vld [vmem:[%s201 + $0xd60] sm:%s194]
                %632 = vst [vmem:[%s202 + $0x358] sm:%s194] %v631
                %v633 = vld [vmem:[%s201 + $0xd70] sm:%s194]
                %634 = vst [vmem:[%s202 + $0x35c] sm:%s194] %v633
                %v635 = vld [vmem:[%s201 + $0xd80] sm:%s194]
                %636 = vst [vmem:[%s202 + $0x360] sm:%s194] %v635
                %v637 = vld [vmem:[%s201 + $0xd90] sm:%s194]
                %638 = vst [vmem:[%s202 + $0x364] sm:%s194] %v637
                %v639 = vld [vmem:[%s201 + $0xda0] sm:%s194]
                %640 = vst [vmem:[%s202 + $0x368] sm:%s194] %v639
                %v641 = vld [vmem:[%s201 + $0xdb0] sm:%s194]
                %642 = vst [vmem:[%s202 + $0x36c] sm:%s194] %v641
                %v643 = vld [vmem:[%s201 + $0xdc0] sm:%s194]
                %644 = vst [vmem:[%s202 + $0x370] sm:%s194] %v643
                %v645 = vld [vmem:[%s201 + $0xdd0] sm:%s194]
                %646 = vst [vmem:[%s202 + $0x374] sm:%s194] %v645
                %v647 = vld [vmem:[%s201 + $0xde0] sm:%s194]
                %648 = vst [vmem:[%s202 + $0x378] sm:%s194] %v647
                %v649 = vld [vmem:[%s201 + $0xdf0] sm:%s194]
                %650 = vst [vmem:[%s202 + $0x37c] sm:%s194] %v649
                %v651 = vld [vmem:[%s201 + $0xe00] sm:%s194]
                %652 = vst [vmem:[%s202 + $0x380] sm:%s194] %v651
                %v653 = vld [vmem:[%s201 + $0xe10] sm:%s194]
                %654 = vst [vmem:[%s202 + $0x384] sm:%s194] %v653
                %v655 = vld [vmem:[%s201 + $0xe20] sm:%s194]
                %656 = vst [vmem:[%s202 + $0x388] sm:%s194] %v655
                %v657 = vld [vmem:[%s201 + $0xe30] sm:%s194]
                %658 = vst [vmem:[%s202 + $0x38c] sm:%s194] %v657
                %v659 = vld [vmem:[%s201 + $0xe40] sm:%s194]
                %660 = vst [vmem:[%s202 + $0x390] sm:%s194] %v659
                %v661 = vld [vmem:[%s201 + $0xe50] sm:%s194]
                %662 = vst [vmem:[%s202 + $0x394] sm:%s194] %v661
                %v663 = vld [vmem:[%s201 + $0xe60] sm:%s194]
                %664 = vst [vmem:[%s202 + $0x398] sm:%s194] %v663
                %v665 = vld [vmem:[%s201 + $0xe70] sm:%s194]
                %666 = vst [vmem:[%s202 + $0x39c] sm:%s194] %v665
                %v667 = vld [vmem:[%s201 + $0xe80] sm:%s194]
                %668 = vst [vmem:[%s202 + $0x3a0] sm:%s194] %v667
                %v669 = vld [vmem:[%s201 + $0xe90] sm:%s194]
                %670 = vst [vmem:[%s202 + $0x3a4] sm:%s194] %v669
                %v671 = vld [vmem:[%s201 + $0xea0] sm:%s194]
                %672 = vst [vmem:[%s202 + $0x3a8] sm:%s194] %v671
                %v673 = vld [vmem:[%s201 + $0xeb0] sm:%s194]
                %674 = vst [vmem:[%s202 + $0x3ac] sm:%s194] %v673
                %v675 = vld [vmem:[%s201 + $0xec0] sm:%s194]
                %676 = vst [vmem:[%s202 + $0x3b0] sm:%s194] %v675
                %v677 = vld [vmem:[%s201 + $0xed0] sm:%s194]
                %678 = vst [vmem:[%s202 + $0x3b4] sm:%s194] %v677
                %v679 = vld [vmem:[%s201 + $0xee0] sm:%s194]
                %680 = vst [vmem:[%s202 + $0x3b8] sm:%s194] %v679
                %v681 = vld [vmem:[%s201 + $0xef0] sm:%s194]
                %682 = vst [vmem:[%s202 + $0x3bc] sm:%s194] %v681
                %v683 = vld [vmem:[%s201 + $0xf00] sm:%s194]
                %684 = vst [vmem:[%s202 + $0x3c0] sm:%s194] %v683
                %v685 = vld [vmem:[%s201 + $0xf10] sm:%s194]
                %686 = vst [vmem:[%s202 + $0x3c4] sm:%s194] %v685
                %v687 = vld [vmem:[%s201 + $0xf20] sm:%s194]
                %688 = vst [vmem:[%s202 + $0x3c8] sm:%s194] %v687
                %v689 = vld [vmem:[%s201 + $0xf30] sm:%s194]
                %690 = vst [vmem:[%s202 + $0x3cc] sm:%s194] %v689
                %v691 = vld [vmem:[%s201 + $0xf40] sm:%s194]
                %692 = vst [vmem:[%s202 + $0x3d0] sm:%s194] %v691
                %v693 = vld [vmem:[%s201 + $0xf50] sm:%s194]
                %694 = vst [vmem:[%s202 + $0x3d4] sm:%s194] %v693
                %v695 = vld [vmem:[%s201 + $0xf60] sm:%s194]
                %696 = vst [vmem:[%s202 + $0x3d8] sm:%s194] %v695
                %v697 = vld [vmem:[%s201 + $0xf70] sm:%s194]
                %698 = vst [vmem:[%s202 + $0x3dc] sm:%s194] %v697
                %v699 = vld [vmem:[%s201 + $0xf80] sm:%s194]
                %700 = vst [vmem:[%s202 + $0x3e0] sm:%s194] %v699
                %v701 = vld [vmem:[%s201 + $0xf90] sm:%s194]
                %702 = vst [vmem:[%s202 + $0x3e4] sm:%s194] %v701
                %v703 = vld [vmem:[%s201 + $0xfa0] sm:%s194]
                %704 = vst [vmem:[%s202 + $0x3e8] sm:%s194] %v703
                %v705 = vld [vmem:[%s201 + $0xfb0] sm:%s194]
                %706 = vst [vmem:[%s202 + $0x3ec] sm:%s194] %v705
                %v707 = vld [vmem:[%s201 + $0xfc0] sm:%s194]
                %708 = vst [vmem:[%s202 + $0x3f0] sm:%s194] %v707
                %v709 = vld [vmem:[%s201 + $0xfd0] sm:%s194]
                %710 = vst [vmem:[%s202 + $0x3f4] sm:%s194] %v709
                %v711 = vld [vmem:[%s201 + $0xfe0] sm:%s194]
                %712 = vst [vmem:[%s202 + $0x3f8] sm:%s194] %v711
                %v713 = vld [vmem:[%s201 + $0xff0] sm:%s194]
                %714 = vst [vmem:[%s202 + $0x3fc] sm:%s194] %v713
                %v715 = vld [vmem:[%s201 + $0x1000] sm:%s194]
                %716 = vst [vmem:[%s202 + $0x400] sm:%s194] %v715
                %v717 = vld [vmem:[%s201 + $0x1010] sm:%s194]
                %718 = vst [vmem:[%s202 + $0x404] sm:%s194] %v717
                %v719 = vld [vmem:[%s201 + $0x1020] sm:%s194]
                %720 = vst [vmem:[%s202 + $0x408] sm:%s194] %v719
                %v721 = vld [vmem:[%s201 + $0x1030] sm:%s194]
                %722 = vst [vmem:[%s202 + $0x40c] sm:%s194] %v721
                %v723 = vld [vmem:[%s201 + $0x1040] sm:%s194]
                %724 = vst [vmem:[%s202 + $0x410] sm:%s194] %v723
                %v725 = vld [vmem:[%s201 + $0x1050] sm:%s194]
                %726 = vst [vmem:[%s202 + $0x414] sm:%s194] %v725
                %v727 = vld [vmem:[%s201 + $0x1060] sm:%s194]
                %728 = vst [vmem:[%s202 + $0x418] sm:%s194] %v727
                %v729 = vld [vmem:[%s201 + $0x1070] sm:%s194]
                %730 = vst [vmem:[%s202 + $0x41c] sm:%s194] %v729
                %v731 = vld [vmem:[%s201 + $0x1080] sm:%s194]
                %732 = vst [vmem:[%s202 + $0x420] sm:%s194] %v731
                %v733 = vld [vmem:[%s201 + $0x1090] sm:%s194]
                %734 = vst [vmem:[%s202 + $0x424] sm:%s194] %v733
                %v735 = vld [vmem:[%s201 + $0x10a0] sm:%s194]
                %736 = vst [vmem:[%s202 + $0x428] sm:%s194] %v735
                %v737 = vld [vmem:[%s201 + $0x10b0] sm:%s194]
                %738 = vst [vmem:[%s202 + $0x42c] sm:%s194] %v737
                %v739 = vld [vmem:[%s201 + $0x10c0] sm:%s194]
                %740 = vst [vmem:[%s202 + $0x430] sm:%s194] %v739
                %v741 = vld [vmem:[%s201 + $0x10d0] sm:%s194]
                %742 = vst [vmem:[%s202 + $0x434] sm:%s194] %v741
                %v743 = vld [vmem:[%s201 + $0x10e0] sm:%s194]
                %744 = vst [vmem:[%s202 + $0x438] sm:%s194] %v743
                %v745 = vld [vmem:[%s201 + $0x10f0] sm:%s194]
                %746 = vst [vmem:[%s202 + $0x43c] sm:%s194] %v745
                %v747 = vld [vmem:[%s201 + $0x1100] sm:%s194]
                %748 = vst [vmem:[%s202 + $0x440] sm:%s194] %v747
                %v749 = vld [vmem:[%s201 + $0x1110] sm:%s194]
                %750 = vst [vmem:[%s202 + $0x444] sm:%s194] %v749
                %v751 = vld [vmem:[%s201 + $0x1120] sm:%s194]
                %752 = vst [vmem:[%s202 + $0x448] sm:%s194] %v751
                %v753 = vld [vmem:[%s201 + $0x1130] sm:%s194]
                %754 = vst [vmem:[%s202 + $0x44c] sm:%s194] %v753
                %v755 = vld [vmem:[%s201 + $0x1140] sm:%s194]
                %756 = vst [vmem:[%s202 + $0x450] sm:%s194] %v755
                %v757 = vld [vmem:[%s201 + $0x1150] sm:%s194]
                %758 = vst [vmem:[%s202 + $0x454] sm:%s194] %v757
                %v759 = vld [vmem:[%s201 + $0x1160] sm:%s194]
                %760 = vst [vmem:[%s202 + $0x458] sm:%s194] %v759
                %v761 = vld [vmem:[%s201 + $0x1170] sm:%s194]
                %762 = vst [vmem:[%s202 + $0x45c] sm:%s194] %v761
                %v763 = vld [vmem:[%s201 + $0x1180] sm:%s194]
                %764 = vst [vmem:[%s202 + $0x460] sm:%s194] %v763
                %v765 = vld [vmem:[%s201 + $0x1190] sm:%s194]
                %766 = vst [vmem:[%s202 + $0x464] sm:%s194] %v765
                %v767 = vld [vmem:[%s201 + $0x11a0] sm:%s194]
                %768 = vst [vmem:[%s202 + $0x468] sm:%s194] %v767
                %v769 = vld [vmem:[%s201 + $0x11b0] sm:%s194]
                %770 = vst [vmem:[%s202 + $0x46c] sm:%s194] %v769
                %v771 = vld [vmem:[%s201 + $0x11c0] sm:%s194]
                %772 = vst [vmem:[%s202 + $0x470] sm:%s194] %v771
                %v773 = vld [vmem:[%s201 + $0x11d0] sm:%s194]
                %774 = vst [vmem:[%s202 + $0x474] sm:%s194] %v773
                %v775 = vld [vmem:[%s201 + $0x11e0] sm:%s194]
                %776 = vst [vmem:[%s202 + $0x478] sm:%s194] %v775
                %v777 = vld [vmem:[%s201 + $0x11f0] sm:%s194]
                %778 = vst [vmem:[%s202 + $0x47c] sm:%s194] %v777
                %v779 = vld [vmem:[%s201 + $0x1200] sm:%s194]
                %780 = vst [vmem:[%s202 + $0x480] sm:%s194] %v779
                %v781 = vld [vmem:[%s201 + $0x1210] sm:%s194]
                %782 = vst [vmem:[%s202 + $0x484] sm:%s194] %v781
                %v783 = vld [vmem:[%s201 + $0x1220] sm:%s194]
                %784 = vst [vmem:[%s202 + $0x488] sm:%s194] %v783
                %v785 = vld [vmem:[%s201 + $0x1230] sm:%s194]
                %786 = vst [vmem:[%s202 + $0x48c] sm:%s194] %v785
                %v787 = vld [vmem:[%s201 + $0x1240] sm:%s194]
                %788 = vst [vmem:[%s202 + $0x490] sm:%s194] %v787
                %v789 = vld [vmem:[%s201 + $0x1250] sm:%s194]
                %790 = vst [vmem:[%s202 + $0x494] sm:%s194] %v789
                %v791 = vld [vmem:[%s201 + $0x1260] sm:%s194]
                %792 = vst [vmem:[%s202 + $0x498] sm:%s194] %v791
                %v793 = vld [vmem:[%s201 + $0x1270] sm:%s194]
                %794 = vst [vmem:[%s202 + $0x49c] sm:%s194] %v793
                %v795 = vld [vmem:[%s201 + $0x1280] sm:%s194]
                %796 = vst [vmem:[%s202 + $0x4a0] sm:%s194] %v795
                %v797 = vld [vmem:[%s201 + $0x1290] sm:%s194]
                %798 = vst [vmem:[%s202 + $0x4a4] sm:%s194] %v797
                %v799 = vld [vmem:[%s201 + $0x12a0] sm:%s194]
                %800 = vst [vmem:[%s202 + $0x4a8] sm:%s194] %v799
                %v801 = vld [vmem:[%s201 + $0x12b0] sm:%s194]
                %802 = vst [vmem:[%s202 + $0x4ac] sm:%s194] %v801
                %v803 = vld [vmem:[%s201 + $0x12c0] sm:%s194]
                %804 = vst [vmem:[%s202 + $0x4b0] sm:%s194] %v803
                %v805 = vld [vmem:[%s201 + $0x12d0] sm:%s194]
                %806 = vst [vmem:[%s202 + $0x4b4] sm:%s194] %v805
                %v807 = vld [vmem:[%s201 + $0x12e0] sm:%s194]
                %808 = vst [vmem:[%s202 + $0x4b8] sm:%s194] %v807
                %v809 = vld [vmem:[%s201 + $0x12f0] sm:%s194]
                %810 = vst [vmem:[%s202 + $0x4bc] sm:%s194] %v809
                %v811 = vld [vmem:[%s201 + $0x1300] sm:%s194]
                %812 = vst [vmem:[%s202 + $0x4c0] sm:%s194] %v811
                %v813 = vld [vmem:[%s201 + $0x1310] sm:%s194]
                %814 = vst [vmem:[%s202 + $0x4c4] sm:%s194] %v813
                %v815 = vld [vmem:[%s201 + $0x1320] sm:%s194]
                %816 = vst [vmem:[%s202 + $0x4c8] sm:%s194] %v815
                %v817 = vld [vmem:[%s201 + $0x1330] sm:%s194]
                %818 = vst [vmem:[%s202 + $0x4cc] sm:%s194] %v817
                %v819 = vld [vmem:[%s201 + $0x1340] sm:%s194]
                %820 = vst [vmem:[%s202 + $0x4d0] sm:%s194] %v819
                %v821 = vld [vmem:[%s201 + $0x1350] sm:%s194]
                %822 = vst [vmem:[%s202 + $0x4d4] sm:%s194] %v821
                %v823 = vld [vmem:[%s201 + $0x1360] sm:%s194]
                %824 = vst [vmem:[%s202 + $0x4d8] sm:%s194] %v823
                %v825 = vld [vmem:[%s201 + $0x1370] sm:%s194]
                %826 = vst [vmem:[%s202 + $0x4dc] sm:%s194] %v825
                %v827 = vld [vmem:[%s201 + $0x1380] sm:%s194]
                %828 = vst [vmem:[%s202 + $0x4e0] sm:%s194] %v827
                %v829 = vld [vmem:[%s201 + $0x1390] sm:%s194]
                %830 = vst [vmem:[%s202 + $0x4e4] sm:%s194] %v829
                %v831 = vld [vmem:[%s201 + $0x13a0] sm:%s194]
                %832 = vst [vmem:[%s202 + $0x4e8] sm:%s194] %v831
                %v833 = vld [vmem:[%s201 + $0x13b0] sm:%s194]
                %834 = vst [vmem:[%s202 + $0x4ec] sm:%s194] %v833
                %v835 = vld [vmem:[%s201 + $0x13c0] sm:%s194]
                %836 = vst [vmem:[%s202 + $0x4f0] sm:%s194] %v835
                %v837 = vld [vmem:[%s201 + $0x13d0] sm:%s194]
                %838 = vst [vmem:[%s202 + $0x4f4] sm:%s194] %v837
                %v839 = vld [vmem:[%s201 + $0x13e0] sm:%s194]
                %840 = vst [vmem:[%s202 + $0x4f8] sm:%s194] %v839
                %v841 = vld [vmem:[%s201 + $0x13f0] sm:%s194]
                %842 = vst [vmem:[%s202 + $0x4fc] sm:%s194] %v841
                %v843 = vld [vmem:[%s201 + $0x1400] sm:%s194]
                %844 = vst [vmem:[%s202 + $0x500] sm:%s194] %v843
                %v845 = vld [vmem:[%s201 + $0x1410] sm:%s194]
                %846 = vst [vmem:[%s202 + $0x504] sm:%s194] %v845
                %v847 = vld [vmem:[%s201 + $0x1420] sm:%s194]
                %848 = vst [vmem:[%s202 + $0x508] sm:%s194] %v847
                %v849 = vld [vmem:[%s201 + $0x1430] sm:%s194]
                %850 = vst [vmem:[%s202 + $0x50c] sm:%s194] %v849
                %v851 = vld [vmem:[%s201 + $0x1440] sm:%s194]
                %852 = vst [vmem:[%s202 + $0x510] sm:%s194] %v851
                %v853 = vld [vmem:[%s201 + $0x1450] sm:%s194]
                %854 = vst [vmem:[%s202 + $0x514] sm:%s194] %v853
                %v855 = vld [vmem:[%s201 + $0x1460] sm:%s194]
                %856 = vst [vmem:[%s202 + $0x518] sm:%s194] %v855
                %v857 = vld [vmem:[%s201 + $0x1470] sm:%s194]
                %858 = vst [vmem:[%s202 + $0x51c] sm:%s194] %v857
                %v859 = vld [vmem:[%s201 + $0x1480] sm:%s194]
                %860 = vst [vmem:[%s202 + $0x520] sm:%s194] %v859
                %v861 = vld [vmem:[%s201 + $0x1490] sm:%s194]
                %862 = vst [vmem:[%s202 + $0x524] sm:%s194] %v861
                %v863 = vld [vmem:[%s201 + $0x14a0] sm:%s194]
                %864 = vst [vmem:[%s202 + $0x528] sm:%s194] %v863
                %v865 = vld [vmem:[%s201 + $0x14b0] sm:%s194]
                %866 = vst [vmem:[%s202 + $0x52c] sm:%s194] %v865
                %v867 = vld [vmem:[%s201 + $0x14c0] sm:%s194]
                %868 = vst [vmem:[%s202 + $0x530] sm:%s194] %v867
                %v869 = vld [vmem:[%s201 + $0x14d0] sm:%s194]
                %870 = vst [vmem:[%s202 + $0x534] sm:%s194] %v869
                %v871 = vld [vmem:[%s201 + $0x14e0] sm:%s194]
                %872 = vst [vmem:[%s202 + $0x538] sm:%s194] %v871
                %v873 = vld [vmem:[%s201 + $0x14f0] sm:%s194]
                %874 = vst [vmem:[%s202 + $0x53c] sm:%s194] %v873
                %v875 = vld [vmem:[%s201 + $0x1500] sm:%s194]
                %876 = vst [vmem:[%s202 + $0x540] sm:%s194] %v875
                %v877 = vld [vmem:[%s201 + $0x1510] sm:%s194]
                %878 = vst [vmem:[%s202 + $0x544] sm:%s194] %v877
                %v879 = vld [vmem:[%s201 + $0x1520] sm:%s194]
                %880 = vst [vmem:[%s202 + $0x548] sm:%s194] %v879
                %v881 = vld [vmem:[%s201 + $0x1530] sm:%s194]
                %882 = vst [vmem:[%s202 + $0x54c] sm:%s194] %v881
                %v883 = vld [vmem:[%s201 + $0x1540] sm:%s194]
                %884 = vst [vmem:[%s202 + $0x550] sm:%s194] %v883
                %v885 = vld [vmem:[%s201 + $0x1550] sm:%s194]
                %886 = vst [vmem:[%s202 + $0x554] sm:%s194] %v885
                %v887 = vld [vmem:[%s201 + $0x1560] sm:%s194]
                %888 = vst [vmem:[%s202 + $0x558] sm:%s194] %v887
                %v889 = vld [vmem:[%s201 + $0x1570] sm:%s194]
                %890 = vst [vmem:[%s202 + $0x55c] sm:%s194] %v889
                %v891 = vld [vmem:[%s201 + $0x1580] sm:%s194]
                %892 = vst [vmem:[%s202 + $0x560] sm:%s194] %v891
                %v893 = vld [vmem:[%s201 + $0x1590] sm:%s194]
                %894 = vst [vmem:[%s202 + $0x564] sm:%s194] %v893
                %v895 = vld [vmem:[%s201 + $0x15a0] sm:%s194]
                %896 = vst [vmem:[%s202 + $0x568] sm:%s194] %v895
                %v897 = vld [vmem:[%s201 + $0x15b0] sm:%s194]
                %898 = vst [vmem:[%s202 + $0x56c] sm:%s194] %v897
                %v899 = vld [vmem:[%s201 + $0x15c0] sm:%s194]
                %900 = vst [vmem:[%s202 + $0x570] sm:%s194] %v899
                %v901 = vld [vmem:[%s201 + $0x15d0] sm:%s194]
                %902 = vst [vmem:[%s202 + $0x574] sm:%s194] %v901
                %v903 = vld [vmem:[%s201 + $0x15e0] sm:%s194]
                %904 = vst [vmem:[%s202 + $0x578] sm:%s194] %v903
                %v905 = vld [vmem:[%s201 + $0x15f0] sm:%s194]
                %906 = vst [vmem:[%s202 + $0x57c] sm:%s194] %v905
                %v907 = vld [vmem:[%s201 + $0x1600] sm:%s194]
                %908 = vst [vmem:[%s202 + $0x580] sm:%s194] %v907
                %v909 = vld [vmem:[%s201 + $0x1610] sm:%s194]
                %910 = vst [vmem:[%s202 + $0x584] sm:%s194] %v909
                %v911 = vld [vmem:[%s201 + $0x1620] sm:%s194]
                %912 = vst [vmem:[%s202 + $0x588] sm:%s194] %v911
                %v913 = vld [vmem:[%s201 + $0x1630] sm:%s194]
                %914 = vst [vmem:[%s202 + $0x58c] sm:%s194] %v913
                %v915 = vld [vmem:[%s201 + $0x1640] sm:%s194]
                %916 = vst [vmem:[%s202 + $0x590] sm:%s194] %v915
                %v917 = vld [vmem:[%s201 + $0x1650] sm:%s194]
                %918 = vst [vmem:[%s202 + $0x594] sm:%s194] %v917
                %v919 = vld [vmem:[%s201 + $0x1660] sm:%s194]
                %920 = vst [vmem:[%s202 + $0x598] sm:%s194] %v919
                %v921 = vld [vmem:[%s201 + $0x1670] sm:%s194]
                %922 = vst [vmem:[%s202 + $0x59c] sm:%s194] %v921
                %v923 = vld [vmem:[%s201 + $0x1680] sm:%s194]
                %924 = vst [vmem:[%s202 + $0x5a0] sm:%s194] %v923
                %v925 = vld [vmem:[%s201 + $0x1690] sm:%s194]
                %926 = vst [vmem:[%s202 + $0x5a4] sm:%s194] %v925
                %v927 = vld [vmem:[%s201 + $0x16a0] sm:%s194]
                %928 = vst [vmem:[%s202 + $0x5a8] sm:%s194] %v927
                %v929 = vld [vmem:[%s201 + $0x16b0] sm:%s194]
                %930 = vst [vmem:[%s202 + $0x5ac] sm:%s194] %v929
                %v931 = vld [vmem:[%s201 + $0x16c0] sm:%s194]
                %932 = vst [vmem:[%s202 + $0x5b0] sm:%s194] %v931
                %v933 = vld [vmem:[%s201 + $0x16d0] sm:%s194]
                %934 = vst [vmem:[%s202 + $0x5b4] sm:%s194] %v933
                %v935 = vld [vmem:[%s201 + $0x16e0] sm:%s194]
                %936 = vst [vmem:[%s202 + $0x5b8] sm:%s194] %v935
                %v937 = vld [vmem:[%s201 + $0x16f0] sm:%s194]
                %938 = vst [vmem:[%s202 + $0x5bc] sm:%s194] %v937
                %v939 = vld [vmem:[%s201 + $0x1700] sm:%s194]
                %940 = vst [vmem:[%s202 + $0x5c0] sm:%s194] %v939
                %v941 = vld [vmem:[%s201 + $0x1710] sm:%s194]
                %942 = vst [vmem:[%s202 + $0x5c4] sm:%s194] %v941
                %v943 = vld [vmem:[%s201 + $0x1720] sm:%s194]
                %944 = vst [vmem:[%s202 + $0x5c8] sm:%s194] %v943
                %v945 = vld [vmem:[%s201 + $0x1730] sm:%s194]
                %946 = vst [vmem:[%s202 + $0x5cc] sm:%s194] %v945
                %v947 = vld [vmem:[%s201 + $0x1740] sm:%s194]
                %948 = vst [vmem:[%s202 + $0x5d0] sm:%s194] %v947
                %v949 = vld [vmem:[%s201 + $0x1750] sm:%s194]
                %950 = vst [vmem:[%s202 + $0x5d4] sm:%s194] %v949
                %v951 = vld [vmem:[%s201 + $0x1760] sm:%s194]
                %952 = vst [vmem:[%s202 + $0x5d8] sm:%s194] %v951
                %v953 = vld [vmem:[%s201 + $0x1770] sm:%s194]
                %954 = vst [vmem:[%s202 + $0x5dc] sm:%s194] %v953
                %v955 = vld [vmem:[%s201 + $0x1780] sm:%s194]
                %956 = vst [vmem:[%s202 + $0x5e0] sm:%s194] %v955
                %v957 = vld [vmem:[%s201 + $0x1790] sm:%s194]
                %958 = vst [vmem:[%s202 + $0x5e4] sm:%s194] %v957
                %v959 = vld [vmem:[%s201 + $0x17a0] sm:%s194]
                %960 = vst [vmem:[%s202 + $0x5e8] sm:%s194] %v959
                %v961 = vld [vmem:[%s201 + $0x17b0] sm:%s194]
                %962 = vst [vmem:[%s202 + $0x5ec] sm:%s194] %v961
                %v963 = vld [vmem:[%s201 + $0x17c0] sm:%s194]
                %964 = vst [vmem:[%s202 + $0x5f0] sm:%s194] %v963
                %v965 = vld [vmem:[%s201 + $0x17d0] sm:%s194]
                %966 = vst [vmem:[%s202 + $0x5f4] sm:%s194] %v965
                %v967 = vld [vmem:[%s201 + $0x17e0] sm:%s194]
                %968 = vst [vmem:[%s202 + $0x5f8] sm:%s194] %v967
                %v969 = vld [vmem:[%s201 + $0x17f0] sm:%s194]
                %970 = vst [vmem:[%s202 + $0x5fc] sm:%s194] %v969
                %v971 = vld [vmem:[%s201 + $0x1800] sm:%s194]
                %972 = vst [vmem:[%s202 + $0x600] sm:%s194] %v971
                %v973 = vld [vmem:[%s201 + $0x1810] sm:%s194]
                %974 = vst [vmem:[%s202 + $0x604] sm:%s194] %v973
                %v975 = vld [vmem:[%s201 + $0x1820] sm:%s194]
                %976 = vst [vmem:[%s202 + $0x608] sm:%s194] %v975
                %v977 = vld [vmem:[%s201 + $0x1830] sm:%s194]
                %978 = vst [vmem:[%s202 + $0x60c] sm:%s194] %v977
                %v979 = vld [vmem:[%s201 + $0x1840] sm:%s194]
                %980 = vst [vmem:[%s202 + $0x610] sm:%s194] %v979
                %v981 = vld [vmem:[%s201 + $0x1850] sm:%s194]
                %982 = vst [vmem:[%s202 + $0x614] sm:%s194] %v981
                %v983 = vld [vmem:[%s201 + $0x1860] sm:%s194]
                %984 = vst [vmem:[%s202 + $0x618] sm:%s194] %v983
                %v985 = vld [vmem:[%s201 + $0x1870] sm:%s194]
                %986 = vst [vmem:[%s202 + $0x61c] sm:%s194] %v985
                %v987 = vld [vmem:[%s201 + $0x1880] sm:%s194]
                %988 = vst [vmem:[%s202 + $0x620] sm:%s194] %v987
                %v989 = vld [vmem:[%s201 + $0x1890] sm:%s194]
                %990 = vst [vmem:[%s202 + $0x624] sm:%s194] %v989
                %v991 = vld [vmem:[%s201 + $0x18a0] sm:%s194]
                %992 = vst [vmem:[%s202 + $0x628] sm:%s194] %v991
                %v993 = vld [vmem:[%s201 + $0x18b0] sm:%s194]
                %994 = vst [vmem:[%s202 + $0x62c] sm:%s194] %v993
                %v995 = vld [vmem:[%s201 + $0x18c0] sm:%s194]
                %996 = vst [vmem:[%s202 + $0x630] sm:%s194] %v995
                %v997 = vld [vmem:[%s201 + $0x18d0] sm:%s194]
                %998 = vst [vmem:[%s202 + $0x634] sm:%s194] %v997
                %v999 = vld [vmem:[%s201 + $0x18e0] sm:%s194]
                %1000 = vst [vmem:[%s202 + $0x638] sm:%s194] %v999
                %v1001 = vld [vmem:[%s201 + $0x18f0] sm:%s194]
                %1002 = vst [vmem:[%s202 + $0x63c] sm:%s194] %v1001
                %v1003 = vld [vmem:[%s201 + $0x1900] sm:%s194]
                %1004 = vst [vmem:[%s202 + $0x640] sm:%s194] %v1003
                %v1005 = vld [vmem:[%s201 + $0x1910] sm:%s194]
                %1006 = vst [vmem:[%s202 + $0x644] sm:%s194] %v1005
                %v1007 = vld [vmem:[%s201 + $0x1920] sm:%s194]
                %1008 = vst [vmem:[%s202 + $0x648] sm:%s194] %v1007
                %v1009 = vld [vmem:[%s201 + $0x1930] sm:%s194]
                %1010 = vst [vmem:[%s202 + $0x64c] sm:%s194] %v1009
                %v1011 = vld [vmem:[%s201 + $0x1940] sm:%s194]
                %1012 = vst [vmem:[%s202 + $0x650] sm:%s194] %v1011
              $region45: #{forward.7} parent=39 // loop_footer
                %s200 = sadd.s32 1, %s196
              $region46: #{forward.7} parent=39 // loop_footer_branch
                %195 = sbr.rel target = $region42
              $region47: #{forward.7} parent=39 // loop_exit
                _
            $region40: #{forward.7} parent=31 // pred_fallthru
              _
          $region32: #{forward.7} parent=27 // pred_fallthru
            _
          %1843 = vnop
        $region28: #{forward.7} parent=23 // pred_fallthru
          _
        // Predicated region
        $region66: #{forward.7} parent=23 // pred_check
          %p1844 = pneg %p79
        $region67: #{forward.7} parent=23 // pred_check_branch
          %1846 = sbr.rel (%p1844) target = $region69
        $region68: #{forward.7} parent=23 // pred_region
          %p1847 = scmp.lt.s32.totalorder %s12, 3
          %s1848 = scalar_select %p1847, %s12, 3
          %s1849 = scalar_lea.vmem %s2, %s1848
        $region69: #{forward.7} parent=23 // pred_fallthru
          _
        // Predicated region
        $region70: #{forward.7} parent=23 // pred_check
          %p1850 = pneg %p105
        $region71: #{forward.7} parent=23 // pred_check_branch
          %1852 = sbr.rel (%p1850) target = $region73
        $region72: #{forward.7} parent=23 // pred_region
          %s1853 = smul.u32 16, %s12
          %p1854 = scmp.lt.s32.totalorder %s1853, 63
          %s1855 = scalar_select %p1854, %s1853, 63
          %s1856 = smul.addr %s1855, 4
          %s1857 = scalar_lea.vmem %s3, %s1856
          %s1858 = smul.u32 16, %s12
        $region73: #{forward.7} parent=23 // pred_fallthru
          _
      $region24: #{forward.7} parent=5 // pred_fallthru
        _
      %p1859 = scmp.le.s32.totalorder 1, %s12
      %p1860 = scmp.lt.s32.totalorder %s12, 5
      %p1861 = pnand %p1859, %p1860
      %p1862 = pneg %p1861
      // Predicated region
      $region74: #{forward.7} parent=5 // pred_check
        _
      $region75: #{forward.7} parent=5 // pred_check_branch
        %1864 = sbr.rel (%p1861) target = $region77
      $region76: #{forward.7} parent=5 // pred_region
        %s1865 = ssub.s32 %s12, 1
        %s1866 = sand.u32 %s46, 1
        %s1867 = sand.u32 %s46, 1
        %s1868 = smul.addr %s1867, 1620
        %s1869 = scalar_lea.vmem [#allocation2], %s1868
        // Predicated region
        $region78: #{forward.7} parent=76 // pred_check
          %p1870 = pneg %p59
        $region79: #{forward.7} parent=76 // pred_check_branch
          %1872 = sbr.rel (%p1870) target = $region81
        $region80: #{forward.7} parent=76 // pred_region
          _
        $region81: #{forward.7} parent=76 // pred_fallthru
          _
        %p1873 = pneg %p33
        %p1874 = pneg %p30
        %s1875 = sand.u32 %s46, 1
        %s1876 = sand.u32 %s46, 1
        %s1877 = smul.addr %s1876, 1620
        %s1878 = scalar_lea.vmem [#allocation2], %s1877
        %p1879 = pneg %p59
        %p1880 = pneg %p56
        %p1881 = scmp.lt.s32.totalorder %s17, 3
        %s1882 = scalar_select %p1881, %s17, 3
        %s1883 = scalar_lea.vmem %s2, %s1882
        %p1884 = pneg %p85
        %p1885 = pneg %p82
        %s1886 = smul.u32 16, %s17
        %p1887 = scmp.lt.s32.totalorder %s1886, 63
        %s1888 = scalar_select %p1887, %s1886, 63
        %s1889 = smul.addr %s1888, 4
        %s1890 = scalar_lea.vmem %s3, %s1889
        %p1891 = pneg %p111
        %p1892 = pneg %p108
        %p1893 = pneg %p132
        %p1894 = pneg %p129
        %p1895 = pneg %p153
        %p1896 = pneg %p150
        %p1897 = scmp.lt.s32.totalorder %s17, 3
        %s1898 = scalar_select %p1897, %s17, 3
        %s1899 = scalar_lea.vmem %s2, %s1898
        %s1900 = smul.u32 16, %s17
        %p1901 = scmp.lt.s32.totalorder %s1900, 63
        %s1902 = scalar_select %p1901, %s1900, 63
        %s1903 = smul.addr %s1902, 4
        %s1904 = scalar_lea.vmem %s3, %s1903
        %s1905 = smul.u32 16, %s17
        %p1907 = scmp.eq.s32.totalorder %s17, 0
        // Predicated region
        $region82: #{forward.7} parent=76 // pred_check
          %p1908 = pneg %p1907
        $region83: #{forward.7} parent=76 // pred_check_branch
          %1910 = sbr.rel (%p1908) target = $region85
        $region84: #{forward.7} parent=76 // pred_region
          %v1911 = vld [vmem:[%s4] sm:$0x1]
          %v1913 = vlaneseq
          %v1914 = vshrl.u32 %v1913, 7
          %v1915 = vsub.s32 0, %v1914
          %v1916 = vrot.slane %v1911, %v1915
          %vm1918 = vcmask 25600
          %1919 = vst.msk [vmem:[#allocation3] sm:$0x3] %vm1918, %v1916
        $region85: #{forward.7} parent=76 // pred_fallthru
          _
        %v1920 = vld [vmem:[%s0] sm:$0xff]
        %v1921 = vld [vmem:[%s0 + $0x8] sm:$0xff]
        %v1922 = vld [vmem:[%s0 + $0x10] sm:$0xff]
        %v1923 = vld [vmem:[%s0 + $0x18] sm:$0x3]
        %v1924 = vld [vmem:[%s1869] sm:$0xf]
        %v1925 = vld [vmem:[%s1869 + $0x4] sm:$0xf]
        %v1926 = vld [vmem:[%s1869 + $0x8] sm:$0xf]
        %v1927 = vld [vmem:[%s1869 + $0xc] sm:$0xf]
        %v1928 = vld [vmem:[%s1869 + $0x10] sm:$0xf]
        %v1929 = vld [vmem:[%s1869 + $0x14] sm:$0xf]
        %v1930 = vld [vmem:[%s1869 + $0x18] sm:$0xf]
        %v1931 = vld [vmem:[%s1869 + $0x1c] sm:$0xf]
        %v1932 = vld [vmem:[%s1869 + $0x20] sm:$0xf]
        %v1933 = vld [vmem:[%s1869 + $0x24] sm:$0xf]
        %v1934 = vld [vmem:[%s1869 + $0x28] sm:$0xf]
        %v1935 = vld [vmem:[%s1869 + $0x2c] sm:$0xf]
        %v1936 = vld [vmem:[%s1869 + $0x30] sm:$0xf]
        %v1937 = vld [vmem:[%s1869 + $0x34] sm:$0xf]
        %v1938 = vld [vmem:[%s1869 + $0x38] sm:$0xf]
        %v1939 = vld [vmem:[%s1869 + $0x3c] sm:$0xf]
        %v1940 = vld [vmem:[%s1869 + $0x40] sm:$0xf]
        %v1941 = vld [vmem:[%s1869 + $0x44] sm:$0xf]
        %v1942 = vld [vmem:[%s1869 + $0x48] sm:$0xf]
        %v1943 = vld [vmem:[%s1869 + $0x4c] sm:$0xf]
        %v1944 = vld [vmem:[%s1869 + $0x50] sm:$0xf]
        %v1945 = vld [vmem:[%s1869 + $0x54] sm:$0xf]
        %v1946 = vld [vmem:[%s1869 + $0x58] sm:$0xf]
        %v1947 = vld [vmem:[%s1869 + $0x5c] sm:$0xf]
        %v1948 = vld [vmem:[%s1869 + $0x60] sm:$0xf]
        %v1949 = vld [vmem:[%s1869 + $0x64] sm:$0xf]
        %v1950 = vld [vmem:[%s1869 + $0x68] sm:$0xf]
        %v1951 = vld [vmem:[%s1869 + $0x6c] sm:$0xf]
        %v1952 = vld [vmem:[%s1869 + $0x70] sm:$0xf]
        %v1953 = vld [vmem:[%s1869 + $0x74] sm:$0xf]
        %v1954 = vld [vmem:[%s1869 + $0x78] sm:$0xf]
        %v1955 = vld [vmem:[%s1869 + $0x7c] sm:$0xf]
        %v1956 = vld [vmem:[%s1869 + $0x80] sm:$0xf]
        %v1957 = vld [vmem:[%s1869 + $0x84] sm:$0xf]
        %v1958 = vld [vmem:[%s1869 + $0x88] sm:$0xf]
        %v1959 = vld [vmem:[%s1869 + $0x8c] sm:$0xf]
        %v1960 = vld [vmem:[%s1869 + $0x90] sm:$0xf]
        %v1961 = vld [vmem:[%s1869 + $0x94] sm:$0xf]
        %v1962 = vld [vmem:[%s1869 + $0x98] sm:$0xf]
        %v1963 = vld [vmem:[%s1869 + $0x9c] sm:$0xf]
        %v1964 = vld [vmem:[%s1869 + $0xa0] sm:$0xf]
        %v1965 = vld [vmem:[%s1869 + $0xa4] sm:$0xf]
        %v1966 = vld [vmem:[%s1869 + $0xa8] sm:$0xf]
        %v1967 = vld [vmem:[%s1869 + $0xac] sm:$0xf]
        %v1968 = vld [vmem:[%s1869 + $0xb0] sm:$0xf]
        %v1969 = vld [vmem:[%s1869 + $0xb4] sm:$0xf]
        %v1970 = vld [vmem:[%s1869 + $0xb8] sm:$0xf]
        %v1971 = vld [vmem:[%s1869 + $0xbc] sm:$0xf]
        %v1972 = vld [vmem:[%s1869 + $0xc0] sm:$0xf]
        %v1973 = vld [vmem:[%s1869 + $0xc4] sm:$0xf]
        %v1974 = vld [vmem:[%s1869 + $0xc8] sm:$0xf]
        %v1975 = vld [vmem:[%s1869 + $0xcc] sm:$0xf]
        %v1976 = vld [vmem:[%s1869 + $0xd0] sm:$0xf]
        %v1977 = vld [vmem:[%s1869 + $0xd4] sm:$0xf]
        %v1978 = vld [vmem:[%s1869 + $0xd8] sm:$0xf]
        %v1979 = vld [vmem:[%s1869 + $0xdc] sm:$0xf]
        %v1980 = vld [vmem:[%s1869 + $0xe0] sm:$0xf]
        %v1981 = vld [vmem:[%s1869 + $0xe4] sm:$0xf]
        %v1982 = vld [vmem:[%s1869 + $0xe8] sm:$0xf]
        %v1983 = vld [vmem:[%s1869 + $0xec] sm:$0xf]
        %v1984 = vld [vmem:[%s1869 + $0xf0] sm:$0xf]
        %v1985 = vld [vmem:[%s1869 + $0xf4] sm:$0xf]
        %v1986 = vld [vmem:[%s1869 + $0xf8] sm:$0xf]
        %v1987 = vld [vmem:[%s1869 + $0xfc] sm:$0xf]
        %v1988 = vld [vmem:[%s1869 + $0x100] sm:$0xf]
        %v1989 = vld [vmem:[%s1869 + $0x104] sm:$0xf]
        %v1990 = vld [vmem:[%s1869 + $0x108] sm:$0xf]
        %v1991 = vld [vmem:[%s1869 + $0x10c] sm:$0xf]
        %v1992 = vld [vmem:[%s1869 + $0x110] sm:$0xf]
        %v1993 = vld [vmem:[%s1869 + $0x114] sm:$0xf]
        %v1994 = vld [vmem:[%s1869 + $0x118] sm:$0xf]
        %v1995 = vld [vmem:[%s1869 + $0x11c] sm:$0xf]
        %v1996 = vld [vmem:[%s1869 + $0x120] sm:$0xf]
        %v1997 = vld [vmem:[%s1869 + $0x124] sm:$0xf]
        %v1998 = vld [vmem:[%s1869 + $0x128] sm:$0xf]
        %v1999 = vld [vmem:[%s1869 + $0x12c] sm:$0xf]
        %v2000 = vld [vmem:[%s1869 + $0x130] sm:$0xf]
        %v2001 = vld [vmem:[%s1869 + $0x134] sm:$0xf]
        %v2002 = vld [vmem:[%s1869 + $0x138] sm:$0xf]
        %v2003 = vld [vmem:[%s1869 + $0x13c] sm:$0xf]
        %v2004 = vld [vmem:[%s1869 + $0x140] sm:$0xf]
        %v2005 = vld [vmem:[%s1869 + $0x144] sm:$0xf]
        %v2006 = vld [vmem:[%s1869 + $0x148] sm:$0xf]
        %v2007 = vld [vmem:[%s1869 + $0x14c] sm:$0xf]
        %v2008 = vld [vmem:[%s1869 + $0x150] sm:$0xf]
        %v2009 = vld [vmem:[%s1869 + $0x154] sm:$0xf]
        %v2010 = vld [vmem:[%s1869 + $0x158] sm:$0xf]
        %v2011 = vld [vmem:[%s1869 + $0x15c] sm:$0xf]
        %v2012 = vld [vmem:[%s1869 + $0x160] sm:$0xf]
        %v2013 = vld [vmem:[%s1869 + $0x164] sm:$0xf]
        %v2014 = vld [vmem:[%s1869 + $0x168] sm:$0xf]
        %v2015 = vld [vmem:[%s1869 + $0x16c] sm:$0xf]
        %v2016 = vld [vmem:[%s1869 + $0x170] sm:$0xf]
        %v2017 = vld [vmem:[%s1869 + $0x174] sm:$0xf]
        %v2018 = vld [vmem:[%s1869 + $0x178] sm:$0xf]
        %v2019 = vld [vmem:[%s1869 + $0x17c] sm:$0xf]
        %v2020 = vld [vmem:[%s1869 + $0x180] sm:$0xf]
        %v2021 = vld [vmem:[%s1869 + $0x184] sm:$0xf]
        %v2022 = vld [vmem:[%s1869 + $0x188] sm:$0xf]
        %v2023 = vld [vmem:[%s1869 + $0x18c] sm:$0xf]
        %v2024 = vld [vmem:[%s1869 + $0x190] sm:$0xf]
        %v2025 = vld [vmem:[%s1869 + $0x194] sm:$0xf]
        %v2026 = vld [vmem:[%s1869 + $0x198] sm:$0xf]
        %v2027 = vld [vmem:[%s1869 + $0x19c] sm:$0xf]
        %v2028 = vld [vmem:[%s1869 + $0x1a0] sm:$0xf]
        %v2029 = vld [vmem:[%s1869 + $0x1a4] sm:$0xf]
        %v2030 = vld [vmem:[%s1869 + $0x1a8] sm:$0xf]
        %v2031 = vld [vmem:[%s1869 + $0x1ac] sm:$0xf]
        %v2032 = vld [vmem:[%s1869 + $0x1b0] sm:$0xf]
        %v2033 = vld [vmem:[%s1869 + $0x1b4] sm:$0xf]
        %v2034 = vld [vmem:[%s1869 + $0x1b8] sm:$0xf]
        %v2035 = vld [vmem:[%s1869 + $0x1bc] sm:$0xf]
        %v2036 = vld [vmem:[%s1869 + $0x1c0] sm:$0xf]
        %v2037 = vld [vmem:[%s1869 + $0x1c4] sm:$0xf]
        %v2038 = vld [vmem:[%s1869 + $0x1c8] sm:$0xf]
        %v2039 = vld [vmem:[%s1869 + $0x1cc] sm:$0xf]
        %v2040 = vld [vmem:[%s1869 + $0x1d0] sm:$0xf]
        %v2041 = vld [vmem:[%s1869 + $0x1d4] sm:$0xf]
        %v2042 = vld [vmem:[%s1869 + $0x1d8] sm:$0xf]
        %v2043 = vld [vmem:[%s1869 + $0x1dc] sm:$0xf]
        %v2044 = vld [vmem:[%s1869 + $0x1e0] sm:$0xf]
        %v2045 = vld [vmem:[%s1869 + $0x1e4] sm:$0xf]
        %v2046 = vld [vmem:[%s1869 + $0x1e8] sm:$0xf]
        %v2047 = vld [vmem:[%s1869 + $0x1ec] sm:$0xf]
        %v2048 = vld [vmem:[%s1869 + $0x1f0] sm:$0xf]
        %v2049 = vld [vmem:[%s1869 + $0x1f4] sm:$0xf]
        %v2050 = vld [vmem:[%s1869 + $0x1f8] sm:$0xf]
        %v2051 = vld [vmem:[%s1869 + $0x1fc] sm:$0xf]
        %v2052 = vld [vmem:[%s1869 + $0x200] sm:$0xf]
        %v2053 = vld [vmem:[%s1869 + $0x204] sm:$0xf]
        %v2054 = vld [vmem:[%s1869 + $0x208] sm:$0xf]
        %v2055 = vld [vmem:[%s1869 + $0x20c] sm:$0xf]
        %v2056 = vld [vmem:[%s1869 + $0x210] sm:$0xf]
        %v2057 = vld [vmem:[%s1869 + $0x214] sm:$0xf]
        %v2058 = vld [vmem:[%s1869 + $0x218] sm:$0xf]
        %v2059 = vld [vmem:[%s1869 + $0x21c] sm:$0xf]
        %v2060 = vld [vmem:[%s1869 + $0x220] sm:$0xf]
        %v2061 = vld [vmem:[%s1869 + $0x224] sm:$0xf]
        %v2062 = vld [vmem:[%s1869 + $0x228] sm:$0xf]
        %v2063 = vld [vmem:[%s1869 + $0x22c] sm:$0xf]
        %v2064 = vld [vmem:[%s1869 + $0x230] sm:$0xf]
        %v2065 = vld [vmem:[%s1869 + $0x234] sm:$0xf]
        %v2066 = vld [vmem:[%s1869 + $0x238] sm:$0xf]
        %v2067 = vld [vmem:[%s1869 + $0x23c] sm:$0xf]
        %v2068 = vld [vmem:[%s1869 + $0x240] sm:$0xf]
        %v2069 = vld [vmem:[%s1869 + $0x244] sm:$0xf]
        %v2070 = vld [vmem:[%s1869 + $0x248] sm:$0xf]
        %v2071 = vld [vmem:[%s1869 + $0x24c] sm:$0xf]
        %v2072 = vld [vmem:[%s1869 + $0x250] sm:$0xf]
        %v2073 = vld [vmem:[%s1869 + $0x254] sm:$0xf]
        %v2074 = vld [vmem:[%s1869 + $0x258] sm:$0xf]
        %v2075 = vld [vmem:[%s1869 + $0x25c] sm:$0xf]
        %v2076 = vld [vmem:[%s1869 + $0x260] sm:$0xf]
        %v2077 = vld [vmem:[%s1869 + $0x264] sm:$0xf]
        %v2078 = vld [vmem:[%s1869 + $0x268] sm:$0xf]
        %v2079 = vld [vmem:[%s1869 + $0x26c] sm:$0xf]
        %v2080 = vld [vmem:[%s1869 + $0x270] sm:$0xf]
        %v2081 = vld [vmem:[%s1869 + $0x274] sm:$0xf]
        %v2082 = vld [vmem:[%s1869 + $0x278] sm:$0xf]
        %v2083 = vld [vmem:[%s1869 + $0x27c] sm:$0xf]
        %v2084 = vld [vmem:[%s1869 + $0x280] sm:$0xf]
        %v2085 = vld [vmem:[%s1869 + $0x284] sm:$0xf]
        %v2086 = vld [vmem:[%s1869 + $0x288] sm:$0xf]
        %v2087 = vld [vmem:[%s1869 + $0x28c] sm:$0xf]
        %v2088 = vld [vmem:[%s1869 + $0x290] sm:$0xf]
        %v2089 = vld [vmem:[%s1869 + $0x294] sm:$0xf]
        %v2090 = vld [vmem:[%s1869 + $0x298] sm:$0xf]
        %v2091 = vld [vmem:[%s1869 + $0x29c] sm:$0xf]
        %v2092 = vld [vmem:[%s1869 + $0x2a0] sm:$0xf]
        %v2093 = vld [vmem:[%s1869 + $0x2a4] sm:$0xf]
        %v2094 = vld [vmem:[%s1869 + $0x2a8] sm:$0xf]
        %v2095 = vld [vmem:[%s1869 + $0x2ac] sm:$0xf]
        %v2096 = vld [vmem:[%s1869 + $0x2b0] sm:$0xf]
        %v2097 = vld [vmem:[%s1869 + $0x2b4] sm:$0xf]
        %v2098 = vld [vmem:[%s1869 + $0x2b8] sm:$0xf]
        %v2099 = vld [vmem:[%s1869 + $0x2bc] sm:$0xf]
        %v2100 = vld [vmem:[%s1869 + $0x2c0] sm:$0xf]
        %v2101 = vld [vmem:[%s1869 + $0x2c4] sm:$0xf]
        %v2102 = vld [vmem:[%s1869 + $0x2c8] sm:$0xf]
        %v2103 = vld [vmem:[%s1869 + $0x2cc] sm:$0xf]
        %v2104 = vld [vmem:[%s1869 + $0x2d0] sm:$0xf]
        %v2105 = vld [vmem:[%s1869 + $0x2d4] sm:$0xf]
        %v2106 = vld [vmem:[%s1869 + $0x2d8] sm:$0xf]
        %v2107 = vld [vmem:[%s1869 + $0x2dc] sm:$0xf]
        %v2108 = vld [vmem:[%s1869 + $0x2e0] sm:$0xf]
        %v2109 = vld [vmem:[%s1869 + $0x2e4] sm:$0xf]
        %v2110 = vld [vmem:[%s1869 + $0x2e8] sm:$0xf]
        %v2111 = vld [vmem:[%s1869 + $0x2ec] sm:$0xf]
        %v2112 = vld [vmem:[%s1869 + $0x2f0] sm:$0xf]
        %v2113 = vld [vmem:[%s1869 + $0x2f4] sm:$0xf]
        %v2114 = vld [vmem:[%s1869 + $0x2f8] sm:$0xf]
        %v2115 = vld [vmem:[%s1869 + $0x2fc] sm:$0xf]
        %v2116 = vld [vmem:[%s1869 + $0x300] sm:$0xf]
        %v2117 = vld [vmem:[%s1869 + $0x304] sm:$0xf]
        %v2118 = vld [vmem:[%s1869 + $0x308] sm:$0xf]
        %v2119 = vld [vmem:[%s1869 + $0x30c] sm:$0xf]
        %v2120 = vld [vmem:[%s1869 + $0x310] sm:$0xf]
        %v2121 = vld [vmem:[%s1869 + $0x314] sm:$0xf]
        %v2122 = vld [vmem:[%s1869 + $0x318] sm:$0xf]
        %v2123 = vld [vmem:[%s1869 + $0x31c] sm:$0xf]
        %v2124 = vld [vmem:[%s1869 + $0x320] sm:$0xf]
        %v2125 = vld [vmem:[%s1869 + $0x324] sm:$0xf]
        %v2126 = vld [vmem:[%s1869 + $0x328] sm:$0xf]
        %v2127 = vld [vmem:[%s1869 + $0x32c] sm:$0xf]
        %v2128 = vld [vmem:[%s1869 + $0x330] sm:$0xf]
        %v2129 = vld [vmem:[%s1869 + $0x334] sm:$0xf]
        %v2130 = vld [vmem:[%s1869 + $0x338] sm:$0xf]
        %v2131 = vld [vmem:[%s1869 + $0x33c] sm:$0xf]
        %v2132 = vld [vmem:[%s1869 + $0x340] sm:$0xf]
        %v2133 = vld [vmem:[%s1869 + $0x344] sm:$0xf]
        %v2134 = vld [vmem:[%s1869 + $0x348] sm:$0xf]
        %v2135 = vld [vmem:[%s1869 + $0x34c] sm:$0xf]
        %v2136 = vld [vmem:[%s1869 + $0x350] sm:$0xf]
        %v2137 = vld [vmem:[%s1869 + $0x354] sm:$0xf]
        %v2138 = vld [vmem:[%s1869 + $0x358] sm:$0xf]
        %v2139 = vld [vmem:[%s1869 + $0x35c] sm:$0xf]
        %v2140 = vld [vmem:[%s1869 + $0x360] sm:$0xf]
        %v2141 = vld [vmem:[%s1869 + $0x364] sm:$0xf]
        %v2142 = vld [vmem:[%s1869 + $0x368] sm:$0xf]
        %v2143 = vld [vmem:[%s1869 + $0x36c] sm:$0xf]
        %v2144 = vld [vmem:[%s1869 + $0x370] sm:$0xf]
        %v2145 = vld [vmem:[%s1869 + $0x374] sm:$0xf]
        %v2146 = vld [vmem:[%s1869 + $0x378] sm:$0xf]
        %v2147 = vld [vmem:[%s1869 + $0x37c] sm:$0xf]
        %v2148 = vld [vmem:[%s1869 + $0x380] sm:$0xf]
        %v2149 = vld [vmem:[%s1869 + $0x384] sm:$0xf]
        %v2150 = vld [vmem:[%s1869 + $0x388] sm:$0xf]
        %v2151 = vld [vmem:[%s1869 + $0x38c] sm:$0xf]
        %v2152 = vld [vmem:[%s1869 + $0x390] sm:$0xf]
        %v2153 = vld [vmem:[%s1869 + $0x394] sm:$0xf]
        %v2154 = vld [vmem:[%s1869 + $0x398] sm:$0xf]
        %v2155 = vld [vmem:[%s1869 + $0x39c] sm:$0xf]
        %v2156 = vld [vmem:[%s1869 + $0x3a0] sm:$0xf]
        %v2157 = vld [vmem:[%s1869 + $0x3a4] sm:$0xf]
        %v2158 = vld [vmem:[%s1869 + $0x3a8] sm:$0xf]
        %v2159 = vld [vmem:[%s1869 + $0x3ac] sm:$0xf]
        %v2160 = vld [vmem:[%s1869 + $0x3b0] sm:$0xf]
        %v2161 = vld [vmem:[%s1869 + $0x3b4] sm:$0xf]
        %v2162 = vld [vmem:[%s1869 + $0x3b8] sm:$0xf]
        %v2163 = vld [vmem:[%s1869 + $0x3bc] sm:$0xf]
        %v2164 = vld [vmem:[%s1869 + $0x3c0] sm:$0xf]
        %v2165 = vld [vmem:[%s1869 + $0x3c4] sm:$0xf]
        %v2166 = vld [vmem:[%s1869 + $0x3c8] sm:$0xf]
        %v2167 = vld [vmem:[%s1869 + $0x3cc] sm:$0xf]
        %v2168 = vld [vmem:[%s1869 + $0x3d0] sm:$0xf]
        %v2169 = vld [vmem:[%s1869 + $0x3d4] sm:$0xf]
        %v2170 = vld [vmem:[%s1869 + $0x3d8] sm:$0xf]
        %v2171 = vld [vmem:[%s1869 + $0x3dc] sm:$0xf]
        %v2172 = vld [vmem:[%s1869 + $0x3e0] sm:$0xf]
        %v2173 = vld [vmem:[%s1869 + $0x3e4] sm:$0xf]
        %v2174 = vld [vmem:[%s1869 + $0x3e8] sm:$0xf]
        %v2175 = vld [vmem:[%s1869 + $0x3ec] sm:$0xf]
        %v2176 = vld [vmem:[%s1869 + $0x3f0] sm:$0xf]
        %v2177 = vld [vmem:[%s1869 + $0x3f4] sm:$0xf]
        %v2178 = vld [vmem:[%s1869 + $0x3f8] sm:$0xf]
        %v2179 = vld [vmem:[%s1869 + $0x3fc] sm:$0xf]
        %v2180 = vld [vmem:[%s1869 + $0x400] sm:$0xf]
        %v2181 = vld [vmem:[%s1869 + $0x404] sm:$0xf]
        %v2182 = vld [vmem:[%s1869 + $0x408] sm:$0xf]
        %v2183 = vld [vmem:[%s1869 + $0x40c] sm:$0xf]
        %v2184 = vld [vmem:[%s1869 + $0x410] sm:$0xf]
        %v2185 = vld [vmem:[%s1869 + $0x414] sm:$0xf]
        %v2186 = vld [vmem:[%s1869 + $0x418] sm:$0xf]
        %v2187 = vld [vmem:[%s1869 + $0x41c] sm:$0xf]
        %v2188 = vld [vmem:[%s1869 + $0x420] sm:$0xf]
        %v2189 = vld [vmem:[%s1869 + $0x424] sm:$0xf]
        %v2190 = vld [vmem:[%s1869 + $0x428] sm:$0xf]
        %v2191 = vld [vmem:[%s1869 + $0x42c] sm:$0xf]
        %v2192 = vld [vmem:[%s1869 + $0x430] sm:$0xf]
        %v2193 = vld [vmem:[%s1869 + $0x434] sm:$0xf]
        %v2194 = vld [vmem:[%s1869 + $0x438] sm:$0xf]
        %v2195 = vld [vmem:[%s1869 + $0x43c] sm:$0xf]
        %v2196 = vld [vmem:[%s1869 + $0x440] sm:$0xf]
        %v2197 = vld [vmem:[%s1869 + $0x444] sm:$0xf]
        %v2198 = vld [vmem:[%s1869 + $0x448] sm:$0xf]
        %v2199 = vld [vmem:[%s1869 + $0x44c] sm:$0xf]
        %v2200 = vld [vmem:[%s1869 + $0x450] sm:$0xf]
        %v2201 = vld [vmem:[%s1869 + $0x454] sm:$0xf]
        %v2202 = vld [vmem:[%s1869 + $0x458] sm:$0xf]
        %v2203 = vld [vmem:[%s1869 + $0x45c] sm:$0xf]
        %v2204 = vld [vmem:[%s1869 + $0x460] sm:$0xf]
        %v2205 = vld [vmem:[%s1869 + $0x464] sm:$0xf]
        %v2206 = vld [vmem:[%s1869 + $0x468] sm:$0xf]
        %v2207 = vld [vmem:[%s1869 + $0x46c] sm:$0xf]
        %v2208 = vld [vmem:[%s1869 + $0x470] sm:$0xf]
        %v2209 = vld [vmem:[%s1869 + $0x474] sm:$0xf]
        %v2210 = vld [vmem:[%s1869 + $0x478] sm:$0xf]
        %v2211 = vld [vmem:[%s1869 + $0x47c] sm:$0xf]
        %v2212 = vld [vmem:[%s1869 + $0x480] sm:$0xf]
        %v2213 = vld [vmem:[%s1869 + $0x484] sm:$0xf]
        %v2214 = vld [vmem:[%s1869 + $0x488] sm:$0xf]
        %v2215 = vld [vmem:[%s1869 + $0x48c] sm:$0xf]
        %v2216 = vld [vmem:[%s1869 + $0x490] sm:$0xf]
        %v2217 = vld [vmem:[%s1869 + $0x494] sm:$0xf]
        %v2218 = vld [vmem:[%s1869 + $0x498] sm:$0xf]
        %v2219 = vld [vmem:[%s1869 + $0x49c] sm:$0xf]
        %v2220 = vld [vmem:[%s1869 + $0x4a0] sm:$0xf]
        %v2221 = vld [vmem:[%s1869 + $0x4a4] sm:$0xf]
        %v2222 = vld [vmem:[%s1869 + $0x4a8] sm:$0xf]
        %v2223 = vld [vmem:[%s1869 + $0x4ac] sm:$0xf]
        %v2224 = vld [vmem:[%s1869 + $0x4b0] sm:$0xf]
        %v2225 = vld [vmem:[%s1869 + $0x4b4] sm:$0xf]
        %v2226 = vld [vmem:[%s1869 + $0x4b8] sm:$0xf]
        %v2227 = vld [vmem:[%s1869 + $0x4bc] sm:$0xf]
        %v2228 = vld [vmem:[%s1869 + $0x4c0] sm:$0xf]
        %v2229 = vld [vmem:[%s1869 + $0x4c4] sm:$0xf]
        %v2230 = vld [vmem:[%s1869 + $0x4c8] sm:$0xf]
        %v2231 = vld [vmem:[%s1869 + $0x4cc] sm:$0xf]
        %v2232 = vld [vmem:[%s1869 + $0x4d0] sm:$0xf]
        %v2233 = vld [vmem:[%s1869 + $0x4d4] sm:$0xf]
        %v2234 = vld [vmem:[%s1869 + $0x4d8] sm:$0xf]
        %v2235 = vld [vmem:[%s1869 + $0x4dc] sm:$0xf]
        %v2236 = vld [vmem:[%s1869 + $0x4e0] sm:$0xf]
        %v2237 = vld [vmem:[%s1869 + $0x4e4] sm:$0xf]
        %v2238 = vld [vmem:[%s1869 + $0x4e8] sm:$0xf]
        %v2239 = vld [vmem:[%s1869 + $0x4ec] sm:$0xf]
        %v2240 = vld [vmem:[%s1869 + $0x4f0] sm:$0xf]
        %v2241 = vld [vmem:[%s1869 + $0x4f4] sm:$0xf]
        %v2242 = vld [vmem:[%s1869 + $0x4f8] sm:$0xf]
        %v2243 = vld [vmem:[%s1869 + $0x4fc] sm:$0xf]
        %v2244 = vld [vmem:[%s1869 + $0x500] sm:$0xf]
        %v2245 = vld [vmem:[%s1869 + $0x504] sm:$0xf]
        %v2246 = vld [vmem:[%s1869 + $0x508] sm:$0xf]
        %v2247 = vld [vmem:[%s1869 + $0x50c] sm:$0xf]
        %v2248 = vld [vmem:[%s1869 + $0x510] sm:$0xf]
        %v2249 = vld [vmem:[%s1869 + $0x514] sm:$0xf]
        %v2250 = vld [vmem:[%s1869 + $0x518] sm:$0xf]
        %v2251 = vld [vmem:[%s1869 + $0x51c] sm:$0xf]
        %v2252 = vld [vmem:[%s1869 + $0x520] sm:$0xf]
        %v2253 = vld [vmem:[%s1869 + $0x524] sm:$0xf]
        %v2254 = vld [vmem:[%s1869 + $0x528] sm:$0xf]
        %v2255 = vld [vmem:[%s1869 + $0x52c] sm:$0xf]
        %v2256 = vld [vmem:[%s1869 + $0x530] sm:$0xf]
        %v2257 = vld [vmem:[%s1869 + $0x534] sm:$0xf]
        %v2258 = vld [vmem:[%s1869 + $0x538] sm:$0xf]
        %v2259 = vld [vmem:[%s1869 + $0x53c] sm:$0xf]
        %v2260 = vld [vmem:[%s1869 + $0x540] sm:$0xf]
        %v2261 = vld [vmem:[%s1869 + $0x544] sm:$0xf]
        %v2262 = vld [vmem:[%s1869 + $0x548] sm:$0xf]
        %v2263 = vld [vmem:[%s1869 + $0x54c] sm:$0xf]
        %v2264 = vld [vmem:[%s1869 + $0x550] sm:$0xf]
        %v2265 = vld [vmem:[%s1869 + $0x554] sm:$0xf]
        %v2266 = vld [vmem:[%s1869 + $0x558] sm:$0xf]
        %v2267 = vld [vmem:[%s1869 + $0x55c] sm:$0xf]
        %v2268 = vld [vmem:[%s1869 + $0x560] sm:$0xf]
        %v2269 = vld [vmem:[%s1869 + $0x564] sm:$0xf]
        %v2270 = vld [vmem:[%s1869 + $0x568] sm:$0xf]
        %v2271 = vld [vmem:[%s1869 + $0x56c] sm:$0xf]
        %v2272 = vld [vmem:[%s1869 + $0x570] sm:$0xf]
        %v2273 = vld [vmem:[%s1869 + $0x574] sm:$0xf]
        %v2274 = vld [vmem:[%s1869 + $0x578] sm:$0xf]
        %v2275 = vld [vmem:[%s1869 + $0x57c] sm:$0xf]
        %v2276 = vld [vmem:[%s1869 + $0x580] sm:$0xf]
        %v2277 = vld [vmem:[%s1869 + $0x584] sm:$0xf]
        %v2278 = vld [vmem:[%s1869 + $0x588] sm:$0xf]
        %v2279 = vld [vmem:[%s1869 + $0x58c] sm:$0xf]
        %v2280 = vld [vmem:[%s1869 + $0x590] sm:$0xf]
        %v2281 = vld [vmem:[%s1869 + $0x594] sm:$0xf]
        %v2282 = vld [vmem:[%s1869 + $0x598] sm:$0xf]
        %v2283 = vld [vmem:[%s1869 + $0x59c] sm:$0xf]
        %v2284 = vld [vmem:[%s1869 + $0x5a0] sm:$0xf]
        %v2285 = vld [vmem:[%s1869 + $0x5a4] sm:$0xf]
        %v2286 = vld [vmem:[%s1869 + $0x5a8] sm:$0xf]
        %v2287 = vld [vmem:[%s1869 + $0x5ac] sm:$0xf]
        %v2288 = vld [vmem:[%s1869 + $0x5b0] sm:$0xf]
        %v2289 = vld [vmem:[%s1869 + $0x5b4] sm:$0xf]
        %v2290 = vld [vmem:[%s1869 + $0x5b8] sm:$0xf]
        %v2291 = vld [vmem:[%s1869 + $0x5bc] sm:$0xf]
        %v2292 = vld [vmem:[%s1869 + $0x5c0] sm:$0xf]
        %v2293 = vld [vmem:[%s1869 + $0x5c4] sm:$0xf]
        %v2294 = vld [vmem:[%s1869 + $0x5c8] sm:$0xf]
        %v2295 = vld [vmem:[%s1869 + $0x5cc] sm:$0xf]
        %v2296 = vld [vmem:[%s1869 + $0x5d0] sm:$0xf]
        %v2297 = vld [vmem:[%s1869 + $0x5d4] sm:$0xf]
        %v2298 = vld [vmem:[%s1869 + $0x5d8] sm:$0xf]
        %v2299 = vld [vmem:[%s1869 + $0x5dc] sm:$0xf]
        %v2300 = vld [vmem:[%s1869 + $0x5e0] sm:$0xf]
        %v2301 = vld [vmem:[%s1869 + $0x5e4] sm:$0xf]
        %v2302 = vld [vmem:[%s1869 + $0x5e8] sm:$0xf]
        %v2303 = vld [vmem:[%s1869 + $0x5ec] sm:$0xf]
        %v2304 = vld [vmem:[%s1869 + $0x5f0] sm:$0xf]
        %v2305 = vld [vmem:[%s1869 + $0x5f4] sm:$0xf]
        %v2306 = vld [vmem:[%s1869 + $0x5f8] sm:$0xf]
        %v2307 = vld [vmem:[%s1869 + $0x5fc] sm:$0xf]
        %v2308 = vld [vmem:[%s1869 + $0x600] sm:$0xf]
        %v2309 = vld [vmem:[%s1869 + $0x604] sm:$0xf]
        %v2310 = vld [vmem:[%s1869 + $0x608] sm:$0xf]
        %v2311 = vld [vmem:[%s1869 + $0x60c] sm:$0xf]
        %v2312 = vld [vmem:[%s1869 + $0x610] sm:$0xf]
        %v2313 = vld [vmem:[%s1869 + $0x614] sm:$0xf]
        %v2314 = vld [vmem:[%s1869 + $0x618] sm:$0xf]
        %v2315 = vld [vmem:[%s1869 + $0x61c] sm:$0xf]
        %v2316 = vld [vmem:[%s1869 + $0x620] sm:$0xf]
        %v2317 = vld [vmem:[%s1869 + $0x624] sm:$0xf]
        %v2318 = vld [vmem:[%s1869 + $0x628] sm:$0xf]
        %v2319 = vld [vmem:[%s1869 + $0x62c] sm:$0xf]
        %v2320 = vld [vmem:[%s1869 + $0x630] sm:$0xf]
        %v2321 = vld [vmem:[%s1869 + $0x634] sm:$0xf]
        %v2322 = vld [vmem:[%s1869 + $0x638] sm:$0xf]
        %v2323 = vld [vmem:[%s1869 + $0x63c] sm:$0xf]
        %v2324 = vld [vmem:[%s1869 + $0x640] sm:$0xf]
        %v2325 = vld [vmem:[%s1869 + $0x644] sm:$0xf]
        %v2326 = vld [vmem:[%s1869 + $0x648] sm:$0xf]
        %v2327 = vld [vmem:[%s1869 + $0x64c] sm:$0xf]
        %v2328 = vld [vmem:[%s1869 + $0x650] sm:$0xf]
        %v2329 = vld [vmem:[%s1899] sm:$0x1]
        %v2331 = vlaneseq
        %v2332 = vshrl.u32 %v2331, 7
        %v2333 = vsub.s32 0, %v2332
        %v2334 = vrot.slane %v2329, %v2333
        %v2340 = vcombine.high %v1920, %v1920
        %v2342 = vunpack.c.l.s4 1966171168
        %v2343 = vunpack.c.0.s8 %v2342
        %v2344 = vlaneseq
        %v2345 = vshrl.u32 %v2344, 7
        %v2346 = vsub.s32 %v2343, %v2345
        %v2347 = vrot.slane %v1920, %v2346
        %v2349 = vunpack.c.l.s4 1966171168
        %v2350 = vunpack.c.0.s8 %v2349
        %v2351 = vlaneseq
        %v2352 = vshrl.u32 %v2351, 7
        %v2353 = vsub.s32 %v2350, %v2352
        %v2354 = vrot.slane %v2340, %v2353
        %v2355 = vcombine.high %v2347, %v2347
        %v2356 = vcombine.high %v2354, %v2354
        %v2358 = vunpack.c.l.s4 1966171168
        %v2359 = vunpack.c.0.s8 %v2358
        %v2360 = vlaneseq
        %v2361 = vshrl.u32 %v2360, 7
        %v2362 = vsub.s32 %v2359, %v2361
        %v2363 = vrot.slane %v2347, %v2362
        %v2365 = vunpack.c.l.s4 1966171168
        %v2366 = vunpack.c.0.s8 %v2365
        %v2367 = vlaneseq
        %v2368 = vshrl.u32 %v2367, 7
        %v2369 = vsub.s32 %v2366, %v2368
        %v2370 = vrot.slane %v2354, %v2369
        %v2372 = vunpack.c.l.s4 1966171168
        %v2373 = vunpack.c.0.s8 %v2372
        %v2374 = vlaneseq
        %v2375 = vshrl.u32 %v2374, 7
        %v2376 = vsub.s32 %v2373, %v2375
        %v2377 = vrot.slane %v2355, %v2376
        %v2379 = vunpack.c.l.s4 1966171168
        %v2380 = vunpack.c.0.s8 %v2379
        %v2381 = vlaneseq
        %v2382 = vshrl.u32 %v2381, 7
        %v2383 = vsub.s32 %v2380, %v2382
        %v2384 = vrot.slane %v2356, %v2383
        %v2385 = vcombine.high %v2363, %v2363
        %v2386 = vcombine.high %v2370, %v2370
        %v2387 = vcombine.high %v2377, %v2377
        %v2388 = vcombine.high %v2384, %v2384
        %v2389 = vcombine.high %v1921, %v1921
        %v2391 = vunpack.c.l.s4 1966171168
        %v2392 = vunpack.c.0.s8 %v2391
        %v2393 = vlaneseq
        %v2394 = vshrl.u32 %v2393, 7
        %v2395 = vsub.s32 %v2392, %v2394
        %v2396 = vrot.slane %v1921, %v2395
        %v2398 = vunpack.c.l.s4 1966171168
        %v2399 = vunpack.c.0.s8 %v2398
        %v2400 = vlaneseq
        %v2401 = vshrl.u32 %v2400, 7
        %v2402 = vsub.s32 %v2399, %v2401
        %v2403 = vrot.slane %v2389, %v2402
        %v2404 = vcombine.high %v2396, %v2396
        %v2405 = vcombine.high %v2403, %v2403
        %v2407 = vunpack.c.l.s4 1966171168
        %v2408 = vunpack.c.0.s8 %v2407
        %v2409 = vlaneseq
        %v2410 = vshrl.u32 %v2409, 7
        %v2411 = vsub.s32 %v2408, %v2410
        %v2412 = vrot.slane %v2396, %v2411
        %v2414 = vunpack.c.l.s4 1966171168
        %v2415 = vunpack.c.0.s8 %v2414
        %v2416 = vlaneseq
        %v2417 = vshrl.u32 %v2416, 7
        %v2418 = vsub.s32 %v2415, %v2417
        %v2419 = vrot.slane %v2403, %v2418
        %v2421 = vunpack.c.l.s4 1966171168
        %v2422 = vunpack.c.0.s8 %v2421
        %v2423 = vlaneseq
        %v2424 = vshrl.u32 %v2423, 7
        %v2425 = vsub.s32 %v2422, %v2424
        %v2426 = vrot.slane %v2404, %v2425
        %v2428 = vunpack.c.l.s4 1966171168
        %v2429 = vunpack.c.0.s8 %v2428
        %v2430 = vlaneseq
        %v2431 = vshrl.u32 %v2430, 7
        %v2432 = vsub.s32 %v2429, %v2431
        %v2433 = vrot.slane %v2405, %v2432
        %v2434 = vcombine.high %v2412, %v2412
        %v2435 = vcombine.high %v2419, %v2419
        %v2436 = vcombine.high %v2426, %v2426
        %v2437 = vcombine.high %v2433, %v2433
        %v2438 = vcombine.high %v1922, %v1922
        %v2440 = vunpack.c.l.s4 1966171168
        %v2441 = vunpack.c.0.s8 %v2440
        %v2442 = vlaneseq
        %v2443 = vshrl.u32 %v2442, 7
        %v2444 = vsub.s32 %v2441, %v2443
        %v2445 = vrot.slane %v1922, %v2444
        %v2447 = vunpack.c.l.s4 1966171168
        %v2448 = vunpack.c.0.s8 %v2447
        %v2449 = vlaneseq
        %v2450 = vshrl.u32 %v2449, 7
        %v2451 = vsub.s32 %v2448, %v2450
        %v2452 = vrot.slane %v2438, %v2451
        %v2453 = vcombine.high %v2445, %v2445
        %v2454 = vcombine.high %v2452, %v2452
        %v2456 = vunpack.c.l.s4 1966171168
        %v2457 = vunpack.c.0.s8 %v2456
        %v2458 = vlaneseq
        %v2459 = vshrl.u32 %v2458, 7
        %v2460 = vsub.s32 %v2457, %v2459
        %v2461 = vrot.slane %v2445, %v2460
        %v2463 = vunpack.c.l.s4 1966171168
        %v2464 = vunpack.c.0.s8 %v2463
        %v2465 = vlaneseq
        %v2466 = vshrl.u32 %v2465, 7
        %v2467 = vsub.s32 %v2464, %v2466
        %v2468 = vrot.slane %v2452, %v2467
        %v2470 = vunpack.c.l.s4 1966171168
        %v2471 = vunpack.c.0.s8 %v2470
        %v2472 = vlaneseq
        %v2473 = vshrl.u32 %v2472, 7
        %v2474 = vsub.s32 %v2471, %v2473
        %v2475 = vrot.slane %v2453, %v2474
        %v2477 = vunpack.c.l.s4 1966171168
        %v2478 = vunpack.c.0.s8 %v2477
        %v2479 = vlaneseq
        %v2480 = vshrl.u32 %v2479, 7
        %v2481 = vsub.s32 %v2478, %v2480
        %v2482 = vrot.slane %v2454, %v2481
        %v2483 = vcombine.high %v2461, %v2461
        %v2484 = vcombine.high %v2468, %v2468
        %v2485 = vcombine.high %v2475, %v2475
        %v2486 = vcombine.high %v2482, %v2482
        %v2488 = vunpack.c.l.s4 1966171168
        %v2489 = vunpack.c.0.s8 %v2488
        %v2490 = vlaneseq
        %v2491 = vshrl.u32 %v2490, 7
        %v2492 = vsub.s32 %v2489, %v2491
        %v2493 = vrot.slane %v1923, %v2492
        %v2494 = vcombine.high %v2493, %v2493
        %v2496 = vunpack.c.l.s4 1966171168
        %v2497 = vunpack.c.0.s8 %v2496
        %v2498 = vlaneseq
        %v2499 = vshrl.u32 %v2498, 7
        %v2500 = vsub.s32 %v2497, %v2499
        %v2501 = vrot.slane %v2493, %v2500
        %v2503 = vunpack.c.l.s4 1966171168
        %v2504 = vunpack.c.0.s8 %v2503
        %v2505 = vlaneseq
        %v2506 = vshrl.u32 %v2505, 7
        %v2507 = vsub.s32 %v2504, %v2506
        %v2508 = vrot.slane %v2494, %v2507
        %v2939 = vunpack.c.l.b16 %v1924
        %v2940 = vunpack.c.l.b16 %v1925
        %v2941 = vunpack.c.l.b16 %v1926
        %v2942 = vunpack.c.l.b16 %v1927
        %v2943 = vunpack.c.l.b16 %v1928
        %v2944 = vunpack.c.l.b16 %v1929
        %v2945 = vunpack.c.l.b16 %v1930
        %v2946 = vunpack.c.l.b16 %v1931
        %v2947 = vunpack.c.l.b16 %v1932
        %v2948 = vunpack.c.l.b16 %v1933
        %v2949 = vunpack.c.l.b16 %v1934
        %v2950 = vunpack.c.l.b16 %v1935
        %v2951 = vunpack.c.l.b16 %v1936
        %v2952 = vunpack.c.l.b16 %v1937
        %v2953 = vunpack.c.l.b16 %v1938
        %v2954 = vunpack.c.l.b16 %v1939
        %v2955 = vunpack.c.l.b16 %v1940
        %v2956 = vunpack.c.l.b16 %v1941
        %v2957 = vunpack.c.l.b16 %v1942
        %v2958 = vunpack.c.l.b16 %v1943
        %v2959 = vunpack.c.l.b16 %v1944
        %v2960 = vunpack.c.l.b16 %v1945
        %v2961 = vunpack.c.l.b16 %v1946
        %v2962 = vunpack.c.l.b16 %v1947
        %v2963 = vunpack.c.l.b16 %v1948
        %v2964 = vunpack.c.l.b16 %v1949
        %v2965 = vunpack.c.l.b16 %v1950
        %v2966 = vunpack.c.l.b16 %v1951
        %v2967 = vunpack.c.l.b16 %v1952
        %v2968 = vunpack.c.l.b16 %v1953
        %v2969 = vunpack.c.l.b16 %v1954
        %v2970 = vunpack.c.l.b16 %v1955
        %v2971 = vunpack.c.l.b16 %v1956
        %v2972 = vunpack.c.l.b16 %v1957
        %v2973 = vunpack.c.l.b16 %v1958
        %v2974 = vunpack.c.l.b16 %v1959
        %v2975 = vunpack.c.l.b16 %v1960
        %v2976 = vunpack.c.l.b16 %v1961
        %v2977 = vunpack.c.l.b16 %v1962
        %v2978 = vunpack.c.l.b16 %v1963
        %v2979 = vunpack.c.l.b16 %v1964
        %v2980 = vunpack.c.l.b16 %v1965
        %v2981 = vunpack.c.l.b16 %v1966
        %v2982 = vunpack.c.l.b16 %v1967
        %v2983 = vunpack.c.l.b16 %v1968
        %v2984 = vunpack.c.l.b16 %v1969
        %v2985 = vunpack.c.l.b16 %v1970
        %v2986 = vunpack.c.l.b16 %v1971
        %v2987 = vunpack.c.l.b16 %v1972
        %v2988 = vunpack.c.l.b16 %v1973
        %v2989 = vunpack.c.l.b16 %v1974
        %v2990 = vunpack.c.l.b16 %v1975
        %v2991 = vunpack.c.l.b16 %v1976
        %v2992 = vunpack.c.l.b16 %v1977
        %v2993 = vunpack.c.l.b16 %v1978
        %v2994 = vunpack.c.l.b16 %v1979
        %v2995 = vunpack.c.l.b16 %v1980
        %v2996 = vunpack.c.l.b16 %v1981
        %v2997 = vunpack.c.l.b16 %v1982
        %v2998 = vunpack.c.l.b16 %v1983
        %v2999 = vunpack.c.l.b16 %v1984
        %v3000 = vunpack.c.l.b16 %v1985
        %v3001 = vunpack.c.l.b16 %v1986
        %v3002 = vunpack.c.l.b16 %v1987
        %v3003 = vunpack.c.l.b16 %v1988
        %v3004 = vunpack.c.l.b16 %v1989
        %v3005 = vunpack.c.l.b16 %v1990
        %v3006 = vunpack.c.l.b16 %v1991
        %v3007 = vunpack.c.l.b16 %v1992
        %v3008 = vunpack.c.l.b16 %v1993
        %v3009 = vunpack.c.l.b16 %v1994
        %v3010 = vunpack.c.l.b16 %v1995
        %v3011 = vunpack.c.l.b16 %v1996
        %v3012 = vunpack.c.l.b16 %v1997
        %v3013 = vunpack.c.l.b16 %v1998
        %v3014 = vunpack.c.l.b16 %v1999
        %v3015 = vunpack.c.l.b16 %v2000
        %v3016 = vunpack.c.l.b16 %v2001
        %v3017 = vunpack.c.l.b16 %v2002
        %v3018 = vunpack.c.l.b16 %v2003
        %v3019 = vunpack.c.l.b16 %v2004
        %v3020 = vunpack.c.l.b16 %v2005
        %v3021 = vunpack.c.l.b16 %v2006
        %v3022 = vunpack.c.l.b16 %v2007
        %v3023 = vunpack.c.l.b16 %v2008
        %v3024 = vunpack.c.l.b16 %v2009
        %v3025 = vunpack.c.l.b16 %v2010
        %v3026 = vunpack.c.l.b16 %v2011
        %v3027 = vunpack.c.l.b16 %v2012
        %v3028 = vunpack.c.l.b16 %v2013
        %v3029 = vunpack.c.l.b16 %v2014
        %v3030 = vunpack.c.l.b16 %v2015
        %v3031 = vunpack.c.l.b16 %v2016
        %v3032 = vunpack.c.l.b16 %v2017
        %v3033 = vunpack.c.l.b16 %v2018
        %v3034 = vunpack.c.l.b16 %v2019
        %v3035 = vunpack.c.l.b16 %v2020
        %v3036 = vunpack.c.l.b16 %v2021
        %v3037 = vunpack.c.l.b16 %v2022
        %v3038 = vunpack.c.l.b16 %v2023
        %v3039 = vunpack.c.l.b16 %v2024
        %v3040 = vunpack.c.l.b16 %v2025
        %v3041 = vunpack.c.l.b16 %v2026
        %v3042 = vunpack.c.l.b16 %v2027
        %v3043 = vunpack.c.l.b16 %v2028
        %v3044 = vunpack.c.l.b16 %v2029
        %v3045 = vunpack.c.l.b16 %v2030
        %v3046 = vunpack.c.l.b16 %v2031
        %v3047 = vunpack.c.l.b16 %v2032
        %v3048 = vunpack.c.l.b16 %v2033
        %v3049 = vunpack.c.l.b16 %v2034
        %v3050 = vunpack.c.l.b16 %v2035
        %v3051 = vunpack.c.l.b16 %v2036
        %v3052 = vunpack.c.l.b16 %v2037
        %v3053 = vunpack.c.l.b16 %v2038
        %v3054 = vunpack.c.l.b16 %v2039
        %v3055 = vunpack.c.l.b16 %v2040
        %v3056 = vunpack.c.l.b16 %v2041
        %v3057 = vunpack.c.l.b16 %v2042
        %v3058 = vunpack.c.l.b16 %v2043
        %v3059 = vunpack.c.l.b16 %v2044
        %v3060 = vunpack.c.l.b16 %v2045
        %v3061 = vunpack.c.l.b16 %v2046
        %v3062 = vunpack.c.l.b16 %v2047
        %v3063 = vunpack.c.l.b16 %v2048
        %v3064 = vunpack.c.l.b16 %v2049
        %v3065 = vunpack.c.l.b16 %v2050
        %v3066 = vunpack.c.l.b16 %v2051
        %v3067 = vunpack.c.l.b16 %v2052
        %v3068 = vunpack.c.l.b16 %v2053
        %v3069 = vunpack.c.l.b16 %v2054
        %v3070 = vunpack.c.l.b16 %v2055
        %v3071 = vunpack.c.l.b16 %v2056
        %v3072 = vunpack.c.l.b16 %v2057
        %v3073 = vunpack.c.l.b16 %v2058
        %v3074 = vunpack.c.l.b16 %v2059
        %v3075 = vunpack.c.l.b16 %v2060
        %v3076 = vunpack.c.l.b16 %v2061
        %v3077 = vunpack.c.l.b16 %v2062
        %v3078 = vunpack.c.l.b16 %v2063
        %v3079 = vunpack.c.l.b16 %v2064
        %v3080 = vunpack.c.l.b16 %v2065
        %v3081 = vunpack.c.l.b16 %v2066
        %v3082 = vunpack.c.l.b16 %v2067
        %v3083 = vunpack.c.l.b16 %v2068
        %v3084 = vunpack.c.l.b16 %v2069
        %v3085 = vunpack.c.l.b16 %v2070
        %v3086 = vunpack.c.l.b16 %v2071
        %v3087 = vunpack.c.l.b16 %v2072
        %v3088 = vunpack.c.l.b16 %v2073
        %v3089 = vunpack.c.l.b16 %v2074
        %v3090 = vunpack.c.l.b16 %v2075
        %v3091 = vunpack.c.l.b16 %v2076
        %v3092 = vunpack.c.l.b16 %v2077
        %v3093 = vunpack.c.l.b16 %v2078
        %v3094 = vunpack.c.l.b16 %v2079
        %v3095 = vunpack.c.l.b16 %v2080
        %v3096 = vunpack.c.l.b16 %v2081
        %v3097 = vunpack.c.l.b16 %v2082
        %v3098 = vunpack.c.l.b16 %v2083
        %v3099 = vunpack.c.l.b16 %v2084
        %v3100 = vunpack.c.l.b16 %v2085
        %v3101 = vunpack.c.l.b16 %v2086
        %v3102 = vunpack.c.l.b16 %v2087
        %v3103 = vunpack.c.l.b16 %v2088
        %v3104 = vunpack.c.l.b16 %v2089
        %v3105 = vunpack.c.l.b16 %v2090
        %v3106 = vunpack.c.l.b16 %v2091
        %v3107 = vunpack.c.l.b16 %v2092
        %v3108 = vunpack.c.l.b16 %v2093
        %v3109 = vunpack.c.l.b16 %v2094
        %v3110 = vunpack.c.l.b16 %v2095
        %v3111 = vunpack.c.l.b16 %v2096
        %v3112 = vunpack.c.l.b16 %v2097
        %v3113 = vunpack.c.l.b16 %v2098
        %v3114 = vunpack.c.l.b16 %v2099
        %v3115 = vunpack.c.l.b16 %v2100
        %v3116 = vunpack.c.l.b16 %v2101
        %v3117 = vunpack.c.l.b16 %v2102
        %v3118 = vunpack.c.l.b16 %v2103
        %v3119 = vunpack.c.l.b16 %v2104
        %v3120 = vunpack.c.l.b16 %v2105
        %v3121 = vunpack.c.l.b16 %v2106
        %v3122 = vunpack.c.l.b16 %v2107
        %v3123 = vunpack.c.l.b16 %v2108
        %v3124 = vunpack.c.l.b16 %v2109
        %v3125 = vunpack.c.l.b16 %v2110
        %v3126 = vunpack.c.l.b16 %v2111
        %v3127 = vunpack.c.l.b16 %v2112
        %v3128 = vunpack.c.l.b16 %v2113
        %v3129 = vunpack.c.l.b16 %v2114
        %v3130 = vunpack.c.l.b16 %v2115
        %v3131 = vunpack.c.l.b16 %v2116
        %v3132 = vunpack.c.l.b16 %v2117
        %v3133 = vunpack.c.l.b16 %v2118
        %v3134 = vunpack.c.l.b16 %v2119
        %v3135 = vunpack.c.l.b16 %v2120
        %v3136 = vunpack.c.l.b16 %v2121
        %v3137 = vunpack.c.l.b16 %v2122
        %v3138 = vunpack.c.l.b16 %v2123
        %v3139 = vunpack.c.l.b16 %v2124
        %v3140 = vunpack.c.l.b16 %v2125
        %v3141 = vunpack.c.l.b16 %v2126
        %v3142 = vunpack.c.l.b16 %v2127
        %v3143 = vunpack.c.l.b16 %v2128
        %v3144 = vunpack.c.l.b16 %v2129
        %v3145 = vunpack.c.l.b16 %v2130
        %v3146 = vunpack.c.l.b16 %v2131
        %v3147 = vunpack.c.l.b16 %v2132
        %v3148 = vunpack.c.l.b16 %v2133
        %v3149 = vunpack.c.l.b16 %v2134
        %v3150 = vunpack.c.l.b16 %v2135
        %v3151 = vunpack.c.l.b16 %v2136
        %v3152 = vunpack.c.l.b16 %v2137
        %v3153 = vunpack.c.l.b16 %v2138
        %v3154 = vunpack.c.l.b16 %v2139
        %v3155 = vunpack.c.l.b16 %v2140
        %v3156 = vunpack.c.l.b16 %v2141
        %v3157 = vunpack.c.l.b16 %v2142
        %v3158 = vunpack.c.l.b16 %v2143
        %v3159 = vunpack.c.l.b16 %v2144
        %v3160 = vunpack.c.l.b16 %v2145
        %v3161 = vunpack.c.l.b16 %v2146
        %v3162 = vunpack.c.l.b16 %v2147
        %v3163 = vunpack.c.l.b16 %v2148
        %v3164 = vunpack.c.l.b16 %v2149
        %v3165 = vunpack.c.l.b16 %v2150
        %v3166 = vunpack.c.l.b16 %v2151
        %v3167 = vunpack.c.l.b16 %v2152
        %v3168 = vunpack.c.l.b16 %v2153
        %v3169 = vunpack.c.l.b16 %v2154
        %v3170 = vunpack.c.l.b16 %v2155
        %v3171 = vunpack.c.l.b16 %v2156
        %v3172 = vunpack.c.l.b16 %v2157
        %v3173 = vunpack.c.l.b16 %v2158
        %v3174 = vunpack.c.l.b16 %v2159
        %v3175 = vunpack.c.l.b16 %v2160
        %v3176 = vunpack.c.l.b16 %v2161
        %v3177 = vunpack.c.l.b16 %v2162
        %v3178 = vunpack.c.l.b16 %v2163
        %v3179 = vunpack.c.l.b16 %v2164
        %v3180 = vunpack.c.l.b16 %v2165
        %v3181 = vunpack.c.l.b16 %v2166
        %v3182 = vunpack.c.l.b16 %v2167
        %v3183 = vunpack.c.l.b16 %v2168
        %v3184 = vunpack.c.l.b16 %v2169
        %v3185 = vunpack.c.l.b16 %v2170
        %v3186 = vunpack.c.l.b16 %v2171
        %v3187 = vunpack.c.l.b16 %v2172
        %v3188 = vunpack.c.l.b16 %v2173
        %v3189 = vunpack.c.l.b16 %v2174
        %v3190 = vunpack.c.l.b16 %v2175
        %v3191 = vunpack.c.l.b16 %v2176
        %v3192 = vunpack.c.l.b16 %v2177
        %v3193 = vunpack.c.l.b16 %v2178
        %v3194 = vunpack.c.l.b16 %v2179
        %v3195 = vunpack.c.l.b16 %v2180
        %v3196 = vunpack.c.l.b16 %v2181
        %v3197 = vunpack.c.l.b16 %v2182
        %v3198 = vunpack.c.l.b16 %v2183
        %v3199 = vunpack.c.l.b16 %v2184
        %v3200 = vunpack.c.l.b16 %v2185
        %v3201 = vunpack.c.l.b16 %v2186
        %v3202 = vunpack.c.l.b16 %v2187
        %v3203 = vunpack.c.l.b16 %v2188
        %v3204 = vunpack.c.l.b16 %v2189
        %v3205 = vunpack.c.l.b16 %v2190
        %v3206 = vunpack.c.l.b16 %v2191
        %v3207 = vunpack.c.l.b16 %v2192
        %v3208 = vunpack.c.l.b16 %v2193
        %v3209 = vunpack.c.l.b16 %v2194
        %v3210 = vunpack.c.l.b16 %v2195
        %v3211 = vunpack.c.l.b16 %v2196
        %v3212 = vunpack.c.l.b16 %v2197
        %v3213 = vunpack.c.l.b16 %v2198
        %v3214 = vunpack.c.l.b16 %v2199
        %v3215 = vunpack.c.l.b16 %v2200
        %v3216 = vunpack.c.l.b16 %v2201
        %v3217 = vunpack.c.l.b16 %v2202
        %v3218 = vunpack.c.l.b16 %v2203
        %v3219 = vunpack.c.l.b16 %v2204
        %v3220 = vunpack.c.l.b16 %v2205
        %v3221 = vunpack.c.l.b16 %v2206
        %v3222 = vunpack.c.l.b16 %v2207
        %v3223 = vunpack.c.l.b16 %v2208
        %v3224 = vunpack.c.l.b16 %v2209
        %v3225 = vunpack.c.l.b16 %v2210
        %v3226 = vunpack.c.l.b16 %v2211
        %v3227 = vunpack.c.l.b16 %v2212
        %v3228 = vunpack.c.l.b16 %v2213
        %v3229 = vunpack.c.l.b16 %v2214
        %v3230 = vunpack.c.l.b16 %v2215
        %v3231 = vunpack.c.l.b16 %v2216
        %v3232 = vunpack.c.l.b16 %v2217
        %v3233 = vunpack.c.l.b16 %v2218
        %v3234 = vunpack.c.l.b16 %v2219
        %v3235 = vunpack.c.l.b16 %v2220
        %v3236 = vunpack.c.l.b16 %v2221
        %v3237 = vunpack.c.l.b16 %v2222
        %v3238 = vunpack.c.l.b16 %v2223
        %v3239 = vunpack.c.l.b16 %v2224
        %v3240 = vunpack.c.l.b16 %v2225
        %v3241 = vunpack.c.l.b16 %v2226
        %v3242 = vunpack.c.l.b16 %v2227
        %v3243 = vunpack.c.l.b16 %v2228
        %v3244 = vunpack.c.l.b16 %v2229
        %v3245 = vunpack.c.l.b16 %v2230
        %v3246 = vunpack.c.l.b16 %v2231
        %v3247 = vunpack.c.l.b16 %v2232
        %v3248 = vunpack.c.l.b16 %v2233
        %v3249 = vunpack.c.l.b16 %v2234
        %v3250 = vunpack.c.l.b16 %v2235
        %v3251 = vunpack.c.l.b16 %v2236
        %v3252 = vunpack.c.l.b16 %v2237
        %v3253 = vunpack.c.l.b16 %v2238
        %v3254 = vunpack.c.l.b16 %v2239
        %v3255 = vunpack.c.l.b16 %v2240
        %v3256 = vunpack.c.l.b16 %v2241
        %v3257 = vunpack.c.l.b16 %v2242
        %v3258 = vunpack.c.l.b16 %v2243
        %v3259 = vunpack.c.l.b16 %v2244
        %v3260 = vunpack.c.l.b16 %v2245
        %v3261 = vunpack.c.l.b16 %v2246
        %v3262 = vunpack.c.l.b16 %v2247
        %v3263 = vunpack.c.l.b16 %v2248
        %v3264 = vunpack.c.l.b16 %v2249
        %v3265 = vunpack.c.l.b16 %v2250
        %v3266 = vunpack.c.l.b16 %v2251
        %v3267 = vunpack.c.l.b16 %v2252
        %v3268 = vunpack.c.l.b16 %v2253
        %v3269 = vunpack.c.l.b16 %v2254
        %v3270 = vunpack.c.l.b16 %v2255
        %v3271 = vunpack.c.l.b16 %v2256
        %v3272 = vunpack.c.l.b16 %v2257
        %v3273 = vunpack.c.l.b16 %v2258
        %v3274 = vunpack.c.l.b16 %v2259
        %v3275 = vunpack.c.l.b16 %v2260
        %v3276 = vunpack.c.l.b16 %v2261
        %v3277 = vunpack.c.l.b16 %v2262
        %v3278 = vunpack.c.l.b16 %v2263
        %v3279 = vunpack.c.l.b16 %v2264
        %v3280 = vunpack.c.l.b16 %v2265
        %v3281 = vunpack.c.l.b16 %v2266
        %v3282 = vunpack.c.l.b16 %v2267
        %v3283 = vunpack.c.l.b16 %v2268
        %v3284 = vunpack.c.l.b16 %v2269
        %v3285 = vunpack.c.l.b16 %v2270
        %v3286 = vunpack.c.l.b16 %v2271
        %v3287 = vunpack.c.l.b16 %v2272
        %v3288 = vunpack.c.l.b16 %v2273
        %v3289 = vunpack.c.l.b16 %v2274
        %v3290 = vunpack.c.l.b16 %v2275
        %v3291 = vunpack.c.l.b16 %v2276
        %v3292 = vunpack.c.l.b16 %v2277
        %v3293 = vunpack.c.l.b16 %v2278
        %v3294 = vunpack.c.l.b16 %v2279
        %v3295 = vunpack.c.l.b16 %v2280
        %v3296 = vunpack.c.l.b16 %v2281
        %v3297 = vunpack.c.l.b16 %v2282
        %v3298 = vunpack.c.l.b16 %v2283
        %v3299 = vunpack.c.l.b16 %v2284
        %v3300 = vunpack.c.l.b16 %v2285
        %v3301 = vunpack.c.l.b16 %v2286
        %v3302 = vunpack.c.l.b16 %v2287
        %v3303 = vunpack.c.l.b16 %v2288
        %v3304 = vunpack.c.l.b16 %v2289
        %v3305 = vunpack.c.l.b16 %v2290
        %v3306 = vunpack.c.l.b16 %v2291
        %v3307 = vunpack.c.l.b16 %v2292
        %v3308 = vunpack.c.l.b16 %v2293
        %v3309 = vunpack.c.l.b16 %v2294
        %v3310 = vunpack.c.l.b16 %v2295
        %v3311 = vunpack.c.l.b16 %v2296
        %v3312 = vunpack.c.l.b16 %v2297
        %v3313 = vunpack.c.l.b16 %v2298
        %v3314 = vunpack.c.l.b16 %v2299
        %v3315 = vunpack.c.l.b16 %v2300
        %v3316 = vunpack.c.l.b16 %v2301
        %v3317 = vunpack.c.l.b16 %v2302
        %v3318 = vunpack.c.l.b16 %v2303
        %v3319 = vunpack.c.l.b16 %v2304
        %v3320 = vunpack.c.l.b16 %v2305
        %v3321 = vunpack.c.l.b16 %v2306
        %v3322 = vunpack.c.l.b16 %v2307
        %v3323 = vunpack.c.l.b16 %v2308
        %v3324 = vunpack.c.l.b16 %v2309
        %v3325 = vunpack.c.l.b16 %v2310
        %v3326 = vunpack.c.l.b16 %v2311
        %v3327 = vunpack.c.l.b16 %v2312
        %v3328 = vunpack.c.l.b16 %v2313
        %v3329 = vunpack.c.l.b16 %v2314
        %v3330 = vunpack.c.l.b16 %v2315
        %v3331 = vunpack.c.l.b16 %v2316
        %v3332 = vunpack.c.l.b16 %v2317
        %v3333 = vunpack.c.l.b16 %v2318
        %v3334 = vunpack.c.l.b16 %v2319
        %v3335 = vunpack.c.l.b16 %v2320
        %v3336 = vunpack.c.l.b16 %v2321
        %v3337 = vunpack.c.l.b16 %v2322
        %v3338 = vunpack.c.l.b16 %v2323
        %v3339 = vunpack.c.l.b16 %v2324
        %v3340 = vunpack.c.l.b16 %v2325
        %v3341 = vunpack.c.l.b16 %v2326
        %v3342 = vunpack.c.l.b16 %v2327
        %v3343 = vunpack.c.l.b16 %v2328
        %v3344 = vpack.c.b16 %v2940, %v2939
        %v3345 = vpack.c.b16 %v2942, %v2941
        %v3346 = vpack.c.b16 %v2944, %v2943
        %v3347 = vpack.c.b16 %v2946, %v2945
        %v3348 = vpack.c.b16 %v2948, %v2947
        %v3349 = vpack.c.b16 %v2950, %v2949
        %v3350 = vpack.c.b16 %v2952, %v2951
        %v3351 = vpack.c.b16 %v2954, %v2953
        %v3352 = vpack.c.b16 %v2956, %v2955
        %v3353 = vpack.c.b16 %v2958, %v2957
        %v3354 = vpack.c.b16 %v2960, %v2959
        %v3355 = vpack.c.b16 %v2962, %v2961
        %v3356 = vpack.c.b16 %v2964, %v2963
        %v3357 = vpack.c.b16 %v2966, %v2965
        %v3358 = vpack.c.b16 %v2968, %v2967
        %v3359 = vpack.c.b16 %v2970, %v2969
        %v3360 = vpack.c.b16 %v2972, %v2971
        %v3361 = vpack.c.b16 %v2974, %v2973
        %v3362 = vpack.c.b16 %v2976, %v2975
        %v3363 = vpack.c.b16 %v2978, %v2977
        %v3364 = vpack.c.b16 %v2980, %v2979
        %v3365 = vpack.c.b16 %v2982, %v2981
        %v3366 = vpack.c.b16 %v2984, %v2983
        %v3367 = vpack.c.b16 %v2986, %v2985
        %v3368 = vpack.c.b16 %v2988, %v2987
        %v3369 = vpack.c.b16 %v2990, %v2989
        %v3370 = vpack.c.b16 %v2992, %v2991
        %v3371 = vpack.c.b16 %v2994, %v2993
        %v3372 = vpack.c.b16 %v2996, %v2995
        %v3373 = vpack.c.b16 %v2998, %v2997
        %v3374 = vpack.c.b16 %v3000, %v2999
        %v3375 = vpack.c.b16 %v3002, %v3001
        %v3376 = vpack.c.b16 %v3004, %v3003
        %v3377 = vpack.c.b16 %v3006, %v3005
        %v3378 = vpack.c.b16 %v3008, %v3007
        %v3379 = vpack.c.b16 %v3010, %v3009
        %v3380 = vpack.c.b16 %v3012, %v3011
        %v3381 = vpack.c.b16 %v3014, %v3013
        %v3382 = vpack.c.b16 %v3016, %v3015
        %v3383 = vpack.c.b16 %v3018, %v3017
        %v3384 = vpack.c.b16 %v3020, %v3019
        %v3385 = vpack.c.b16 %v3022, %v3021
        %v3386 = vpack.c.b16 %v3024, %v3023
        %v3387 = vpack.c.b16 %v3026, %v3025
        %v3388 = vpack.c.b16 %v3028, %v3027
        %v3389 = vpack.c.b16 %v3030, %v3029
        %v3390 = vpack.c.b16 %v3032, %v3031
        %v3391 = vpack.c.b16 %v3034, %v3033
        %v3392 = vpack.c.b16 %v3036, %v3035
        %v3393 = vpack.c.b16 %v3038, %v3037
        %v3394 = vpack.c.b16 %v3040, %v3039
        %v3395 = vpack.c.b16 %v3042, %v3041
        %v3396 = vpack.c.b16 %v3044, %v3043
        %v3397 = vpack.c.b16 %v3046, %v3045
        %v3398 = vpack.c.b16 %v3048, %v3047
        %v3399 = vpack.c.b16 %v3050, %v3049
        %v3400 = vpack.c.b16 %v3052, %v3051
        %v3401 = vpack.c.b16 %v3054, %v3053
        %v3402 = vpack.c.b16 %v3056, %v3055
        %v3403 = vpack.c.b16 %v3058, %v3057
        %v3404 = vpack.c.b16 %v3060, %v3059
        %v3405 = vpack.c.b16 %v3062, %v3061
        %v3406 = vpack.c.b16 %v3064, %v3063
        %v3407 = vpack.c.b16 %v3066, %v3065
        %v3408 = vpack.c.b16 %v3068, %v3067
        %v3409 = vpack.c.b16 %v3070, %v3069
        %v3410 = vpack.c.b16 %v3072, %v3071
        %v3411 = vpack.c.b16 %v3074, %v3073
        %v3412 = vpack.c.b16 %v3076, %v3075
        %v3413 = vpack.c.b16 %v3078, %v3077
        %v3414 = vpack.c.b16 %v3080, %v3079
        %v3415 = vpack.c.b16 %v3082, %v3081
        %v3416 = vpack.c.b16 %v3084, %v3083
        %v3417 = vpack.c.b16 %v3086, %v3085
        %v3418 = vpack.c.b16 %v3088, %v3087
        %v3419 = vpack.c.b16 %v3090, %v3089
        %v3420 = vpack.c.b16 %v3092, %v3091
        %v3421 = vpack.c.b16 %v3094, %v3093
        %v3422 = vpack.c.b16 %v3096, %v3095
        %v3423 = vpack.c.b16 %v3098, %v3097
        %v3424 = vpack.c.b16 %v3100, %v3099
        %v3425 = vpack.c.b16 %v3102, %v3101
        %v3426 = vpack.c.b16 %v3104, %v3103
        %v3427 = vpack.c.b16 %v3106, %v3105
        %v3428 = vpack.c.b16 %v3108, %v3107
        %v3429 = vpack.c.b16 %v3110, %v3109
        %v3430 = vpack.c.b16 %v3112, %v3111
        %v3431 = vpack.c.b16 %v3114, %v3113
        %v3432 = vpack.c.b16 %v3116, %v3115
        %v3433 = vpack.c.b16 %v3118, %v3117
        %v3434 = vpack.c.b16 %v3120, %v3119
        %v3435 = vpack.c.b16 %v3122, %v3121
        %v3436 = vpack.c.b16 %v3124, %v3123
        %v3437 = vpack.c.b16 %v3126, %v3125
        %v3438 = vpack.c.b16 %v3128, %v3127
        %v3439 = vpack.c.b16 %v3130, %v3129
        %v3440 = vpack.c.b16 %v3132, %v3131
        %v3441 = vpack.c.b16 %v3134, %v3133
        %v3442 = vpack.c.b16 %v3136, %v3135
        %v3443 = vpack.c.b16 %v3138, %v3137
        %v3444 = vpack.c.b16 %v3140, %v3139
        %v3445 = vpack.c.b16 %v3142, %v3141
        %v3446 = vpack.c.b16 %v3144, %v3143
        %v3447 = vpack.c.b16 %v3146, %v3145
        %v3448 = vpack.c.b16 %v3148, %v3147
        %v3449 = vpack.c.b16 %v3150, %v3149
        %v3450 = vpack.c.b16 %v3152, %v3151
        %v3451 = vpack.c.b16 %v3154, %v3153
        %v3452 = vpack.c.b16 %v3156, %v3155
        %v3453 = vpack.c.b16 %v3158, %v3157
        %v3454 = vpack.c.b16 %v3160, %v3159
        %v3455 = vpack.c.b16 %v3162, %v3161
        %v3456 = vpack.c.b16 %v3164, %v3163
        %v3457 = vpack.c.b16 %v3166, %v3165
        %v3458 = vpack.c.b16 %v3168, %v3167
        %v3459 = vpack.c.b16 %v3170, %v3169
        %v3460 = vpack.c.b16 %v3172, %v3171
        %v3461 = vpack.c.b16 %v3174, %v3173
        %v3462 = vpack.c.b16 %v3176, %v3175
        %v3463 = vpack.c.b16 %v3178, %v3177
        %v3464 = vpack.c.b16 %v3180, %v3179
        %v3465 = vpack.c.b16 %v3182, %v3181
        %v3466 = vpack.c.b16 %v3184, %v3183
        %v3467 = vpack.c.b16 %v3186, %v3185
        %v3468 = vpack.c.b16 %v3188, %v3187
        %v3469 = vpack.c.b16 %v3190, %v3189
        %v3470 = vpack.c.b16 %v3192, %v3191
        %v3471 = vpack.c.b16 %v3194, %v3193
        %v3472 = vpack.c.b16 %v3196, %v3195
        %v3473 = vpack.c.b16 %v3198, %v3197
        %v3474 = vpack.c.b16 %v3200, %v3199
        %v3475 = vpack.c.b16 %v3202, %v3201
        %v3476 = vpack.c.b16 %v3204, %v3203
        %v3477 = vpack.c.b16 %v3206, %v3205
        %v3478 = vpack.c.b16 %v3208, %v3207
        %v3479 = vpack.c.b16 %v3210, %v3209
        %v3480 = vpack.c.b16 %v3212, %v3211
        %v3481 = vpack.c.b16 %v3214, %v3213
        %v3482 = vpack.c.b16 %v3216, %v3215
        %v3483 = vpack.c.b16 %v3218, %v3217
        %v3484 = vpack.c.b16 %v3220, %v3219
        %v3485 = vpack.c.b16 %v3222, %v3221
        %v3486 = vpack.c.b16 %v3224, %v3223
        %v3487 = vpack.c.b16 %v3226, %v3225
        %v3488 = vpack.c.b16 %v3228, %v3227
        %v3489 = vpack.c.b16 %v3230, %v3229
        %v3490 = vpack.c.b16 %v3232, %v3231
        %v3491 = vpack.c.b16 %v3234, %v3233
        %v3492 = vpack.c.b16 %v3236, %v3235
        %v3493 = vpack.c.b16 %v3238, %v3237
        %v3494 = vpack.c.b16 %v3240, %v3239
        %v3495 = vpack.c.b16 %v3242, %v3241
        %v3496 = vpack.c.b16 %v3244, %v3243
        %v3497 = vpack.c.b16 %v3246, %v3245
        %v3498 = vpack.c.b16 %v3248, %v3247
        %v3499 = vpack.c.b16 %v3250, %v3249
        %v3500 = vpack.c.b16 %v3252, %v3251
        %v3501 = vpack.c.b16 %v3254, %v3253
        %v3502 = vpack.c.b16 %v3256, %v3255
        %v3503 = vpack.c.b16 %v3258, %v3257
        %v3504 = vpack.c.b16 %v3260, %v3259
        %v3505 = vpack.c.b16 %v3262, %v3261
        %v3506 = vpack.c.b16 %v3264, %v3263
        %v3507 = vpack.c.b16 %v3266, %v3265
        %v3508 = vpack.c.b16 %v3268, %v3267
        %v3509 = vpack.c.b16 %v3270, %v3269
        %v3510 = vpack.c.b16 %v3272, %v3271
        %v3511 = vpack.c.b16 %v3274, %v3273
        %v3512 = vpack.c.b16 %v3276, %v3275
        %v3513 = vpack.c.b16 %v3278, %v3277
        %v3514 = vpack.c.b16 %v3280, %v3279
        %v3515 = vpack.c.b16 %v3282, %v3281
        %v3516 = vpack.c.b16 %v3284, %v3283
        %v3517 = vpack.c.b16 %v3286, %v3285
        %v3518 = vpack.c.b16 %v3288, %v3287
        %v3519 = vpack.c.b16 %v3290, %v3289
        %v3520 = vpack.c.b16 %v3292, %v3291
        %v3521 = vpack.c.b16 %v3294, %v3293
        %v3522 = vpack.c.b16 %v3296, %v3295
        %v3523 = vpack.c.b16 %v3298, %v3297
        %v3524 = vpack.c.b16 %v3300, %v3299
        %v3525 = vpack.c.b16 %v3302, %v3301
        %v3526 = vpack.c.b16 %v3304, %v3303
        %v3527 = vpack.c.b16 %v3306, %v3305
        %v3528 = vpack.c.b16 %v3308, %v3307
        %v3529 = vpack.c.b16 %v3310, %v3309
        %v3530 = vpack.c.b16 %v3312, %v3311
        %v3531 = vpack.c.b16 %v3314, %v3313
        %v3532 = vpack.c.b16 %v3316, %v3315
        %v3533 = vpack.c.b16 %v3318, %v3317
        %v3534 = vpack.c.b16 %v3320, %v3319
        %v3535 = vpack.c.b16 %v3322, %v3321
        %v3536 = vpack.c.b16 %v3324, %v3323
        %v3537 = vpack.c.b16 %v3326, %v3325
        %v3538 = vpack.c.b16 %v3328, %v3327
        %v3539 = vpack.c.b16 %v3330, %v3329
        %v3540 = vpack.c.b16 %v3332, %v3331
        %v3541 = vpack.c.b16 %v3334, %v3333
        %v3542 = vpack.c.b16 %v3336, %v3335
        %v3543 = vpack.c.b16 %v3338, %v3337
        %v3544 = vpack.c.b16 %v3340, %v3339
        %v3545 = vpack.c.b16 %v3342, %v3341
        %v3546 = vpack.c.b16 %v3343, %v3343
        %vm3749 = vcmask 326656
        %v3751 = vsel %vm3749, %v2508, 0
        %vm3753 = vcmask 1043456
        %v3755 = vsel %vm3753, %v3546, 0
        %3757 = vmatprep.subr.bf16.mxu0 0
        %3758 = vmatpush1.bf16.msra.mxu0 %v3351
        %3759 = vmatprep.subr.bf16.mxu0 0
        %3760 = vmatpush1.bf16.msra.mxu0 %v3350
        %3761 = vmatprep.subr.bf16.mxu0 0
        %3762 = vmatpush1.bf16.msra.mxu0 %v3349
        %3763 = vmatprep.subr.bf16.mxu0 0
        %3764 = vmatpush1.bf16.msra.mxu0 %v3348
        %3765 = vmatprep.subr.bf16.mxu0 0
        %3766 = vmatpush1.bf16.msra.mxu0 %v3347
        %3767 = vmatprep.subr.bf16.mxu0 0
        %3768 = vmatpush1.bf16.msra.mxu0 %v3346
        %3769 = vmatprep.subr.bf16.mxu0 0
        %3770 = vmatpush1.bf16.msra.mxu0 %v3345
        %3771 = vmatprep.subr.bf16.mxu0 0
        %3772 = vmatpush1.bf16.msra.mxu0 %v3344
        %3773 = vmatprep.subr.bf16.mxu0 0
        %3774 = vmatpush2.bf16.msra.mxu0 %v3359
        %3775 = vmatprep.subr.bf16.mxu0 0
        %3776 = vmatpush2.bf16.msra.mxu0 %v3358
        %3777 = vmatprep.subr.bf16.mxu0 0
        %3778 = vmatpush2.bf16.msra.mxu0 %v3357
        %3779 = vmatprep.subr.bf16.mxu0 0
        %3780 = vmatpush2.bf16.msra.mxu0 %v3356
        %3781 = vmatprep.subr.bf16.mxu0 0
        %3782 = vmatpush2.bf16.msra.mxu0 %v3355
        %3783 = vmatprep.subr.bf16.mxu0 0
        %3784 = vmatpush2.bf16.msra.mxu0 %v3354
        %3785 = vmatprep.subr.bf16.mxu0 0
        %3786 = vmatpush2.bf16.msra.mxu0 %v3353
        %3787 = vmatprep.subr.bf16.mxu0 0
        %3788 = vmatpush2.bf16.msra.mxu0 %v3352
        %3789 = vmatprep.mubr.bf16.mxu0 %v2377
        %3790 = vmatmul.mubr.bf16.gmra.mxu0 %v2363
        %v3791 = vpop.f32.mrf.mxu0
        %v3792 = vadd.f32 %v2334, %v3791
        %v3793 = vpop.f32.mrf.mxu0
        %v3794 = vpop.f32.mrf.mxu0
        %v3795 = vpop.f32.mrf.mxu0
        %3796 = vdwg.mxu0
        %3797 = vmatprep.subr.bf16.mxu0 0
        %3798 = vmatpush1.bf16.msra.mxu0 %v3367
        %3799 = vmatprep.subr.bf16.mxu0 0
        %3800 = vmatpush1.bf16.msra.mxu0 %v3366
        %3801 = vmatprep.subr.bf16.mxu0 0
        %3802 = vmatpush1.bf16.msra.mxu0 %v3365
        %3803 = vmatprep.subr.bf16.mxu0 0
        %3804 = vmatpush1.bf16.msra.mxu0 %v3364
        %3805 = vmatprep.subr.bf16.mxu0 0
        %3806 = vmatpush1.bf16.msra.mxu0 %v3363
        %3807 = vmatprep.subr.bf16.mxu0 0
        %3808 = vmatpush1.bf16.msra.mxu0 %v3362
        %3809 = vmatprep.subr.bf16.mxu0 0
        %3810 = vmatpush1.bf16.msra.mxu0 %v3361
        %3811 = vmatprep.subr.bf16.mxu0 0
        %3812 = vmatpush1.bf16.msra.mxu0 %v3360
        %3813 = vmatprep.subr.bf16.mxu0 0
        %3814 = vmatpush2.bf16.msra.mxu0 %v3375
        %3815 = vmatprep.subr.bf16.mxu0 0
        %3816 = vmatpush2.bf16.msra.mxu0 %v3374
        %3817 = vmatprep.subr.bf16.mxu0 0
        %3818 = vmatpush2.bf16.msra.mxu0 %v3373
        %3819 = vmatprep.subr.bf16.mxu0 0
        %3820 = vmatpush2.bf16.msra.mxu0 %v3372
        %3821 = vmatprep.subr.bf16.mxu0 0
        %3822 = vmatpush2.bf16.msra.mxu0 %v3371
        %3823 = vmatprep.subr.bf16.mxu0 0
        %3824 = vmatpush2.bf16.msra.mxu0 %v3370
        %3825 = vmatprep.subr.bf16.mxu0 0
        %3826 = vmatpush2.bf16.msra.mxu0 %v3369
        %3827 = vmatprep.subr.bf16.mxu0 0
        %3828 = vmatpush2.bf16.msra.mxu0 %v3368
        %3829 = vmatprep.mubr.bf16.mxu0 %v2387
        %3830 = vmatmul.mubr.bf16.gmra.mxu0 %v2385
        %v3831 = vpop.f32.mrf.mxu0
        %v3832 = vadd.f32 %v3792, %v3831
        %v3833 = vpop.f32.mrf.mxu0
        %v3834 = vpop.f32.mrf.mxu0
        %v3835 = vpop.f32.mrf.mxu0
        %3836 = vdwg.mxu0
        %3837 = vmatprep.subr.bf16.mxu0 0
        %3838 = vmatpush1.bf16.msra.mxu0 %v3383
        %3839 = vmatprep.subr.bf16.mxu0 0
        %3840 = vmatpush1.bf16.msra.mxu0 %v3382
        %3841 = vmatprep.subr.bf16.mxu0 0
        %3842 = vmatpush1.bf16.msra.mxu0 %v3381
        %3843 = vmatprep.subr.bf16.mxu0 0
        %3844 = vmatpush1.bf16.msra.mxu0 %v3380
        %3845 = vmatprep.subr.bf16.mxu0 0
        %3846 = vmatpush1.bf16.msra.mxu0 %v3379
        %3847 = vmatprep.subr.bf16.mxu0 0
        %3848 = vmatpush1.bf16.msra.mxu0 %v3378
        %3849 = vmatprep.subr.bf16.mxu0 0
        %3850 = vmatpush1.bf16.msra.mxu0 %v3377
        %3851 = vmatprep.subr.bf16.mxu0 0
        %3852 = vmatpush1.bf16.msra.mxu0 %v3376
        %3853 = vmatprep.subr.bf16.mxu0 0
        %3854 = vmatpush2.bf16.msra.mxu0 %v3391
        %3855 = vmatprep.subr.bf16.mxu0 0
        %3856 = vmatpush2.bf16.msra.mxu0 %v3390
        %3857 = vmatprep.subr.bf16.mxu0 0
        %3858 = vmatpush2.bf16.msra.mxu0 %v3389
        %3859 = vmatprep.subr.bf16.mxu0 0
        %3860 = vmatpush2.bf16.msra.mxu0 %v3388
        %3861 = vmatprep.subr.bf16.mxu0 0
        %3862 = vmatpush2.bf16.msra.mxu0 %v3387
        %3863 = vmatprep.subr.bf16.mxu0 0
        %3864 = vmatpush2.bf16.msra.mxu0 %v3386
        %3865 = vmatprep.subr.bf16.mxu0 0
        %3866 = vmatpush2.bf16.msra.mxu0 %v3385
        %3867 = vmatprep.subr.bf16.mxu0 0
        %3868 = vmatpush2.bf16.msra.mxu0 %v3384
        %3869 = vmatprep.mubr.bf16.mxu0 %v2384
        %3870 = vmatmul.mubr.bf16.gmra.mxu0 %v2370
        %v3871 = vpop.f32.mrf.mxu0
        %v3872 = vadd.f32 %v3832, %v3871
        %v3873 = vpop.f32.mrf.mxu0
        %v3874 = vpop.f32.mrf.mxu0
        %v3875 = vpop.f32.mrf.mxu0
        %3876 = vdwg.mxu0
        %3877 = vmatprep.subr.bf16.mxu0 0
        %3878 = vmatpush1.bf16.msra.mxu0 %v3399
        %3879 = vmatprep.subr.bf16.mxu0 0
        %3880 = vmatpush1.bf16.msra.mxu0 %v3398
        %3881 = vmatprep.subr.bf16.mxu0 0
        %3882 = vmatpush1.bf16.msra.mxu0 %v3397
        %3883 = vmatprep.subr.bf16.mxu0 0
        %3884 = vmatpush1.bf16.msra.mxu0 %v3396
        %3885 = vmatprep.subr.bf16.mxu0 0
        %3886 = vmatpush1.bf16.msra.mxu0 %v3395
        %3887 = vmatprep.subr.bf16.mxu0 0
        %3888 = vmatpush1.bf16.msra.mxu0 %v3394
        %3889 = vmatprep.subr.bf16.mxu0 0
        %3890 = vmatpush1.bf16.msra.mxu0 %v3393
        %3891 = vmatprep.subr.bf16.mxu0 0
        %3892 = vmatpush1.bf16.msra.mxu0 %v3392
        %3893 = vmatprep.subr.bf16.mxu0 0
        %3894 = vmatpush2.bf16.msra.mxu0 %v3407
        %3895 = vmatprep.subr.bf16.mxu0 0
        %3896 = vmatpush2.bf16.msra.mxu0 %v3406
        %3897 = vmatprep.subr.bf16.mxu0 0
        %3898 = vmatpush2.bf16.msra.mxu0 %v3405
        %3899 = vmatprep.subr.bf16.mxu0 0
        %3900 = vmatpush2.bf16.msra.mxu0 %v3404
        %3901 = vmatprep.subr.bf16.mxu0 0
        %3902 = vmatpush2.bf16.msra.mxu0 %v3403
        %3903 = vmatprep.subr.bf16.mxu0 0
        %3904 = vmatpush2.bf16.msra.mxu0 %v3402
        %3905 = vmatprep.subr.bf16.mxu0 0
        %3906 = vmatpush2.bf16.msra.mxu0 %v3401
        %3907 = vmatprep.subr.bf16.mxu0 0
        %3908 = vmatpush2.bf16.msra.mxu0 %v3400
        %3909 = vmatprep.mubr.bf16.mxu0 %v2388
        %3910 = vmatmul.mubr.bf16.gmra.mxu0 %v2386
        %v3911 = vpop.f32.mrf.mxu0
        %v3912 = vadd.f32 %v3872, %v3911
        %v3913 = vpop.f32.mrf.mxu0
        %v3914 = vpop.f32.mrf.mxu0
        %v3915 = vpop.f32.mrf.mxu0
        %3916 = vdwg.mxu0
        %3917 = vmatprep.subr.bf16.mxu0 0
        %3918 = vmatpush1.bf16.msra.mxu0 %v3415
        %3919 = vmatprep.subr.bf16.mxu0 0
        %3920 = vmatpush1.bf16.msra.mxu0 %v3414
        %3921 = vmatprep.subr.bf16.mxu0 0
        %3922 = vmatpush1.bf16.msra.mxu0 %v3413
        %3923 = vmatprep.subr.bf16.mxu0 0
        %3924 = vmatpush1.bf16.msra.mxu0 %v3412
        %3925 = vmatprep.subr.bf16.mxu0 0
        %3926 = vmatpush1.bf16.msra.mxu0 %v3411
        %3927 = vmatprep.subr.bf16.mxu0 0
        %3928 = vmatpush1.bf16.msra.mxu0 %v3410
        %3929 = vmatprep.subr.bf16.mxu0 0
        %3930 = vmatpush1.bf16.msra.mxu0 %v3409
        %3931 = vmatprep.subr.bf16.mxu0 0
        %3932 = vmatpush1.bf16.msra.mxu0 %v3408
        %3933 = vmatprep.subr.bf16.mxu0 0
        %3934 = vmatpush2.bf16.msra.mxu0 %v3423
        %3935 = vmatprep.subr.bf16.mxu0 0
        %3936 = vmatpush2.bf16.msra.mxu0 %v3422
        %3937 = vmatprep.subr.bf16.mxu0 0
        %3938 = vmatpush2.bf16.msra.mxu0 %v3421
        %3939 = vmatprep.subr.bf16.mxu0 0
        %3940 = vmatpush2.bf16.msra.mxu0 %v3420
        %3941 = vmatprep.subr.bf16.mxu0 0
        %3942 = vmatpush2.bf16.msra.mxu0 %v3419
        %3943 = vmatprep.subr.bf16.mxu0 0
        %3944 = vmatpush2.bf16.msra.mxu0 %v3418
        %3945 = vmatprep.subr.bf16.mxu0 0
        %3946 = vmatpush2.bf16.msra.mxu0 %v3417
        %3947 = vmatprep.subr.bf16.mxu0 0
        %3948 = vmatpush2.bf16.msra.mxu0 %v3416
        %3949 = vmatprep.mubr.bf16.mxu0 %v2426
        %3950 = vmatmul.mubr.bf16.gmra.mxu0 %v2412
        %v3951 = vpop.f32.mrf.mxu0
        %v3952 = vadd.f32 %v3912, %v3951
        %v3953 = vpop.f32.mrf.mxu0
        %v3954 = vpop.f32.mrf.mxu0
        %v3955 = vpop.f32.mrf.mxu0
        %3956 = vdwg.mxu0
        %3957 = vmatprep.subr.bf16.mxu0 0
        %3958 = vmatpush1.bf16.msra.mxu0 %v3431
        %3959 = vmatprep.subr.bf16.mxu0 0
        %3960 = vmatpush1.bf16.msra.mxu0 %v3430
        %3961 = vmatprep.subr.bf16.mxu0 0
        %3962 = vmatpush1.bf16.msra.mxu0 %v3429
        %3963 = vmatprep.subr.bf16.mxu0 0
        %3964 = vmatpush1.bf16.msra.mxu0 %v3428
        %3965 = vmatprep.subr.bf16.mxu0 0
        %3966 = vmatpush1.bf16.msra.mxu0 %v3427
        %3967 = vmatprep.subr.bf16.mxu0 0
        %3968 = vmatpush1.bf16.msra.mxu0 %v3426
        %3969 = vmatprep.subr.bf16.mxu0 0
        %3970 = vmatpush1.bf16.msra.mxu0 %v3425
        %3971 = vmatprep.subr.bf16.mxu0 0
        %3972 = vmatpush1.bf16.msra.mxu0 %v3424
        %3973 = vmatprep.subr.bf16.mxu0 0
        %3974 = vmatpush2.bf16.msra.mxu0 %v3439
        %3975 = vmatprep.subr.bf16.mxu0 0
        %3976 = vmatpush2.bf16.msra.mxu0 %v3438
        %3977 = vmatprep.subr.bf16.mxu0 0
        %3978 = vmatpush2.bf16.msra.mxu0 %v3437
        %3979 = vmatprep.subr.bf16.mxu0 0
        %3980 = vmatpush2.bf16.msra.mxu0 %v3436
        %3981 = vmatprep.subr.bf16.mxu0 0
        %3982 = vmatpush2.bf16.msra.mxu0 %v3435
        %3983 = vmatprep.subr.bf16.mxu0 0
        %3984 = vmatpush2.bf16.msra.mxu0 %v3434
        %3985 = vmatprep.subr.bf16.mxu0 0
        %3986 = vmatpush2.bf16.msra.mxu0 %v3433
        %3987 = vmatprep.subr.bf16.mxu0 0
        %3988 = vmatpush2.bf16.msra.mxu0 %v3432
        %3989 = vmatprep.mubr.bf16.mxu0 %v2436
        %3990 = vmatmul.mubr.bf16.gmra.mxu0 %v2434
        %v3991 = vpop.f32.mrf.mxu0
        %v3992 = vadd.f32 %v3952, %v3991
        %v3993 = vpop.f32.mrf.mxu0
        %v3994 = vpop.f32.mrf.mxu0
        %v3995 = vpop.f32.mrf.mxu0
        %3996 = vdwg.mxu0
        %3997 = vmatprep.subr.bf16.mxu0 0
        %3998 = vmatpush1.bf16.msra.mxu0 %v3447
        %3999 = vmatprep.subr.bf16.mxu0 0
        %4000 = vmatpush1.bf16.msra.mxu0 %v3446
        %4001 = vmatprep.subr.bf16.mxu0 0
        %4002 = vmatpush1.bf16.msra.mxu0 %v3445
        %4003 = vmatprep.subr.bf16.mxu0 0
        %4004 = vmatpush1.bf16.msra.mxu0 %v3444
        %4005 = vmatprep.subr.bf16.mxu0 0
        %4006 = vmatpush1.bf16.msra.mxu0 %v3443
        %4007 = vmatprep.subr.bf16.mxu0 0
        %4008 = vmatpush1.bf16.msra.mxu0 %v3442
        %4009 = vmatprep.subr.bf16.mxu0 0
        %4010 = vmatpush1.bf16.msra.mxu0 %v3441
        %4011 = vmatprep.subr.bf16.mxu0 0
        %4012 = vmatpush1.bf16.msra.mxu0 %v3440
        %4013 = vmatprep.subr.bf16.mxu0 0
        %4014 = vmatpush2.bf16.msra.mxu0 %v3455
        %4015 = vmatprep.subr.bf16.mxu0 0
        %4016 = vmatpush2.bf16.msra.mxu0 %v3454
        %4017 = vmatprep.subr.bf16.mxu0 0
        %4018 = vmatpush2.bf16.msra.mxu0 %v3453
        %4019 = vmatprep.subr.bf16.mxu0 0
        %4020 = vmatpush2.bf16.msra.mxu0 %v3452
        %4021 = vmatprep.subr.bf16.mxu0 0
        %4022 = vmatpush2.bf16.msra.mxu0 %v3451
        %4023 = vmatprep.subr.bf16.mxu0 0
        %4024 = vmatpush2.bf16.msra.mxu0 %v3450
        %4025 = vmatprep.subr.bf16.mxu0 0
        %4026 = vmatpush2.bf16.msra.mxu0 %v3449
        %4027 = vmatprep.subr.bf16.mxu0 0
        %4028 = vmatpush2.bf16.msra.mxu0 %v3448
        %4029 = vmatprep.mubr.bf16.mxu0 %v2433
        %4030 = vmatmul.mubr.bf16.gmra.mxu0 %v2419
        %v4031 = vpop.f32.mrf.mxu0
        %v4032 = vadd.f32 %v3992, %v4031
        %v4033 = vpop.f32.mrf.mxu0
        %v4034 = vpop.f32.mrf.mxu0
        %v4035 = vpop.f32.mrf.mxu0
        %4036 = vdwg.mxu0
        %4037 = vmatprep.subr.bf16.mxu0 0
        %4038 = vmatpush1.bf16.msra.mxu0 %v3463
        %4039 = vmatprep.subr.bf16.mxu0 0
        %4040 = vmatpush1.bf16.msra.mxu0 %v3462
        %4041 = vmatprep.subr.bf16.mxu0 0
        %4042 = vmatpush1.bf16.msra.mxu0 %v3461
        %4043 = vmatprep.subr.bf16.mxu0 0
        %4044 = vmatpush1.bf16.msra.mxu0 %v3460
        %4045 = vmatprep.subr.bf16.mxu0 0
        %4046 = vmatpush1.bf16.msra.mxu0 %v3459
        %4047 = vmatprep.subr.bf16.mxu0 0
        %4048 = vmatpush1.bf16.msra.mxu0 %v3458
        %4049 = vmatprep.subr.bf16.mxu0 0
        %4050 = vmatpush1.bf16.msra.mxu0 %v3457
        %4051 = vmatprep.subr.bf16.mxu0 0
        %4052 = vmatpush1.bf16.msra.mxu0 %v3456
        %4053 = vmatprep.subr.bf16.mxu0 0
        %4054 = vmatpush2.bf16.msra.mxu0 %v3471
        %4055 = vmatprep.subr.bf16.mxu0 0
        %4056 = vmatpush2.bf16.msra.mxu0 %v3470
        %4057 = vmatprep.subr.bf16.mxu0 0
        %4058 = vmatpush2.bf16.msra.mxu0 %v3469
        %4059 = vmatprep.subr.bf16.mxu0 0
        %4060 = vmatpush2.bf16.msra.mxu0 %v3468
        %4061 = vmatprep.subr.bf16.mxu0 0
        %4062 = vmatpush2.bf16.msra.mxu0 %v3467
        %4063 = vmatprep.subr.bf16.mxu0 0
        %4064 = vmatpush2.bf16.msra.mxu0 %v3466
        %4065 = vmatprep.subr.bf16.mxu0 0
        %4066 = vmatpush2.bf16.msra.mxu0 %v3465
        %4067 = vmatprep.subr.bf16.mxu0 0
        %4068 = vmatpush2.bf16.msra.mxu0 %v3464
        %4069 = vmatprep.mubr.bf16.mxu0 %v2437
        %4070 = vmatmul.mubr.bf16.gmra.mxu0 %v2435
        %v4071 = vpop.f32.mrf.mxu0
        %v4072 = vadd.f32 %v4032, %v4071
        %v4073 = vpop.f32.mrf.mxu0
        %v4074 = vpop.f32.mrf.mxu0
        %v4075 = vpop.f32.mrf.mxu0
        %4076 = vdwg.mxu0
        %4077 = vmatprep.subr.bf16.mxu0 0
        %4078 = vmatpush1.bf16.msra.mxu0 %v3479
        %4079 = vmatprep.subr.bf16.mxu0 0
        %4080 = vmatpush1.bf16.msra.mxu0 %v3478
        %4081 = vmatprep.subr.bf16.mxu0 0
        %4082 = vmatpush1.bf16.msra.mxu0 %v3477
        %4083 = vmatprep.subr.bf16.mxu0 0
        %4084 = vmatpush1.bf16.msra.mxu0 %v3476
        %4085 = vmatprep.subr.bf16.mxu0 0
        %4086 = vmatpush1.bf16.msra.mxu0 %v3475
        %4087 = vmatprep.subr.bf16.mxu0 0
        %4088 = vmatpush1.bf16.msra.mxu0 %v3474
        %4089 = vmatprep.subr.bf16.mxu0 0
        %4090 = vmatpush1.bf16.msra.mxu0 %v3473
        %4091 = vmatprep.subr.bf16.mxu0 0
        %4092 = vmatpush1.bf16.msra.mxu0 %v3472
        %4093 = vmatprep.subr.bf16.mxu0 0
        %4094 = vmatpush2.bf16.msra.mxu0 %v3487
        %4095 = vmatprep.subr.bf16.mxu0 0
        %4096 = vmatpush2.bf16.msra.mxu0 %v3486
        %4097 = vmatprep.subr.bf16.mxu0 0
        %4098 = vmatpush2.bf16.msra.mxu0 %v3485
        %4099 = vmatprep.subr.bf16.mxu0 0
        %4100 = vmatpush2.bf16.msra.mxu0 %v3484
        %4101 = vmatprep.subr.bf16.mxu0 0
        %4102 = vmatpush2.bf16.msra.mxu0 %v3483
        %4103 = vmatprep.subr.bf16.mxu0 0
        %4104 = vmatpush2.bf16.msra.mxu0 %v3482
        %4105 = vmatprep.subr.bf16.mxu0 0
        %4106 = vmatpush2.bf16.msra.mxu0 %v3481
        %4107 = vmatprep.subr.bf16.mxu0 0
        %4108 = vmatpush2.bf16.msra.mxu0 %v3480
        %4109 = vmatprep.mubr.bf16.mxu0 %v2475
        %4110 = vmatmul.mubr.bf16.gmra.mxu0 %v2461
        %v4111 = vpop.f32.mrf.mxu0
        %v4112 = vadd.f32 %v4072, %v4111
        %v4113 = vpop.f32.mrf.mxu0
        %v4114 = vpop.f32.mrf.mxu0
        %v4115 = vpop.f32.mrf.mxu0
        %4116 = vdwg.mxu0
        %4117 = vmatprep.subr.bf16.mxu0 0
        %4118 = vmatpush1.bf16.msra.mxu0 %v3495
        %4119 = vmatprep.subr.bf16.mxu0 0
        %4120 = vmatpush1.bf16.msra.mxu0 %v3494
        %4121 = vmatprep.subr.bf16.mxu0 0
        %4122 = vmatpush1.bf16.msra.mxu0 %v3493
        %4123 = vmatprep.subr.bf16.mxu0 0
        %4124 = vmatpush1.bf16.msra.mxu0 %v3492
        %4125 = vmatprep.subr.bf16.mxu0 0
        %4126 = vmatpush1.bf16.msra.mxu0 %v3491
        %4127 = vmatprep.subr.bf16.mxu0 0
        %4128 = vmatpush1.bf16.msra.mxu0 %v3490
        %4129 = vmatprep.subr.bf16.mxu0 0
        %4130 = vmatpush1.bf16.msra.mxu0 %v3489
        %4131 = vmatprep.subr.bf16.mxu0 0
        %4132 = vmatpush1.bf16.msra.mxu0 %v3488
        %4133 = vmatprep.subr.bf16.mxu0 0
        %4134 = vmatpush2.bf16.msra.mxu0 %v3503
        %4135 = vmatprep.subr.bf16.mxu0 0
        %4136 = vmatpush2.bf16.msra.mxu0 %v3502
        %4137 = vmatprep.subr.bf16.mxu0 0
        %4138 = vmatpush2.bf16.msra.mxu0 %v3501
        %4139 = vmatprep.subr.bf16.mxu0 0
        %4140 = vmatpush2.bf16.msra.mxu0 %v3500
        %4141 = vmatprep.subr.bf16.mxu0 0
        %4142 = vmatpush2.bf16.msra.mxu0 %v3499
        %4143 = vmatprep.subr.bf16.mxu0 0
        %4144 = vmatpush2.bf16.msra.mxu0 %v3498
        %4145 = vmatprep.subr.bf16.mxu0 0
        %4146 = vmatpush2.bf16.msra.mxu0 %v3497
        %4147 = vmatprep.subr.bf16.mxu0 0
        %4148 = vmatpush2.bf16.msra.mxu0 %v3496
        %4149 = vmatprep.mubr.bf16.mxu0 %v2485
        %4150 = vmatmul.mubr.bf16.gmra.mxu0 %v2483
        %v4151 = vpop.f32.mrf.mxu0
        %v4152 = vadd.f32 %v4112, %v4151
        %v4153 = vpop.f32.mrf.mxu0
        %v4154 = vpop.f32.mrf.mxu0
        %v4155 = vpop.f32.mrf.mxu0
        %4156 = vdwg.mxu0
        %4157 = vmatprep.subr.bf16.mxu0 0
        %4158 = vmatpush1.bf16.msra.mxu0 %v3511
        %4159 = vmatprep.subr.bf16.mxu0 0
        %4160 = vmatpush1.bf16.msra.mxu0 %v3510
        %4161 = vmatprep.subr.bf16.mxu0 0
        %4162 = vmatpush1.bf16.msra.mxu0 %v3509
        %4163 = vmatprep.subr.bf16.mxu0 0
        %4164 = vmatpush1.bf16.msra.mxu0 %v3508
        %4165 = vmatprep.subr.bf16.mxu0 0
        %4166 = vmatpush1.bf16.msra.mxu0 %v3507
        %4167 = vmatprep.subr.bf16.mxu0 0
        %4168 = vmatpush1.bf16.msra.mxu0 %v3506
        %4169 = vmatprep.subr.bf16.mxu0 0
        %4170 = vmatpush1.bf16.msra.mxu0 %v3505
        %4171 = vmatprep.subr.bf16.mxu0 0
        %4172 = vmatpush1.bf16.msra.mxu0 %v3504
        %4173 = vmatprep.subr.bf16.mxu0 0
        %4174 = vmatpush2.bf16.msra.mxu0 %v3519
        %4175 = vmatprep.subr.bf16.mxu0 0
        %4176 = vmatpush2.bf16.msra.mxu0 %v3518
        %4177 = vmatprep.subr.bf16.mxu0 0
        %4178 = vmatpush2.bf16.msra.mxu0 %v3517
        %4179 = vmatprep.subr.bf16.mxu0 0
        %4180 = vmatpush2.bf16.msra.mxu0 %v3516
        %4181 = vmatprep.subr.bf16.mxu0 0
        %4182 = vmatpush2.bf16.msra.mxu0 %v3515
        %4183 = vmatprep.subr.bf16.mxu0 0
        %4184 = vmatpush2.bf16.msra.mxu0 %v3514
        %4185 = vmatprep.subr.bf16.mxu0 0
        %4186 = vmatpush2.bf16.msra.mxu0 %v3513
        %4187 = vmatprep.subr.bf16.mxu0 0
        %4188 = vmatpush2.bf16.msra.mxu0 %v3512
        %4189 = vmatprep.mubr.bf16.mxu0 %v2482
        %4190 = vmatmul.mubr.bf16.gmra.mxu0 %v2468
        %v4191 = vpop.f32.mrf.mxu0
        %v4192 = vadd.f32 %v4152, %v4191
        %v4193 = vpop.f32.mrf.mxu0
        %v4194 = vpop.f32.mrf.mxu0
        %v4195 = vpop.f32.mrf.mxu0
        %4196 = vdwg.mxu0
        %4197 = vmatprep.subr.bf16.mxu0 0
        %4198 = vmatpush1.bf16.msra.mxu0 %v3527
        %4199 = vmatprep.subr.bf16.mxu0 0
        %4200 = vmatpush1.bf16.msra.mxu0 %v3526
        %4201 = vmatprep.subr.bf16.mxu0 0
        %4202 = vmatpush1.bf16.msra.mxu0 %v3525
        %4203 = vmatprep.subr.bf16.mxu0 0
        %4204 = vmatpush1.bf16.msra.mxu0 %v3524
        %4205 = vmatprep.subr.bf16.mxu0 0
        %4206 = vmatpush1.bf16.msra.mxu0 %v3523
        %4207 = vmatprep.subr.bf16.mxu0 0
        %4208 = vmatpush1.bf16.msra.mxu0 %v3522
        %4209 = vmatprep.subr.bf16.mxu0 0
        %4210 = vmatpush1.bf16.msra.mxu0 %v3521
        %4211 = vmatprep.subr.bf16.mxu0 0
        %4212 = vmatpush1.bf16.msra.mxu0 %v3520
        %4213 = vmatprep.subr.bf16.mxu0 0
        %4214 = vmatpush2.bf16.msra.mxu0 %v3535
        %4215 = vmatprep.subr.bf16.mxu0 0
        %4216 = vmatpush2.bf16.msra.mxu0 %v3534
        %4217 = vmatprep.subr.bf16.mxu0 0
        %4218 = vmatpush2.bf16.msra.mxu0 %v3533
        %4219 = vmatprep.subr.bf16.mxu0 0
        %4220 = vmatpush2.bf16.msra.mxu0 %v3532
        %4221 = vmatprep.subr.bf16.mxu0 0
        %4222 = vmatpush2.bf16.msra.mxu0 %v3531
        %4223 = vmatprep.subr.bf16.mxu0 0
        %4224 = vmatpush2.bf16.msra.mxu0 %v3530
        %4225 = vmatprep.subr.bf16.mxu0 0
        %4226 = vmatpush2.bf16.msra.mxu0 %v3529
        %4227 = vmatprep.subr.bf16.mxu0 0
        %4228 = vmatpush2.bf16.msra.mxu0 %v3528
        %4229 = vmatprep.mubr.bf16.mxu0 %v2486
        %4230 = vmatmul.mubr.bf16.gmra.mxu0 %v2484
        %v4231 = vpop.f32.mrf.mxu0
        %v4232 = vadd.f32 %v4192, %v4231
        %v4233 = vpop.f32.mrf.mxu0
        %v4234 = vpop.f32.mrf.mxu0
        %v4235 = vpop.f32.mrf.mxu0
        %4236 = vdwg.mxu0
        %4237 = vmatprep.subr.bf16.mxu0 0
        %4238 = vmatpush1.bf16.msra.mxu0 %v3543
        %4239 = vmatprep.subr.bf16.mxu0 0
        %4240 = vmatpush1.bf16.msra.mxu0 %v3542
        %4241 = vmatprep.subr.bf16.mxu0 0
        %4242 = vmatpush1.bf16.msra.mxu0 %v3541
        %4243 = vmatprep.subr.bf16.mxu0 0
        %4244 = vmatpush1.bf16.msra.mxu0 %v3540
        %4245 = vmatprep.subr.bf16.mxu0 0
        %4246 = vmatpush1.bf16.msra.mxu0 %v3539
        %4247 = vmatprep.subr.bf16.mxu0 0
        %4248 = vmatpush1.bf16.msra.mxu0 %v3538
        %4249 = vmatprep.subr.bf16.mxu0 0
        %4250 = vmatpush1.bf16.msra.mxu0 %v3537
        %4251 = vmatprep.subr.bf16.mxu0 0
        %4252 = vmatpush1.bf16.msra.mxu0 %v3536
        %4253 = vmatprep.subr.bf16.mxu0 0
        %4254 = vmatpush2.bf16.msra.mxu0 0
        %4255 = vmatprep.subr.bf16.mxu0 0
        %4256 = vmatpush2.bf16.msra.mxu0 0
        %4257 = vmatprep.subr.bf16.mxu0 0
        %4258 = vmatpush2.bf16.msra.mxu0 0
        %4259 = vmatprep.subr.bf16.mxu0 0
        %4260 = vmatpush2.bf16.msra.mxu0 0
        %4261 = vmatprep.subr.bf16.mxu0 0
        %4262 = vmatpush2.bf16.msra.mxu0 0
        %4263 = vmatprep.subr.bf16.mxu0 0
        %4264 = vmatpush2.bf16.msra.mxu0 %v3755
        %4265 = vmatprep.subr.bf16.mxu0 0
        %4266 = vmatpush2.bf16.msra.mxu0 %v3545
        %4267 = vmatprep.subr.bf16.mxu0 0
        %4268 = vmatpush2.bf16.msra.mxu0 %v3544
        %4269 = vmatprep.mubr.bf16.mxu0 %v3751
        %4270 = vmatmul.mubr.bf16.gmra.mxu0 %v2501
        %v4271 = vpop.f32.mrf.mxu0
        %v4272 = vadd.f32 %v4232, %v4271
        %v4273 = vpop.f32.mrf.mxu0
        %v4274 = vpop.f32.mrf.mxu0
        %v4275 = vpop.f32.mrf.mxu0
        %4276 = vdwg.mxu0
        %v4277 = vmax.f32 %v4272, 0.0
        %v4278 = vld [vmem:[#allocation3] sm:$0x3]
        %v4279 = vpack.c.bf16 %v4277, %v4277
        %v4280 = vld [vmem:[%s1904] sm:$0xf]
        %v4281 = vld [vmem:[%s1904 + $0x4] sm:$0xf]
        %v4282 = vld [vmem:[%s1904 + $0x8] sm:$0xf]
        %v4283 = vld [vmem:[%s1904 + $0xc] sm:$0xf]
        %v4284 = vld [vmem:[%s1904 + $0x10] sm:$0xf]
        %v4285 = vld [vmem:[%s1904 + $0x14] sm:$0xf]
        %v4286 = vld [vmem:[%s1904 + $0x18] sm:$0xf]
        %v4287 = vld [vmem:[%s1904 + $0x1c] sm:$0xf]
        %v4288 = vld [vmem:[%s1904 + $0x20] sm:$0xf]
        %v4289 = vld [vmem:[%s1904 + $0x24] sm:$0xf]
        %v4290 = vld [vmem:[%s1904 + $0x28] sm:$0xf]
        %v4291 = vld [vmem:[%s1904 + $0x2c] sm:$0xf]
        %v4292 = vld [vmem:[%s1904 + $0x30] sm:$0xf]
        %v4293 = vld [vmem:[%s1904 + $0x34] sm:$0xf]
        %v4294 = vld [vmem:[%s1904 + $0x38] sm:$0xf]
        %v4295 = vld [vmem:[%s1904 + $0x3c] sm:$0xf]
        %v4312 = vunpack.c.l.b16 %v4280
        %v4313 = vunpack.c.l.b16 %v4281
        %v4314 = vunpack.c.l.b16 %v4282
        %v4315 = vunpack.c.l.b16 %v4283
        %v4316 = vunpack.c.l.b16 %v4284
        %v4317 = vunpack.c.l.b16 %v4285
        %v4318 = vunpack.c.l.b16 %v4286
        %v4319 = vunpack.c.l.b16 %v4287
        %v4320 = vunpack.c.l.b16 %v4288
        %v4321 = vunpack.c.l.b16 %v4289
        %v4322 = vunpack.c.l.b16 %v4290
        %v4323 = vunpack.c.l.b16 %v4291
        %v4324 = vunpack.c.l.b16 %v4292
        %v4325 = vunpack.c.l.b16 %v4293
        %v4326 = vunpack.c.l.b16 %v4294
        %v4327 = vunpack.c.l.b16 %v4295
        %v4328 = vpack.c.b16 %v4313, %v4312
        %v4329 = vpack.c.b16 %v4315, %v4314
        %v4330 = vpack.c.b16 %v4317, %v4316
        %v4331 = vpack.c.b16 %v4319, %v4318
        %v4332 = vpack.c.b16 %v4321, %v4320
        %v4333 = vpack.c.b16 %v4323, %v4322
        %v4334 = vpack.c.b16 %v4325, %v4324
        %v4335 = vpack.c.b16 %v4327, %v4326
        %4344 = vmatprep.subr.bf16.mxu0 0
        %4345 = vmatpush1.bf16.msra.mxu0 %v4335
        %4346 = vmatprep.subr.bf16.mxu0 0
        %4347 = vmatpush1.bf16.msra.mxu0 %v4334
        %4348 = vmatprep.subr.bf16.mxu0 0
        %4349 = vmatpush1.bf16.msra.mxu0 %v4333
        %4350 = vmatprep.subr.bf16.mxu0 0
        %4351 = vmatpush1.bf16.msra.mxu0 %v4332
        %4352 = vmatprep.subr.bf16.mxu0 0
        %4353 = vmatpush1.bf16.msra.mxu0 %v4331
        %4354 = vmatprep.subr.bf16.mxu0 0
        %4355 = vmatpush1.bf16.msra.mxu0 %v4330
        %4356 = vmatprep.subr.bf16.mxu0 0
        %4357 = vmatpush1.bf16.msra.mxu0 %v4329
        %4358 = vmatprep.subr.bf16.mxu0 0
        %4359 = vmatpush1.bf16.msra.mxu0 %v4328
        %4360 = vmatprep.subr.bf16.mxu0 0
        %4361 = vmatpush2.bf16.msra.mxu0 0
        %4362 = vmatprep.subr.bf16.mxu0 0
        %4363 = vmatpush2.bf16.msra.mxu0 0
        %4364 = vmatprep.subr.bf16.mxu0 0
        %4365 = vmatpush2.bf16.msra.mxu0 0
        %4366 = vmatprep.subr.bf16.mxu0 0
        %4367 = vmatpush2.bf16.msra.mxu0 0
        %4368 = vmatprep.subr.bf16.mxu0 0
        %4369 = vmatpush2.bf16.msra.mxu0 0
        %4370 = vmatprep.subr.bf16.mxu0 0
        %4371 = vmatpush2.bf16.msra.mxu0 0
        %4372 = vmatprep.subr.bf16.mxu0 0
        %4373 = vmatpush2.bf16.msra.mxu0 0
        %4374 = vmatprep.subr.bf16.mxu0 0
        %4375 = vmatpush2.bf16.msra.mxu0 0
        %4376 = vmatprep.mubr.bf16.mxu0 0
        %4377 = vmatmul.mubr.bf16.gmra.mxu0 %v4279
        %v4378 = vpop.f32.mrf.mxu0
        %v4379 = vadd.f32 0.0, %v4378
        %v4380 = vpop.f32.mrf.mxu0
        %v4381 = vpop.f32.mrf.mxu0
        %v4382 = vpop.f32.mrf.mxu0
        %4383 = vdwg.mxu0
        %v4384 = vadd.f32 %v4278, %v4379
        %vm4385 = vcmask 25600
        %4386 = vst.msk [vmem:[#allocation3] sm:$0x3] %vm4385, %v4384
        // Predicated region
        $region86: #{forward.7} parent=76 // pred_check
          %p4387 = pneg %p150
        $region87: #{forward.7} parent=76 // pred_check_branch
          %4389 = sbr.rel (%p4387) target = $region89
        $region88: #{forward.7} parent=76 // pred_region
          %s4391 = ssub.s32 32, 32
          %4392 = vsyncadd [#allocation4], %s4391
          %s4394 = sshll.u32 [#allocation3], 4
          %s4395 = int_to_ptr.vmem [resolvable:$true] %s4394
          %4397 = dma.vmem_to_hbm [thread:$0]  %s4395, 32, %s5, [#allocation4]
        $region89: #{forward.7} parent=76 // pred_fallthru
          _
        // Predicated region
        $region90: #{forward.7} parent=76 // pred_check
          %p4398 = pneg %p150
        $region91: #{forward.7} parent=76 // pred_check_branch
          %4400 = sbr.rel (%p4398) target = $region93
        $region92: #{forward.7} parent=76 // pred_region
          %4401 = dma.done [#allocation4], 32
        $region93: #{forward.7} parent=76 // pred_fallthru
          _
      $region77: #{forward.7} parent=5 // pred_fallthru
        _
      %p4402 = scmp.le.s32.totalorder 2, %s12
      // Predicated region
      $region94: #{forward.7} parent=5 // pred_check
        %p4403 = pneg %p4402
      $region95: #{forward.7} parent=5 // pred_check_branch
        %4405 = sbr.rel (%p4403) target = $region97
      $region96: #{forward.7} parent=5 // pred_region
        %s4406 = ssub.s32 %s12, 2
      $region97: #{forward.7} parent=5 // pred_fallthru
        _
    $region6: #{forward.7} parent=1 // loop_footer
      %s16 = sadd.s32 1, %s12
    $region7: #{forward.7} parent=1 // loop_footer_branch
      %11 = sbr.rel target = $region3
    $region8: #{forward.7} parent=1 // loop_exit
      _
    %4407 = vsyncpa [#allocation4], 1
    %s4408 = scalar_lea.sflag [#allocation4], 1
    %4409 = vsyncpa %s4408, 1

</llo_original>
